<compile_context>
chip_gen: v7x
topology: tpu7x:2x2x1
jax: 0.10.0
libtpu: 0.0.40
codegen_flags: <defaults>
</compile_context>

<pallas_src>
import functools

import jax
import jax.numpy as jnp
import numpy as np
from jax import lax
from jax.experimental import pallas as pl
from jax.experimental.pallas import tpu as pltpu


def _round_up(a, b):
    return ((a + b - 1) // b) * b


# ----------------------------------------------------------------------------
# Fused Pallas kernel: convT(3,3,s3) -> conv3x3+BN+ReLU -> conv3x3+BN+act
# Layout inside the kernel: channels on sublanes, flattened (row, padded-col)
# raster on lanes.  One grid step == one image.
# ----------------------------------------------------------------------------
def _decoder_kernel(x_ref, a_ref, w1_ref, b1_ref, w2_ref, b2_ref, tgt_ref,
                    mask_ref, o_ref, up_scr, c1_scr, *,
                    H, W, cin, cout, lead, activation):
    H3, W3 = 3 * H, 3 * W
    Wp = W3 + 2                  # padded width of the upsampled image
    HW = H * W
    M = H3 * Wp                  # contiguous conv "slab" length
    UPW = up_scr.shape[1]

    x = x_ref[0]                                            # (cin+1, HW) bf16

    # ---- ConvTranspose2d(k=3, s=3) + bias, scattered into the zero-padded
    #      flattened 3H x 3W image.  The scatter (pixel shuffle) is a matmul
    #      with a 0/1 matrix built from an iota and a precomputed target table,
    #      so the MXU does the shuffle and nothing round-trips through HBM.
    d_idx = lax.broadcasted_iota(jnp.int32, (HW, UPW), 1)
    up = jnp.zeros((cin, UPW), jnp.float32)
    for k in range(9):                                       # k = ki*3 + kj
        y = jnp.dot(a_ref[k], x, preferred_element_type=jnp.float32)  # (cin, HW)
        e = (d_idx == tgt_ref[k]).astype(jnp.bfloat16)       # (HW, UPW) 0/1
        up = up + jnp.dot(y.astype(jnp.bfloat16), e,
                          preferred_element_type=jnp.float32)
    up_scr[...] = up.astype(jnp.bfloat16)

    # ---- Conv3x3 (pad=1) + folded BN + ReLU: 9 shifted-slab matmuls ----
    acc1 = jnp.zeros((cout, M), jnp.float32)
    for dh in range(3):
        for dw in range(3):
            acc1 = acc1 + jnp.dot(
                w1_ref[dh * 3 + dw],
                up_scr[:, pl.ds(dh * Wp + dw, M)],
                preferred_element_type=jnp.float32)
    acc1 = jnp.maximum(acc1 + b1_ref[...], 0.0) * mask_ref[...]

    # stash conv1 result as the (zero-ring-padded) image for conv2
    c1_scr[...] = jnp.zeros(c1_scr.shape, c1_scr.dtype)
    c1_scr[:, pl.ds(lead, M)] = acc1.astype(jnp.bfloat16)

    # ---- Conv3x3 (pad=1) + folded BN + ReLU/Sigmoid ----
    base = lead - (Wp + 1)
    acc2 = jnp.zeros((cout, M), jnp.float32)
    for dh in range(3):
        for dw in range(3):
            acc2 = acc2 + jnp.dot(
                w2_ref[dh * 3 + dw],
                c1_scr[:, pl.ds(base + dh * Wp + dw, M)],
                preferred_element_type=jnp.float32)
    acc2 = acc2 + b2_ref[...]
    if activation == "relu":
        acc2 = jnp.maximum(acc2, 0.0)
    else:
        acc2 = 1.0 / (1.0 + jnp.exp(-acc2))

    # ---- write NCHW rows (strip the 2 padding columns of every image row);
    #      the HBM DMA of the output block is dense NCHW.
    for r in range(H3):
        o_ref[0, :, r, :] = acc2[:, r * Wp: r * Wp + W3]


# ----------------------------------------------------------------------------
# Wrapper: parameter folding + tiny index tables, then one fused pallas_call.
# ----------------------------------------------------------------------------
def same_decoder(x_nchw, p, out_activation="relu", eps=1e-5):
    """Forward of _SameDecoder.  Input/output NCHW like PyTorch."""
    f32, bf16 = jnp.float32, jnp.bfloat16
    N, Cin, H, W = x_nchw.shape
    Co = p["w1"].shape[0]
    H3, W3 = 3 * H, 3 * W
    Wp = W3 + 2
    HW = H * W
    M = H3 * Wp
    NPAD = (H3 + 2) * Wp
    UPW = _round_up(NPAD + 2, 128)
    LEAD = _round_up(Wp + 1, 128)
    C1W = _round_up(LEAD + M + Wp + 2, 128)

    # ConvTranspose weights, per (ki,kj) tap, with the bias as an extra column
    # (paired with a ones-row on the input) so the bias only lands on the
    # interior of the zero-padded upsampled image.
    A = jnp.transpose(p["wt"], (2, 3, 1, 0)).reshape(9, Cin, Cin)
    A_aug = jnp.concatenate(
        [A, jnp.broadcast_to(p["bt"][None, :, None], (9, Cin, 1))],
        axis=2).astype(bf16)                                  # (9, Cin, Cin+1)

    def fold(w, b, g, be, m, v):
        s = g / jnp.sqrt(v + eps)
        wf = w * s[:, None, None, None]
        bf = (b - m) * s + be
        co, ci = w.shape[0], w.shape[1]
        taps = jnp.transpose(wf, (2, 3, 0, 1)).reshape(9, co, ci)  # (dh*3+dw, co, ci)
        return taps.astype(bf16), bf.reshape(co, 1).astype(f32)

    W1t, b1f = fold(p["w1"], p["b1"], p["g1"], p["be1"], p["m1"], p["v1"])
    W2t, b2f = fold(p["w2"], p["b2"], p["g2"], p["be2"], p["m2"], p["v2"])

    # scatter target table: flat padded-image index for source pixel s=(i,j)
    # and tap k=(ki,kj).
    ii, jj = jnp.meshgrid(jnp.arange(H, dtype=jnp.int32),
                          jnp.arange(W, dtype=jnp.int32), indexing="ij")
    src_base = ((1 + 3 * ii) * Wp + (1 + 3 * jj)).reshape(1, HW)
    offs = jnp.array([[ki * Wp + kj] for ki in range(3) for kj in range(3)],
                     dtype=jnp.int32)                          # (9, 1)
    tgt = (src_base + offs).reshape(9, HW, 1).astype(jnp.int32)

    # validity mask over the conv slab (zeroes the 2 wrap-around pad columns)
    col = jnp.arange(M, dtype=jnp.int32) % Wp
    col_mask = (col < W3).astype(f32).reshape(1, M)

    # input: NCHW consumed directly -> (N, Cin, H*W) + ones row, bf16
    x_aug = jnp.concatenate(
        [x_nchw.reshape(N, Cin, HW), jnp.ones((N, 1, HW), x_nchw.dtype)],
        axis=1).astype(bf16)                                   # (N, Cin+1, HW)

    act = "relu" if out_activation == "relu" else "sigmoid"
    kernel = functools.partial(_decoder_kernel, H=H, W=W, cin=Cin, cout=Co,
                               lead=LEAD, activation=act)

    # TODO(synk): for large images, add a row-band grid axis (with a 1-row
    # input halo via manual DMA) so the VMEM-resident slabs stay under the
    # v7x 64 MiB budget; whole-image-per-step is fine at these sizes.
    out = pl.pallas_call(
        kernel,
        out_shape=jax.ShapeDtypeStruct((N, Co, H3, W3), f32),
        grid=(N,),
        in_specs=[
            pl.BlockSpec((1, Cin + 1, HW), lambda n: (n, 0, 0)),
            pl.BlockSpec((9, Cin, Cin + 1), lambda n: (0, 0, 0)),
            pl.BlockSpec((9, Co, Cin), lambda n: (0, 0, 0)),
            pl.BlockSpec((Co, 1), lambda n: (0, 0)),
            pl.BlockSpec((9, Co, Co), lambda n: (0, 0, 0)),
            pl.BlockSpec((Co, 1), lambda n: (0, 0)),
            pl.BlockSpec((9, HW, 1), lambda n: (0, 0, 0)),
            pl.BlockSpec((1, M), lambda n: (0, 0)),
        ],
        out_specs=pl.BlockSpec((1, Co, H3, W3), lambda n: (n, 0, 0, 0)),
        scratch_shapes=[
            pltpu.VMEM((Cin, UPW), bf16),   # padded upsampled image
            pltpu.VMEM((Co, C1W), bf16),    # padded conv1 output image
        ],
        compiler_params=pltpu.CompilerParams(
            dimension_semantics=("parallel",),
            vmem_limit_bytes=32 << 20,
        ),
    )(x_aug, A_aug, W1t, b1f, W2t, b2f, tgt, col_mask)
    return out


# ----------------------------------------------------------------------------
# Deterministic synthetic parameters (shapes from _SameDecoder.__init__)
# ----------------------------------------------------------------------------
def init_params(key, cin, cout):
    ks = jax.random.split(key, 16)
    f32 = jnp.float32
    return {
        "wt": 0.1 * jax.random.normal(ks[0], (cin, cin, 3, 3), f32),
        "bt": 0.05 * jax.random.normal(ks[1], (cin,), f32),
        "w1": 0.1 * jax.random.normal(ks[2], (cout, cin, 3, 3), f32),
        "b1": 0.05 * jax.random.normal(ks[3], (cout,), f32),
        "g1": 1.0 + 0.1 * jax.random.normal(ks[4], (cout,), f32),
        "be1": 0.05 * jax.random.normal(ks[5], (cout,), f32),
        "m1": 0.05 * jax.random.normal(ks[6], (cout,), f32),
        "v1": 0.5 + jax.random.uniform(ks[7], (cout,), f32),
        "w2": 0.1 * jax.random.normal(ks[8], (cout, cout, 3, 3), f32),
        "b2": 0.05 * jax.random.normal(ks[9], (cout,), f32),
        "g2": 1.0 + 0.1 * jax.random.normal(ks[10], (cout,), f32),
        "be2": 0.05 * jax.random.normal(ks[11], (cout,), f32),
        "m2": 0.05 * jax.random.normal(ks[12], (cout,), f32),
        "v2": 0.5 + jax.random.uniform(ks[13], (cout,), f32),
    }


# ----------------------------------------------------------------------------
# Pure-JAX reference (NCHW, no Pallas) for correctness check
# ----------------------------------------------------------------------------
def _ref_bn(y, g, b, m, v, eps):
    return ((y - m[None, :, None, None])
            / jnp.sqrt(v[None, :, None, None] + eps)
            * g[None, :, None, None] + b[None, :, None, None])


def ref_same_decoder(x, p, out_activation="relu", eps=1e-5):
    N, Ci, H, W = x.shape
    y = jnp.einsum("nihw,iokl->nohkwl", x, p["wt"]).reshape(N, Ci, 3 * H, 3 * W)
    y = y + p["bt"][None, :, None, None]

    def conv(z, w, b):
        o = lax.conv_general_dilated(z, w, (1, 1), ((1, 1), (1, 1)),
                                     dimension_numbers=("NCHW", "OIHW", "NCHW"))
        return o + b[None, :, None, None]

    y = conv(y, p["w1"], p["b1"])
    y = jnp.maximum(_ref_bn(y, p["g1"], p["be1"], p["m1"], p["v1"], eps), 0.0)
    y = conv(y, p["w2"], p["b2"])
    y = _ref_bn(y, p["g2"], p["be2"], p["m2"], p["v2"], eps)
    if out_activation == "relu":
        y = jnp.maximum(y, 0.0)
    else:
        y = jax.nn.sigmoid(y)
    return y


if __name__ == "__main__":
    key = jax.random.PRNGKey(0)
    kx, kp = jax.random.split(key)

    N, Cin, Cout, H, W = 2, 4, 8, 8, 8
    x = jax.random.normal(kx, (N, Cin, H, W), jnp.float32)
    params = init_params(kp, Cin, Cout)

    out = jax.jit(same_decoder)(x, params)
    out = jax.block_until_ready(out)

    assert out.shape == (N, Cout, 3 * H, 3 * W), out.shape

    ref = ref_same_decoder(x, params)
    # bf16 matmul operands with f32 accumulation -> loosened tolerances.
    np.testing.assert_allclose(np.asarray(out), np.asarray(ref),
                               rtol=2e-2, atol=1e-2)
    print("KERNEL_OK")
</pallas_src>

<mosaic_0001>
module attributes {stable_mosaic.version = 11 : i64} {
  func.func @_decoder_kernel(%arg0: i32, %arg1: memref<1x5x64xbf16, #tpu.memory_space<vmem>>, %arg2: memref<9x4x5xbf16, #tpu.memory_space<vmem>>, %arg3: memref<9x8x4xbf16, #tpu.memory_space<vmem>>, %arg4: memref<8x1xf32, #tpu.memory_space<vmem>>, %arg5: memref<9x8x8xbf16, #tpu.memory_space<vmem>>, %arg6: memref<8x1xf32, #tpu.memory_space<vmem>>, %arg7: memref<9x64x1xi32, #tpu.memory_space<vmem>>, %arg8: memref<1x624xf32, #tpu.memory_space<vmem>>, %arg9: memref<1x8x24x24xf32, #tpu.memory_space<vmem>>, %arg10: memref<4x768xbf16, #tpu.memory_space<vmem>>, %arg11: memref<8x896xbf16, #tpu.memory_space<vmem>>) attributes {dimension_semantics = [#tpu.dimension_semantics<parallel>], iteration_bounds = array<i64: 2>, scalar_prefetch = 0 : i64, scratch_operands = 2 : i64, tpu.core_type = #tpu.core_type<tc>, window_params = [{transform_indices = @transform_0, window_bounds = array<i64: 1, 5, 64>}, {pipeline_mode = #tpu.pipeline_mode<synchronous>, transform_indices = @transform_1, window_bounds = array<i64: 9, 4, 5>}, {pipeline_mode = #tpu.pipeline_mode<synchronous>, transform_indices = @transform_2, window_bounds = array<i64: 9, 8, 4>}, {pipeline_mode = #tpu.pipeline_mode<synchronous>, transform_indices = @transform_3, window_bounds = array<i64: 8, 1>}, {pipeline_mode = #tpu.pipeline_mode<synchronous>, transform_indices = @transform_4, window_bounds = array<i64: 9, 8, 8>}, {pipeline_mode = #tpu.pipeline_mode<synchronous>, transform_indices = @transform_5, window_bounds = array<i64: 8, 1>}, {pipeline_mode = #tpu.pipeline_mode<synchronous>, transform_indices = @transform_6, window_bounds = array<i64: 9, 64, 1>}, {pipeline_mode = #tpu.pipeline_mode<synchronous>, transform_indices = @transform_7, window_bounds = array<i64: 1, 624>}, {transform_indices = @transform_8, window_bounds = array<i64: 1, 8, 24, 24>}]} {
    %c0 = arith.constant 0 : index
    %c0_0 = arith.constant 0 : index
    %c0_1 = arith.constant 0 : index
    %0 = vector.load %arg1[%c0, %c0_0, %c0_1] : memref<1x5x64xbf16, #tpu.memory_space<vmem>>, vector<1x5x64xbf16>
    %1 = vector.shape_cast %0 : vector<1x5x64xbf16> to vector<5x64xbf16>
    %2 = tpu.iota {dimensions = array<i32: 1>} : vector<64x768xi32>
    %cst = arith.constant 0.000000e+00 : f32
    %3 = vector.broadcast %cst : f32 to vector<4x768xf32>
    %c0_2 = arith.constant 0 : index
    %c0_3 = arith.constant 0 : index
    %c0_4 = arith.constant 0 : index
    %4 = vector.load %arg2[%c0_2, %c0_3, %c0_4] : memref<9x4x5xbf16, #tpu.memory_space<vmem>>, vector<1x4x5xbf16>
    %5 = vector.shape_cast %4 : vector<1x4x5xbf16> to vector<4x5xbf16>
    %cst_5 = arith.constant dense<0.000000e+00> : vector<4x64xf32>
    %6 = tpu.matmul %5, %1, %cst_5 {dimension_numbers = #tpu.dot_dimension_numbers<[1], [0], [0], [1], [0, 0, 1, 1], [], []>} : vector<4x5xbf16>, vector<5x64xbf16>, vector<4x64xf32> -> vector<4x64xf32>
    %c0_6 = arith.constant 0 : index
    %c0_7 = arith.constant 0 : index
    %c0_8 = arith.constant 0 : index
    %7 = vector.load %arg7[%c0_6, %c0_7, %c0_8] : memref<9x64x1xi32, #tpu.memory_space<vmem>>, vector<1x64x1xi32>
    %8 = vector.shape_cast %7 : vector<1x64x1xi32> to vector<64x1xi32>
    %9 = vector.broadcast %8 : vector<64x1xi32> to vector<64x768xi32>
    %10 = arith.cmpi eq, %2, %9 : vector<64x768xi32>
    %11 = arith.extui %10 : vector<64x768xi1> to vector<64x768xi32>
    %12 = arith.sitofp %11 : vector<64x768xi32> to vector<64x768xf32>
    %13 = arith.truncf %12 : vector<64x768xf32> to vector<64x768xbf16>
    %14 = arith.truncf %6 : vector<4x64xf32> to vector<4x64xbf16>
    %cst_9 = arith.constant dense<0.000000e+00> : vector<4x768xf32>
    %15 = tpu.matmul %14, %13, %cst_9 {dimension_numbers = #tpu.dot_dimension_numbers<[1], [0], [0], [1], [0, 0, 1, 1], [], []>} : vector<4x64xbf16>, vector<64x768xbf16>, vector<4x768xf32> -> vector<4x768xf32>
    %16 = arith.addf %3, %15 : vector<4x768xf32>
    %c1 = arith.constant 1 : index
    %c0_10 = arith.constant 0 : index
    %c0_11 = arith.constant 0 : index
    %17 = vector.load %arg2[%c1, %c0_10, %c0_11] : memref<9x4x5xbf16, #tpu.memory_space<vmem>>, vector<1x4x5xbf16>
    %18 = vector.shape_cast %17 : vector<1x4x5xbf16> to vector<4x5xbf16>
    %cst_12 = arith.constant dense<0.000000e+00> : vector<4x64xf32>
    %19 = tpu.matmul %18, %1, %cst_12 {dimension_numbers = #tpu.dot_dimension_numbers<[1], [0], [0], [1], [0, 0, 1, 1], [], []>} : vector<4x5xbf16>, vector<5x64xbf16>, vector<4x64xf32> -> vector<4x64xf32>
    %c1_13 = arith.constant 1 : index
    %c0_14 = arith.constant 0 : index
    %c0_15 = arith.constant 0 : index
    %20 = vector.load %arg7[%c1_13, %c0_14, %c0_15] : memref<9x64x1xi32, #tpu.memory_space<vmem>>, vector<1x64x1xi32>
    %21 = vector.shape_cast %20 : vector<1x64x1xi32> to vector<64x1xi32>
    %22 = vector.broadcast %21 : vector<64x1xi32> to vector<64x768xi32>
    %23 = arith.cmpi eq, %2, %22 : vector<64x768xi32>
    %24 = arith.extui %23 : vector<64x768xi1> to vector<64x768xi32>
    %25 = arith.sitofp %24 : vector<64x768xi32> to vector<64x768xf32>
    %26 = arith.truncf %25 : vector<64x768xf32> to vector<64x768xbf16>
    %27 = arith.truncf %19 : vector<4x64xf32> to vector<4x64xbf16>
    %cst_16 = arith.constant dense<0.000000e+00> : vector<4x768xf32>
    %28 = tpu.matmul %27, %26, %cst_16 {dimension_numbers = #tpu.dot_dimension_numbers<[1], [0], [0], [1], [0, 0, 1, 1], [], []>} : vector<4x64xbf16>, vector<64x768xbf16>, vector<4x768xf32> -> vector<4x768xf32>
    %29 = arith.addf %16, %28 : vector<4x768xf32>
    %c2 = arith.constant 2 : index
    %c0_17 = arith.constant 0 : index
    %c0_18 = arith.constant 0 : index
    %30 = vector.load %arg2[%c2, %c0_17, %c0_18] : memref<9x4x5xbf16, #tpu.memory_space<vmem>>, vector<1x4x5xbf16>
    %31 = vector.shape_cast %30 : vector<1x4x5xbf16> to vector<4x5xbf16>
    %cst_19 = arith.constant dense<0.000000e+00> : vector<4x64xf32>
    %32 = tpu.matmul %31, %1, %cst_19 {dimension_numbers = #tpu.dot_dimension_numbers<[1], [0], [0], [1], [0, 0, 1, 1], [], []>} : vector<4x5xbf16>, vector<5x64xbf16>, vector<4x64xf32> -> vector<4x64xf32>
    %c2_20 = arith.constant 2 : index
    %c0_21 = arith.constant 0 : index
    %c0_22 = arith.constant 0 : index
    %33 = vector.load %arg7[%c2_20, %c0_21, %c0_22] : memref<9x64x1xi32, #tpu.memory_space<vmem>>, vector<1x64x1xi32>
    %34 = vector.shape_cast %33 : vector<1x64x1xi32> to vector<64x1xi32>
    %35 = vector.broadcast %34 : vector<64x1xi32> to vector<64x768xi32>
    %36 = arith.cmpi eq, %2, %35 : vector<64x768xi32>
    %37 = arith.extui %36 : vector<64x768xi1> to vector<64x768xi32>
    %38 = arith.sitofp %37 : vector<64x768xi32> to vector<64x768xf32>
    %39 = arith.truncf %38 : vector<64x768xf32> to vector<64x768xbf16>
    %40 = arith.truncf %32 : vector<4x64xf32> to vector<4x64xbf16>
    %cst_23 = arith.constant dense<0.000000e+00> : vector<4x768xf32>
    %41 = tpu.matmul %40, %39, %cst_23 {dimension_numbers = #tpu.dot_dimension_numbers<[1], [0], [0], [1], [0, 0, 1, 1], [], []>} : vector<4x64xbf16>, vector<64x768xbf16>, vector<4x768xf32> -> vector<4x768xf32>
    %42 = arith.addf %29, %41 : vector<4x768xf32>
    %c3 = arith.constant 3 : index
    %c0_24 = arith.constant 0 : index
    %c0_25 = arith.constant 0 : index
    %43 = vector.load %arg2[%c3, %c0_24, %c0_25] : memref<9x4x5xbf16, #tpu.memory_space<vmem>>, vector<1x4x5xbf16>
    %44 = vector.shape_cast %43 : vector<1x4x5xbf16> to vector<4x5xbf16>
    %cst_26 = arith.constant dense<0.000000e+00> : vector<4x64xf32>
    %45 = tpu.matmul %44, %1, %cst_26 {dimension_numbers = #tpu.dot_dimension_numbers<[1], [0], [0], [1], [0, 0, 1, 1], [], []>} : vector<4x5xbf16>, vector<5x64xbf16>, vector<4x64xf32> -> vector<4x64xf32>
    %c3_27 = arith.constant 3 : index
    %c0_28 = arith.constant 0 : index
    %c0_29 = arith.constant 0 : index
    %46 = vector.load %arg7[%c3_27, %c0_28, %c0_29] : memref<9x64x1xi32, #tpu.memory_space<vmem>>, vector<1x64x1xi32>
    %47 = vector.shape_cast %46 : vector<1x64x1xi32> to vector<64x1xi32>
    %48 = vector.broadcast %47 : vector<64x1xi32> to vector<64x768xi32>
    %49 = arith.cmpi eq, %2, %48 : vector<64x768xi32>
    %50 = arith.extui %49 : vector<64x768xi1> to vector<64x768xi32>
    %51 = arith.sitofp %50 : vector<64x768xi32> to vector<64x768xf32>
    %52 = arith.truncf %51 : vector<64x768xf32> to vector<64x768xbf16>
    %53 = arith.truncf %45 : vector<4x64xf32> to vector<4x64xbf16>
    %cst_30 = arith.constant dense<0.000000e+00> : vector<4x768xf32>
    %54 = tpu.matmul %53, %52, %cst_30 {dimension_numbers = #tpu.dot_dimension_numbers<[1], [0], [0], [1], [0, 0, 1, 1], [], []>} : vector<4x64xbf16>, vector<64x768xbf16>, vector<4x768xf32> -> vector<4x768xf32>
    %55 = arith.addf %42, %54 : vector<4x768xf32>
    %c4 = arith.constant 4 : index
    %c0_31 = arith.constant 0 : index
    %c0_32 = arith.constant 0 : index
    %56 = vector.load %arg2[%c4, %c0_31, %c0_32] : memref<9x4x5xbf16, #tpu.memory_space<vmem>>, vector<1x4x5xbf16>
    %57 = vector.shape_cast %56 : vector<1x4x5xbf16> to vector<4x5xbf16>
    %cst_33 = arith.constant dense<0.000000e+00> : vector<4x64xf32>
    %58 = tpu.matmul %57, %1, %cst_33 {dimension_numbers = #tpu.dot_dimension_numbers<[1], [0], [0], [1], [0, 0, 1, 1], [], []>} : vector<4x5xbf16>, vector<5x64xbf16>, vector<4x64xf32> -> vector<4x64xf32>
    %c4_34 = arith.constant 4 : index
    %c0_35 = arith.constant 0 : index
    %c0_36 = arith.constant 0 : index
    %59 = vector.load %arg7[%c4_34, %c0_35, %c0_36] : memref<9x64x1xi32, #tpu.memory_space<vmem>>, vector<1x64x1xi32>
    %60 = vector.shape_cast %59 : vector<1x64x1xi32> to vector<64x1xi32>
    %61 = vector.broadcast %60 : vector<64x1xi32> to vector<64x768xi32>
    %62 = arith.cmpi eq, %2, %61 : vector<64x768xi32>
    %63 = arith.extui %62 : vector<64x768xi1> to vector<64x768xi32>
    %64 = arith.sitofp %63 : vector<64x768xi32> to vector<64x768xf32>
    %65 = arith.truncf %64 : vector<64x768xf32> to vector<64x768xbf16>
    %66 = arith.truncf %58 : vector<4x64xf32> to vector<4x64xbf16>
    %cst_37 = arith.constant dense<0.000000e+00> : vector<4x768xf32>
    %67 = tpu.matmul %66, %65, %cst_37 {dimension_numbers = #tpu.dot_dimension_numbers<[1], [0], [0], [1], [0, 0, 1, 1], [], []>} : vector<4x64xbf16>, vector<64x768xbf16>, vector<4x768xf32> -> vector<4x768xf32>
    %68 = arith.addf %55, %67 : vector<4x768xf32>
    %c5 = arith.constant 5 : index
    %c0_38 = arith.constant 0 : index
    %c0_39 = arith.constant 0 : index
    %69 = vector.load %arg2[%c5, %c0_38, %c0_39] : memref<9x4x5xbf16, #tpu.memory_space<vmem>>, vector<1x4x5xbf16>
    %70 = vector.shape_cast %69 : vector<1x4x5xbf16> to vector<4x5xbf16>
    %cst_40 = arith.constant dense<0.000000e+00> : vector<4x64xf32>
    %71 = tpu.matmul %70, %1, %cst_40 {dimension_numbers = #tpu.dot_dimension_numbers<[1], [0], [0], [1], [0, 0, 1, 1], [], []>} : vector<4x5xbf16>, vector<5x64xbf16>, vector<4x64xf32> -> vector<4x64xf32>
    %c5_41 = arith.constant 5 : index
    %c0_42 = arith.constant 0 : index
    %c0_43 = arith.constant 0 : index
    %72 = vector.load %arg7[%c5_41, %c0_42, %c0_43] : memref<9x64x1xi32, #tpu.memory_space<vmem>>, vector<1x64x1xi32>
    %73 = vector.shape_cast %72 : vector<1x64x1xi32> to vector<64x1xi32>
    %74 = vector.broadcast %73 : vector<64x1xi32> to vector<64x768xi32>
    %75 = arith.cmpi eq, %2, %74 : vector<64x768xi32>
    %76 = arith.extui %75 : vector<64x768xi1> to vector<64x768xi32>
    %77 = arith.sitofp %76 : vector<64x768xi32> to vector<64x768xf32>
    %78 = arith.truncf %77 : vector<64x768xf32> to vector<64x768xbf16>
    %79 = arith.truncf %71 : vector<4x64xf32> to vector<4x64xbf16>
    %cst_44 = arith.constant dense<0.000000e+00> : vector<4x768xf32>
    %80 = tpu.matmul %79, %78, %cst_44 {dimension_numbers = #tpu.dot_dimension_numbers<[1], [0], [0], [1], [0, 0, 1, 1], [], []>} : vector<4x64xbf16>, vector<64x768xbf16>, vector<4x768xf32> -> vector<4x768xf32>
    %81 = arith.addf %68, %80 : vector<4x768xf32>
    %c6 = arith.constant 6 : index
    %c0_45 = arith.constant 0 : index
    %c0_46 = arith.constant 0 : index
    %82 = vector.load %arg2[%c6, %c0_45, %c0_46] : memref<9x4x5xbf16, #tpu.memory_space<vmem>>, vector<1x4x5xbf16>
    %83 = vector.shape_cast %82 : vector<1x4x5xbf16> to vector<4x5xbf16>
    %cst_47 = arith.constant dense<0.000000e+00> : vector<4x64xf32>
    %84 = tpu.matmul %83, %1, %cst_47 {dimension_numbers = #tpu.dot_dimension_numbers<[1], [0], [0], [1], [0, 0, 1, 1], [], []>} : vector<4x5xbf16>, vector<5x64xbf16>, vector<4x64xf32> -> vector<4x64xf32>
    %c6_48 = arith.constant 6 : index
    %c0_49 = arith.constant 0 : index
    %c0_50 = arith.constant 0 : index
    %85 = vector.load %arg7[%c6_48, %c0_49, %c0_50] : memref<9x64x1xi32, #tpu.memory_space<vmem>>, vector<1x64x1xi32>
    %86 = vector.shape_cast %85 : vector<1x64x1xi32> to vector<64x1xi32>
    %87 = vector.broadcast %86 : vector<64x1xi32> to vector<64x768xi32>
    %88 = arith.cmpi eq, %2, %87 : vector<64x768xi32>
    %89 = arith.extui %88 : vector<64x768xi1> to vector<64x768xi32>
    %90 = arith.sitofp %89 : vector<64x768xi32> to vector<64x768xf32>
    %91 = arith.truncf %90 : vector<64x768xf32> to vector<64x768xbf16>
    %92 = arith.truncf %84 : vector<4x64xf32> to vector<4x64xbf16>
    %cst_51 = arith.constant dense<0.000000e+00> : vector<4x768xf32>
    %93 = tpu.matmul %92, %91, %cst_51 {dimension_numbers = #tpu.dot_dimension_numbers<[1], [0], [0], [1], [0, 0, 1, 1], [], []>} : vector<4x64xbf16>, vector<64x768xbf16>, vector<4x768xf32> -> vector<4x768xf32>
    %94 = arith.addf %81, %93 : vector<4x768xf32>
    %c7 = arith.constant 7 : index
    %c0_52 = arith.constant 0 : index
    %c0_53 = arith.constant 0 : index
    %95 = vector.load %arg2[%c7, %c0_52, %c0_53] : memref<9x4x5xbf16, #tpu.memory_space<vmem>>, vector<1x4x5xbf16>
    %96 = vector.shape_cast %95 : vector<1x4x5xbf16> to vector<4x5xbf16>
    %cst_54 = arith.constant dense<0.000000e+00> : vector<4x64xf32>
    %97 = tpu.matmul %96, %1, %cst_54 {dimension_numbers = #tpu.dot_dimension_numbers<[1], [0], [0], [1], [0, 0, 1, 1], [], []>} : vector<4x5xbf16>, vector<5x64xbf16>, vector<4x64xf32> -> vector<4x64xf32>
    %c7_55 = arith.constant 7 : index
    %c0_56 = arith.constant 0 : index
    %c0_57 = arith.constant 0 : index
    %98 = vector.load %arg7[%c7_55, %c0_56, %c0_57] : memref<9x64x1xi32, #tpu.memory_space<vmem>>, vector<1x64x1xi32>
    %99 = vector.shape_cast %98 : vector<1x64x1xi32> to vector<64x1xi32>
    %100 = vector.broadcast %99 : vector<64x1xi32> to vector<64x768xi32>
    %101 = arith.cmpi eq, %2, %100 : vector<64x768xi32>
    %102 = arith.extui %101 : vector<64x768xi1> to vector<64x768xi32>
    %103 = arith.sitofp %102 : vector<64x768xi32> to vector<64x768xf32>
    %104 = arith.truncf %103 : vector<64x768xf32> to vector<64x768xbf16>
    %105 = arith.truncf %97 : vector<4x64xf32> to vector<4x64xbf16>
    %cst_58 = arith.constant dense<0.000000e+00> : vector<4x768xf32>
    %106 = tpu.matmul %105, %104, %cst_58 {dimension_numbers = #tpu.dot_dimension_numbers<[1], [0], [0], [1], [0, 0, 1, 1], [], []>} : vector<4x64xbf16>, vector<64x768xbf16>, vector<4x768xf32> -> vector<4x768xf32>
    %107 = arith.addf %94, %106 : vector<4x768xf32>
    %c8 = arith.constant 8 : index
    %c0_59 = arith.constant 0 : index
    %c0_60 = arith.constant 0 : index
    %108 = vector.load %arg2[%c8, %c0_59, %c0_60] : memref<9x4x5xbf16, #tpu.memory_space<vmem>>, vector<1x4x5xbf16>
    %109 = vector.shape_cast %108 : vector<1x4x5xbf16> to vector<4x5xbf16>
    %cst_61 = arith.constant dense<0.000000e+00> : vector<4x64xf32>
    %110 = tpu.matmul %109, %1, %cst_61 {dimension_numbers = #tpu.dot_dimension_numbers<[1], [0], [0], [1], [0, 0, 1, 1], [], []>} : vector<4x5xbf16>, vector<5x64xbf16>, vector<4x64xf32> -> vector<4x64xf32>
    %c8_62 = arith.constant 8 : index
    %c0_63 = arith.constant 0 : index
    %c0_64 = arith.constant 0 : index
    %111 = vector.load %arg7[%c8_62, %c0_63, %c0_64] : memref<9x64x1xi32, #tpu.memory_space<vmem>>, vector<1x64x1xi32>
    %112 = vector.shape_cast %111 : vector<1x64x1xi32> to vector<64x1xi32>
    %113 = vector.broadcast %112 : vector<64x1xi32> to vector<64x768xi32>
    %114 = arith.cmpi eq, %2, %113 : vector<64x768xi32>
    %115 = arith.extui %114 : vector<64x768xi1> to vector<64x768xi32>
    %116 = arith.sitofp %115 : vector<64x768xi32> to vector<64x768xf32>
    %117 = arith.truncf %116 : vector<64x768xf32> to vector<64x768xbf16>
    %118 = arith.truncf %110 : vector<4x64xf32> to vector<4x64xbf16>
    %cst_65 = arith.constant dense<0.000000e+00> : vector<4x768xf32>
    %119 = tpu.matmul %118, %117, %cst_65 {dimension_numbers = #tpu.dot_dimension_numbers<[1], [0], [0], [1], [0, 0, 1, 1], [], []>} : vector<4x64xbf16>, vector<64x768xbf16>, vector<4x768xf32> -> vector<4x768xf32>
    %120 = arith.addf %107, %119 : vector<4x768xf32>
    %121 = arith.truncf %120 : vector<4x768xf32> to vector<4x768xbf16>
    %c0_66 = arith.constant 0 : index
    %c0_67 = arith.constant 0 : index
    %122 = vector.load %arg10[%c0_66, %c0_67] : memref<4x768xbf16, #tpu.memory_space<vmem>>, vector<4x768xbf16>
    tpu.vector_store %arg10[%c0_66, %c0_67], %121 {strides = array<i32>} : memref<4x768xbf16, #tpu.memory_space<vmem>>, vector<4x768xbf16>,
    %cst_68 = arith.constant 0.000000e+00 : f32
    %123 = vector.broadcast %cst_68 : f32 to vector<8x624xf32>
    %c0_69 = arith.constant 0 : index
    %c0_70 = arith.constant 0 : index
    %c0_71 = arith.constant 0 : index
    %124 = vector.load %arg3[%c0_69, %c0_70, %c0_71] : memref<9x8x4xbf16, #tpu.memory_space<vmem>>, vector<1x8x4xbf16>
    %125 = vector.shape_cast %124 : vector<1x8x4xbf16> to vector<8x4xbf16>
    %c0_72 = arith.constant 0 : index
    %c0_73 = arith.constant 0 : index
    %126 = vector.load %arg10[%c0_72, %c0_73] : memref<4x768xbf16, #tpu.memory_space<vmem>>, vector<4x624xbf16>
    %cst_74 = arith.constant dense<0.000000e+00> : vector<8x624xf32>
    %127 = tpu.matmul %125, %126, %cst_74 {dimension_numbers = #tpu.dot_dimension_numbers<[1], [0], [0], [1], [0, 0, 1, 1], [], []>} : vector<8x4xbf16>, vector<4x624xbf16>, vector<8x624xf32> -> vector<8x624xf32>
    %128 = arith.addf %123, %127 : vector<8x624xf32>
    %c1_75 = arith.constant 1 : index
    %c0_76 = arith.constant 0 : index
    %c0_77 = arith.constant 0 : index
    %129 = vector.load %arg3[%c1_75, %c0_76, %c0_77] : memref<9x8x4xbf16, #tpu.memory_space<vmem>>, vector<1x8x4xbf16>
    %130 = vector.shape_cast %129 : vector<1x8x4xbf16> to vector<8x4xbf16>
    %c0_78 = arith.constant 0 : index
    %c1_79 = arith.constant 1 : index
    %131 = vector.load %arg10[%c0_78, %c1_79] : memref<4x768xbf16, #tpu.memory_space<vmem>>, vector<4x624xbf16>
    %cst_80 = arith.constant dense<0.000000e+00> : vector<8x624xf32>
    %132 = tpu.matmul %130, %131, %cst_80 {dimension_numbers = #tpu.dot_dimension_numbers<[1], [0], [0], [1], [0, 0, 1, 1], [], []>} : vector<8x4xbf16>, vector<4x624xbf16>, vector<8x624xf32> -> vector<8x624xf32>
    %133 = arith.addf %128, %132 : vector<8x624xf32>
    %c2_81 = arith.constant 2 : index
    %c0_82 = arith.constant 0 : index
    %c0_83 = arith.constant 0 : index
    %134 = vector.load %arg3[%c2_81, %c0_82, %c0_83] : memref<9x8x4xbf16, #tpu.memory_space<vmem>>, vector<1x8x4xbf16>
    %135 = vector.shape_cast %134 : vector<1x8x4xbf16> to vector<8x4xbf16>
    %c0_84 = arith.constant 0 : index
    %c2_85 = arith.constant 2 : index
    %136 = vector.load %arg10[%c0_84, %c2_85] : memref<4x768xbf16, #tpu.memory_space<vmem>>, vector<4x624xbf16>
    %cst_86 = arith.constant dense<0.000000e+00> : vector<8x624xf32>
    %137 = tpu.matmul %135, %136, %cst_86 {dimension_numbers = #tpu.dot_dimension_numbers<[1], [0], [0], [1], [0, 0, 1, 1], [], []>} : vector<8x4xbf16>, vector<4x624xbf16>, vector<8x624xf32> -> vector<8x624xf32>
    %138 = arith.addf %133, %137 : vector<8x624xf32>
    %c3_87 = arith.constant 3 : index
    %c0_88 = arith.constant 0 : index
    %c0_89 = arith.constant 0 : index
    %139 = vector.load %arg3[%c3_87, %c0_88, %c0_89] : memref<9x8x4xbf16, #tpu.memory_space<vmem>>, vector<1x8x4xbf16>
    %140 = vector.shape_cast %139 : vector<1x8x4xbf16> to vector<8x4xbf16>
    %c0_90 = arith.constant 0 : index
    %c26 = arith.constant 26 : index
    %141 = vector.load %arg10[%c0_90, %c26] : memref<4x768xbf16, #tpu.memory_space<vmem>>, vector<4x624xbf16>
    %cst_91 = arith.constant dense<0.000000e+00> : vector<8x624xf32>
    %142 = tpu.matmul %140, %141, %cst_91 {dimension_numbers = #tpu.dot_dimension_numbers<[1], [0], [0], [1], [0, 0, 1, 1], [], []>} : vector<8x4xbf16>, vector<4x624xbf16>, vector<8x624xf32> -> vector<8x624xf32>
    %143 = arith.addf %138, %142 : vector<8x624xf32>
    %c4_92 = arith.constant 4 : index
    %c0_93 = arith.constant 0 : index
    %c0_94 = arith.constant 0 : index
    %144 = vector.load %arg3[%c4_92, %c0_93, %c0_94] : memref<9x8x4xbf16, #tpu.memory_space<vmem>>, vector<1x8x4xbf16>
    %145 = vector.shape_cast %144 : vector<1x8x4xbf16> to vector<8x4xbf16>
    %c0_95 = arith.constant 0 : index
    %c27 = arith.constant 27 : index
    %146 = vector.load %arg10[%c0_95, %c27] : memref<4x768xbf16, #tpu.memory_space<vmem>>, vector<4x624xbf16>
    %cst_96 = arith.constant dense<0.000000e+00> : vector<8x624xf32>
    %147 = tpu.matmul %145, %146, %cst_96 {dimension_numbers = #tpu.dot_dimension_numbers<[1], [0], [0], [1], [0, 0, 1, 1], [], []>} : vector<8x4xbf16>, vector<4x624xbf16>, vector<8x624xf32> -> vector<8x624xf32>
    %148 = arith.addf %143, %147 : vector<8x624xf32>
    %c5_97 = arith.constant 5 : index
    %c0_98 = arith.constant 0 : index
    %c0_99 = arith.constant 0 : index
    %149 = vector.load %arg3[%c5_97, %c0_98, %c0_99] : memref<9x8x4xbf16, #tpu.memory_space<vmem>>, vector<1x8x4xbf16>
    %150 = vector.shape_cast %149 : vector<1x8x4xbf16> to vector<8x4xbf16>
    %c0_100 = arith.constant 0 : index
    %c28 = arith.constant 28 : index
    %151 = vector.load %arg10[%c0_100, %c28] : memref<4x768xbf16, #tpu.memory_space<vmem>>, vector<4x624xbf16>
    %cst_101 = arith.constant dense<0.000000e+00> : vector<8x624xf32>
    %152 = tpu.matmul %150, %151, %cst_101 {dimension_numbers = #tpu.dot_dimension_numbers<[1], [0], [0], [1], [0, 0, 1, 1], [], []>} : vector<8x4xbf16>, vector<4x624xbf16>, vector<8x624xf32> -> vector<8x624xf32>
    %153 = arith.addf %148, %152 : vector<8x624xf32>
    %c6_102 = arith.constant 6 : index
    %c0_103 = arith.constant 0 : index
    %c0_104 = arith.constant 0 : index
    %154 = vector.load %arg3[%c6_102, %c0_103, %c0_104] : memref<9x8x4xbf16, #tpu.memory_space<vmem>>, vector<1x8x4xbf16>
    %155 = vector.shape_cast %154 : vector<1x8x4xbf16> to vector<8x4xbf16>
    %c0_105 = arith.constant 0 : index
    %c52 = arith.constant 52 : index
    %156 = vector.load %arg10[%c0_105, %c52] : memref<4x768xbf16, #tpu.memory_space<vmem>>, vector<4x624xbf16>
    %cst_106 = arith.constant dense<0.000000e+00> : vector<8x624xf32>
    %157 = tpu.matmul %155, %156, %cst_106 {dimension_numbers = #tpu.dot_dimension_numbers<[1], [0], [0], [1], [0, 0, 1, 1], [], []>} : vector<8x4xbf16>, vector<4x624xbf16>, vector<8x624xf32> -> vector<8x624xf32>
    %158 = arith.addf %153, %157 : vector<8x624xf32>
    %c7_107 = arith.constant 7 : index
    %c0_108 = arith.constant 0 : index
    %c0_109 = arith.constant 0 : index
    %159 = vector.load %arg3[%c7_107, %c0_108, %c0_109] : memref<9x8x4xbf16, #tpu.memory_space<vmem>>, vector<1x8x4xbf16>
    %160 = vector.shape_cast %159 : vector<1x8x4xbf16> to vector<8x4xbf16>
    %c0_110 = arith.constant 0 : index
    %c53 = arith.constant 53 : index
    %161 = vector.load %arg10[%c0_110, %c53] : memref<4x768xbf16, #tpu.memory_space<vmem>>, vector<4x624xbf16>
    %cst_111 = arith.constant dense<0.000000e+00> : vector<8x624xf32>
    %162 = tpu.matmul %160, %161, %cst_111 {dimension_numbers = #tpu.dot_dimension_numbers<[1], [0], [0], [1], [0, 0, 1, 1], [], []>} : vector<8x4xbf16>, vector<4x624xbf16>, vector<8x624xf32> -> vector<8x624xf32>
    %163 = arith.addf %158, %162 : vector<8x624xf32>
    %c8_112 = arith.constant 8 : index
    %c0_113 = arith.constant 0 : index
    %c0_114 = arith.constant 0 : index
    %164 = vector.load %arg3[%c8_112, %c0_113, %c0_114] : memref<9x8x4xbf16, #tpu.memory_space<vmem>>, vector<1x8x4xbf16>
    %165 = vector.shape_cast %164 : vector<1x8x4xbf16> to vector<8x4xbf16>
    %c0_115 = arith.constant 0 : index
    %c54 = arith.constant 54 : index
    %166 = vector.load %arg10[%c0_115, %c54] : memref<4x768xbf16, #tpu.memory_space<vmem>>, vector<4x624xbf16>
    %cst_116 = arith.constant dense<0.000000e+00> : vector<8x624xf32>
    %167 = tpu.matmul %165, %166, %cst_116 {dimension_numbers = #tpu.dot_dimension_numbers<[1], [0], [0], [1], [0, 0, 1, 1], [], []>} : vector<8x4xbf16>, vector<4x624xbf16>, vector<8x624xf32> -> vector<8x624xf32>
    %168 = arith.addf %163, %167 : vector<8x624xf32>
    %c0_117 = arith.constant 0 : index
    %c0_118 = arith.constant 0 : index
    %169 = vector.load %arg4[%c0_117, %c0_118] : memref<8x1xf32, #tpu.memory_space<vmem>>, vector<8x1xf32>
    %170 = vector.broadcast %169 : vector<8x1xf32> to vector<8x624xf32>
    %171 = arith.addf %168, %170 : vector<8x624xf32>
    %cst_119 = arith.constant 0.000000e+00 : f32
    %172 = vector.broadcast %cst_119 : f32 to vector<8x624xf32>
    %173 = arith.maximumf %171, %172 : vector<8x624xf32>
    %c0_120 = arith.constant 0 : index
    %c0_121 = arith.constant 0 : index
    %174 = vector.load %arg8[%c0_120, %c0_121] : memref<1x624xf32, #tpu.memory_space<vmem>>, vector<1x624xf32>
    %175 = vector.broadcast %174 : vector<1x624xf32> to vector<8x624xf32>
    %176 = arith.mulf %173, %175 : vector<8x624xf32>
    %cst_122 = arith.constant 0.000000e+00 : bf16
    %177 = vector.broadcast %cst_122 : bf16 to vector<8x896xbf16>
    %c0_123 = arith.constant 0 : index
    %c0_124 = arith.constant 0 : index
    %178 = vector.load %arg11[%c0_123, %c0_124] : memref<8x896xbf16, #tpu.memory_space<vmem>>, vector<8x896xbf16>
    tpu.vector_store %arg11[%c0_123, %c0_124], %177 {strides = array<i32>} : memref<8x896xbf16, #tpu.memory_space<vmem>>, vector<8x896xbf16>,
    %179 = arith.truncf %176 : vector<8x624xf32> to vector<8x624xbf16>
    %c0_125 = arith.constant 0 : index
    %c128 = arith.constant 128 : index
    %180 = vector.load %arg11[%c0_125, %c128] : memref<8x896xbf16, #tpu.memory_space<vmem>>, vector<8x624xbf16>
    tpu.vector_store %arg11[%c0_125, %c128], %179 {strides = array<i32>} : memref<8x896xbf16, #tpu.memory_space<vmem>>, vector<8x624xbf16>,
    %cst_126 = arith.constant 0.000000e+00 : f32
    %181 = vector.broadcast %cst_126 : f32 to vector<8x624xf32>
    %c0_127 = arith.constant 0 : index
    %c0_128 = arith.constant 0 : index
    %c0_129 = arith.constant 0 : index
    %182 = vector.load %arg5[%c0_127, %c0_128, %c0_129] : memref<9x8x8xbf16, #tpu.memory_space<vmem>>, vector<1x8x8xbf16>
    %183 = vector.shape_cast %182 : vector<1x8x8xbf16> to vector<8x8xbf16>
    %c0_130 = arith.constant 0 : index
    %c101 = arith.constant 101 : index
    %184 = vector.load %arg11[%c0_130, %c101] : memref<8x896xbf16, #tpu.memory_space<vmem>>, vector<8x624xbf16>
    %cst_131 = arith.constant dense<0.000000e+00> : vector<8x624xf32>
    %185 = tpu.matmul %183, %184, %cst_131 {dimension_numbers = #tpu.dot_dimension_numbers<[1], [0], [0], [1], [0, 0, 1, 1], [], []>} : vector<8x8xbf16>, vector<8x624xbf16>, vector<8x624xf32> -> vector<8x624xf32>
    %186 = arith.addf %181, %185 : vector<8x624xf32>
    %c1_132 = arith.constant 1 : index
    %c0_133 = arith.constant 0 : index
    %c0_134 = arith.constant 0 : index
    %187 = vector.load %arg5[%c1_132, %c0_133, %c0_134] : memref<9x8x8xbf16, #tpu.memory_space<vmem>>, vector<1x8x8xbf16>
    %188 = vector.shape_cast %187 : vector<1x8x8xbf16> to vector<8x8xbf16>
    %c0_135 = arith.constant 0 : index
    %c102 = arith.constant 102 : index
    %189 = vector.load %arg11[%c0_135, %c102] : memref<8x896xbf16, #tpu.memory_space<vmem>>, vector<8x624xbf16>
    %cst_136 = arith.constant dense<0.000000e+00> : vector<8x624xf32>
    %190 = tpu.matmul %188, %189, %cst_136 {dimension_numbers = #tpu.dot_dimension_numbers<[1], [0], [0], [1], [0, 0, 1, 1], [], []>} : vector<8x8xbf16>, vector<8x624xbf16>, vector<8x624xf32> -> vector<8x624xf32>
    %191 = arith.addf %186, %190 : vector<8x624xf32>
    %c2_137 = arith.constant 2 : index
    %c0_138 = arith.constant 0 : index
    %c0_139 = arith.constant 0 : index
    %192 = vector.load %arg5[%c2_137, %c0_138, %c0_139] : memref<9x8x8xbf16, #tpu.memory_space<vmem>>, vector<1x8x8xbf16>
    %193 = vector.shape_cast %192 : vector<1x8x8xbf16> to vector<8x8xbf16>
    %c0_140 = arith.constant 0 : index
    %c103 = arith.constant 103 : index
    %194 = vector.load %arg11[%c0_140, %c103] : memref<8x896xbf16, #tpu.memory_space<vmem>>, vector<8x624xbf16>
    %cst_141 = arith.constant dense<0.000000e+00> : vector<8x624xf32>
    %195 = tpu.matmul %193, %194, %cst_141 {dimension_numbers = #tpu.dot_dimension_numbers<[1], [0], [0], [1], [0, 0, 1, 1], [], []>} : vector<8x8xbf16>, vector<8x624xbf16>, vector<8x624xf32> -> vector<8x624xf32>
    %196 = arith.addf %191, %195 : vector<8x624xf32>
    %c3_142 = arith.constant 3 : index
    %c0_143 = arith.constant 0 : index
    %c0_144 = arith.constant 0 : index
    %197 = vector.load %arg5[%c3_142, %c0_143, %c0_144] : memref<9x8x8xbf16, #tpu.memory_space<vmem>>, vector<1x8x8xbf16>
    %198 = vector.shape_cast %197 : vector<1x8x8xbf16> to vector<8x8xbf16>
    %c0_145 = arith.constant 0 : index
    %c127 = arith.constant 127 : index
    %199 = vector.load %arg11[%c0_145, %c127] : memref<8x896xbf16, #tpu.memory_space<vmem>>, vector<8x624xbf16>
    %cst_146 = arith.constant dense<0.000000e+00> : vector<8x624xf32>
    %200 = tpu.matmul %198, %199, %cst_146 {dimension_numbers = #tpu.dot_dimension_numbers<[1], [0], [0], [1], [0, 0, 1, 1], [], []>} : vector<8x8xbf16>, vector<8x624xbf16>, vector<8x624xf32> -> vector<8x624xf32>
    %201 = arith.addf %196, %200 : vector<8x624xf32>
    %c4_147 = arith.constant 4 : index
    %c0_148 = arith.constant 0 : index
    %c0_149 = arith.constant 0 : index
    %202 = vector.load %arg5[%c4_147, %c0_148, %c0_149] : memref<9x8x8xbf16, #tpu.memory_space<vmem>>, vector<1x8x8xbf16>
    %203 = vector.shape_cast %202 : vector<1x8x8xbf16> to vector<8x8xbf16>
    %c0_150 = arith.constant 0 : index
    %c128_151 = arith.constant 128 : index
    %204 = vector.load %arg11[%c0_150, %c128_151] : memref<8x896xbf16, #tpu.memory_space<vmem>>, vector<8x624xbf16>
    %cst_152 = arith.constant dense<0.000000e+00> : vector<8x624xf32>
    %205 = tpu.matmul %203, %204, %cst_152 {dimension_numbers = #tpu.dot_dimension_numbers<[1], [0], [0], [1], [0, 0, 1, 1], [], []>} : vector<8x8xbf16>, vector<8x624xbf16>, vector<8x624xf32> -> vector<8x624xf32>
    %206 = arith.addf %201, %205 : vector<8x624xf32>
    %c5_153 = arith.constant 5 : index
    %c0_154 = arith.constant 0 : index
    %c0_155 = arith.constant 0 : index
    %207 = vector.load %arg5[%c5_153, %c0_154, %c0_155] : memref<9x8x8xbf16, #tpu.memory_space<vmem>>, vector<1x8x8xbf16>
    %208 = vector.shape_cast %207 : vector<1x8x8xbf16> to vector<8x8xbf16>
    %c0_156 = arith.constant 0 : index
    %c129 = arith.constant 129 : index
    %209 = vector.load %arg11[%c0_156, %c129] : memref<8x896xbf16, #tpu.memory_space<vmem>>, vector<8x624xbf16>
    %cst_157 = arith.constant dense<0.000000e+00> : vector<8x624xf32>
    %210 = tpu.matmul %208, %209, %cst_157 {dimension_numbers = #tpu.dot_dimension_numbers<[1], [0], [0], [1], [0, 0, 1, 1], [], []>} : vector<8x8xbf16>, vector<8x624xbf16>, vector<8x624xf32> -> vector<8x624xf32>
    %211 = arith.addf %206, %210 : vector<8x624xf32>
    %c6_158 = arith.constant 6 : index
    %c0_159 = arith.constant 0 : index
    %c0_160 = arith.constant 0 : index
    %212 = vector.load %arg5[%c6_158, %c0_159, %c0_160] : memref<9x8x8xbf16, #tpu.memory_space<vmem>>, vector<1x8x8xbf16>
    %213 = vector.shape_cast %212 : vector<1x8x8xbf16> to vector<8x8xbf16>
    %c0_161 = arith.constant 0 : index
    %c153 = arith.constant 153 : index
    %214 = vector.load %arg11[%c0_161, %c153] : memref<8x896xbf16, #tpu.memory_space<vmem>>, vector<8x624xbf16>
    %cst_162 = arith.constant dense<0.000000e+00> : vector<8x624xf32>
    %215 = tpu.matmul %213, %214, %cst_162 {dimension_numbers = #tpu.dot_dimension_numbers<[1], [0], [0], [1], [0, 0, 1, 1], [], []>} : vector<8x8xbf16>, vector<8x624xbf16>, vector<8x624xf32> -> vector<8x624xf32>
    %216 = arith.addf %211, %215 : vector<8x624xf32>
    %c7_163 = arith.constant 7 : index
    %c0_164 = arith.constant 0 : index
    %c0_165 = arith.constant 0 : index
    %217 = vector.load %arg5[%c7_163, %c0_164, %c0_165] : memref<9x8x8xbf16, #tpu.memory_space<vmem>>, vector<1x8x8xbf16>
    %218 = vector.shape_cast %217 : vector<1x8x8xbf16> to vector<8x8xbf16>
    %c0_166 = arith.constant 0 : index
    %c154 = arith.constant 154 : index
    %219 = vector.load %arg11[%c0_166, %c154] : memref<8x896xbf16, #tpu.memory_space<vmem>>, vector<8x624xbf16>
    %cst_167 = arith.constant dense<0.000000e+00> : vector<8x624xf32>
    %220 = tpu.matmul %218, %219, %cst_167 {dimension_numbers = #tpu.dot_dimension_numbers<[1], [0], [0], [1], [0, 0, 1, 1], [], []>} : vector<8x8xbf16>, vector<8x624xbf16>, vector<8x624xf32> -> vector<8x624xf32>
    %221 = arith.addf %216, %220 : vector<8x624xf32>
    %c8_168 = arith.constant 8 : index
    %c0_169 = arith.constant 0 : index
    %c0_170 = arith.constant 0 : index
    %222 = vector.load %arg5[%c8_168, %c0_169, %c0_170] : memref<9x8x8xbf16, #tpu.memory_space<vmem>>, vector<1x8x8xbf16>
    %223 = vector.shape_cast %222 : vector<1x8x8xbf16> to vector<8x8xbf16>
    %c0_171 = arith.constant 0 : index
    %c155 = arith.constant 155 : index
    %224 = vector.load %arg11[%c0_171, %c155] : memref<8x896xbf16, #tpu.memory_space<vmem>>, vector<8x624xbf16>
    %cst_172 = arith.constant dense<0.000000e+00> : vector<8x624xf32>
    %225 = tpu.matmul %223, %224, %cst_172 {dimension_numbers = #tpu.dot_dimension_numbers<[1], [0], [0], [1], [0, 0, 1, 1], [], []>} : vector<8x8xbf16>, vector<8x624xbf16>, vector<8x624xf32> -> vector<8x624xf32>
    %226 = arith.addf %221, %225 : vector<8x624xf32>
    %c0_173 = arith.constant 0 : index
    %c0_174 = arith.constant 0 : index
    %227 = vector.load %arg6[%c0_173, %c0_174] : memref<8x1xf32, #tpu.memory_space<vmem>>, vector<8x1xf32>
    %228 = vector.broadcast %227 : vector<8x1xf32> to vector<8x624xf32>
    %229 = arith.addf %226, %228 : vector<8x624xf32>
    %cst_175 = arith.constant 0.000000e+00 : f32
    %230 = vector.broadcast %cst_175 : f32 to vector<8x624xf32>
    %231 = arith.maximumf %229, %230 : vector<8x624xf32>
    %232 = vector.extract_strided_slice %231 {offsets = [0, 0], sizes = [8, 24], strides = [1, 1]} : vector<8x624xf32> to vector<8x24xf32>
    %c0_176 = arith.constant 0 : index
    %c0_177 = arith.constant 0 : index
    %c0_178 = arith.constant 0 : index
    %c0_179 = arith.constant 0 : index
    %233 = vector.load %arg9[%c0_176, %c0_177, %c0_178, %c0_179] : memref<1x8x24x24xf32, #tpu.memory_space<vmem>>, vector<1x8x1x24xf32>
    %234 = vector.shape_cast %233 : vector<1x8x1x24xf32> to vector<8x24xf32>
    %235 = vector.shape_cast %232 : vector<8x24xf32> to vector<1x8x1x24xf32>
    tpu.vector_store %arg9[%c0_176, %c0_177, %c0_178, %c0_179], %235 {strides = array<i32>} : memref<1x8x24x24xf32, #tpu.memory_space<vmem>>, vector<1x8x1x24xf32>,
    %236 = vector.extract_strided_slice %231 {offsets = [0, 26], sizes = [8, 24], strides = [1, 1]} : vector<8x624xf32> to vector<8x24xf32>
    %c0_180 = arith.constant 0 : index
    %c0_181 = arith.constant 0 : index
    %c1_182 = arith.constant 1 : index
    %c0_183 = arith.constant 0 : index
    %237 = vector.load %arg9[%c0_180, %c0_181, %c1_182, %c0_183] : memref<1x8x24x24xf32, #tpu.memory_space<vmem>>, vector<1x8x1x24xf32>
    %238 = vector.shape_cast %237 : vector<1x8x1x24xf32> to vector<8x24xf32>
    %239 = vector.shape_cast %236 : vector<8x24xf32> to vector<1x8x1x24xf32>
    tpu.vector_store %arg9[%c0_180, %c0_181, %c1_182, %c0_183], %239 {strides = array<i32>} : memref<1x8x24x24xf32, #tpu.memory_space<vmem>>, vector<1x8x1x24xf32>,
    %240 = vector.extract_strided_slice %231 {offsets = [0, 52], sizes = [8, 24], strides = [1, 1]} : vector<8x624xf32> to vector<8x24xf32>
    %c0_184 = arith.constant 0 : index
    %c0_185 = arith.constant 0 : index
    %c2_186 = arith.constant 2 : index
    %c0_187 = arith.constant 0 : index
    %241 = vector.load %arg9[%c0_184, %c0_185, %c2_186, %c0_187] : memref<1x8x24x24xf32, #tpu.memory_space<vmem>>, vector<1x8x1x24xf32>
    %242 = vector.shape_cast %241 : vector<1x8x1x24xf32> to vector<8x24xf32>
    %243 = vector.shape_cast %240 : vector<8x24xf32> to vector<1x8x1x24xf32>
    tpu.vector_store %arg9[%c0_184, %c0_185, %c2_186, %c0_187], %243 {strides = array<i32>} : memref<1x8x24x24xf32, #tpu.memory_space<vmem>>, vector<1x8x1x24xf32>,
    %244 = vector.extract_strided_slice %231 {offsets = [0, 78], sizes = [8, 24], strides = [1, 1]} : vector<8x624xf32> to vector<8x24xf32>
    %c0_188 = arith.constant 0 : index
    %c0_189 = arith.constant 0 : index
    %c3_190 = arith.constant 3 : index
    %c0_191 = arith.constant 0 : index
    %245 = vector.load %arg9[%c0_188, %c0_189, %c3_190, %c0_191] : memref<1x8x24x24xf32, #tpu.memory_space<vmem>>, vector<1x8x1x24xf32>
    %246 = vector.shape_cast %245 : vector<1x8x1x24xf32> to vector<8x24xf32>
    %247 = vector.shape_cast %244 : vector<8x24xf32> to vector<1x8x1x24xf32>
    tpu.vector_store %arg9[%c0_188, %c0_189, %c3_190, %c0_191], %247 {strides = array<i32>} : memref<1x8x24x24xf32, #tpu.memory_space<vmem>>, vector<1x8x1x24xf32>,
    %248 = vector.extract_strided_slice %231 {offsets = [0, 104], sizes = [8, 24], strides = [1, 1]} : vector<8x624xf32> to vector<8x24xf32>
    %c0_192 = arith.constant 0 : index
    %c0_193 = arith.constant 0 : index
    %c4_194 = arith.constant 4 : index
    %c0_195 = arith.constant 0 : index
    %249 = vector.load %arg9[%c0_192, %c0_193, %c4_194, %c0_195] : memref<1x8x24x24xf32, #tpu.memory_space<vmem>>, vector<1x8x1x24xf32>
    %250 = vector.shape_cast %249 : vector<1x8x1x24xf32> to vector<8x24xf32>
    %251 = vector.shape_cast %248 : vector<8x24xf32> to vector<1x8x1x24xf32>
    tpu.vector_store %arg9[%c0_192, %c0_193, %c4_194, %c0_195], %251 {strides = array<i32>} : memref<1x8x24x24xf32, #tpu.memory_space<vmem>>, vector<1x8x1x24xf32>,
    %252 = vector.extract_strided_slice %231 {offsets = [0, 130], sizes = [8, 24], strides = [1, 1]} : vector<8x624xf32> to vector<8x24xf32>
    %c0_196 = arith.constant 0 : index
    %c0_197 = arith.constant 0 : index
    %c5_198 = arith.constant 5 : index
    %c0_199 = arith.constant 0 : index
    %253 = vector.load %arg9[%c0_196, %c0_197, %c5_198, %c0_199] : memref<1x8x24x24xf32, #tpu.memory_space<vmem>>, vector<1x8x1x24xf32>
    %254 = vector.shape_cast %253 : vector<1x8x1x24xf32> to vector<8x24xf32>
    %255 = vector.shape_cast %252 : vector<8x24xf32> to vector<1x8x1x24xf32>
    tpu.vector_store %arg9[%c0_196, %c0_197, %c5_198, %c0_199], %255 {strides = array<i32>} : memref<1x8x24x24xf32, #tpu.memory_space<vmem>>, vector<1x8x1x24xf32>,
    %256 = vector.extract_strided_slice %231 {offsets = [0, 156], sizes = [8, 24], strides = [1, 1]} : vector<8x624xf32> to vector<8x24xf32>
    %c0_200 = arith.constant 0 : index
    %c0_201 = arith.constant 0 : index
    %c6_202 = arith.constant 6 : index
    %c0_203 = arith.constant 0 : index
    %257 = vector.load %arg9[%c0_200, %c0_201, %c6_202, %c0_203] : memref<1x8x24x24xf32, #tpu.memory_space<vmem>>, vector<1x8x1x24xf32>
    %258 = vector.shape_cast %257 : vector<1x8x1x24xf32> to vector<8x24xf32>
    %259 = vector.shape_cast %256 : vector<8x24xf32> to vector<1x8x1x24xf32>
    tpu.vector_store %arg9[%c0_200, %c0_201, %c6_202, %c0_203], %259 {strides = array<i32>} : memref<1x8x24x24xf32, #tpu.memory_space<vmem>>, vector<1x8x1x24xf32>,
    %260 = vector.extract_strided_slice %231 {offsets = [0, 182], sizes = [8, 24], strides = [1, 1]} : vector<8x624xf32> to vector<8x24xf32>
    %c0_204 = arith.constant 0 : index
    %c0_205 = arith.constant 0 : index
    %c7_206 = arith.constant 7 : index
    %c0_207 = arith.constant 0 : index
    %261 = vector.load %arg9[%c0_204, %c0_205, %c7_206, %c0_207] : memref<1x8x24x24xf32, #tpu.memory_space<vmem>>, vector<1x8x1x24xf32>
    %262 = vector.shape_cast %261 : vector<1x8x1x24xf32> to vector<8x24xf32>
    %263 = vector.shape_cast %260 : vector<8x24xf32> to vector<1x8x1x24xf32>
    tpu.vector_store %arg9[%c0_204, %c0_205, %c7_206, %c0_207], %263 {strides = array<i32>} : memref<1x8x24x24xf32, #tpu.memory_space<vmem>>, vector<1x8x1x24xf32>,
    %264 = vector.extract_strided_slice %231 {offsets = [0, 208], sizes = [8, 24], strides = [1, 1]} : vector<8x624xf32> to vector<8x24xf32>
    %c0_208 = arith.constant 0 : index
    %c0_209 = arith.constant 0 : index
    %c8_210 = arith.constant 8 : index
    %c0_211 = arith.constant 0 : index
    %265 = vector.load %arg9[%c0_208, %c0_209, %c8_210, %c0_211] : memref<1x8x24x24xf32, #tpu.memory_space<vmem>>, vector<1x8x1x24xf32>
    %266 = vector.shape_cast %265 : vector<1x8x1x24xf32> to vector<8x24xf32>
    %267 = vector.shape_cast %264 : vector<8x24xf32> to vector<1x8x1x24xf32>
    tpu.vector_store %arg9[%c0_208, %c0_209, %c8_210, %c0_211], %267 {strides = array<i32>} : memref<1x8x24x24xf32, #tpu.memory_space<vmem>>, vector<1x8x1x24xf32>,
    %268 = vector.extract_strided_slice %231 {offsets = [0, 234], sizes = [8, 24], strides = [1, 1]} : vector<8x624xf32> to vector<8x24xf32>
    %c0_212 = arith.constant 0 : index
    %c0_213 = arith.constant 0 : index
    %c9 = arith.constant 9 : index
    %c0_214 = arith.constant 0 : index
    %269 = vector.load %arg9[%c0_212, %c0_213, %c9, %c0_214] : memref<1x8x24x24xf32, #tpu.memory_space<vmem>>, vector<1x8x1x24xf32>
    %270 = vector.shape_cast %269 : vector<1x8x1x24xf32> to vector<8x24xf32>
    %271 = vector.shape_cast %268 : vector<8x24xf32> to vector<1x8x1x24xf32>
    tpu.vector_store %arg9[%c0_212, %c0_213, %c9, %c0_214], %271 {strides = array<i32>} : memref<1x8x24x24xf32, #tpu.memory_space<vmem>>, vector<1x8x1x24xf32>,
    %272 = vector.extract_strided_slice %231 {offsets = [0, 260], sizes = [8, 24], strides = [1, 1]} : vector<8x624xf32> to vector<8x24xf32>
    %c0_215 = arith.constant 0 : index
    %c0_216 = arith.constant 0 : index
    %c10 = arith.constant 10 : index
    %c0_217 = arith.constant 0 : index
    %273 = vector.load %arg9[%c0_215, %c0_216, %c10, %c0_217] : memref<1x8x24x24xf32, #tpu.memory_space<vmem>>, vector<1x8x1x24xf32>
    %274 = vector.shape_cast %273 : vector<1x8x1x24xf32> to vector<8x24xf32>
    %275 = vector.shape_cast %272 : vector<8x24xf32> to vector<1x8x1x24xf32>
    tpu.vector_store %arg9[%c0_215, %c0_216, %c10, %c0_217], %275 {strides = array<i32>} : memref<1x8x24x24xf32, #tpu.memory_space<vmem>>, vector<1x8x1x24xf32>,
    %276 = vector.extract_strided_slice %231 {offsets = [0, 286], sizes = [8, 24], strides = [1, 1]} : vector<8x624xf32> to vector<8x24xf32>
    %c0_218 = arith.constant 0 : index
    %c0_219 = arith.constant 0 : index
    %c11 = arith.constant 11 : index
    %c0_220 = arith.constant 0 : index
    %277 = vector.load %arg9[%c0_218, %c0_219, %c11, %c0_220] : memref<1x8x24x24xf32, #tpu.memory_space<vmem>>, vector<1x8x1x24xf32>
    %278 = vector.shape_cast %277 : vector<1x8x1x24xf32> to vector<8x24xf32>
    %279 = vector.shape_cast %276 : vector<8x24xf32> to vector<1x8x1x24xf32>
    tpu.vector_store %arg9[%c0_218, %c0_219, %c11, %c0_220], %279 {strides = array<i32>} : memref<1x8x24x24xf32, #tpu.memory_space<vmem>>, vector<1x8x1x24xf32>,
    %280 = vector.extract_strided_slice %231 {offsets = [0, 312], sizes = [8, 24], strides = [1, 1]} : vector<8x624xf32> to vector<8x24xf32>
    %c0_221 = arith.constant 0 : index
    %c0_222 = arith.constant 0 : index
    %c12 = arith.constant 12 : index
    %c0_223 = arith.constant 0 : index
    %281 = vector.load %arg9[%c0_221, %c0_222, %c12, %c0_223] : memref<1x8x24x24xf32, #tpu.memory_space<vmem>>, vector<1x8x1x24xf32>
    %282 = vector.shape_cast %281 : vector<1x8x1x24xf32> to vector<8x24xf32>
    %283 = vector.shape_cast %280 : vector<8x24xf32> to vector<1x8x1x24xf32>
    tpu.vector_store %arg9[%c0_221, %c0_222, %c12, %c0_223], %283 {strides = array<i32>} : memref<1x8x24x24xf32, #tpu.memory_space<vmem>>, vector<1x8x1x24xf32>,
    %284 = vector.extract_strided_slice %231 {offsets = [0, 338], sizes = [8, 24], strides = [1, 1]} : vector<8x624xf32> to vector<8x24xf32>
    %c0_224 = arith.constant 0 : index
    %c0_225 = arith.constant 0 : index
    %c13 = arith.constant 13 : index
    %c0_226 = arith.constant 0 : index
    %285 = vector.load %arg9[%c0_224, %c0_225, %c13, %c0_226] : memref<1x8x24x24xf32, #tpu.memory_space<vmem>>, vector<1x8x1x24xf32>
    %286 = vector.shape_cast %285 : vector<1x8x1x24xf32> to vector<8x24xf32>
    %287 = vector.shape_cast %284 : vector<8x24xf32> to vector<1x8x1x24xf32>
    tpu.vector_store %arg9[%c0_224, %c0_225, %c13, %c0_226], %287 {strides = array<i32>} : memref<1x8x24x24xf32, #tpu.memory_space<vmem>>, vector<1x8x1x24xf32>,
    %288 = vector.extract_strided_slice %231 {offsets = [0, 364], sizes = [8, 24], strides = [1, 1]} : vector<8x624xf32> to vector<8x24xf32>
    %c0_227 = arith.constant 0 : index
    %c0_228 = arith.constant 0 : index
    %c14 = arith.constant 14 : index
    %c0_229 = arith.constant 0 : index
    %289 = vector.load %arg9[%c0_227, %c0_228, %c14, %c0_229] : memref<1x8x24x24xf32, #tpu.memory_space<vmem>>, vector<1x8x1x24xf32>
    %290 = vector.shape_cast %289 : vector<1x8x1x24xf32> to vector<8x24xf32>
    %291 = vector.shape_cast %288 : vector<8x24xf32> to vector<1x8x1x24xf32>
    tpu.vector_store %arg9[%c0_227, %c0_228, %c14, %c0_229], %291 {strides = array<i32>} : memref<1x8x24x24xf32, #tpu.memory_space<vmem>>, vector<1x8x1x24xf32>,
    %292 = vector.extract_strided_slice %231 {offsets = [0, 390], sizes = [8, 24], strides = [1, 1]} : vector<8x624xf32> to vector<8x24xf32>
    %c0_230 = arith.constant 0 : index
    %c0_231 = arith.constant 0 : index
    %c15 = arith.constant 15 : index
    %c0_232 = arith.constant 0 : index
    %293 = vector.load %arg9[%c0_230, %c0_231, %c15, %c0_232] : memref<1x8x24x24xf32, #tpu.memory_space<vmem>>, vector<1x8x1x24xf32>
    %294 = vector.shape_cast %293 : vector<1x8x1x24xf32> to vector<8x24xf32>
    %295 = vector.shape_cast %292 : vector<8x24xf32> to vector<1x8x1x24xf32>
    tpu.vector_store %arg9[%c0_230, %c0_231, %c15, %c0_232], %295 {strides = array<i32>} : memref<1x8x24x24xf32, #tpu.memory_space<vmem>>, vector<1x8x1x24xf32>,
    %296 = vector.extract_strided_slice %231 {offsets = [0, 416], sizes = [8, 24], strides = [1, 1]} : vector<8x624xf32> to vector<8x24xf32>
    %c0_233 = arith.constant 0 : index
    %c0_234 = arith.constant 0 : index
    %c16 = arith.constant 16 : index
    %c0_235 = arith.constant 0 : index
    %297 = vector.load %arg9[%c0_233, %c0_234, %c16, %c0_235] : memref<1x8x24x24xf32, #tpu.memory_space<vmem>>, vector<1x8x1x24xf32>
    %298 = vector.shape_cast %297 : vector<1x8x1x24xf32> to vector<8x24xf32>
    %299 = vector.shape_cast %296 : vector<8x24xf32> to vector<1x8x1x24xf32>
    tpu.vector_store %arg9[%c0_233, %c0_234, %c16, %c0_235], %299 {strides = array<i32>} : memref<1x8x24x24xf32, #tpu.memory_space<vmem>>, vector<1x8x1x24xf32>,
    %300 = vector.extract_strided_slice %231 {offsets = [0, 442], sizes = [8, 24], strides = [1, 1]} : vector<8x624xf32> to vector<8x24xf32>
    %c0_236 = arith.constant 0 : index
    %c0_237 = arith.constant 0 : index
    %c17 = arith.constant 17 : index
    %c0_238 = arith.constant 0 : index
    %301 = vector.load %arg9[%c0_236, %c0_237, %c17, %c0_238] : memref<1x8x24x24xf32, #tpu.memory_space<vmem>>, vector<1x8x1x24xf32>
    %302 = vector.shape_cast %301 : vector<1x8x1x24xf32> to vector<8x24xf32>
    %303 = vector.shape_cast %300 : vector<8x24xf32> to vector<1x8x1x24xf32>
    tpu.vector_store %arg9[%c0_236, %c0_237, %c17, %c0_238], %303 {strides = array<i32>} : memref<1x8x24x24xf32, #tpu.memory_space<vmem>>, vector<1x8x1x24xf32>,
    %304 = vector.extract_strided_slice %231 {offsets = [0, 468], sizes = [8, 24], strides = [1, 1]} : vector<8x624xf32> to vector<8x24xf32>
    %c0_239 = arith.constant 0 : index
    %c0_240 = arith.constant 0 : index
    %c18 = arith.constant 18 : index
    %c0_241 = arith.constant 0 : index
    %305 = vector.load %arg9[%c0_239, %c0_240, %c18, %c0_241] : memref<1x8x24x24xf32, #tpu.memory_space<vmem>>, vector<1x8x1x24xf32>
    %306 = vector.shape_cast %305 : vector<1x8x1x24xf32> to vector<8x24xf32>
    %307 = vector.shape_cast %304 : vector<8x24xf32> to vector<1x8x1x24xf32>
    tpu.vector_store %arg9[%c0_239, %c0_240, %c18, %c0_241], %307 {strides = array<i32>} : memref<1x8x24x24xf32, #tpu.memory_space<vmem>>, vector<1x8x1x24xf32>,
    %308 = vector.extract_strided_slice %231 {offsets = [0, 494], sizes = [8, 24], strides = [1, 1]} : vector<8x624xf32> to vector<8x24xf32>
    %c0_242 = arith.constant 0 : index
    %c0_243 = arith.constant 0 : index
    %c19 = arith.constant 19 : index
    %c0_244 = arith.constant 0 : index
    %309 = vector.load %arg9[%c0_242, %c0_243, %c19, %c0_244] : memref<1x8x24x24xf32, #tpu.memory_space<vmem>>, vector<1x8x1x24xf32>
    %310 = vector.shape_cast %309 : vector<1x8x1x24xf32> to vector<8x24xf32>
    %311 = vector.shape_cast %308 : vector<8x24xf32> to vector<1x8x1x24xf32>
    tpu.vector_store %arg9[%c0_242, %c0_243, %c19, %c0_244], %311 {strides = array<i32>} : memref<1x8x24x24xf32, #tpu.memory_space<vmem>>, vector<1x8x1x24xf32>,
    %312 = vector.extract_strided_slice %231 {offsets = [0, 520], sizes = [8, 24], strides = [1, 1]} : vector<8x624xf32> to vector<8x24xf32>
    %c0_245 = arith.constant 0 : index
    %c0_246 = arith.constant 0 : index
    %c20 = arith.constant 20 : index
    %c0_247 = arith.constant 0 : index
    %313 = vector.load %arg9[%c0_245, %c0_246, %c20, %c0_247] : memref<1x8x24x24xf32, #tpu.memory_space<vmem>>, vector<1x8x1x24xf32>
    %314 = vector.shape_cast %313 : vector<1x8x1x24xf32> to vector<8x24xf32>
    %315 = vector.shape_cast %312 : vector<8x24xf32> to vector<1x8x1x24xf32>
    tpu.vector_store %arg9[%c0_245, %c0_246, %c20, %c0_247], %315 {strides = array<i32>} : memref<1x8x24x24xf32, #tpu.memory_space<vmem>>, vector<1x8x1x24xf32>,
    %316 = vector.extract_strided_slice %231 {offsets = [0, 546], sizes = [8, 24], strides = [1, 1]} : vector<8x624xf32> to vector<8x24xf32>
    %c0_248 = arith.constant 0 : index
    %c0_249 = arith.constant 0 : index
    %c21 = arith.constant 21 : index
    %c0_250 = arith.constant 0 : index
    %317 = vector.load %arg9[%c0_248, %c0_249, %c21, %c0_250] : memref<1x8x24x24xf32, #tpu.memory_space<vmem>>, vector<1x8x1x24xf32>
    %318 = vector.shape_cast %317 : vector<1x8x1x24xf32> to vector<8x24xf32>
    %319 = vector.shape_cast %316 : vector<8x24xf32> to vector<1x8x1x24xf32>
    tpu.vector_store %arg9[%c0_248, %c0_249, %c21, %c0_250], %319 {strides = array<i32>} : memref<1x8x24x24xf32, #tpu.memory_space<vmem>>, vector<1x8x1x24xf32>,
    %320 = vector.extract_strided_slice %231 {offsets = [0, 572], sizes = [8, 24], strides = [1, 1]} : vector<8x624xf32> to vector<8x24xf32>
    %c0_251 = arith.constant 0 : index
    %c0_252 = arith.constant 0 : index
    %c22 = arith.constant 22 : index
    %c0_253 = arith.constant 0 : index
    %321 = vector.load %arg9[%c0_251, %c0_252, %c22, %c0_253] : memref<1x8x24x24xf32, #tpu.memory_space<vmem>>, vector<1x8x1x24xf32>
    %322 = vector.shape_cast %321 : vector<1x8x1x24xf32> to vector<8x24xf32>
    %323 = vector.shape_cast %320 : vector<8x24xf32> to vector<1x8x1x24xf32>
    tpu.vector_store %arg9[%c0_251, %c0_252, %c22, %c0_253], %323 {strides = array<i32>} : memref<1x8x24x24xf32, #tpu.memory_space<vmem>>, vector<1x8x1x24xf32>,
    %324 = vector.extract_strided_slice %231 {offsets = [0, 598], sizes = [8, 24], strides = [1, 1]} : vector<8x624xf32> to vector<8x24xf32>
    %c0_254 = arith.constant 0 : index
    %c0_255 = arith.constant 0 : index
    %c23 = arith.constant 23 : index
    %c0_256 = arith.constant 0 : index
    %325 = vector.load %arg9[%c0_254, %c0_255, %c23, %c0_256] : memref<1x8x24x24xf32, #tpu.memory_space<vmem>>, vector<1x8x1x24xf32>
    %326 = vector.shape_cast %325 : vector<1x8x1x24xf32> to vector<8x24xf32>
    %327 = vector.shape_cast %324 : vector<8x24xf32> to vector<1x8x1x24xf32>
    tpu.vector_store %arg9[%c0_254, %c0_255, %c23, %c0_256], %327 {strides = array<i32>} : memref<1x8x24x24xf32, #tpu.memory_space<vmem>>, vector<1x8x1x24xf32>,
    return
  }
  func.func @transform_0(%arg0: i32) -> (i32, i32, i32) {
    %c0_i32 = arith.constant 0 : i32
    %c0_i32_0 = arith.constant 0 : i32
    %c0_i32_1 = arith.constant 0 : i32
    return %arg0, %c0_i32, %c0_i32_0 : i32, i32, i32
  }
  func.func @transform_1(%arg0: i32) -> (i32, i32, i32) {
    %c0_i32 = arith.constant 0 : i32
    %c0_i32_0 = arith.constant 0 : i32
    %c0_i32_1 = arith.constant 0 : i32
    %c0_i32_2 = arith.constant 0 : i32
    return %c0_i32, %c0_i32_0, %c0_i32_1 : i32, i32, i32
  }
  func.func @transform_2(%arg0: i32) -> (i32, i32, i32) {
    %c0_i32 = arith.constant 0 : i32
    %c0_i32_0 = arith.constant 0 : i32
    %c0_i32_1 = arith.constant 0 : i32
    %c0_i32_2 = arith.constant 0 : i32
    return %c0_i32, %c0_i32_0, %c0_i32_1 : i32, i32, i32
  }
  func.func @transform_3(%arg0: i32) -> (i32, i32) {
    %c0_i32 = arith.constant 0 : i32
    %c0_i32_0 = arith.constant 0 : i32
    %c0_i32_1 = arith.constant 0 : i32
    return %c0_i32, %c0_i32_0 : i32, i32
  }
  func.func @transform_4(%arg0: i32) -> (i32, i32, i32) {
    %c0_i32 = arith.constant 0 : i32
    %c0_i32_0 = arith.constant 0 : i32
    %c0_i32_1 = arith.constant 0 : i32
    %c0_i32_2 = arith.constant 0 : i32
    return %c0_i32, %c0_i32_0, %c0_i32_1 : i32, i32, i32
  }
  func.func @transform_5(%arg0: i32) -> (i32, i32) {
    %c0_i32 = arith.constant 0 : i32
    %c0_i32_0 = arith.constant 0 : i32
    %c0_i32_1 = arith.constant 0 : i32
    return %c0_i32, %c0_i32_0 : i32, i32
  }
  func.func @transform_6(%arg0: i32) -> (i32, i32, i32) {
    %c0_i32 = arith.constant 0 : i32
    %c0_i32_0 = arith.constant 0 : i32
    %c0_i32_1 = arith.constant 0 : i32
    %c0_i32_2 = arith.constant 0 : i32
    return %c0_i32, %c0_i32_0, %c0_i32_1 : i32, i32, i32
  }
  func.func @transform_7(%arg0: i32) -> (i32, i32) {
    %c0_i32 = arith.constant 0 : i32
    %c0_i32_0 = arith.constant 0 : i32
    %c0_i32_1 = arith.constant 0 : i32
    return %c0_i32, %c0_i32_0 : i32, i32
  }
  func.func @transform_8(%arg0: i32) -> (i32, i32, i32, i32) {
    %c0_i32 = arith.constant 0 : i32
    %c0_i32_0 = arith.constant 0 : i32
    %c0_i32_1 = arith.constant 0 : i32
    %c0_i32_2 = arith.constant 0 : i32
    return %arg0, %c0_i32, %c0_i32_0, %c0_i32_1 : i32, i32, i32, i32
  }
}

</mosaic_0001>

<llo_original>
// kernel: same_decoder.1
$region0: #{same_decoder.1}
  #allocation0 [shape = 'u32[]', space=smem, size = 0x4, offset = 0x4, fixed_abs, tag = 'smem constant byte address 0x4 - core index']
  #allocation1 [shape = 'u32[144,128]{1,0:T(1,128)}', space=vmem, size = 0x12000, scoped, tag = 'internal scratch']
  #allocation2 [shape = 'bf16[4,768]{1,0:T(4,128)(2,1)}', space=vmem, size = 0x1800, scoped, tag = 'scratch operand']
  #allocation3 [shape = 'bf16[8,896]{1,0:T(8,128)(2,1)}', space=vmem, size = 0x3800, scoped, tag = 'scratch operand']
  %s0 = inlined_call_operand.vmem [shape: bf16[2,5,64], index: 0, kind: input, shape index: {}]
  %s1 = inlined_call_operand.vmem [shape: bf16[9,4,5], index: 1, kind: input, shape index: {}]
  %s2 = inlined_call_operand.vmem [shape: bf16[9,8,4], index: 2, kind: input, shape index: {}]
  %s3 = inlined_call_operand.vmem [shape: f32[8,1], index: 3, kind: input, shape index: {}]
  %s4 = inlined_call_operand.vmem [shape: bf16[9,8,8], index: 4, kind: input, shape index: {}]
  %s5 = inlined_call_operand.vmem [shape: f32[8,1], index: 5, kind: input, shape index: {}]
  %s6 = inlined_call_operand.vmem [shape: s32[9,64,1], index: 6, kind: input, shape index: {}]
  %s7 = inlined_call_operand.vmem [shape: f32[1,624], index: 7, kind: input, shape index: {}]
  %s8 = inlined_call_operand.hbm [shape: f32[2,8,24,24], index: 8, kind: output, shape index: {}]
  %s9 = sld [smem:[#allocation0]]
  $region65: #{same_decoder.1} parent=0
    _
  %s11 = ssub.s32 1, %s9
  %s12 = scalar_select 0, %s11, %s9
  $region1: #{same_decoder.1} parent=0
    #allocation4 [shape = 'u8[196608]{0}', space=vmem, size = 0x30000, scoped, tag = 'output window, operand 0']
    #allocation5 [shape = 's32[2]{0}', space=sflag, size = 0x8, scoped, tag = 'scoped memory for same_decoder.1']
    %13 = vsyncpa [#allocation5], 0
    %s14 = scalar_lea.sflag [#allocation5], 1
    %15 = vsyncpa %s14, 0
    loop: start=0, step=1, limit=4
    $region2: #{same_decoder.1} parent=1 // loop_pre_header
      _
    $region3: #{same_decoder.1} parent=1 // loop_header
      %s17 = sphi 0, %s21
      %p18 = scmp.ge.s32.totalorder %s17, 4
      %s27 = sphi 0, %s29
      %s30 = sphi 0, %s27
      %s31 = sphi 0, %s30
      %s47 = sphi 0, %s31
      %s51 = sphi 0, %s51
      %s53 = sphi 0, %s51
      %s54 = sphi 0, %s53
      %s68 = sphi 0, %s54
      %s72 = sphi 0, %s72
      %s74 = sphi 0, %s72
      %s75 = sphi 0, %s74
      %s89 = sphi 0, %s75
      %s93 = sphi 0, %s93
      %s95 = sphi 0, %s93
      %s96 = sphi 0, %s95
      %s110 = sphi 0, %s96
      %s114 = sphi 0, %s114
      %s116 = sphi 0, %s114
      %s117 = sphi 0, %s116
      %s131 = sphi 0, %s117
      %s135 = sphi 0, %s135
      %s137 = sphi 0, %s135
      %s138 = sphi 0, %s137
      %s152 = sphi 0, %s138
      %s156 = sphi 0, %s156
      %s158 = sphi 0, %s156
      %s159 = sphi 0, %s158
      %s173 = sphi 0, %s159
      %s177 = sphi 0, %s177
      %s179 = sphi 0, %s177
      %s180 = sphi 0, %s179
      %s194 = sphi 0, %s180
      %s200 = sphi 0, %s202
      %s203 = sphi 0, %s200
      %s204 = sphi 0, %s203
      %s220 = sphi 0, %s204
    $region4: #{same_decoder.1} parent=1 // loop_header_branch
      %20 = sbr.rel (%p18) target = $region8
    $region5: #{same_decoder.1} parent=1 // loop_body
      %s22 = ssub.s32 %s17, 1
      %s23 = ssub.s32 %s17, 2
      %s24 = sadd.s32 %s17, 1
      %s25 = ssub.s32 %s17, %s24
      %p26 = scmp.eq.s32.totalorder %s25, 0
      %s28 = sadd.s32 %s27, 1
      %s29 = scalar_select %p26, %s27, %s28
      %p32 = pneg %p26
      %p33 = scmp.eq.s32.totalorder %s17, 1
      %p34 = por %p32, %p33
      %p35 = scmp.ne.s32.totalorder %s27, %s30
      %p36 = scmp.eq.s32.totalorder %s17, 0
      %p37 = por %p35, %p36
      %p38 = scmp.ne.s32.totalorder %s27, %s30
      %p39 = scmp.eq.s32.totalorder %s22, 1
      %p40 = por %p38, %p39
      %p41 = scmp.ne.s32.totalorder %s30, %s31
      %p42 = scmp.eq.s32.totalorder %s22, 0
      %p43 = por %p41, %p42
      %p44 = scmp.ne.s32.totalorder %s30, %s31
      %p45 = scmp.eq.s32.totalorder %s23, 1
      %p46 = por %p44, %p45
      %p48 = scmp.ne.s32.totalorder %s31, %s47
      %p49 = scmp.eq.s32.totalorder %s23, 0
      %p50 = por %p48, %p49
      %s52 = sadd.s32 %s51, 1
      %p55 = scmp.eq.s32.totalorder %s17, 1
      %p56 = scmp.ne.s32.totalorder %s51, %s53
      %p57 = scmp.eq.s32.totalorder %s17, 0
      %p58 = por %p56, %p57
      %p59 = scmp.ne.s32.totalorder %s51, %s53
      %p60 = scmp.eq.s32.totalorder %s22, 1
      %p61 = por %p59, %p60
      %p62 = scmp.ne.s32.totalorder %s53, %s54
      %p63 = scmp.eq.s32.totalorder %s22, 0
      %p64 = por %p62, %p63
      %p65 = scmp.ne.s32.totalorder %s53, %s54
      %p66 = scmp.eq.s32.totalorder %s23, 1
      %p67 = por %p65, %p66
      %p69 = scmp.ne.s32.totalorder %s54, %s68
      %p70 = scmp.eq.s32.totalorder %s23, 0
      %p71 = por %p69, %p70
      %s73 = sadd.s32 %s72, 1
      %p76 = scmp.eq.s32.totalorder %s17, 1
      %p77 = scmp.ne.s32.totalorder %s72, %s74
      %p78 = scmp.eq.s32.totalorder %s17, 0
      %p79 = por %p77, %p78
      %p80 = scmp.ne.s32.totalorder %s72, %s74
      %p81 = scmp.eq.s32.totalorder %s22, 1
      %p82 = por %p80, %p81
      %p83 = scmp.ne.s32.totalorder %s74, %s75
      %p84 = scmp.eq.s32.totalorder %s22, 0
      %p85 = por %p83, %p84
      %p86 = scmp.ne.s32.totalorder %s74, %s75
      %p87 = scmp.eq.s32.totalorder %s23, 1
      %p88 = por %p86, %p87
      %p90 = scmp.ne.s32.totalorder %s75, %s89
      %p91 = scmp.eq.s32.totalorder %s23, 0
      %p92 = por %p90, %p91
      %s94 = sadd.s32 %s93, 1
      %p97 = scmp.eq.s32.totalorder %s17, 1
      %p98 = scmp.ne.s32.totalorder %s93, %s95
      %p99 = scmp.eq.s32.totalorder %s17, 0
      %p100 = por %p98, %p99
      %p101 = scmp.ne.s32.totalorder %s93, %s95
      %p102 = scmp.eq.s32.totalorder %s22, 1
      %p103 = por %p101, %p102
      %p104 = scmp.ne.s32.totalorder %s95, %s96
      %p105 = scmp.eq.s32.totalorder %s22, 0
      %p106 = por %p104, %p105
      %p107 = scmp.ne.s32.totalorder %s95, %s96
      %p108 = scmp.eq.s32.totalorder %s23, 1
      %p109 = por %p107, %p108
      %p111 = scmp.ne.s32.totalorder %s96, %s110
      %p112 = scmp.eq.s32.totalorder %s23, 0
      %p113 = por %p111, %p112
      %s115 = sadd.s32 %s114, 1
      %p118 = scmp.eq.s32.totalorder %s17, 1
      %p119 = scmp.ne.s32.totalorder %s114, %s116
      %p120 = scmp.eq.s32.totalorder %s17, 0
      %p121 = por %p119, %p120
      %p122 = scmp.ne.s32.totalorder %s114, %s116
      %p123 = scmp.eq.s32.totalorder %s22, 1
      %p124 = por %p122, %p123
      %p125 = scmp.ne.s32.totalorder %s116, %s117
      %p126 = scmp.eq.s32.totalorder %s22, 0
      %p127 = por %p125, %p126
      %p128 = scmp.ne.s32.totalorder %s116, %s117
      %p129 = scmp.eq.s32.totalorder %s23, 1
      %p130 = por %p128, %p129
      %p132 = scmp.ne.s32.totalorder %s117, %s131
      %p133 = scmp.eq.s32.totalorder %s23, 0
      %p134 = por %p132, %p133
      %s136 = sadd.s32 %s135, 1
      %p139 = scmp.eq.s32.totalorder %s17, 1
      %p140 = scmp.ne.s32.totalorder %s135, %s137
      %p141 = scmp.eq.s32.totalorder %s17, 0
      %p142 = por %p140, %p141
      %p143 = scmp.ne.s32.totalorder %s135, %s137
      %p144 = scmp.eq.s32.totalorder %s22, 1
      %p145 = por %p143, %p144
      %p146 = scmp.ne.s32.totalorder %s137, %s138
      %p147 = scmp.eq.s32.totalorder %s22, 0
      %p148 = por %p146, %p147
      %p149 = scmp.ne.s32.totalorder %s137, %s138
      %p150 = scmp.eq.s32.totalorder %s23, 1
      %p151 = por %p149, %p150
      %p153 = scmp.ne.s32.totalorder %s138, %s152
      %p154 = scmp.eq.s32.totalorder %s23, 0
      %p155 = por %p153, %p154
      %s157 = sadd.s32 %s156, 1
      %p160 = scmp.eq.s32.totalorder %s17, 1
      %p161 = scmp.ne.s32.totalorder %s156, %s158
      %p162 = scmp.eq.s32.totalorder %s17, 0
      %p163 = por %p161, %p162
      %p164 = scmp.ne.s32.totalorder %s156, %s158
      %p165 = scmp.eq.s32.totalorder %s22, 1
      %p166 = por %p164, %p165
      %p167 = scmp.ne.s32.totalorder %s158, %s159
      %p168 = scmp.eq.s32.totalorder %s22, 0
      %p169 = por %p167, %p168
      %p170 = scmp.ne.s32.totalorder %s158, %s159
      %p171 = scmp.eq.s32.totalorder %s23, 1
      %p172 = por %p170, %p171
      %p174 = scmp.ne.s32.totalorder %s159, %s173
      %p175 = scmp.eq.s32.totalorder %s23, 0
      %p176 = por %p174, %p175
      %s178 = sadd.s32 %s177, 1
      %p181 = scmp.eq.s32.totalorder %s17, 1
      %p182 = scmp.ne.s32.totalorder %s177, %s179
      %p183 = scmp.eq.s32.totalorder %s17, 0
      %p184 = por %p182, %p183
      %p185 = scmp.ne.s32.totalorder %s177, %s179
      %p186 = scmp.eq.s32.totalorder %s22, 1
      %p187 = por %p185, %p186
      %p188 = scmp.ne.s32.totalorder %s179, %s180
      %p189 = scmp.eq.s32.totalorder %s22, 0
      %p190 = por %p188, %p189
      %p191 = scmp.ne.s32.totalorder %s179, %s180
      %p192 = scmp.eq.s32.totalorder %s23, 1
      %p193 = por %p191, %p192
      %p195 = scmp.ne.s32.totalorder %s180, %s194
      %p196 = scmp.eq.s32.totalorder %s23, 0
      %p197 = por %p195, %p196
      %s198 = ssub.s32 %s17, %s24
      %p199 = scmp.eq.s32.totalorder %s198, 0
      %s201 = sadd.s32 %s200, 1
      %s202 = scalar_select %p199, %s200, %s201
      %p205 = pneg %p199
      %p206 = scmp.eq.s32.totalorder %s17, 1
      %p207 = por %p205, %p206
      %p208 = scmp.ne.s32.totalorder %s200, %s203
      %p209 = scmp.eq.s32.totalorder %s17, 0
      %p210 = por %p208, %p209
      %p211 = scmp.ne.s32.totalorder %s200, %s203
      %p212 = scmp.eq.s32.totalorder %s22, 1
      %p213 = por %p211, %p212
      %p214 = scmp.ne.s32.totalorder %s203, %s204
      %p215 = scmp.eq.s32.totalorder %s22, 0
      %p216 = por %p214, %p215
      %p217 = scmp.ne.s32.totalorder %s203, %s204
      %p218 = scmp.eq.s32.totalorder %s23, 1
      %p219 = por %p217, %p218
      %p221 = scmp.ne.s32.totalorder %s204, %s220
      %p222 = scmp.eq.s32.totalorder %s23, 0
      %p223 = por %p221, %p222
      %p224 = scmp.le.s32.totalorder 1, %s17
      %p225 = scmp.lt.s32.totalorder %s17, 3
      %p226 = pnand %p224, %p225
      %p227 = pneg %p226
      // Predicated region
      $region9: #{same_decoder.1} parent=5 // pred_check
        _
      $region10: #{same_decoder.1} parent=5 // pred_check_branch
        %229 = sbr.rel (%p226) target = $region12
      $region11: #{same_decoder.1} parent=5 // pred_region
        %s230 = ssub.s32 %s17, 1
        // Predicated region
        $region13: #{same_decoder.1} parent=11 // pred_check
          %p231 = pneg %p64
        $region14: #{same_decoder.1} parent=11 // pred_check_branch
          %233 = sbr.rel (%p231) target = $region16
        $region15: #{same_decoder.1} parent=11 // pred_region
          _
        $region16: #{same_decoder.1} parent=11 // pred_fallthru
          _
        // Predicated region
        $region17: #{same_decoder.1} parent=11 // pred_check
          %p234 = pneg %p85
        $region18: #{same_decoder.1} parent=11 // pred_check_branch
          %236 = sbr.rel (%p234) target = $region20
        $region19: #{same_decoder.1} parent=11 // pred_region
          _
        $region20: #{same_decoder.1} parent=11 // pred_fallthru
          _
        // Predicated region
        $region21: #{same_decoder.1} parent=11 // pred_check
          %p237 = pneg %p106
        $region22: #{same_decoder.1} parent=11 // pred_check_branch
          %239 = sbr.rel (%p237) target = $region24
        $region23: #{same_decoder.1} parent=11 // pred_region
          _
        $region24: #{same_decoder.1} parent=11 // pred_fallthru
          _
        // Predicated region
        $region25: #{same_decoder.1} parent=11 // pred_check
          %p240 = pneg %p127
        $region26: #{same_decoder.1} parent=11 // pred_check_branch
          %242 = sbr.rel (%p240) target = $region28
        $region27: #{same_decoder.1} parent=11 // pred_region
          _
        $region28: #{same_decoder.1} parent=11 // pred_fallthru
          _
        // Predicated region
        $region29: #{same_decoder.1} parent=11 // pred_check
          %p243 = pneg %p148
        $region30: #{same_decoder.1} parent=11 // pred_check_branch
          %245 = sbr.rel (%p243) target = $region32
        $region31: #{same_decoder.1} parent=11 // pred_region
          _
        $region32: #{same_decoder.1} parent=11 // pred_fallthru
          _
        // Predicated region
        $region33: #{same_decoder.1} parent=11 // pred_check
          %p246 = pneg %p169
        $region34: #{same_decoder.1} parent=11 // pred_check_branch
          %248 = sbr.rel (%p246) target = $region36
        $region35: #{same_decoder.1} parent=11 // pred_region
          _
        $region36: #{same_decoder.1} parent=11 // pred_fallthru
          _
        // Predicated region
        $region37: #{same_decoder.1} parent=11 // pred_check
          %p249 = pneg %p190
        $region38: #{same_decoder.1} parent=11 // pred_check_branch
          %251 = sbr.rel (%p249) target = $region40
        $region39: #{same_decoder.1} parent=11 // pred_region
          _
        $region40: #{same_decoder.1} parent=11 // pred_fallthru
          _
      $region12: #{same_decoder.1} parent=5 // pred_fallthru
        _
      %p252 = scmp.lt.s32.totalorder %s17, 2
      // Predicated region
      $region41: #{same_decoder.1} parent=5 // pred_check
        %p253 = pneg %p252
      $region42: #{same_decoder.1} parent=5 // pred_check_branch
        %255 = sbr.rel (%p253) target = $region44
      $region43: #{same_decoder.1} parent=5 // pred_region
        // Predicated region
        $region45: #{same_decoder.1} parent=43 // pred_check
          %p256 = pneg %p37
        $region46: #{same_decoder.1} parent=43 // pred_check_branch
          %258 = sbr.rel (%p256) target = $region48
        $region47: #{same_decoder.1} parent=43 // pred_region
          %p259 = scmp.lt.s32.totalorder %s17, 1
          %s260 = scalar_select %p259, %s17, 1
          %s261 = smul.addr %s260, 4
          %s262 = scalar_lea.vmem %s0, %s261
        $region48: #{same_decoder.1} parent=43 // pred_fallthru
          _
      $region44: #{same_decoder.1} parent=5 // pred_fallthru
        _
      %p263 = scmp.le.s32.totalorder 1, %s17
      %p264 = scmp.lt.s32.totalorder %s17, 3
      %p265 = pnand %p263, %p264
      %p266 = pneg %p265
      // Predicated region
      $region49: #{same_decoder.1} parent=5 // pred_check
        _
      $region50: #{same_decoder.1} parent=5 // pred_check_branch
        %268 = sbr.rel (%p265) target = $region52
      $region51: #{same_decoder.1} parent=5 // pred_region
        %s269 = ssub.s32 %s17, 1
        %p270 = scmp.lt.s32.totalorder %s22, 1
        %s271 = scalar_select %p270, %s22, 1
        %s272 = smul.addr %s271, 4
        %s273 = scalar_lea.vmem %s0, %s272
        %p274 = pneg %p43
        %p275 = pneg %p40
        %p276 = pneg %p64
        %p277 = pneg %p61
        %p278 = pneg %p85
        %p279 = pneg %p82
        %p280 = pneg %p106
        %p281 = pneg %p103
        %p282 = pneg %p127
        %p283 = pneg %p124
        %p284 = pneg %p148
        %p285 = pneg %p145
        %p286 = pneg %p169
        %p287 = pneg %p166
        %p288 = pneg %p190
        %p289 = pneg %p187
        %p290 = pneg %p216
        %p291 = pneg %p213
        %s292 = sand.u32 %s203, 1
        %s293 = scalar_lea.sflag [#allocation5], %s292
        %s294 = sand.u32 %s203, 1
        %s295 = smul.addr %s294, 192
        %s296 = scalar_lea.vmem [#allocation4], %s295
        %p297 = scmp.lt.s32.totalorder %s22, 1
        %s298 = scalar_select %p297, %s22, 1
        %s299 = smul.addr %s298, 4
        %s300 = scalar_lea.vmem %s0, %s299
        %v302 = vld [vmem:[%s300] sm:$0x7]
        %v303 = vlaneseq
        %v304 = vand.u32 %v303, 127
        %v305 = vadd.s32 %v304, 128
        %v306 = vadd.s32 %v304, 256
        %v307 = vadd.s32 %v304, 384
        %v308 = vadd.s32 %v304, 512
        %v309 = vadd.s32 %v304, 640
        %v310 = vld [vmem:[%s1] sm:$0x3]
        %vm311 = vcmask 39936
        %v313 = vsel %vm311, %v310, 0
        %vm315 = vcmask 1041408
        %vm316 = vcmask 1042432
        %v317 = vsel %vm315, 4294967295, 65535
        %v318 = vsel %vm316, %v317, 0
        %v320 = vand.u32 %v302, %v318
        %322 = vmatprep.subr.bf16.mxu0 0
        %323 = vmatpush1.bf16.msra.mxu0 %v320
        %324 = vmatprep.subr.bf16.mxu0 0
        %325 = vmatpush1.bf16.msra.mxu0 0
        %326 = vmatprep.subr.bf16.mxu0 0
        %327 = vmatpush1.bf16.msra.mxu0 0
        %328 = vmatprep.subr.bf16.mxu0 0
        %329 = vmatpush1.bf16.msra.mxu0 0
        %330 = vmatprep.subr.bf16.mxu0 0
        %331 = vmatpush1.bf16.msra.mxu0 0
        %332 = vmatprep.subr.bf16.mxu0 0
        %333 = vmatpush1.bf16.msra.mxu0 0
        %334 = vmatprep.subr.bf16.mxu0 0
        %335 = vmatpush1.bf16.msra.mxu0 0
        %336 = vmatprep.subr.bf16.mxu0 0
        %337 = vmatpush1.bf16.msra.mxu0 0
        %338 = vmatprep.subr.bf16.mxu0 0
        %339 = vmatpush1.bf16.msra.mxu0 0
        %340 = vmatprep.subr.bf16.mxu0 0
        %341 = vmatpush1.bf16.msra.mxu0 0
        %342 = vmatprep.subr.bf16.mxu0 0
        %343 = vmatpush1.bf16.msra.mxu0 0
        %344 = vmatprep.subr.bf16.mxu0 0
        %345 = vmatpush1.bf16.msra.mxu0 0
        %346 = vmatprep.subr.bf16.mxu0 0
        %347 = vmatpush1.bf16.msra.mxu0 0
        %348 = vmatprep.subr.bf16.mxu0 0
        %349 = vmatpush1.bf16.msra.mxu0 0
        %350 = vmatprep.subr.bf16.mxu0 0
        %351 = vmatpush1.bf16.msra.mxu0 0
        %352 = vmatprep.subr.bf16.mxu0 0
        %353 = vmatpush1.bf16.msra.mxu0 0
        %354 = vmatprep.mubr.bf16.mxu0 0
        %355 = vmatmul.mubr.bf16.gmra.mrb[0].mxu0 %v313
        %v356 = vpop.f32.mrb[0].mxu0
        %v357 = vadd.f32 0.0, %v356
        %v358 = vpop.f32.mrb[0].mxu0
        %v359 = vpop.f32.mrb[0].mxu0
        %v360 = vpop.f32.mrb[0].mxu0
        %361 = vdwg.mxu0
        %v362 = vld [vmem:[%s6] sm:$0xff]
        %v363 = vld [vmem:[%s6 + $0x8] sm:$0xff]
        %v364 = vld [vmem:[%s6 + $0x10] sm:$0xff]
        %v365 = vld [vmem:[%s6 + $0x18] sm:$0xff]
        %v366 = vld [vmem:[%s6 + $0x20] sm:$0xff]
        %v367 = vld [vmem:[%s6 + $0x28] sm:$0xff]
        %v368 = vld [vmem:[%s6 + $0x30] sm:$0xff]
        %v369 = vld [vmem:[%s6 + $0x38] sm:$0xff]
        %370 = vset.pattern.permute.xlu0 0
        %371 = vperm.xlu0 %370, %v362
        %v372 = vpop.permute.xlu0 %371
        %373 = vset.pattern.permute.xlu0 0
        %374 = vperm.xlu0 %373, %v363
        %v375 = vpop.permute.xlu0 %374
        %376 = vset.pattern.permute.xlu0 0
        %377 = vperm.xlu0 %376, %v364
        %v378 = vpop.permute.xlu0 %377
        %379 = vset.pattern.permute.xlu0 0
        %380 = vperm.xlu0 %379, %v365
        %v381 = vpop.permute.xlu0 %380
        %382 = vset.pattern.permute.xlu0 0
        %383 = vperm.xlu0 %382, %v366
        %v384 = vpop.permute.xlu0 %383
        %385 = vset.pattern.permute.xlu0 0
        %386 = vperm.xlu0 %385, %v367
        %v387 = vpop.permute.xlu0 %386
        %388 = vset.pattern.permute.xlu0 0
        %389 = vperm.xlu0 %388, %v368
        %v390 = vpop.permute.xlu0 %389
        %391 = vset.pattern.permute.xlu0 0
        %392 = vperm.xlu0 %391, %v369
        %v393 = vpop.permute.xlu0 %392
        %vm394 = vcmp.eq.s32.totalorder %v304, %v372
        %vm395 = vcmp.eq.s32.totalorder %v305, %v372
        %vm396 = vcmp.eq.s32.totalorder %v306, %v372
        %vm397 = vcmp.eq.s32.totalorder %v307, %v372
        %vm398 = vcmp.eq.s32.totalorder %v308, %v372
        %vm399 = vcmp.eq.s32.totalorder %v309, %v372
        %vm400 = vcmp.eq.s32.totalorder %v304, %v375
        %vm401 = vcmp.eq.s32.totalorder %v305, %v375
        %vm402 = vcmp.eq.s32.totalorder %v306, %v375
        %vm403 = vcmp.eq.s32.totalorder %v307, %v375
        %vm404 = vcmp.eq.s32.totalorder %v308, %v375
        %vm405 = vcmp.eq.s32.totalorder %v309, %v375
        %vm406 = vcmp.eq.s32.totalorder %v304, %v378
        %vm407 = vcmp.eq.s32.totalorder %v305, %v378
        %vm408 = vcmp.eq.s32.totalorder %v306, %v378
        %vm409 = vcmp.eq.s32.totalorder %v307, %v378
        %vm410 = vcmp.eq.s32.totalorder %v308, %v378
        %vm411 = vcmp.eq.s32.totalorder %v309, %v378
        %vm412 = vcmp.eq.s32.totalorder %v304, %v381
        %vm413 = vcmp.eq.s32.totalorder %v305, %v381
        %vm414 = vcmp.eq.s32.totalorder %v306, %v381
        %vm415 = vcmp.eq.s32.totalorder %v307, %v381
        %vm416 = vcmp.eq.s32.totalorder %v308, %v381
        %vm417 = vcmp.eq.s32.totalorder %v309, %v381
        %vm418 = vcmp.eq.s32.totalorder %v304, %v384
        %vm419 = vcmp.eq.s32.totalorder %v305, %v384
        %vm420 = vcmp.eq.s32.totalorder %v306, %v384
        %vm421 = vcmp.eq.s32.totalorder %v307, %v384
        %vm422 = vcmp.eq.s32.totalorder %v308, %v384
        %vm423 = vcmp.eq.s32.totalorder %v309, %v384
        %vm424 = vcmp.eq.s32.totalorder %v304, %v387
        %vm425 = vcmp.eq.s32.totalorder %v305, %v387
        %vm426 = vcmp.eq.s32.totalorder %v306, %v387
        %vm427 = vcmp.eq.s32.totalorder %v307, %v387
        %vm428 = vcmp.eq.s32.totalorder %v308, %v387
        %vm429 = vcmp.eq.s32.totalorder %v309, %v387
        %vm430 = vcmp.eq.s32.totalorder %v304, %v390
        %vm431 = vcmp.eq.s32.totalorder %v305, %v390
        %vm432 = vcmp.eq.s32.totalorder %v306, %v390
        %vm433 = vcmp.eq.s32.totalorder %v307, %v390
        %vm434 = vcmp.eq.s32.totalorder %v308, %v390
        %vm435 = vcmp.eq.s32.totalorder %v309, %v390
        %vm436 = vcmp.eq.s32.totalorder %v304, %v393
        %vm437 = vcmp.eq.s32.totalorder %v305, %v393
        %vm438 = vcmp.eq.s32.totalorder %v306, %v393
        %vm439 = vcmp.eq.s32.totalorder %v307, %v393
        %vm440 = vcmp.eq.s32.totalorder %v308, %v393
        %vm441 = vcmp.eq.s32.totalorder %v309, %v393
        %v442 = vsel %vm394, 1, 0
        %v443 = vsel %vm395, 1, 0
        %v444 = vsel %vm396, 1, 0
        %v445 = vsel %vm397, 1, 0
        %v446 = vsel %vm398, 1, 0
        %v447 = vsel %vm399, 1, 0
        %v448 = vsel %vm400, 1, 0
        %v449 = vsel %vm401, 1, 0
        %v450 = vsel %vm402, 1, 0
        %v451 = vsel %vm403, 1, 0
        %v452 = vsel %vm404, 1, 0
        %v453 = vsel %vm405, 1, 0
        %v454 = vsel %vm406, 1, 0
        %v455 = vsel %vm407, 1, 0
        %v456 = vsel %vm408, 1, 0
        %v457 = vsel %vm409, 1, 0
        %v458 = vsel %vm410, 1, 0
        %v459 = vsel %vm411, 1, 0
        %v460 = vsel %vm412, 1, 0
        %v461 = vsel %vm413, 1, 0
        %v462 = vsel %vm414, 1, 0
        %v463 = vsel %vm415, 1, 0
        %v464 = vsel %vm416, 1, 0
        %v465 = vsel %vm417, 1, 0
        %v466 = vsel %vm418, 1, 0
        %v467 = vsel %vm419, 1, 0
        %v468 = vsel %vm420, 1, 0
        %v469 = vsel %vm421, 1, 0
        %v470 = vsel %vm422, 1, 0
        %v471 = vsel %vm423, 1, 0
        %v472 = vsel %vm424, 1, 0
        %v473 = vsel %vm425, 1, 0
        %v474 = vsel %vm426, 1, 0
        %v475 = vsel %vm427, 1, 0
        %v476 = vsel %vm428, 1, 0
        %v477 = vsel %vm429, 1, 0
        %v478 = vsel %vm430, 1, 0
        %v479 = vsel %vm431, 1, 0
        %v480 = vsel %vm432, 1, 0
        %v481 = vsel %vm433, 1, 0
        %v482 = vsel %vm434, 1, 0
        %v483 = vsel %vm435, 1, 0
        %v484 = vsel %vm436, 1, 0
        %v485 = vsel %vm437, 1, 0
        %v486 = vsel %vm438, 1, 0
        %v487 = vsel %vm439, 1, 0
        %v488 = vsel %vm440, 1, 0
        %v489 = vsel %vm441, 1, 0
        %v490 = vcvt.s32.f32 %v442
        %v491 = vcvt.s32.f32 %v443
        %v492 = vcvt.s32.f32 %v444
        %v493 = vcvt.s32.f32 %v445
        %v494 = vcvt.s32.f32 %v446
        %v495 = vcvt.s32.f32 %v447
        %v496 = vcvt.s32.f32 %v448
        %v497 = vcvt.s32.f32 %v449
        %v498 = vcvt.s32.f32 %v450
        %v499 = vcvt.s32.f32 %v451
        %v500 = vcvt.s32.f32 %v452
        %v501 = vcvt.s32.f32 %v453
        %v502 = vcvt.s32.f32 %v454
        %v503 = vcvt.s32.f32 %v455
        %v504 = vcvt.s32.f32 %v456
        %v505 = vcvt.s32.f32 %v457
        %v506 = vcvt.s32.f32 %v458
        %v507 = vcvt.s32.f32 %v459
        %v508 = vcvt.s32.f32 %v460
        %v509 = vcvt.s32.f32 %v461
        %v510 = vcvt.s32.f32 %v462
        %v511 = vcvt.s32.f32 %v463
        %v512 = vcvt.s32.f32 %v464
        %v513 = vcvt.s32.f32 %v465
        %v514 = vcvt.s32.f32 %v466
        %v515 = vcvt.s32.f32 %v467
        %v516 = vcvt.s32.f32 %v468
        %v517 = vcvt.s32.f32 %v469
        %v518 = vcvt.s32.f32 %v470
        %v519 = vcvt.s32.f32 %v471
        %v520 = vcvt.s32.f32 %v472
        %v521 = vcvt.s32.f32 %v473
        %v522 = vcvt.s32.f32 %v474
        %v523 = vcvt.s32.f32 %v475
        %v524 = vcvt.s32.f32 %v476
        %v525 = vcvt.s32.f32 %v477
        %v526 = vcvt.s32.f32 %v478
        %v527 = vcvt.s32.f32 %v479
        %v528 = vcvt.s32.f32 %v480
        %v529 = vcvt.s32.f32 %v481
        %v530 = vcvt.s32.f32 %v482
        %v531 = vcvt.s32.f32 %v483
        %v532 = vcvt.s32.f32 %v484
        %v533 = vcvt.s32.f32 %v485
        %v534 = vcvt.s32.f32 %v486
        %v535 = vcvt.s32.f32 %v487
        %v536 = vcvt.s32.f32 %v488
        %v537 = vcvt.s32.f32 %v489
        %v538 = vpack.c.bf16 %v496, %v490
        %v539 = vpack.c.bf16 %v497, %v491
        %v540 = vpack.c.bf16 %v498, %v492
        %v541 = vpack.c.bf16 %v499, %v493
        %v542 = vpack.c.bf16 %v500, %v494
        %v543 = vpack.c.bf16 %v501, %v495
        %v544 = vpack.c.bf16 %v508, %v502
        %v545 = vpack.c.bf16 %v509, %v503
        %v546 = vpack.c.bf16 %v510, %v504
        %v547 = vpack.c.bf16 %v511, %v505
        %v548 = vpack.c.bf16 %v512, %v506
        %v549 = vpack.c.bf16 %v513, %v507
        %v550 = vpack.c.bf16 %v520, %v514
        %v551 = vpack.c.bf16 %v521, %v515
        %v552 = vpack.c.bf16 %v522, %v516
        %v553 = vpack.c.bf16 %v523, %v517
        %v554 = vpack.c.bf16 %v524, %v518
        %v555 = vpack.c.bf16 %v525, %v519
        %v556 = vpack.c.bf16 %v532, %v526
        %v557 = vpack.c.bf16 %v533, %v527
        %v558 = vpack.c.bf16 %v534, %v528
        %v559 = vpack.c.bf16 %v535, %v529
        %v560 = vpack.c.bf16 %v536, %v530
        %v561 = vpack.c.bf16 %v537, %v531
        %v562 = vpack.c.bf16 %v357, %v357
        %s563 = scalar_lea.vmem %s1, 2
        %v564 = vld [vmem:[%s563] sm:$0x3]
        %v566 = vsel %vm311, %v564, 0
        %568 = vmatprep.subr.bf16.mxu0 0
        %569 = vmatpush1.bf16.msra.mxu0 %v320
        %570 = vmatprep.subr.bf16.mxu0 0
        %571 = vmatpush1.bf16.msra.mxu0 0
        %572 = vmatprep.subr.bf16.mxu0 0
        %573 = vmatpush1.bf16.msra.mxu0 0
        %574 = vmatprep.subr.bf16.mxu0 0
        %575 = vmatpush1.bf16.msra.mxu0 0
        %576 = vmatprep.subr.bf16.mxu0 0
        %577 = vmatpush1.bf16.msra.mxu0 0
        %578 = vmatprep.subr.bf16.mxu0 0
        %579 = vmatpush1.bf16.msra.mxu0 0
        %580 = vmatprep.subr.bf16.mxu0 0
        %581 = vmatpush1.bf16.msra.mxu0 0
        %582 = vmatprep.subr.bf16.mxu0 0
        %583 = vmatpush1.bf16.msra.mxu0 0
        %584 = vmatprep.subr.bf16.mxu0 0
        %585 = vmatpush1.bf16.msra.mxu0 0
        %586 = vmatprep.subr.bf16.mxu0 0
        %587 = vmatpush1.bf16.msra.mxu0 0
        %588 = vmatprep.subr.bf16.mxu0 0
        %589 = vmatpush1.bf16.msra.mxu0 0
        %590 = vmatprep.subr.bf16.mxu0 0
        %591 = vmatpush1.bf16.msra.mxu0 0
        %592 = vmatprep.subr.bf16.mxu0 0
        %593 = vmatpush1.bf16.msra.mxu0 0
        %594 = vmatprep.subr.bf16.mxu0 0
        %595 = vmatpush1.bf16.msra.mxu0 0
        %596 = vmatprep.subr.bf16.mxu0 0
        %597 = vmatpush1.bf16.msra.mxu0 0
        %598 = vmatprep.subr.bf16.mxu0 0
        %599 = vmatpush1.bf16.msra.mxu0 0
        %600 = vmatprep.mubr.bf16.mxu0 0
        %601 = vmatmul.mubr.bf16.gmra.mrb[0].mxu0 %v566
        %v602 = vpop.f32.mrb[0].mxu0
        %v603 = vadd.f32 0.0, %v602
        %v604 = vpop.f32.mrb[0].mxu0
        %v605 = vpop.f32.mrb[0].mxu0
        %v606 = vpop.f32.mrb[0].mxu0
        %607 = vdwg.mxu0
        %s608 = scalar_lea.vmem %s6, 64
        %v609 = vld [vmem:[%s608] sm:$0xff]
        %v610 = vld [vmem:[%s608 + $0x8] sm:$0xff]
        %v611 = vld [vmem:[%s608 + $0x10] sm:$0xff]
        %v612 = vld [vmem:[%s608 + $0x18] sm:$0xff]
        %v613 = vld [vmem:[%s608 + $0x20] sm:$0xff]
        %v614 = vld [vmem:[%s608 + $0x28] sm:$0xff]
        %v615 = vld [vmem:[%s608 + $0x30] sm:$0xff]
        %v616 = vld [vmem:[%s608 + $0x38] sm:$0xff]
        %617 = vset.pattern.permute.xlu0 0
        %618 = vperm.xlu0 %617, %v609
        %v619 = vpop.permute.xlu0 %618
        %620 = vset.pattern.permute.xlu0 0
        %621 = vperm.xlu0 %620, %v610
        %v622 = vpop.permute.xlu0 %621
        %623 = vset.pattern.permute.xlu0 0
        %624 = vperm.xlu0 %623, %v611
        %v625 = vpop.permute.xlu0 %624
        %626 = vset.pattern.permute.xlu0 0
        %627 = vperm.xlu0 %626, %v612
        %v628 = vpop.permute.xlu0 %627
        %629 = vset.pattern.permute.xlu0 0
        %630 = vperm.xlu0 %629, %v613
        %v631 = vpop.permute.xlu0 %630
        %632 = vset.pattern.permute.xlu0 0
        %633 = vperm.xlu0 %632, %v614
        %v634 = vpop.permute.xlu0 %633
        %635 = vset.pattern.permute.xlu0 0
        %636 = vperm.xlu0 %635, %v615
        %v637 = vpop.permute.xlu0 %636
        %638 = vset.pattern.permute.xlu0 0
        %639 = vperm.xlu0 %638, %v616
        %v640 = vpop.permute.xlu0 %639
        %vm641 = vcmp.eq.s32.totalorder %v304, %v619
        %vm642 = vcmp.eq.s32.totalorder %v305, %v619
        %vm643 = vcmp.eq.s32.totalorder %v306, %v619
        %vm644 = vcmp.eq.s32.totalorder %v307, %v619
        %vm645 = vcmp.eq.s32.totalorder %v308, %v619
        %vm646 = vcmp.eq.s32.totalorder %v309, %v619
        %vm647 = vcmp.eq.s32.totalorder %v304, %v622
        %vm648 = vcmp.eq.s32.totalorder %v305, %v622
        %vm649 = vcmp.eq.s32.totalorder %v306, %v622
        %vm650 = vcmp.eq.s32.totalorder %v307, %v622
        %vm651 = vcmp.eq.s32.totalorder %v308, %v622
        %vm652 = vcmp.eq.s32.totalorder %v309, %v622
        %vm653 = vcmp.eq.s32.totalorder %v304, %v625
        %vm654 = vcmp.eq.s32.totalorder %v305, %v625
        %vm655 = vcmp.eq.s32.totalorder %v306, %v625
        %vm656 = vcmp.eq.s32.totalorder %v307, %v625
        %vm657 = vcmp.eq.s32.totalorder %v308, %v625
        %vm658 = vcmp.eq.s32.totalorder %v309, %v625
        %vm659 = vcmp.eq.s32.totalorder %v304, %v628
        %vm660 = vcmp.eq.s32.totalorder %v305, %v628
        %vm661 = vcmp.eq.s32.totalorder %v306, %v628
        %vm662 = vcmp.eq.s32.totalorder %v307, %v628
        %vm663 = vcmp.eq.s32.totalorder %v308, %v628
        %vm664 = vcmp.eq.s32.totalorder %v309, %v628
        %vm665 = vcmp.eq.s32.totalorder %v304, %v631
        %vm666 = vcmp.eq.s32.totalorder %v305, %v631
        %vm667 = vcmp.eq.s32.totalorder %v306, %v631
        %vm668 = vcmp.eq.s32.totalorder %v307, %v631
        %vm669 = vcmp.eq.s32.totalorder %v308, %v631
        %vm670 = vcmp.eq.s32.totalorder %v309, %v631
        %vm671 = vcmp.eq.s32.totalorder %v304, %v634
        %vm672 = vcmp.eq.s32.totalorder %v305, %v634
        %vm673 = vcmp.eq.s32.totalorder %v306, %v634
        %vm674 = vcmp.eq.s32.totalorder %v307, %v634
        %vm675 = vcmp.eq.s32.totalorder %v308, %v634
        %vm676 = vcmp.eq.s32.totalorder %v309, %v634
        %vm677 = vcmp.eq.s32.totalorder %v304, %v637
        %vm678 = vcmp.eq.s32.totalorder %v305, %v637
        %vm679 = vcmp.eq.s32.totalorder %v306, %v637
        %vm680 = vcmp.eq.s32.totalorder %v307, %v637
        %vm681 = vcmp.eq.s32.totalorder %v308, %v637
        %vm682 = vcmp.eq.s32.totalorder %v309, %v637
        %vm683 = vcmp.eq.s32.totalorder %v304, %v640
        %vm684 = vcmp.eq.s32.totalorder %v305, %v640
        %vm685 = vcmp.eq.s32.totalorder %v306, %v640
        %vm686 = vcmp.eq.s32.totalorder %v307, %v640
        %vm687 = vcmp.eq.s32.totalorder %v308, %v640
        %vm688 = vcmp.eq.s32.totalorder %v309, %v640
        %v689 = vsel %vm641, 1, 0
        %v690 = vsel %vm642, 1, 0
        %v691 = vsel %vm643, 1, 0
        %v692 = vsel %vm644, 1, 0
        %v693 = vsel %vm645, 1, 0
        %v694 = vsel %vm646, 1, 0
        %v695 = vsel %vm647, 1, 0
        %v696 = vsel %vm648, 1, 0
        %v697 = vsel %vm649, 1, 0
        %v698 = vsel %vm650, 1, 0
        %v699 = vsel %vm651, 1, 0
        %v700 = vsel %vm652, 1, 0
        %v701 = vsel %vm653, 1, 0
        %v702 = vsel %vm654, 1, 0
        %v703 = vsel %vm655, 1, 0
        %v704 = vsel %vm656, 1, 0
        %v705 = vsel %vm657, 1, 0
        %v706 = vsel %vm658, 1, 0
        %v707 = vsel %vm659, 1, 0
        %v708 = vsel %vm660, 1, 0
        %v709 = vsel %vm661, 1, 0
        %v710 = vsel %vm662, 1, 0
        %v711 = vsel %vm663, 1, 0
        %v712 = vsel %vm664, 1, 0
        %v713 = vsel %vm665, 1, 0
        %v714 = vsel %vm666, 1, 0
        %v715 = vsel %vm667, 1, 0
        %v716 = vsel %vm668, 1, 0
        %v717 = vsel %vm669, 1, 0
        %v718 = vsel %vm670, 1, 0
        %v719 = vsel %vm671, 1, 0
        %v720 = vsel %vm672, 1, 0
        %v721 = vsel %vm673, 1, 0
        %v722 = vsel %vm674, 1, 0
        %v723 = vsel %vm675, 1, 0
        %v724 = vsel %vm676, 1, 0
        %v725 = vsel %vm677, 1, 0
        %v726 = vsel %vm678, 1, 0
        %v727 = vsel %vm679, 1, 0
        %v728 = vsel %vm680, 1, 0
        %v729 = vsel %vm681, 1, 0
        %v730 = vsel %vm682, 1, 0
        %v731 = vsel %vm683, 1, 0
        %v732 = vsel %vm684, 1, 0
        %v733 = vsel %vm685, 1, 0
        %v734 = vsel %vm686, 1, 0
        %v735 = vsel %vm687, 1, 0
        %v736 = vsel %vm688, 1, 0
        %v737 = vcvt.s32.f32 %v689
        %v738 = vcvt.s32.f32 %v690
        %v739 = vcvt.s32.f32 %v691
        %v740 = vcvt.s32.f32 %v692
        %v741 = vcvt.s32.f32 %v693
        %v742 = vcvt.s32.f32 %v694
        %v743 = vcvt.s32.f32 %v695
        %v744 = vcvt.s32.f32 %v696
        %v745 = vcvt.s32.f32 %v697
        %v746 = vcvt.s32.f32 %v698
        %v747 = vcvt.s32.f32 %v699
        %v748 = vcvt.s32.f32 %v700
        %v749 = vcvt.s32.f32 %v701
        %v750 = vcvt.s32.f32 %v702
        %v751 = vcvt.s32.f32 %v703
        %v752 = vcvt.s32.f32 %v704
        %v753 = vcvt.s32.f32 %v705
        %v754 = vcvt.s32.f32 %v706
        %v755 = vcvt.s32.f32 %v707
        %v756 = vcvt.s32.f32 %v708
        %v757 = vcvt.s32.f32 %v709
        %v758 = vcvt.s32.f32 %v710
        %v759 = vcvt.s32.f32 %v711
        %v760 = vcvt.s32.f32 %v712
        %v761 = vcvt.s32.f32 %v713
        %v762 = vcvt.s32.f32 %v714
        %v763 = vcvt.s32.f32 %v715
        %v764 = vcvt.s32.f32 %v716
        %v765 = vcvt.s32.f32 %v717
        %v766 = vcvt.s32.f32 %v718
        %v767 = vcvt.s32.f32 %v719
        %v768 = vcvt.s32.f32 %v720
        %v769 = vcvt.s32.f32 %v721
        %v770 = vcvt.s32.f32 %v722
        %v771 = vcvt.s32.f32 %v723
        %v772 = vcvt.s32.f32 %v724
        %v773 = vcvt.s32.f32 %v725
        %v774 = vcvt.s32.f32 %v726
        %v775 = vcvt.s32.f32 %v727
        %v776 = vcvt.s32.f32 %v728
        %v777 = vcvt.s32.f32 %v729
        %v778 = vcvt.s32.f32 %v730
        %v779 = vcvt.s32.f32 %v731
        %v780 = vcvt.s32.f32 %v732
        %v781 = vcvt.s32.f32 %v733
        %v782 = vcvt.s32.f32 %v734
        %v783 = vcvt.s32.f32 %v735
        %v784 = vcvt.s32.f32 %v736
        %v785 = vpack.c.bf16 %v743, %v737
        %v786 = vpack.c.bf16 %v744, %v738
        %v787 = vpack.c.bf16 %v745, %v739
        %v788 = vpack.c.bf16 %v746, %v740
        %v789 = vpack.c.bf16 %v747, %v741
        %v790 = vpack.c.bf16 %v748, %v742
        %v791 = vpack.c.bf16 %v755, %v749
        %v792 = vpack.c.bf16 %v756, %v750
        %v793 = vpack.c.bf16 %v757, %v751
        %v794 = vpack.c.bf16 %v758, %v752
        %v795 = vpack.c.bf16 %v759, %v753
        %v796 = vpack.c.bf16 %v760, %v754
        %v797 = vpack.c.bf16 %v767, %v761
        %v798 = vpack.c.bf16 %v768, %v762
        %v799 = vpack.c.bf16 %v769, %v763
        %v800 = vpack.c.bf16 %v770, %v764
        %v801 = vpack.c.bf16 %v771, %v765
        %v802 = vpack.c.bf16 %v772, %v766
        %v803 = vpack.c.bf16 %v779, %v773
        %v804 = vpack.c.bf16 %v780, %v774
        %v805 = vpack.c.bf16 %v781, %v775
        %v806 = vpack.c.bf16 %v782, %v776
        %v807 = vpack.c.bf16 %v783, %v777
        %v808 = vpack.c.bf16 %v784, %v778
        %v809 = vpack.c.bf16 %v603, %v603
        %vm810 = vcmask 523264
        %v812 = vsel %vm810, %v809, 0
        %814 = vmatprep.subr.bf16.mxu0 %v786
        %815 = vmatpush1.bf16.msra.mxu0 %v785
        %816 = vmatprep.subr.bf16.mxu0 %v792
        %817 = vmatpush1.bf16.msra.mxu0 %v791
        %818 = vmatprep.subr.bf16.mxu0 %v798
        %819 = vmatpush1.bf16.msra.mxu0 %v797
        %820 = vmatprep.subr.bf16.mxu0 %v804
        %821 = vmatpush1.bf16.msra.mxu0 %v803
        %822 = vmatprep.subr.bf16.mxu0 0
        %823 = vmatpush1.bf16.msra.mxu0 0
        %824 = vmatprep.subr.bf16.mxu0 0
        %825 = vmatpush1.bf16.msra.mxu0 0
        %826 = vmatprep.subr.bf16.mxu0 0
        %827 = vmatpush1.bf16.msra.mxu0 0
        %828 = vmatprep.subr.bf16.mxu0 0
        %829 = vmatpush1.bf16.msra.mxu0 0
        %830 = vmatprep.subr.bf16.mxu0 0
        %831 = vmatpush1.bf16.msra.mxu0 0
        %832 = vmatprep.subr.bf16.mxu0 0
        %833 = vmatpush1.bf16.msra.mxu0 0
        %834 = vmatprep.subr.bf16.mxu0 0
        %835 = vmatpush1.bf16.msra.mxu0 0
        %836 = vmatprep.subr.bf16.mxu0 0
        %837 = vmatpush1.bf16.msra.mxu0 0
        %838 = vmatprep.subr.bf16.mxu0 0
        %839 = vmatpush1.bf16.msra.mxu0 0
        %840 = vmatprep.subr.bf16.mxu0 0
        %841 = vmatpush1.bf16.msra.mxu0 0
        %842 = vmatprep.subr.bf16.mxu0 0
        %843 = vmatpush1.bf16.msra.mxu0 0
        %844 = vmatprep.subr.bf16.mxu0 0
        %845 = vmatpush1.bf16.msra.mxu0 0
        %846 = vmatprep.mubr.bf16.mxu0 0
        %847 = vmatmul.mubr.bf16.gmra.mrb[0].mxu0 %v812
        %v848 = vpop.f32.mrb[0].mxu0
        %v849 = vadd.f32 0.0, %v848
        %v850 = vpop.f32.mrb[0].mxu0
        %v851 = vadd.f32 0.0, %v850
        %v852 = vpop.f32.mrb[0].mxu0
        %v853 = vpop.f32.mrb[0].mxu0
        %854 = vdwg.mxu0
        %855 = vmatprep.subr.bf16.mxu0 %v788
        %856 = vmatpush1.bf16.msra.mxu0 %v787
        %857 = vmatprep.subr.bf16.mxu0 %v794
        %858 = vmatpush1.bf16.msra.mxu0 %v793
        %859 = vmatprep.subr.bf16.mxu0 %v800
        %860 = vmatpush1.bf16.msra.mxu0 %v799
        %861 = vmatprep.subr.bf16.mxu0 %v806
        %862 = vmatpush1.bf16.msra.mxu0 %v805
        %863 = vmatprep.subr.bf16.mxu0 0
        %864 = vmatpush1.bf16.msra.mxu0 0
        %865 = vmatprep.subr.bf16.mxu0 0
        %866 = vmatpush1.bf16.msra.mxu0 0
        %867 = vmatprep.subr.bf16.mxu0 0
        %868 = vmatpush1.bf16.msra.mxu0 0
        %869 = vmatprep.subr.bf16.mxu0 0
        %870 = vmatpush1.bf16.msra.mxu0 0
        %871 = vmatprep.subr.bf16.mxu0 0
        %872 = vmatpush1.bf16.msra.mxu0 0
        %873 = vmatprep.subr.bf16.mxu0 0
        %874 = vmatpush1.bf16.msra.mxu0 0
        %875 = vmatprep.subr.bf16.mxu0 0
        %876 = vmatpush1.bf16.msra.mxu0 0
        %877 = vmatprep.subr.bf16.mxu0 0
        %878 = vmatpush1.bf16.msra.mxu0 0
        %879 = vmatprep.subr.bf16.mxu0 0
        %880 = vmatpush1.bf16.msra.mxu0 0
        %881 = vmatprep.subr.bf16.mxu0 0
        %882 = vmatpush1.bf16.msra.mxu0 0
        %883 = vmatprep.subr.bf16.mxu0 0
        %884 = vmatpush1.bf16.msra.mxu0 0
        %885 = vmatprep.subr.bf16.mxu0 0
        %886 = vmatpush1.bf16.msra.mxu0 0
        %887 = vmatprep.mubr.bf16.mxu0 0
        %888 = vmatmul.mubr.bf16.gmra.mrb[0].mxu0 %v812
        %v889 = vpop.f32.mrb[0].mxu0
        %v890 = vadd.f32 0.0, %v889
        %v891 = vpop.f32.mrb[0].mxu0
        %v892 = vadd.f32 0.0, %v891
        %v893 = vpop.f32.mrb[0].mxu0
        %v894 = vpop.f32.mrb[0].mxu0
        %895 = vdwg.mxu0
        %896 = vmatprep.subr.bf16.mxu0 %v790
        %897 = vmatpush1.bf16.msra.mxu0 %v789
        %898 = vmatprep.subr.bf16.mxu0 %v796
        %899 = vmatpush1.bf16.msra.mxu0 %v795
        %900 = vmatprep.subr.bf16.mxu0 %v802
        %901 = vmatpush1.bf16.msra.mxu0 %v801
        %902 = vmatprep.subr.bf16.mxu0 %v808
        %903 = vmatpush1.bf16.msra.mxu0 %v807
        %904 = vmatprep.subr.bf16.mxu0 0
        %905 = vmatpush1.bf16.msra.mxu0 0
        %906 = vmatprep.subr.bf16.mxu0 0
        %907 = vmatpush1.bf16.msra.mxu0 0
        %908 = vmatprep.subr.bf16.mxu0 0
        %909 = vmatpush1.bf16.msra.mxu0 0
        %910 = vmatprep.subr.bf16.mxu0 0
        %911 = vmatpush1.bf16.msra.mxu0 0
        %912 = vmatprep.subr.bf16.mxu0 0
        %913 = vmatpush1.bf16.msra.mxu0 0
        %914 = vmatprep.subr.bf16.mxu0 0
        %915 = vmatpush1.bf16.msra.mxu0 0
        %916 = vmatprep.subr.bf16.mxu0 0
        %917 = vmatpush1.bf16.msra.mxu0 0
        %918 = vmatprep.subr.bf16.mxu0 0
        %919 = vmatpush1.bf16.msra.mxu0 0
        %920 = vmatprep.subr.bf16.mxu0 0
        %921 = vmatpush1.bf16.msra.mxu0 0
        %922 = vmatprep.subr.bf16.mxu0 0
        %923 = vmatpush1.bf16.msra.mxu0 0
        %924 = vmatprep.subr.bf16.mxu0 0
        %925 = vmatpush1.bf16.msra.mxu0 0
        %926 = vmatprep.subr.bf16.mxu0 0
        %927 = vmatpush1.bf16.msra.mxu0 0
        %928 = vmatprep.mubr.bf16.mxu0 0
        %929 = vmatmul.mubr.bf16.gmra.mrb[0].mxu0 %v812
        %v930 = vpop.f32.mrb[0].mxu0
        %v931 = vadd.f32 0.0, %v930
        %v932 = vpop.f32.mrb[0].mxu0
        %v933 = vadd.f32 0.0, %v932
        %v934 = vpop.f32.mrb[0].mxu0
        %v935 = vpop.f32.mrb[0].mxu0
        %936 = vdwg.mxu0
        %v938 = vsel %vm810, %v562, 0
        %940 = vmatprep.subr.bf16.mxu0 %v539
        %941 = vmatpush1.bf16.msra.mxu0 %v538
        %942 = vmatprep.subr.bf16.mxu0 %v545
        %943 = vmatpush1.bf16.msra.mxu0 %v544
        %944 = vmatprep.subr.bf16.mxu0 %v551
        %945 = vmatpush1.bf16.msra.mxu0 %v550
        %946 = vmatprep.subr.bf16.mxu0 %v557
        %947 = vmatpush1.bf16.msra.mxu0 %v556
        %948 = vmatprep.subr.bf16.mxu0 0
        %949 = vmatpush1.bf16.msra.mxu0 0
        %950 = vmatprep.subr.bf16.mxu0 0
        %951 = vmatpush1.bf16.msra.mxu0 0
        %952 = vmatprep.subr.bf16.mxu0 0
        %953 = vmatpush1.bf16.msra.mxu0 0
        %954 = vmatprep.subr.bf16.mxu0 0
        %955 = vmatpush1.bf16.msra.mxu0 0
        %956 = vmatprep.subr.bf16.mxu0 0
        %957 = vmatpush1.bf16.msra.mxu0 0
        %958 = vmatprep.subr.bf16.mxu0 0
        %959 = vmatpush1.bf16.msra.mxu0 0
        %960 = vmatprep.subr.bf16.mxu0 0
        %961 = vmatpush1.bf16.msra.mxu0 0
        %962 = vmatprep.subr.bf16.mxu0 0
        %963 = vmatpush1.bf16.msra.mxu0 0
        %964 = vmatprep.subr.bf16.mxu0 0
        %965 = vmatpush1.bf16.msra.mxu0 0
        %966 = vmatprep.subr.bf16.mxu0 0
        %967 = vmatpush1.bf16.msra.mxu0 0
        %968 = vmatprep.subr.bf16.mxu0 0
        %969 = vmatpush1.bf16.msra.mxu0 0
        %970 = vmatprep.subr.bf16.mxu0 0
        %971 = vmatpush1.bf16.msra.mxu0 0
        %972 = vmatprep.mubr.bf16.mxu0 0
        %973 = vmatmul.mubr.bf16.gmra.mrb[0].mxu0 %v938
        %v974 = vpop.f32.mrb[0].mxu0
        %v975 = vadd.f32 %v849, %v974
        %v976 = vpop.f32.mrb[0].mxu0
        %v977 = vadd.f32 %v851, %v976
        %v978 = vpop.f32.mrb[0].mxu0
        %v979 = vpop.f32.mrb[0].mxu0
        %980 = vdwg.mxu0
        %981 = vmatprep.subr.bf16.mxu0 %v541
        %982 = vmatpush1.bf16.msra.mxu0 %v540
        %983 = vmatprep.subr.bf16.mxu0 %v547
        %984 = vmatpush1.bf16.msra.mxu0 %v546
        %985 = vmatprep.subr.bf16.mxu0 %v553
        %986 = vmatpush1.bf16.msra.mxu0 %v552
        %987 = vmatprep.subr.bf16.mxu0 %v559
        %988 = vmatpush1.bf16.msra.mxu0 %v558
        %989 = vmatprep.subr.bf16.mxu0 0
        %990 = vmatpush1.bf16.msra.mxu0 0
        %991 = vmatprep.subr.bf16.mxu0 0
        %992 = vmatpush1.bf16.msra.mxu0 0
        %993 = vmatprep.subr.bf16.mxu0 0
        %994 = vmatpush1.bf16.msra.mxu0 0
        %995 = vmatprep.subr.bf16.mxu0 0
        %996 = vmatpush1.bf16.msra.mxu0 0
        %997 = vmatprep.subr.bf16.mxu0 0
        %998 = vmatpush1.bf16.msra.mxu0 0
        %999 = vmatprep.subr.bf16.mxu0 0
        %1000 = vmatpush1.bf16.msra.mxu0 0
        %1001 = vmatprep.subr.bf16.mxu0 0
        %1002 = vmatpush1.bf16.msra.mxu0 0
        %1003 = vmatprep.subr.bf16.mxu0 0
        %1004 = vmatpush1.bf16.msra.mxu0 0
        %1005 = vmatprep.subr.bf16.mxu0 0
        %1006 = vmatpush1.bf16.msra.mxu0 0
        %1007 = vmatprep.subr.bf16.mxu0 0
        %1008 = vmatpush1.bf16.msra.mxu0 0
        %1009 = vmatprep.subr.bf16.mxu0 0
        %1010 = vmatpush1.bf16.msra.mxu0 0
        %1011 = vmatprep.subr.bf16.mxu0 0
        %1012 = vmatpush1.bf16.msra.mxu0 0
        %1013 = vmatprep.mubr.bf16.mxu0 0
        %1014 = vmatmul.mubr.bf16.gmra.mrb[0].mxu0 %v938
        %v1015 = vpop.f32.mrb[0].mxu0
        %v1016 = vadd.f32 %v890, %v1015
        %v1017 = vpop.f32.mrb[0].mxu0
        %v1018 = vadd.f32 %v892, %v1017
        %v1019 = vpop.f32.mrb[0].mxu0
        %v1020 = vpop.f32.mrb[0].mxu0
        %1021 = vdwg.mxu0
        %1022 = vmatprep.subr.bf16.mxu0 %v543
        %1023 = vmatpush1.bf16.msra.mxu0 %v542
        %1024 = vmatprep.subr.bf16.mxu0 %v549
        %1025 = vmatpush1.bf16.msra.mxu0 %v548
        %1026 = vmatprep.subr.bf16.mxu0 %v555
        %1027 = vmatpush1.bf16.msra.mxu0 %v554
        %1028 = vmatprep.subr.bf16.mxu0 %v561
        %1029 = vmatpush1.bf16.msra.mxu0 %v560
        %1030 = vmatprep.subr.bf16.mxu0 0
        %1031 = vmatpush1.bf16.msra.mxu0 0
        %1032 = vmatprep.subr.bf16.mxu0 0
        %1033 = vmatpush1.bf16.msra.mxu0 0
        %1034 = vmatprep.subr.bf16.mxu0 0
        %1035 = vmatpush1.bf16.msra.mxu0 0
        %1036 = vmatprep.subr.bf16.mxu0 0
        %1037 = vmatpush1.bf16.msra.mxu0 0
        %1038 = vmatprep.subr.bf16.mxu0 0
        %1039 = vmatpush1.bf16.msra.mxu0 0
        %1040 = vmatprep.subr.bf16.mxu0 0
        %1041 = vmatpush1.bf16.msra.mxu0 0
        %1042 = vmatprep.subr.bf16.mxu0 0
        %1043 = vmatpush1.bf16.msra.mxu0 0
        %1044 = vmatprep.subr.bf16.mxu0 0
        %1045 = vmatpush1.bf16.msra.mxu0 0
        %1046 = vmatprep.subr.bf16.mxu0 0
        %1047 = vmatpush1.bf16.msra.mxu0 0
        %1048 = vmatprep.subr.bf16.mxu0 0
        %1049 = vmatpush1.bf16.msra.mxu0 0
        %1050 = vmatprep.subr.bf16.mxu0 0
        %1051 = vmatpush1.bf16.msra.mxu0 0
        %1052 = vmatprep.subr.bf16.mxu0 0
        %1053 = vmatpush1.bf16.msra.mxu0 0
        %1054 = vmatprep.mubr.bf16.mxu0 0
        %1055 = vmatmul.mubr.bf16.gmra.mrb[0].mxu0 %v938
        %v1056 = vpop.f32.mrb[0].mxu0
        %v1057 = vadd.f32 %v931, %v1056
        %v1058 = vpop.f32.mrb[0].mxu0
        %v1059 = vadd.f32 %v933, %v1058
        %v1060 = vpop.f32.mrb[0].mxu0
        %v1061 = vpop.f32.mrb[0].mxu0
        %1062 = vdwg.mxu0
        %s1063 = scalar_lea.vmem %s1, 4
        %v1064 = vld [vmem:[%s1063] sm:$0x3]
        %v1066 = vsel %vm311, %v1064, 0
        %1068 = vmatprep.subr.bf16.mxu0 0
        %1069 = vmatpush1.bf16.msra.mxu0 %v320
        %1070 = vmatprep.subr.bf16.mxu0 0
        %1071 = vmatpush1.bf16.msra.mxu0 0
        %1072 = vmatprep.subr.bf16.mxu0 0
        %1073 = vmatpush1.bf16.msra.mxu0 0
        %1074 = vmatprep.subr.bf16.mxu0 0
        %1075 = vmatpush1.bf16.msra.mxu0 0
        %1076 = vmatprep.subr.bf16.mxu0 0
        %1077 = vmatpush1.bf16.msra.mxu0 0
        %1078 = vmatprep.subr.bf16.mxu0 0
        %1079 = vmatpush1.bf16.msra.mxu0 0
        %1080 = vmatprep.subr.bf16.mxu0 0
        %1081 = vmatpush1.bf16.msra.mxu0 0
        %1082 = vmatprep.subr.bf16.mxu0 0
        %1083 = vmatpush1.bf16.msra.mxu0 0
        %1084 = vmatprep.subr.bf16.mxu0 0
        %1085 = vmatpush1.bf16.msra.mxu0 0
        %1086 = vmatprep.subr.bf16.mxu0 0
        %1087 = vmatpush1.bf16.msra.mxu0 0
        %1088 = vmatprep.subr.bf16.mxu0 0
        %1089 = vmatpush1.bf16.msra.mxu0 0
        %1090 = vmatprep.subr.bf16.mxu0 0
        %1091 = vmatpush1.bf16.msra.mxu0 0
        %1092 = vmatprep.subr.bf16.mxu0 0
        %1093 = vmatpush1.bf16.msra.mxu0 0
        %1094 = vmatprep.subr.bf16.mxu0 0
        %1095 = vmatpush1.bf16.msra.mxu0 0
        %1096 = vmatprep.subr.bf16.mxu0 0
        %1097 = vmatpush1.bf16.msra.mxu0 0
        %1098 = vmatprep.subr.bf16.mxu0 0
        %1099 = vmatpush1.bf16.msra.mxu0 0
        %1100 = vmatprep.mubr.bf16.mxu0 0
        %1101 = vmatmul.mubr.bf16.gmra.mrb[0].mxu0 %v1066
        %v1102 = vpop.f32.mrb[0].mxu0
        %v1103 = vadd.f32 0.0, %v1102
        %v1104 = vpop.f32.mrb[0].mxu0
        %v1105 = vpop.f32.mrb[0].mxu0
        %v1106 = vpop.f32.mrb[0].mxu0
        %1107 = vdwg.mxu0
        %s1108 = scalar_lea.vmem %s6, 128
        %v1109 = vld [vmem:[%s1108] sm:$0xff]
        %v1110 = vld [vmem:[%s1108 + $0x8] sm:$0xff]
        %v1111 = vld [vmem:[%s1108 + $0x10] sm:$0xff]
        %v1112 = vld [vmem:[%s1108 + $0x18] sm:$0xff]
        %v1113 = vld [vmem:[%s1108 + $0x20] sm:$0xff]
        %v1114 = vld [vmem:[%s1108 + $0x28] sm:$0xff]
        %v1115 = vld [vmem:[%s1108 + $0x30] sm:$0xff]
        %v1116 = vld [vmem:[%s1108 + $0x38] sm:$0xff]
        %1117 = vset.pattern.permute.xlu0 0
        %1118 = vperm.xlu0 %1117, %v1109
        %v1119 = vpop.permute.xlu0 %1118
        %1120 = vset.pattern.permute.xlu0 0
        %1121 = vperm.xlu0 %1120, %v1110
        %v1122 = vpop.permute.xlu0 %1121
        %1123 = vset.pattern.permute.xlu0 0
        %1124 = vperm.xlu0 %1123, %v1111
        %v1125 = vpop.permute.xlu0 %1124
        %1126 = vset.pattern.permute.xlu0 0
        %1127 = vperm.xlu0 %1126, %v1112
        %v1128 = vpop.permute.xlu0 %1127
        %1129 = vset.pattern.permute.xlu0 0
        %1130 = vperm.xlu0 %1129, %v1113
        %v1131 = vpop.permute.xlu0 %1130
        %1132 = vset.pattern.permute.xlu0 0
        %1133 = vperm.xlu0 %1132, %v1114
        %v1134 = vpop.permute.xlu0 %1133
        %1135 = vset.pattern.permute.xlu0 0
        %1136 = vperm.xlu0 %1135, %v1115
        %v1137 = vpop.permute.xlu0 %1136
        %1138 = vset.pattern.permute.xlu0 0
        %1139 = vperm.xlu0 %1138, %v1116
        %v1140 = vpop.permute.xlu0 %1139
        %vm1141 = vcmp.eq.s32.totalorder %v304, %v1119
        %vm1142 = vcmp.eq.s32.totalorder %v305, %v1119
        %vm1143 = vcmp.eq.s32.totalorder %v306, %v1119
        %vm1144 = vcmp.eq.s32.totalorder %v307, %v1119
        %vm1145 = vcmp.eq.s32.totalorder %v308, %v1119
        %vm1146 = vcmp.eq.s32.totalorder %v309, %v1119
        %vm1147 = vcmp.eq.s32.totalorder %v304, %v1122
        %vm1148 = vcmp.eq.s32.totalorder %v305, %v1122
        %vm1149 = vcmp.eq.s32.totalorder %v306, %v1122
        %vm1150 = vcmp.eq.s32.totalorder %v307, %v1122
        %vm1151 = vcmp.eq.s32.totalorder %v308, %v1122
        %vm1152 = vcmp.eq.s32.totalorder %v309, %v1122
        %vm1153 = vcmp.eq.s32.totalorder %v304, %v1125
        %vm1154 = vcmp.eq.s32.totalorder %v305, %v1125
        %vm1155 = vcmp.eq.s32.totalorder %v306, %v1125
        %vm1156 = vcmp.eq.s32.totalorder %v307, %v1125
        %vm1157 = vcmp.eq.s32.totalorder %v308, %v1125
        %vm1158 = vcmp.eq.s32.totalorder %v309, %v1125
        %vm1159 = vcmp.eq.s32.totalorder %v304, %v1128
        %vm1160 = vcmp.eq.s32.totalorder %v305, %v1128
        %vm1161 = vcmp.eq.s32.totalorder %v306, %v1128
        %vm1162 = vcmp.eq.s32.totalorder %v307, %v1128
        %vm1163 = vcmp.eq.s32.totalorder %v308, %v1128
        %vm1164 = vcmp.eq.s32.totalorder %v309, %v1128
        %vm1165 = vcmp.eq.s32.totalorder %v304, %v1131
        %vm1166 = vcmp.eq.s32.totalorder %v305, %v1131
        %vm1167 = vcmp.eq.s32.totalorder %v306, %v1131
        %vm1168 = vcmp.eq.s32.totalorder %v307, %v1131
        %vm1169 = vcmp.eq.s32.totalorder %v308, %v1131
        %vm1170 = vcmp.eq.s32.totalorder %v309, %v1131
        %vm1171 = vcmp.eq.s32.totalorder %v304, %v1134
        %vm1172 = vcmp.eq.s32.totalorder %v305, %v1134
        %vm1173 = vcmp.eq.s32.totalorder %v306, %v1134
        %vm1174 = vcmp.eq.s32.totalorder %v307, %v1134
        %vm1175 = vcmp.eq.s32.totalorder %v308, %v1134
        %vm1176 = vcmp.eq.s32.totalorder %v309, %v1134
        %vm1177 = vcmp.eq.s32.totalorder %v304, %v1137
        %vm1178 = vcmp.eq.s32.totalorder %v305, %v1137
        %vm1179 = vcmp.eq.s32.totalorder %v306, %v1137
        %vm1180 = vcmp.eq.s32.totalorder %v307, %v1137
        %vm1181 = vcmp.eq.s32.totalorder %v308, %v1137
        %vm1182 = vcmp.eq.s32.totalorder %v309, %v1137
        %vm1183 = vcmp.eq.s32.totalorder %v304, %v1140
        %vm1184 = vcmp.eq.s32.totalorder %v305, %v1140
        %vm1185 = vcmp.eq.s32.totalorder %v306, %v1140
        %vm1186 = vcmp.eq.s32.totalorder %v307, %v1140
        %vm1187 = vcmp.eq.s32.totalorder %v308, %v1140
        %vm1188 = vcmp.eq.s32.totalorder %v309, %v1140
        %v1189 = vsel %vm1141, 1, 0
        %v1190 = vsel %vm1142, 1, 0
        %v1191 = vsel %vm1143, 1, 0
        %v1192 = vsel %vm1144, 1, 0
        %v1193 = vsel %vm1145, 1, 0
        %v1194 = vsel %vm1146, 1, 0
        %v1195 = vsel %vm1147, 1, 0
        %v1196 = vsel %vm1148, 1, 0
        %v1197 = vsel %vm1149, 1, 0
        %v1198 = vsel %vm1150, 1, 0
        %v1199 = vsel %vm1151, 1, 0
        %v1200 = vsel %vm1152, 1, 0
        %v1201 = vsel %vm1153, 1, 0
        %v1202 = vsel %vm1154, 1, 0
        %v1203 = vsel %vm1155, 1, 0
        %v1204 = vsel %vm1156, 1, 0
        %v1205 = vsel %vm1157, 1, 0
        %v1206 = vsel %vm1158, 1, 0
        %v1207 = vsel %vm1159, 1, 0
        %v1208 = vsel %vm1160, 1, 0
        %v1209 = vsel %vm1161, 1, 0
        %v1210 = vsel %vm1162, 1, 0
        %v1211 = vsel %vm1163, 1, 0
        %v1212 = vsel %vm1164, 1, 0
        %v1213 = vsel %vm1165, 1, 0
        %v1214 = vsel %vm1166, 1, 0
        %v1215 = vsel %vm1167, 1, 0
        %v1216 = vsel %vm1168, 1, 0
        %v1217 = vsel %vm1169, 1, 0
        %v1218 = vsel %vm1170, 1, 0
        %v1219 = vsel %vm1171, 1, 0
        %v1220 = vsel %vm1172, 1, 0
        %v1221 = vsel %vm1173, 1, 0
        %v1222 = vsel %vm1174, 1, 0
        %v1223 = vsel %vm1175, 1, 0
        %v1224 = vsel %vm1176, 1, 0
        %v1225 = vsel %vm1177, 1, 0
        %v1226 = vsel %vm1178, 1, 0
        %v1227 = vsel %vm1179, 1, 0
        %v1228 = vsel %vm1180, 1, 0
        %v1229 = vsel %vm1181, 1, 0
        %v1230 = vsel %vm1182, 1, 0
        %v1231 = vsel %vm1183, 1, 0
        %v1232 = vsel %vm1184, 1, 0
        %v1233 = vsel %vm1185, 1, 0
        %v1234 = vsel %vm1186, 1, 0
        %v1235 = vsel %vm1187, 1, 0
        %v1236 = vsel %vm1188, 1, 0
        %v1237 = vcvt.s32.f32 %v1189
        %v1238 = vcvt.s32.f32 %v1190
        %v1239 = vcvt.s32.f32 %v1191
        %v1240 = vcvt.s32.f32 %v1192
        %v1241 = vcvt.s32.f32 %v1193
        %v1242 = vcvt.s32.f32 %v1194
        %v1243 = vcvt.s32.f32 %v1195
        %v1244 = vcvt.s32.f32 %v1196
        %v1245 = vcvt.s32.f32 %v1197
        %v1246 = vcvt.s32.f32 %v1198
        %v1247 = vcvt.s32.f32 %v1199
        %v1248 = vcvt.s32.f32 %v1200
        %v1249 = vcvt.s32.f32 %v1201
        %v1250 = vcvt.s32.f32 %v1202
        %v1251 = vcvt.s32.f32 %v1203
        %v1252 = vcvt.s32.f32 %v1204
        %v1253 = vcvt.s32.f32 %v1205
        %v1254 = vcvt.s32.f32 %v1206
        %v1255 = vcvt.s32.f32 %v1207
        %v1256 = vcvt.s32.f32 %v1208
        %v1257 = vcvt.s32.f32 %v1209
        %v1258 = vcvt.s32.f32 %v1210
        %v1259 = vcvt.s32.f32 %v1211
        %v1260 = vcvt.s32.f32 %v1212
        %v1261 = vcvt.s32.f32 %v1213
        %v1262 = vcvt.s32.f32 %v1214
        %v1263 = vcvt.s32.f32 %v1215
        %v1264 = vcvt.s32.f32 %v1216
        %v1265 = vcvt.s32.f32 %v1217
        %v1266 = vcvt.s32.f32 %v1218
        %v1267 = vcvt.s32.f32 %v1219
        %v1268 = vcvt.s32.f32 %v1220
        %v1269 = vcvt.s32.f32 %v1221
        %v1270 = vcvt.s32.f32 %v1222
        %v1271 = vcvt.s32.f32 %v1223
        %v1272 = vcvt.s32.f32 %v1224
        %v1273 = vcvt.s32.f32 %v1225
        %v1274 = vcvt.s32.f32 %v1226
        %v1275 = vcvt.s32.f32 %v1227
        %v1276 = vcvt.s32.f32 %v1228
        %v1277 = vcvt.s32.f32 %v1229
        %v1278 = vcvt.s32.f32 %v1230
        %v1279 = vcvt.s32.f32 %v1231
        %v1280 = vcvt.s32.f32 %v1232
        %v1281 = vcvt.s32.f32 %v1233
        %v1282 = vcvt.s32.f32 %v1234
        %v1283 = vcvt.s32.f32 %v1235
        %v1284 = vcvt.s32.f32 %v1236
        %v1285 = vpack.c.bf16 %v1243, %v1237
        %v1286 = vpack.c.bf16 %v1244, %v1238
        %v1287 = vpack.c.bf16 %v1245, %v1239
        %v1288 = vpack.c.bf16 %v1246, %v1240
        %v1289 = vpack.c.bf16 %v1247, %v1241
        %v1290 = vpack.c.bf16 %v1248, %v1242
        %v1291 = vpack.c.bf16 %v1255, %v1249
        %v1292 = vpack.c.bf16 %v1256, %v1250
        %v1293 = vpack.c.bf16 %v1257, %v1251
        %v1294 = vpack.c.bf16 %v1258, %v1252
        %v1295 = vpack.c.bf16 %v1259, %v1253
        %v1296 = vpack.c.bf16 %v1260, %v1254
        %v1297 = vpack.c.bf16 %v1267, %v1261
        %v1298 = vpack.c.bf16 %v1268, %v1262
        %v1299 = vpack.c.bf16 %v1269, %v1263
        %v1300 = vpack.c.bf16 %v1270, %v1264
        %v1301 = vpack.c.bf16 %v1271, %v1265
        %v1302 = vpack.c.bf16 %v1272, %v1266
        %v1303 = vpack.c.bf16 %v1279, %v1273
        %v1304 = vpack.c.bf16 %v1280, %v1274
        %v1305 = vpack.c.bf16 %v1281, %v1275
        %v1306 = vpack.c.bf16 %v1282, %v1276
        %v1307 = vpack.c.bf16 %v1283, %v1277
        %v1308 = vpack.c.bf16 %v1284, %v1278
        %v1309 = vpack.c.bf16 %v1103, %v1103
        %v1311 = vsel %vm810, %v1309, 0
        %1313 = vmatprep.subr.bf16.mxu0 %v1286
        %1314 = vmatpush1.bf16.msra.mxu0 %v1285
        %1315 = vmatprep.subr.bf16.mxu0 %v1292
        %1316 = vmatpush1.bf16.msra.mxu0 %v1291
        %1317 = vmatprep.subr.bf16.mxu0 %v1298
        %1318 = vmatpush1.bf16.msra.mxu0 %v1297
        %1319 = vmatprep.subr.bf16.mxu0 %v1304
        %1320 = vmatpush1.bf16.msra.mxu0 %v1303
        %1321 = vmatprep.subr.bf16.mxu0 0
        %1322 = vmatpush1.bf16.msra.mxu0 0
        %1323 = vmatprep.subr.bf16.mxu0 0
        %1324 = vmatpush1.bf16.msra.mxu0 0
        %1325 = vmatprep.subr.bf16.mxu0 0
        %1326 = vmatpush1.bf16.msra.mxu0 0
        %1327 = vmatprep.subr.bf16.mxu0 0
        %1328 = vmatpush1.bf16.msra.mxu0 0
        %1329 = vmatprep.subr.bf16.mxu0 0
        %1330 = vmatpush1.bf16.msra.mxu0 0
        %1331 = vmatprep.subr.bf16.mxu0 0
        %1332 = vmatpush1.bf16.msra.mxu0 0
        %1333 = vmatprep.subr.bf16.mxu0 0
        %1334 = vmatpush1.bf16.msra.mxu0 0
        %1335 = vmatprep.subr.bf16.mxu0 0
        %1336 = vmatpush1.bf16.msra.mxu0 0
        %1337 = vmatprep.subr.bf16.mxu0 0
        %1338 = vmatpush1.bf16.msra.mxu0 0
        %1339 = vmatprep.subr.bf16.mxu0 0
        %1340 = vmatpush1.bf16.msra.mxu0 0
        %1341 = vmatprep.subr.bf16.mxu0 0
        %1342 = vmatpush1.bf16.msra.mxu0 0
        %1343 = vmatprep.subr.bf16.mxu0 0
        %1344 = vmatpush1.bf16.msra.mxu0 0
        %1345 = vmatprep.mubr.bf16.mxu0 0
        %1346 = vmatmul.mubr.bf16.gmra.mrb[0].mxu0 %v1311
        %v1347 = vpop.f32.mrb[0].mxu0
        %v1348 = vadd.f32 0.0, %v1347
        %v1349 = vpop.f32.mrb[0].mxu0
        %v1350 = vadd.f32 0.0, %v1349
        %v1351 = vpop.f32.mrb[0].mxu0
        %v1352 = vpop.f32.mrb[0].mxu0
        %1353 = vdwg.mxu0
        %1354 = vmatprep.subr.bf16.mxu0 %v1288
        %1355 = vmatpush1.bf16.msra.mxu0 %v1287
        %1356 = vmatprep.subr.bf16.mxu0 %v1294
        %1357 = vmatpush1.bf16.msra.mxu0 %v1293
        %1358 = vmatprep.subr.bf16.mxu0 %v1300
        %1359 = vmatpush1.bf16.msra.mxu0 %v1299
        %1360 = vmatprep.subr.bf16.mxu0 %v1306
        %1361 = vmatpush1.bf16.msra.mxu0 %v1305
        %1362 = vmatprep.subr.bf16.mxu0 0
        %1363 = vmatpush1.bf16.msra.mxu0 0
        %1364 = vmatprep.subr.bf16.mxu0 0
        %1365 = vmatpush1.bf16.msra.mxu0 0
        %1366 = vmatprep.subr.bf16.mxu0 0
        %1367 = vmatpush1.bf16.msra.mxu0 0
        %1368 = vmatprep.subr.bf16.mxu0 0
        %1369 = vmatpush1.bf16.msra.mxu0 0
        %1370 = vmatprep.subr.bf16.mxu0 0
        %1371 = vmatpush1.bf16.msra.mxu0 0
        %1372 = vmatprep.subr.bf16.mxu0 0
        %1373 = vmatpush1.bf16.msra.mxu0 0
        %1374 = vmatprep.subr.bf16.mxu0 0
        %1375 = vmatpush1.bf16.msra.mxu0 0
        %1376 = vmatprep.subr.bf16.mxu0 0
        %1377 = vmatpush1.bf16.msra.mxu0 0
        %1378 = vmatprep.subr.bf16.mxu0 0
        %1379 = vmatpush1.bf16.msra.mxu0 0
        %1380 = vmatprep.subr.bf16.mxu0 0
        %1381 = vmatpush1.bf16.msra.mxu0 0
        %1382 = vmatprep.subr.bf16.mxu0 0
        %1383 = vmatpush1.bf16.msra.mxu0 0
        %1384 = vmatprep.subr.bf16.mxu0 0
        %1385 = vmatpush1.bf16.msra.mxu0 0
        %1386 = vmatprep.mubr.bf16.mxu0 0
        %1387 = vmatmul.mubr.bf16.gmra.mrb[0].mxu0 %v1311
        %v1388 = vpop.f32.mrb[0].mxu0
        %v1389 = vadd.f32 0.0, %v1388
        %v1390 = vpop.f32.mrb[0].mxu0
        %v1391 = vadd.f32 0.0, %v1390
        %v1392 = vpop.f32.mrb[0].mxu0
        %v1393 = vpop.f32.mrb[0].mxu0
        %1394 = vdwg.mxu0
        %1395 = vmatprep.subr.bf16.mxu0 %v1290
        %1396 = vmatpush1.bf16.msra.mxu0 %v1289
        %1397 = vmatprep.subr.bf16.mxu0 %v1296
        %1398 = vmatpush1.bf16.msra.mxu0 %v1295
        %1399 = vmatprep.subr.bf16.mxu0 %v1302
        %1400 = vmatpush1.bf16.msra.mxu0 %v1301
        %1401 = vmatprep.subr.bf16.mxu0 %v1308
        %1402 = vmatpush1.bf16.msra.mxu0 %v1307
        %1403 = vmatprep.subr.bf16.mxu0 0
        %1404 = vmatpush1.bf16.msra.mxu0 0
        %1405 = vmatprep.subr.bf16.mxu0 0
        %1406 = vmatpush1.bf16.msra.mxu0 0
        %1407 = vmatprep.subr.bf16.mxu0 0
        %1408 = vmatpush1.bf16.msra.mxu0 0
        %1409 = vmatprep.subr.bf16.mxu0 0
        %1410 = vmatpush1.bf16.msra.mxu0 0
        %1411 = vmatprep.subr.bf16.mxu0 0
        %1412 = vmatpush1.bf16.msra.mxu0 0
        %1413 = vmatprep.subr.bf16.mxu0 0
        %1414 = vmatpush1.bf16.msra.mxu0 0
        %1415 = vmatprep.subr.bf16.mxu0 0
        %1416 = vmatpush1.bf16.msra.mxu0 0
        %1417 = vmatprep.subr.bf16.mxu0 0
        %1418 = vmatpush1.bf16.msra.mxu0 0
        %1419 = vmatprep.subr.bf16.mxu0 0
        %1420 = vmatpush1.bf16.msra.mxu0 0
        %1421 = vmatprep.subr.bf16.mxu0 0
        %1422 = vmatpush1.bf16.msra.mxu0 0
        %1423 = vmatprep.subr.bf16.mxu0 0
        %1424 = vmatpush1.bf16.msra.mxu0 0
        %1425 = vmatprep.subr.bf16.mxu0 0
        %1426 = vmatpush1.bf16.msra.mxu0 0
        %1427 = vmatprep.mubr.bf16.mxu0 0
        %1428 = vmatmul.mubr.bf16.gmra.mrb[0].mxu0 %v1311
        %v1429 = vpop.f32.mrb[0].mxu0
        %v1430 = vadd.f32 0.0, %v1429
        %v1431 = vpop.f32.mrb[0].mxu0
        %v1432 = vadd.f32 0.0, %v1431
        %v1433 = vpop.f32.mrb[0].mxu0
        %v1434 = vpop.f32.mrb[0].mxu0
        %1435 = vdwg.mxu0
        %v1436 = vadd.f32 %v975, %v1348
        %v1437 = vadd.f32 %v977, %v1350
        %v1438 = vadd.f32 %v1016, %v1389
        %v1439 = vadd.f32 %v1018, %v1391
        %v1440 = vadd.f32 %v1057, %v1430
        %v1441 = vadd.f32 %v1059, %v1432
        %s1442 = scalar_lea.vmem %s1, 6
        %v1443 = vld [vmem:[%s1442] sm:$0x3]
        %v1445 = vsel %vm311, %v1443, 0
        %1447 = vmatprep.subr.bf16.mxu0 0
        %1448 = vmatpush1.bf16.msra.mxu0 %v320
        %1449 = vmatprep.subr.bf16.mxu0 0
        %1450 = vmatpush1.bf16.msra.mxu0 0
        %1451 = vmatprep.subr.bf16.mxu0 0
        %1452 = vmatpush1.bf16.msra.mxu0 0
        %1453 = vmatprep.subr.bf16.mxu0 0
        %1454 = vmatpush1.bf16.msra.mxu0 0
        %1455 = vmatprep.subr.bf16.mxu0 0
        %1456 = vmatpush1.bf16.msra.mxu0 0
        %1457 = vmatprep.subr.bf16.mxu0 0
        %1458 = vmatpush1.bf16.msra.mxu0 0
        %1459 = vmatprep.subr.bf16.mxu0 0
        %1460 = vmatpush1.bf16.msra.mxu0 0
        %1461 = vmatprep.subr.bf16.mxu0 0
        %1462 = vmatpush1.bf16.msra.mxu0 0
        %1463 = vmatprep.subr.bf16.mxu0 0
        %1464 = vmatpush1.bf16.msra.mxu0 0
        %1465 = vmatprep.subr.bf16.mxu0 0
        %1466 = vmatpush1.bf16.msra.mxu0 0
        %1467 = vmatprep.subr.bf16.mxu0 0
        %1468 = vmatpush1.bf16.msra.mxu0 0
        %1469 = vmatprep.subr.bf16.mxu0 0
        %1470 = vmatpush1.bf16.msra.mxu0 0
        %1471 = vmatprep.subr.bf16.mxu0 0
        %1472 = vmatpush1.bf16.msra.mxu0 0
        %1473 = vmatprep.subr.bf16.mxu0 0
        %1474 = vmatpush1.bf16.msra.mxu0 0
        %1475 = vmatprep.subr.bf16.mxu0 0
        %1476 = vmatpush1.bf16.msra.mxu0 0
        %1477 = vmatprep.subr.bf16.mxu0 0
        %1478 = vmatpush1.bf16.msra.mxu0 0
        %1479 = vmatprep.mubr.bf16.mxu0 0
        %1480 = vmatmul.mubr.bf16.gmra.mrb[0].mxu0 %v1445
        %v1481 = vpop.f32.mrb[0].mxu0
        %v1482 = vadd.f32 0.0, %v1481
        %v1483 = vpop.f32.mrb[0].mxu0
        %v1484 = vpop.f32.mrb[0].mxu0
        %v1485 = vpop.f32.mrb[0].mxu0
        %1486 = vdwg.mxu0
        %s1487 = scalar_lea.vmem %s6, 192
        %v1488 = vld [vmem:[%s1487] sm:$0xff]
        %v1489 = vld [vmem:[%s1487 + $0x8] sm:$0xff]
        %v1490 = vld [vmem:[%s1487 + $0x10] sm:$0xff]
        %v1491 = vld [vmem:[%s1487 + $0x18] sm:$0xff]
        %v1492 = vld [vmem:[%s1487 + $0x20] sm:$0xff]
        %v1493 = vld [vmem:[%s1487 + $0x28] sm:$0xff]
        %v1494 = vld [vmem:[%s1487 + $0x30] sm:$0xff]
        %v1495 = vld [vmem:[%s1487 + $0x38] sm:$0xff]
        %1496 = vset.pattern.permute.xlu0 0
        %1497 = vperm.xlu0 %1496, %v1488
        %v1498 = vpop.permute.xlu0 %1497
        %1499 = vset.pattern.permute.xlu0 0
        %1500 = vperm.xlu0 %1499, %v1489
        %v1501 = vpop.permute.xlu0 %1500
        %1502 = vset.pattern.permute.xlu0 0
        %1503 = vperm.xlu0 %1502, %v1490
        %v1504 = vpop.permute.xlu0 %1503
        %1505 = vset.pattern.permute.xlu0 0
        %1506 = vperm.xlu0 %1505, %v1491
        %v1507 = vpop.permute.xlu0 %1506
        %1508 = vset.pattern.permute.xlu0 0
        %1509 = vperm.xlu0 %1508, %v1492
        %v1510 = vpop.permute.xlu0 %1509
        %1511 = vset.pattern.permute.xlu0 0
        %1512 = vperm.xlu0 %1511, %v1493
        %v1513 = vpop.permute.xlu0 %1512
        %1514 = vset.pattern.permute.xlu0 0
        %1515 = vperm.xlu0 %1514, %v1494
        %v1516 = vpop.permute.xlu0 %1515
        %1517 = vset.pattern.permute.xlu0 0
        %1518 = vperm.xlu0 %1517, %v1495
        %v1519 = vpop.permute.xlu0 %1518
        %vm1520 = vcmp.eq.s32.totalorder %v304, %v1498
        %vm1521 = vcmp.eq.s32.totalorder %v305, %v1498
        %vm1522 = vcmp.eq.s32.totalorder %v306, %v1498
        %vm1523 = vcmp.eq.s32.totalorder %v307, %v1498
        %vm1524 = vcmp.eq.s32.totalorder %v308, %v1498
        %vm1525 = vcmp.eq.s32.totalorder %v309, %v1498
        %vm1526 = vcmp.eq.s32.totalorder %v304, %v1501
        %vm1527 = vcmp.eq.s32.totalorder %v305, %v1501
        %vm1528 = vcmp.eq.s32.totalorder %v306, %v1501
        %vm1529 = vcmp.eq.s32.totalorder %v307, %v1501
        %vm1530 = vcmp.eq.s32.totalorder %v308, %v1501
        %vm1531 = vcmp.eq.s32.totalorder %v309, %v1501
        %vm1532 = vcmp.eq.s32.totalorder %v304, %v1504
        %vm1533 = vcmp.eq.s32.totalorder %v305, %v1504
        %vm1534 = vcmp.eq.s32.totalorder %v306, %v1504
        %vm1535 = vcmp.eq.s32.totalorder %v307, %v1504
        %vm1536 = vcmp.eq.s32.totalorder %v308, %v1504
        %vm1537 = vcmp.eq.s32.totalorder %v309, %v1504
        %vm1538 = vcmp.eq.s32.totalorder %v304, %v1507
        %vm1539 = vcmp.eq.s32.totalorder %v305, %v1507
        %vm1540 = vcmp.eq.s32.totalorder %v306, %v1507
        %vm1541 = vcmp.eq.s32.totalorder %v307, %v1507
        %vm1542 = vcmp.eq.s32.totalorder %v308, %v1507
        %vm1543 = vcmp.eq.s32.totalorder %v309, %v1507
        %vm1544 = vcmp.eq.s32.totalorder %v304, %v1510
        %vm1545 = vcmp.eq.s32.totalorder %v305, %v1510
        %vm1546 = vcmp.eq.s32.totalorder %v306, %v1510
        %vm1547 = vcmp.eq.s32.totalorder %v307, %v1510
        %vm1548 = vcmp.eq.s32.totalorder %v308, %v1510
        %vm1549 = vcmp.eq.s32.totalorder %v309, %v1510
        %vm1550 = vcmp.eq.s32.totalorder %v304, %v1513
        %vm1551 = vcmp.eq.s32.totalorder %v305, %v1513
        %vm1552 = vcmp.eq.s32.totalorder %v306, %v1513
        %vm1553 = vcmp.eq.s32.totalorder %v307, %v1513
        %vm1554 = vcmp.eq.s32.totalorder %v308, %v1513
        %vm1555 = vcmp.eq.s32.totalorder %v309, %v1513
        %vm1556 = vcmp.eq.s32.totalorder %v304, %v1516
        %vm1557 = vcmp.eq.s32.totalorder %v305, %v1516
        %vm1558 = vcmp.eq.s32.totalorder %v306, %v1516
        %vm1559 = vcmp.eq.s32.totalorder %v307, %v1516
        %vm1560 = vcmp.eq.s32.totalorder %v308, %v1516
        %vm1561 = vcmp.eq.s32.totalorder %v309, %v1516
        %vm1562 = vcmp.eq.s32.totalorder %v304, %v1519
        %vm1563 = vcmp.eq.s32.totalorder %v305, %v1519
        %vm1564 = vcmp.eq.s32.totalorder %v306, %v1519
        %vm1565 = vcmp.eq.s32.totalorder %v307, %v1519
        %vm1566 = vcmp.eq.s32.totalorder %v308, %v1519
        %vm1567 = vcmp.eq.s32.totalorder %v309, %v1519
        %v1568 = vsel %vm1520, 1, 0
        %v1569 = vsel %vm1521, 1, 0
        %v1570 = vsel %vm1522, 1, 0
        %v1571 = vsel %vm1523, 1, 0
        %v1572 = vsel %vm1524, 1, 0
        %v1573 = vsel %vm1525, 1, 0
        %v1574 = vsel %vm1526, 1, 0
        %v1575 = vsel %vm1527, 1, 0
        %v1576 = vsel %vm1528, 1, 0
        %v1577 = vsel %vm1529, 1, 0
        %v1578 = vsel %vm1530, 1, 0
        %v1579 = vsel %vm1531, 1, 0
        %v1580 = vsel %vm1532, 1, 0
        %v1581 = vsel %vm1533, 1, 0
        %v1582 = vsel %vm1534, 1, 0
        %v1583 = vsel %vm1535, 1, 0
        %v1584 = vsel %vm1536, 1, 0
        %v1585 = vsel %vm1537, 1, 0
        %v1586 = vsel %vm1538, 1, 0
        %v1587 = vsel %vm1539, 1, 0
        %v1588 = vsel %vm1540, 1, 0
        %v1589 = vsel %vm1541, 1, 0
        %v1590 = vsel %vm1542, 1, 0
        %v1591 = vsel %vm1543, 1, 0
        %v1592 = vsel %vm1544, 1, 0
        %v1593 = vsel %vm1545, 1, 0
        %v1594 = vsel %vm1546, 1, 0
        %v1595 = vsel %vm1547, 1, 0
        %v1596 = vsel %vm1548, 1, 0
        %v1597 = vsel %vm1549, 1, 0
        %v1598 = vsel %vm1550, 1, 0
        %v1599 = vsel %vm1551, 1, 0
        %v1600 = vsel %vm1552, 1, 0
        %v1601 = vsel %vm1553, 1, 0
        %v1602 = vsel %vm1554, 1, 0
        %v1603 = vsel %vm1555, 1, 0
        %v1604 = vsel %vm1556, 1, 0
        %v1605 = vsel %vm1557, 1, 0
        %v1606 = vsel %vm1558, 1, 0
        %v1607 = vsel %vm1559, 1, 0
        %v1608 = vsel %vm1560, 1, 0
        %v1609 = vsel %vm1561, 1, 0
        %v1610 = vsel %vm1562, 1, 0
        %v1611 = vsel %vm1563, 1, 0
        %v1612 = vsel %vm1564, 1, 0
        %v1613 = vsel %vm1565, 1, 0
        %v1614 = vsel %vm1566, 1, 0
        %v1615 = vsel %vm1567, 1, 0
        %v1616 = vcvt.s32.f32 %v1568
        %v1617 = vcvt.s32.f32 %v1569
        %v1618 = vcvt.s32.f32 %v1570
        %v1619 = vcvt.s32.f32 %v1571
        %v1620 = vcvt.s32.f32 %v1572
        %v1621 = vcvt.s32.f32 %v1573
        %v1622 = vcvt.s32.f32 %v1574
        %v1623 = vcvt.s32.f32 %v1575
        %v1624 = vcvt.s32.f32 %v1576
        %v1625 = vcvt.s32.f32 %v1577
        %v1626 = vcvt.s32.f32 %v1578
        %v1627 = vcvt.s32.f32 %v1579
        %v1628 = vcvt.s32.f32 %v1580
        %v1629 = vcvt.s32.f32 %v1581
        %v1630 = vcvt.s32.f32 %v1582
        %v1631 = vcvt.s32.f32 %v1583
        %v1632 = vcvt.s32.f32 %v1584
        %v1633 = vcvt.s32.f32 %v1585
        %v1634 = vcvt.s32.f32 %v1586
        %v1635 = vcvt.s32.f32 %v1587
        %v1636 = vcvt.s32.f32 %v1588
        %v1637 = vcvt.s32.f32 %v1589
        %v1638 = vcvt.s32.f32 %v1590
        %v1639 = vcvt.s32.f32 %v1591
        %v1640 = vcvt.s32.f32 %v1592
        %v1641 = vcvt.s32.f32 %v1593
        %v1642 = vcvt.s32.f32 %v1594
        %v1643 = vcvt.s32.f32 %v1595
        %v1644 = vcvt.s32.f32 %v1596
        %v1645 = vcvt.s32.f32 %v1597
        %v1646 = vcvt.s32.f32 %v1598
        %v1647 = vcvt.s32.f32 %v1599
        %v1648 = vcvt.s32.f32 %v1600
        %v1649 = vcvt.s32.f32 %v1601
        %v1650 = vcvt.s32.f32 %v1602
        %v1651 = vcvt.s32.f32 %v1603
        %v1652 = vcvt.s32.f32 %v1604
        %v1653 = vcvt.s32.f32 %v1605
        %v1654 = vcvt.s32.f32 %v1606
        %v1655 = vcvt.s32.f32 %v1607
        %v1656 = vcvt.s32.f32 %v1608
        %v1657 = vcvt.s32.f32 %v1609
        %v1658 = vcvt.s32.f32 %v1610
        %v1659 = vcvt.s32.f32 %v1611
        %v1660 = vcvt.s32.f32 %v1612
        %v1661 = vcvt.s32.f32 %v1613
        %v1662 = vcvt.s32.f32 %v1614
        %v1663 = vcvt.s32.f32 %v1615
        %v1664 = vpack.c.bf16 %v1622, %v1616
        %v1665 = vpack.c.bf16 %v1623, %v1617
        %v1666 = vpack.c.bf16 %v1624, %v1618
        %v1667 = vpack.c.bf16 %v1625, %v1619
        %v1668 = vpack.c.bf16 %v1626, %v1620
        %v1669 = vpack.c.bf16 %v1627, %v1621
        %v1670 = vpack.c.bf16 %v1634, %v1628
        %v1671 = vpack.c.bf16 %v1635, %v1629
        %v1672 = vpack.c.bf16 %v1636, %v1630
        %v1673 = vpack.c.bf16 %v1637, %v1631
        %v1674 = vpack.c.bf16 %v1638, %v1632
        %v1675 = vpack.c.bf16 %v1639, %v1633
        %v1676 = vpack.c.bf16 %v1646, %v1640
        %v1677 = vpack.c.bf16 %v1647, %v1641
        %v1678 = vpack.c.bf16 %v1648, %v1642
        %v1679 = vpack.c.bf16 %v1649, %v1643
        %v1680 = vpack.c.bf16 %v1650, %v1644
        %v1681 = vpack.c.bf16 %v1651, %v1645
        %v1682 = vpack.c.bf16 %v1658, %v1652
        %v1683 = vpack.c.bf16 %v1659, %v1653
        %v1684 = vpack.c.bf16 %v1660, %v1654
        %v1685 = vpack.c.bf16 %v1661, %v1655
        %v1686 = vpack.c.bf16 %v1662, %v1656
        %v1687 = vpack.c.bf16 %v1663, %v1657
        %v1688 = vpack.c.bf16 %v1482, %v1482
        %v1690 = vsel %vm810, %v1688, 0
        %1692 = vmatprep.subr.bf16.mxu0 %v1665
        %1693 = vmatpush1.bf16.msra.mxu0 %v1664
        %1694 = vmatprep.subr.bf16.mxu0 %v1671
        %1695 = vmatpush1.bf16.msra.mxu0 %v1670
        %1696 = vmatprep.subr.bf16.mxu0 %v1677
        %1697 = vmatpush1.bf16.msra.mxu0 %v1676
        %1698 = vmatprep.subr.bf16.mxu0 %v1683
        %1699 = vmatpush1.bf16.msra.mxu0 %v1682
        %1700 = vmatprep.subr.bf16.mxu0 0
        %1701 = vmatpush1.bf16.msra.mxu0 0
        %1702 = vmatprep.subr.bf16.mxu0 0
        %1703 = vmatpush1.bf16.msra.mxu0 0
        %1704 = vmatprep.subr.bf16.mxu0 0
        %1705 = vmatpush1.bf16.msra.mxu0 0
        %1706 = vmatprep.subr.bf16.mxu0 0
        %1707 = vmatpush1.bf16.msra.mxu0 0
        %1708 = vmatprep.subr.bf16.mxu0 0
        %1709 = vmatpush1.bf16.msra.mxu0 0
        %1710 = vmatprep.subr.bf16.mxu0 0
        %1711 = vmatpush1.bf16.msra.mxu0 0
        %1712 = vmatprep.subr.bf16.mxu0 0
        %1713 = vmatpush1.bf16.msra.mxu0 0
        %1714 = vmatprep.subr.bf16.mxu0 0
        %1715 = vmatpush1.bf16.msra.mxu0 0
        %1716 = vmatprep.subr.bf16.mxu0 0
        %1717 = vmatpush1.bf16.msra.mxu0 0
        %1718 = vmatprep.subr.bf16.mxu0 0
        %1719 = vmatpush1.bf16.msra.mxu0 0
        %1720 = vmatprep.subr.bf16.mxu0 0
        %1721 = vmatpush1.bf16.msra.mxu0 0
        %1722 = vmatprep.subr.bf16.mxu0 0
        %1723 = vmatpush1.bf16.msra.mxu0 0
        %1724 = vmatprep.mubr.bf16.mxu0 0
        %1725 = vmatmul.mubr.bf16.gmra.mrb[0].mxu0 %v1690
        %v1726 = vpop.f32.mrb[0].mxu0
        %v1727 = vadd.f32 0.0, %v1726
        %v1728 = vpop.f32.mrb[0].mxu0
        %v1729 = vadd.f32 0.0, %v1728
        %v1730 = vpop.f32.mrb[0].mxu0
        %v1731 = vpop.f32.mrb[0].mxu0
        %1732 = vdwg.mxu0
        %1733 = vmatprep.subr.bf16.mxu0 %v1667
        %1734 = vmatpush1.bf16.msra.mxu0 %v1666
        %1735 = vmatprep.subr.bf16.mxu0 %v1673
        %1736 = vmatpush1.bf16.msra.mxu0 %v1672
        %1737 = vmatprep.subr.bf16.mxu0 %v1679
        %1738 = vmatpush1.bf16.msra.mxu0 %v1678
        %1739 = vmatprep.subr.bf16.mxu0 %v1685
        %1740 = vmatpush1.bf16.msra.mxu0 %v1684
        %1741 = vmatprep.subr.bf16.mxu0 0
        %1742 = vmatpush1.bf16.msra.mxu0 0
        %1743 = vmatprep.subr.bf16.mxu0 0
        %1744 = vmatpush1.bf16.msra.mxu0 0
        %1745 = vmatprep.subr.bf16.mxu0 0
        %1746 = vmatpush1.bf16.msra.mxu0 0
        %1747 = vmatprep.subr.bf16.mxu0 0
        %1748 = vmatpush1.bf16.msra.mxu0 0
        %1749 = vmatprep.subr.bf16.mxu0 0
        %1750 = vmatpush1.bf16.msra.mxu0 0
        %1751 = vmatprep.subr.bf16.mxu0 0
        %1752 = vmatpush1.bf16.msra.mxu0 0
        %1753 = vmatprep.subr.bf16.mxu0 0
        %1754 = vmatpush1.bf16.msra.mxu0 0
        %1755 = vmatprep.subr.bf16.mxu0 0
        %1756 = vmatpush1.bf16.msra.mxu0 0
        %1757 = vmatprep.subr.bf16.mxu0 0
        %1758 = vmatpush1.bf16.msra.mxu0 0
        %1759 = vmatprep.subr.bf16.mxu0 0
        %1760 = vmatpush1.bf16.msra.mxu0 0
        %1761 = vmatprep.subr.bf16.mxu0 0
        %1762 = vmatpush1.bf16.msra.mxu0 0
        %1763 = vmatprep.subr.bf16.mxu0 0
        %1764 = vmatpush1.bf16.msra.mxu0 0
        %1765 = vmatprep.mubr.bf16.mxu0 0
        %1766 = vmatmul.mubr.bf16.gmra.mrb[0].mxu0 %v1690
        %v1767 = vpop.f32.mrb[0].mxu0
        %v1768 = vadd.f32 0.0, %v1767
        %v1769 = vpop.f32.mrb[0].mxu0
        %v1770 = vadd.f32 0.0, %v1769
        %v1771 = vpop.f32.mrb[0].mxu0
        %v1772 = vpop.f32.mrb[0].mxu0
        %1773 = vdwg.mxu0
        %1774 = vmatprep.subr.bf16.mxu0 %v1669
        %1775 = vmatpush1.bf16.msra.mxu0 %v1668
        %1776 = vmatprep.subr.bf16.mxu0 %v1675
        %1777 = vmatpush1.bf16.msra.mxu0 %v1674
        %1778 = vmatprep.subr.bf16.mxu0 %v1681
        %1779 = vmatpush1.bf16.msra.mxu0 %v1680
        %1780 = vmatprep.subr.bf16.mxu0 %v1687
        %1781 = vmatpush1.bf16.msra.mxu0 %v1686
        %1782 = vmatprep.subr.bf16.mxu0 0
        %1783 = vmatpush1.bf16.msra.mxu0 0
        %1784 = vmatprep.subr.bf16.mxu0 0
        %1785 = vmatpush1.bf16.msra.mxu0 0
        %1786 = vmatprep.subr.bf16.mxu0 0
        %1787 = vmatpush1.bf16.msra.mxu0 0
        %1788 = vmatprep.subr.bf16.mxu0 0
        %1789 = vmatpush1.bf16.msra.mxu0 0
        %1790 = vmatprep.subr.bf16.mxu0 0
        %1791 = vmatpush1.bf16.msra.mxu0 0
        %1792 = vmatprep.subr.bf16.mxu0 0
        %1793 = vmatpush1.bf16.msra.mxu0 0
        %1794 = vmatprep.subr.bf16.mxu0 0
        %1795 = vmatpush1.bf16.msra.mxu0 0
        %1796 = vmatprep.subr.bf16.mxu0 0
        %1797 = vmatpush1.bf16.msra.mxu0 0
        %1798 = vmatprep.subr.bf16.mxu0 0
        %1799 = vmatpush1.bf16.msra.mxu0 0
        %1800 = vmatprep.subr.bf16.mxu0 0
        %1801 = vmatpush1.bf16.msra.mxu0 0
        %1802 = vmatprep.subr.bf16.mxu0 0
        %1803 = vmatpush1.bf16.msra.mxu0 0
        %1804 = vmatprep.subr.bf16.mxu0 0
        %1805 = vmatpush1.bf16.msra.mxu0 0
        %1806 = vmatprep.mubr.bf16.mxu0 0
        %1807 = vmatmul.mubr.bf16.gmra.mrb[0].mxu0 %v1690
        %v1808 = vpop.f32.mrb[0].mxu0
        %v1809 = vadd.f32 0.0, %v1808
        %v1810 = vpop.f32.mrb[0].mxu0
        %v1811 = vadd.f32 0.0, %v1810
        %v1812 = vpop.f32.mrb[0].mxu0
        %v1813 = vpop.f32.mrb[0].mxu0
        %1814 = vdwg.mxu0
        %v1815 = vadd.f32 %v1436, %v1727
        %v1816 = vadd.f32 %v1437, %v1729
        %v1817 = vadd.f32 %v1438, %v1768
        %v1818 = vadd.f32 %v1439, %v1770
        %v1819 = vadd.f32 %v1440, %v1809
        %v1820 = vadd.f32 %v1441, %v1811
        %s1821 = scalar_lea.vmem %s1, 8
        %v1822 = vld [vmem:[%s1821] sm:$0x3]
        %v1824 = vsel %vm311, %v1822, 0
        %1826 = vmatprep.subr.bf16.mxu0 0
        %1827 = vmatpush1.bf16.msra.mxu0 %v320
        %1828 = vmatprep.subr.bf16.mxu0 0
        %1829 = vmatpush1.bf16.msra.mxu0 0
        %1830 = vmatprep.subr.bf16.mxu0 0
        %1831 = vmatpush1.bf16.msra.mxu0 0
        %1832 = vmatprep.subr.bf16.mxu0 0
        %1833 = vmatpush1.bf16.msra.mxu0 0
        %1834 = vmatprep.subr.bf16.mxu0 0
        %1835 = vmatpush1.bf16.msra.mxu0 0
        %1836 = vmatprep.subr.bf16.mxu0 0
        %1837 = vmatpush1.bf16.msra.mxu0 0
        %1838 = vmatprep.subr.bf16.mxu0 0
        %1839 = vmatpush1.bf16.msra.mxu0 0
        %1840 = vmatprep.subr.bf16.mxu0 0
        %1841 = vmatpush1.bf16.msra.mxu0 0
        %1842 = vmatprep.subr.bf16.mxu0 0
        %1843 = vmatpush1.bf16.msra.mxu0 0
        %1844 = vmatprep.subr.bf16.mxu0 0
        %1845 = vmatpush1.bf16.msra.mxu0 0
        %1846 = vmatprep.subr.bf16.mxu0 0
        %1847 = vmatpush1.bf16.msra.mxu0 0
        %1848 = vmatprep.subr.bf16.mxu0 0
        %1849 = vmatpush1.bf16.msra.mxu0 0
        %1850 = vmatprep.subr.bf16.mxu0 0
        %1851 = vmatpush1.bf16.msra.mxu0 0
        %1852 = vmatprep.subr.bf16.mxu0 0
        %1853 = vmatpush1.bf16.msra.mxu0 0
        %1854 = vmatprep.subr.bf16.mxu0 0
        %1855 = vmatpush1.bf16.msra.mxu0 0
        %1856 = vmatprep.subr.bf16.mxu0 0
        %1857 = vmatpush1.bf16.msra.mxu0 0
        %1858 = vmatprep.mubr.bf16.mxu0 0
        %1859 = vmatmul.mubr.bf16.gmra.mrb[0].mxu0 %v1824
        %v1860 = vpop.f32.mrb[0].mxu0
        %v1861 = vadd.f32 0.0, %v1860
        %v1862 = vpop.f32.mrb[0].mxu0
        %v1863 = vpop.f32.mrb[0].mxu0
        %v1864 = vpop.f32.mrb[0].mxu0
        %1865 = vdwg.mxu0
        %s1866 = scalar_lea.vmem %s6, 256
        %v1867 = vld [vmem:[%s1866] sm:$0xff]
        %v1868 = vld [vmem:[%s1866 + $0x8] sm:$0xff]
        %v1869 = vld [vmem:[%s1866 + $0x10] sm:$0xff]
        %v1870 = vld [vmem:[%s1866 + $0x18] sm:$0xff]
        %v1871 = vld [vmem:[%s1866 + $0x20] sm:$0xff]
        %v1872 = vld [vmem:[%s1866 + $0x28] sm:$0xff]
        %v1873 = vld [vmem:[%s1866 + $0x30] sm:$0xff]
        %v1874 = vld [vmem:[%s1866 + $0x38] sm:$0xff]
        %1875 = vset.pattern.permute.xlu0 0
        %1876 = vperm.xlu0 %1875, %v1867
        %v1877 = vpop.permute.xlu0 %1876
        %1878 = vset.pattern.permute.xlu0 0
        %1879 = vperm.xlu0 %1878, %v1868
        %v1880 = vpop.permute.xlu0 %1879
        %1881 = vset.pattern.permute.xlu0 0
        %1882 = vperm.xlu0 %1881, %v1869
        %v1883 = vpop.permute.xlu0 %1882
        %1884 = vset.pattern.permute.xlu0 0
        %1885 = vperm.xlu0 %1884, %v1870
        %v1886 = vpop.permute.xlu0 %1885
        %1887 = vset.pattern.permute.xlu0 0
        %1888 = vperm.xlu0 %1887, %v1871
        %v1889 = vpop.permute.xlu0 %1888
        %1890 = vset.pattern.permute.xlu0 0
        %1891 = vperm.xlu0 %1890, %v1872
        %v1892 = vpop.permute.xlu0 %1891
        %1893 = vset.pattern.permute.xlu0 0
        %1894 = vperm.xlu0 %1893, %v1873
        %v1895 = vpop.permute.xlu0 %1894
        %1896 = vset.pattern.permute.xlu0 0
        %1897 = vperm.xlu0 %1896, %v1874
        %v1898 = vpop.permute.xlu0 %1897
        %vm1899 = vcmp.eq.s32.totalorder %v304, %v1877
        %vm1900 = vcmp.eq.s32.totalorder %v305, %v1877
        %vm1901 = vcmp.eq.s32.totalorder %v306, %v1877
        %vm1902 = vcmp.eq.s32.totalorder %v307, %v1877
        %vm1903 = vcmp.eq.s32.totalorder %v308, %v1877
        %vm1904 = vcmp.eq.s32.totalorder %v309, %v1877
        %vm1905 = vcmp.eq.s32.totalorder %v304, %v1880
        %vm1906 = vcmp.eq.s32.totalorder %v305, %v1880
        %vm1907 = vcmp.eq.s32.totalorder %v306, %v1880
        %vm1908 = vcmp.eq.s32.totalorder %v307, %v1880
        %vm1909 = vcmp.eq.s32.totalorder %v308, %v1880
        %vm1910 = vcmp.eq.s32.totalorder %v309, %v1880
        %vm1911 = vcmp.eq.s32.totalorder %v304, %v1883
        %vm1912 = vcmp.eq.s32.totalorder %v305, %v1883
        %vm1913 = vcmp.eq.s32.totalorder %v306, %v1883
        %vm1914 = vcmp.eq.s32.totalorder %v307, %v1883
        %vm1915 = vcmp.eq.s32.totalorder %v308, %v1883
        %vm1916 = vcmp.eq.s32.totalorder %v309, %v1883
        %vm1917 = vcmp.eq.s32.totalorder %v304, %v1886
        %vm1918 = vcmp.eq.s32.totalorder %v305, %v1886
        %vm1919 = vcmp.eq.s32.totalorder %v306, %v1886
        %vm1920 = vcmp.eq.s32.totalorder %v307, %v1886
        %vm1921 = vcmp.eq.s32.totalorder %v308, %v1886
        %vm1922 = vcmp.eq.s32.totalorder %v309, %v1886
        %vm1923 = vcmp.eq.s32.totalorder %v304, %v1889
        %vm1924 = vcmp.eq.s32.totalorder %v305, %v1889
        %vm1925 = vcmp.eq.s32.totalorder %v306, %v1889
        %vm1926 = vcmp.eq.s32.totalorder %v307, %v1889
        %vm1927 = vcmp.eq.s32.totalorder %v308, %v1889
        %vm1928 = vcmp.eq.s32.totalorder %v309, %v1889
        %vm1929 = vcmp.eq.s32.totalorder %v304, %v1892
        %vm1930 = vcmp.eq.s32.totalorder %v305, %v1892
        %vm1931 = vcmp.eq.s32.totalorder %v306, %v1892
        %vm1932 = vcmp.eq.s32.totalorder %v307, %v1892
        %vm1933 = vcmp.eq.s32.totalorder %v308, %v1892
        %vm1934 = vcmp.eq.s32.totalorder %v309, %v1892
        %vm1935 = vcmp.eq.s32.totalorder %v304, %v1895
        %vm1936 = vcmp.eq.s32.totalorder %v305, %v1895
        %vm1937 = vcmp.eq.s32.totalorder %v306, %v1895
        %vm1938 = vcmp.eq.s32.totalorder %v307, %v1895
        %vm1939 = vcmp.eq.s32.totalorder %v308, %v1895
        %vm1940 = vcmp.eq.s32.totalorder %v309, %v1895
        %vm1941 = vcmp.eq.s32.totalorder %v304, %v1898
        %vm1942 = vcmp.eq.s32.totalorder %v305, %v1898
        %vm1943 = vcmp.eq.s32.totalorder %v306, %v1898
        %vm1944 = vcmp.eq.s32.totalorder %v307, %v1898
        %vm1945 = vcmp.eq.s32.totalorder %v308, %v1898
        %vm1946 = vcmp.eq.s32.totalorder %v309, %v1898
        %v1947 = vsel %vm1899, 1, 0
        %v1948 = vsel %vm1900, 1, 0
        %v1949 = vsel %vm1901, 1, 0
        %v1950 = vsel %vm1902, 1, 0
        %v1951 = vsel %vm1903, 1, 0
        %v1952 = vsel %vm1904, 1, 0
        %v1953 = vsel %vm1905, 1, 0
        %v1954 = vsel %vm1906, 1, 0
        %v1955 = vsel %vm1907, 1, 0
        %v1956 = vsel %vm1908, 1, 0
        %v1957 = vsel %vm1909, 1, 0
        %v1958 = vsel %vm1910, 1, 0
        %v1959 = vsel %vm1911, 1, 0
        %v1960 = vsel %vm1912, 1, 0
        %v1961 = vsel %vm1913, 1, 0
        %v1962 = vsel %vm1914, 1, 0
        %v1963 = vsel %vm1915, 1, 0
        %v1964 = vsel %vm1916, 1, 0
        %v1965 = vsel %vm1917, 1, 0
        %v1966 = vsel %vm1918, 1, 0
        %v1967 = vsel %vm1919, 1, 0
        %v1968 = vsel %vm1920, 1, 0
        %v1969 = vsel %vm1921, 1, 0
        %v1970 = vsel %vm1922, 1, 0
        %v1971 = vsel %vm1923, 1, 0
        %v1972 = vsel %vm1924, 1, 0
        %v1973 = vsel %vm1925, 1, 0
        %v1974 = vsel %vm1926, 1, 0
        %v1975 = vsel %vm1927, 1, 0
        %v1976 = vsel %vm1928, 1, 0
        %v1977 = vsel %vm1929, 1, 0
        %v1978 = vsel %vm1930, 1, 0
        %v1979 = vsel %vm1931, 1, 0
        %v1980 = vsel %vm1932, 1, 0
        %v1981 = vsel %vm1933, 1, 0
        %v1982 = vsel %vm1934, 1, 0
        %v1983 = vsel %vm1935, 1, 0
        %v1984 = vsel %vm1936, 1, 0
        %v1985 = vsel %vm1937, 1, 0
        %v1986 = vsel %vm1938, 1, 0
        %v1987 = vsel %vm1939, 1, 0
        %v1988 = vsel %vm1940, 1, 0
        %v1989 = vsel %vm1941, 1, 0
        %v1990 = vsel %vm1942, 1, 0
        %v1991 = vsel %vm1943, 1, 0
        %v1992 = vsel %vm1944, 1, 0
        %v1993 = vsel %vm1945, 1, 0
        %v1994 = vsel %vm1946, 1, 0
        %v1995 = vcvt.s32.f32 %v1947
        %v1996 = vcvt.s32.f32 %v1948
        %v1997 = vcvt.s32.f32 %v1949
        %v1998 = vcvt.s32.f32 %v1950
        %v1999 = vcvt.s32.f32 %v1951
        %v2000 = vcvt.s32.f32 %v1952
        %v2001 = vcvt.s32.f32 %v1953
        %v2002 = vcvt.s32.f32 %v1954
        %v2003 = vcvt.s32.f32 %v1955
        %v2004 = vcvt.s32.f32 %v1956
        %v2005 = vcvt.s32.f32 %v1957
        %v2006 = vcvt.s32.f32 %v1958
        %v2007 = vcvt.s32.f32 %v1959
        %v2008 = vcvt.s32.f32 %v1960
        %v2009 = vcvt.s32.f32 %v1961
        %v2010 = vcvt.s32.f32 %v1962
        %v2011 = vcvt.s32.f32 %v1963
        %v2012 = vcvt.s32.f32 %v1964
        %v2013 = vcvt.s32.f32 %v1965
        %v2014 = vcvt.s32.f32 %v1966
        %v2015 = vcvt.s32.f32 %v1967
        %v2016 = vcvt.s32.f32 %v1968
        %v2017 = vcvt.s32.f32 %v1969
        %v2018 = vcvt.s32.f32 %v1970
        %v2019 = vcvt.s32.f32 %v1971
        %v2020 = vcvt.s32.f32 %v1972
        %v2021 = vcvt.s32.f32 %v1973
        %v2022 = vcvt.s32.f32 %v1974
        %v2023 = vcvt.s32.f32 %v1975
        %v2024 = vcvt.s32.f32 %v1976
        %v2025 = vcvt.s32.f32 %v1977
        %v2026 = vcvt.s32.f32 %v1978
        %v2027 = vcvt.s32.f32 %v1979
        %v2028 = vcvt.s32.f32 %v1980
        %v2029 = vcvt.s32.f32 %v1981
        %v2030 = vcvt.s32.f32 %v1982
        %v2031 = vcvt.s32.f32 %v1983
        %v2032 = vcvt.s32.f32 %v1984
        %v2033 = vcvt.s32.f32 %v1985
        %v2034 = vcvt.s32.f32 %v1986
        %v2035 = vcvt.s32.f32 %v1987
        %v2036 = vcvt.s32.f32 %v1988
        %v2037 = vcvt.s32.f32 %v1989
        %v2038 = vcvt.s32.f32 %v1990
        %v2039 = vcvt.s32.f32 %v1991
        %v2040 = vcvt.s32.f32 %v1992
        %v2041 = vcvt.s32.f32 %v1993
        %v2042 = vcvt.s32.f32 %v1994
        %v2043 = vpack.c.bf16 %v2001, %v1995
        %v2044 = vpack.c.bf16 %v2002, %v1996
        %v2045 = vpack.c.bf16 %v2003, %v1997
        %v2046 = vpack.c.bf16 %v2004, %v1998
        %v2047 = vpack.c.bf16 %v2005, %v1999
        %v2048 = vpack.c.bf16 %v2006, %v2000
        %v2049 = vpack.c.bf16 %v2013, %v2007
        %v2050 = vpack.c.bf16 %v2014, %v2008
        %v2051 = vpack.c.bf16 %v2015, %v2009
        %v2052 = vpack.c.bf16 %v2016, %v2010
        %v2053 = vpack.c.bf16 %v2017, %v2011
        %v2054 = vpack.c.bf16 %v2018, %v2012
        %v2055 = vpack.c.bf16 %v2025, %v2019
        %v2056 = vpack.c.bf16 %v2026, %v2020
        %v2057 = vpack.c.bf16 %v2027, %v2021
        %v2058 = vpack.c.bf16 %v2028, %v2022
        %v2059 = vpack.c.bf16 %v2029, %v2023
        %v2060 = vpack.c.bf16 %v2030, %v2024
        %v2061 = vpack.c.bf16 %v2037, %v2031
        %v2062 = vpack.c.bf16 %v2038, %v2032
        %v2063 = vpack.c.bf16 %v2039, %v2033
        %v2064 = vpack.c.bf16 %v2040, %v2034
        %v2065 = vpack.c.bf16 %v2041, %v2035
        %v2066 = vpack.c.bf16 %v2042, %v2036
        %v2067 = vpack.c.bf16 %v1861, %v1861
        %v2069 = vsel %vm810, %v2067, 0
        %2071 = vmatprep.subr.bf16.mxu0 %v2044
        %2072 = vmatpush1.bf16.msra.mxu0 %v2043
        %2073 = vmatprep.subr.bf16.mxu0 %v2050
        %2074 = vmatpush1.bf16.msra.mxu0 %v2049
        %2075 = vmatprep.subr.bf16.mxu0 %v2056
        %2076 = vmatpush1.bf16.msra.mxu0 %v2055
        %2077 = vmatprep.subr.bf16.mxu0 %v2062
        %2078 = vmatpush1.bf16.msra.mxu0 %v2061
        %2079 = vmatprep.subr.bf16.mxu0 0
        %2080 = vmatpush1.bf16.msra.mxu0 0
        %2081 = vmatprep.subr.bf16.mxu0 0
        %2082 = vmatpush1.bf16.msra.mxu0 0
        %2083 = vmatprep.subr.bf16.mxu0 0
        %2084 = vmatpush1.bf16.msra.mxu0 0
        %2085 = vmatprep.subr.bf16.mxu0 0
        %2086 = vmatpush1.bf16.msra.mxu0 0
        %2087 = vmatprep.subr.bf16.mxu0 0
        %2088 = vmatpush1.bf16.msra.mxu0 0
        %2089 = vmatprep.subr.bf16.mxu0 0
        %2090 = vmatpush1.bf16.msra.mxu0 0
        %2091 = vmatprep.subr.bf16.mxu0 0
        %2092 = vmatpush1.bf16.msra.mxu0 0
        %2093 = vmatprep.subr.bf16.mxu0 0
        %2094 = vmatpush1.bf16.msra.mxu0 0
        %2095 = vmatprep.subr.bf16.mxu0 0
        %2096 = vmatpush1.bf16.msra.mxu0 0
        %2097 = vmatprep.subr.bf16.mxu0 0
        %2098 = vmatpush1.bf16.msra.mxu0 0
        %2099 = vmatprep.subr.bf16.mxu0 0
        %2100 = vmatpush1.bf16.msra.mxu0 0
        %2101 = vmatprep.subr.bf16.mxu0 0
        %2102 = vmatpush1.bf16.msra.mxu0 0
        %2103 = vmatprep.mubr.bf16.mxu0 0
        %2104 = vmatmul.mubr.bf16.gmra.mrb[0].mxu0 %v2069
        %v2105 = vpop.f32.mrb[0].mxu0
        %v2106 = vadd.f32 0.0, %v2105
        %v2107 = vpop.f32.mrb[0].mxu0
        %v2108 = vadd.f32 0.0, %v2107
        %v2109 = vpop.f32.mrb[0].mxu0
        %v2110 = vpop.f32.mrb[0].mxu0
        %2111 = vdwg.mxu0
        %2112 = vmatprep.subr.bf16.mxu0 %v2046
        %2113 = vmatpush1.bf16.msra.mxu0 %v2045
        %2114 = vmatprep.subr.bf16.mxu0 %v2052
        %2115 = vmatpush1.bf16.msra.mxu0 %v2051
        %2116 = vmatprep.subr.bf16.mxu0 %v2058
        %2117 = vmatpush1.bf16.msra.mxu0 %v2057
        %2118 = vmatprep.subr.bf16.mxu0 %v2064
        %2119 = vmatpush1.bf16.msra.mxu0 %v2063
        %2120 = vmatprep.subr.bf16.mxu0 0
        %2121 = vmatpush1.bf16.msra.mxu0 0
        %2122 = vmatprep.subr.bf16.mxu0 0
        %2123 = vmatpush1.bf16.msra.mxu0 0
        %2124 = vmatprep.subr.bf16.mxu0 0
        %2125 = vmatpush1.bf16.msra.mxu0 0
        %2126 = vmatprep.subr.bf16.mxu0 0
        %2127 = vmatpush1.bf16.msra.mxu0 0
        %2128 = vmatprep.subr.bf16.mxu0 0
        %2129 = vmatpush1.bf16.msra.mxu0 0
        %2130 = vmatprep.subr.bf16.mxu0 0
        %2131 = vmatpush1.bf16.msra.mxu0 0
        %2132 = vmatprep.subr.bf16.mxu0 0
        %2133 = vmatpush1.bf16.msra.mxu0 0
        %2134 = vmatprep.subr.bf16.mxu0 0
        %2135 = vmatpush1.bf16.msra.mxu0 0
        %2136 = vmatprep.subr.bf16.mxu0 0
        %2137 = vmatpush1.bf16.msra.mxu0 0
        %2138 = vmatprep.subr.bf16.mxu0 0
        %2139 = vmatpush1.bf16.msra.mxu0 0
        %2140 = vmatprep.subr.bf16.mxu0 0
        %2141 = vmatpush1.bf16.msra.mxu0 0
        %2142 = vmatprep.subr.bf16.mxu0 0
        %2143 = vmatpush1.bf16.msra.mxu0 0
        %2144 = vmatprep.mubr.bf16.mxu0 0
        %2145 = vmatmul.mubr.bf16.gmra.mrb[0].mxu0 %v2069
        %v2146 = vpop.f32.mrb[0].mxu0
        %v2147 = vadd.f32 0.0, %v2146
        %v2148 = vpop.f32.mrb[0].mxu0
        %v2149 = vadd.f32 0.0, %v2148
        %v2150 = vpop.f32.mrb[0].mxu0
        %v2151 = vpop.f32.mrb[0].mxu0
        %2152 = vdwg.mxu0
        %2153 = vmatprep.subr.bf16.mxu0 %v2048
        %2154 = vmatpush1.bf16.msra.mxu0 %v2047
        %2155 = vmatprep.subr.bf16.mxu0 %v2054
        %2156 = vmatpush1.bf16.msra.mxu0 %v2053
        %2157 = vmatprep.subr.bf16.mxu0 %v2060
        %2158 = vmatpush1.bf16.msra.mxu0 %v2059
        %2159 = vmatprep.subr.bf16.mxu0 %v2066
        %2160 = vmatpush1.bf16.msra.mxu0 %v2065
        %2161 = vmatprep.subr.bf16.mxu0 0
        %2162 = vmatpush1.bf16.msra.mxu0 0
        %2163 = vmatprep.subr.bf16.mxu0 0
        %2164 = vmatpush1.bf16.msra.mxu0 0
        %2165 = vmatprep.subr.bf16.mxu0 0
        %2166 = vmatpush1.bf16.msra.mxu0 0
        %2167 = vmatprep.subr.bf16.mxu0 0
        %2168 = vmatpush1.bf16.msra.mxu0 0
        %2169 = vmatprep.subr.bf16.mxu0 0
        %2170 = vmatpush1.bf16.msra.mxu0 0
        %2171 = vmatprep.subr.bf16.mxu0 0
        %2172 = vmatpush1.bf16.msra.mxu0 0
        %2173 = vmatprep.subr.bf16.mxu0 0
        %2174 = vmatpush1.bf16.msra.mxu0 0
        %2175 = vmatprep.subr.bf16.mxu0 0
        %2176 = vmatpush1.bf16.msra.mxu0 0
        %2177 = vmatprep.subr.bf16.mxu0 0
        %2178 = vmatpush1.bf16.msra.mxu0 0
        %2179 = vmatprep.subr.bf16.mxu0 0
        %2180 = vmatpush1.bf16.msra.mxu0 0
        %2181 = vmatprep.subr.bf16.mxu0 0
        %2182 = vmatpush1.bf16.msra.mxu0 0
        %2183 = vmatprep.subr.bf16.mxu0 0
        %2184 = vmatpush1.bf16.msra.mxu0 0
        %2185 = vmatprep.mubr.bf16.mxu0 0
        %2186 = vmatmul.mubr.bf16.gmra.mrb[0].mxu0 %v2069
        %v2187 = vpop.f32.mrb[0].mxu0
        %v2188 = vadd.f32 0.0, %v2187
        %v2189 = vpop.f32.mrb[0].mxu0
        %v2190 = vadd.f32 0.0, %v2189
        %v2191 = vpop.f32.mrb[0].mxu0
        %v2192 = vpop.f32.mrb[0].mxu0
        %2193 = vdwg.mxu0
        %v2194 = vadd.f32 %v1815, %v2106
        %v2195 = vadd.f32 %v1816, %v2108
        %v2196 = vadd.f32 %v1817, %v2147
        %v2197 = vadd.f32 %v1818, %v2149
        %v2198 = vadd.f32 %v1819, %v2188
        %v2199 = vadd.f32 %v1820, %v2190
        %s2200 = scalar_lea.vmem %s1, 10
        %v2201 = vld [vmem:[%s2200] sm:$0x3]
        %v2203 = vsel %vm311, %v2201, 0
        %2205 = vmatprep.subr.bf16.mxu0 0
        %2206 = vmatpush1.bf16.msra.mxu0 %v320
        %2207 = vmatprep.subr.bf16.mxu0 0
        %2208 = vmatpush1.bf16.msra.mxu0 0
        %2209 = vmatprep.subr.bf16.mxu0 0
        %2210 = vmatpush1.bf16.msra.mxu0 0
        %2211 = vmatprep.subr.bf16.mxu0 0
        %2212 = vmatpush1.bf16.msra.mxu0 0
        %2213 = vmatprep.subr.bf16.mxu0 0
        %2214 = vmatpush1.bf16.msra.mxu0 0
        %2215 = vmatprep.subr.bf16.mxu0 0
        %2216 = vmatpush1.bf16.msra.mxu0 0
        %2217 = vmatprep.subr.bf16.mxu0 0
        %2218 = vmatpush1.bf16.msra.mxu0 0
        %2219 = vmatprep.subr.bf16.mxu0 0
        %2220 = vmatpush1.bf16.msra.mxu0 0
        %2221 = vmatprep.subr.bf16.mxu0 0
        %2222 = vmatpush1.bf16.msra.mxu0 0
        %2223 = vmatprep.subr.bf16.mxu0 0
        %2224 = vmatpush1.bf16.msra.mxu0 0
        %2225 = vmatprep.subr.bf16.mxu0 0
        %2226 = vmatpush1.bf16.msra.mxu0 0
        %2227 = vmatprep.subr.bf16.mxu0 0
        %2228 = vmatpush1.bf16.msra.mxu0 0
        %2229 = vmatprep.subr.bf16.mxu0 0
        %2230 = vmatpush1.bf16.msra.mxu0 0
        %2231 = vmatprep.subr.bf16.mxu0 0
        %2232 = vmatpush1.bf16.msra.mxu0 0
        %2233 = vmatprep.subr.bf16.mxu0 0
        %2234 = vmatpush1.bf16.msra.mxu0 0
        %2235 = vmatprep.subr.bf16.mxu0 0
        %2236 = vmatpush1.bf16.msra.mxu0 0
        %2237 = vmatprep.mubr.bf16.mxu0 0
        %2238 = vmatmul.mubr.bf16.gmra.mrb[0].mxu0 %v2203
        %v2239 = vpop.f32.mrb[0].mxu0
        %v2240 = vadd.f32 0.0, %v2239
        %v2241 = vpop.f32.mrb[0].mxu0
        %v2242 = vpop.f32.mrb[0].mxu0
        %v2243 = vpop.f32.mrb[0].mxu0
        %2244 = vdwg.mxu0
        %s2245 = scalar_lea.vmem %s6, 320
        %v2246 = vld [vmem:[%s2245] sm:$0xff]
        %v2247 = vld [vmem:[%s2245 + $0x8] sm:$0xff]
        %v2248 = vld [vmem:[%s2245 + $0x10] sm:$0xff]
        %v2249 = vld [vmem:[%s2245 + $0x18] sm:$0xff]
        %v2250 = vld [vmem:[%s2245 + $0x20] sm:$0xff]
        %v2251 = vld [vmem:[%s2245 + $0x28] sm:$0xff]
        %v2252 = vld [vmem:[%s2245 + $0x30] sm:$0xff]
        %v2253 = vld [vmem:[%s2245 + $0x38] sm:$0xff]
        %2254 = vset.pattern.permute.xlu0 0
        %2255 = vperm.xlu0 %2254, %v2246
        %v2256 = vpop.permute.xlu0 %2255
        %2257 = vset.pattern.permute.xlu0 0
        %2258 = vperm.xlu0 %2257, %v2247
        %v2259 = vpop.permute.xlu0 %2258
        %2260 = vset.pattern.permute.xlu0 0
        %2261 = vperm.xlu0 %2260, %v2248
        %v2262 = vpop.permute.xlu0 %2261
        %2263 = vset.pattern.permute.xlu0 0
        %2264 = vperm.xlu0 %2263, %v2249
        %v2265 = vpop.permute.xlu0 %2264
        %2266 = vset.pattern.permute.xlu0 0
        %2267 = vperm.xlu0 %2266, %v2250
        %v2268 = vpop.permute.xlu0 %2267
        %2269 = vset.pattern.permute.xlu0 0
        %2270 = vperm.xlu0 %2269, %v2251
        %v2271 = vpop.permute.xlu0 %2270
        %2272 = vset.pattern.permute.xlu0 0
        %2273 = vperm.xlu0 %2272, %v2252
        %v2274 = vpop.permute.xlu0 %2273
        %2275 = vset.pattern.permute.xlu0 0
        %2276 = vperm.xlu0 %2275, %v2253
        %v2277 = vpop.permute.xlu0 %2276
        %vm2278 = vcmp.eq.s32.totalorder %v304, %v2256
        %vm2279 = vcmp.eq.s32.totalorder %v305, %v2256
        %vm2280 = vcmp.eq.s32.totalorder %v306, %v2256
        %vm2281 = vcmp.eq.s32.totalorder %v307, %v2256
        %vm2282 = vcmp.eq.s32.totalorder %v308, %v2256
        %vm2283 = vcmp.eq.s32.totalorder %v309, %v2256
        %vm2284 = vcmp.eq.s32.totalorder %v304, %v2259
        %vm2285 = vcmp.eq.s32.totalorder %v305, %v2259
        %vm2286 = vcmp.eq.s32.totalorder %v306, %v2259
        %vm2287 = vcmp.eq.s32.totalorder %v307, %v2259
        %vm2288 = vcmp.eq.s32.totalorder %v308, %v2259
        %vm2289 = vcmp.eq.s32.totalorder %v309, %v2259
        %vm2290 = vcmp.eq.s32.totalorder %v304, %v2262
        %vm2291 = vcmp.eq.s32.totalorder %v305, %v2262
        %vm2292 = vcmp.eq.s32.totalorder %v306, %v2262
        %vm2293 = vcmp.eq.s32.totalorder %v307, %v2262
        %vm2294 = vcmp.eq.s32.totalorder %v308, %v2262
        %vm2295 = vcmp.eq.s32.totalorder %v309, %v2262
        %vm2296 = vcmp.eq.s32.totalorder %v304, %v2265
        %vm2297 = vcmp.eq.s32.totalorder %v305, %v2265
        %vm2298 = vcmp.eq.s32.totalorder %v306, %v2265
        %vm2299 = vcmp.eq.s32.totalorder %v307, %v2265
        %vm2300 = vcmp.eq.s32.totalorder %v308, %v2265
        %vm2301 = vcmp.eq.s32.totalorder %v309, %v2265
        %vm2302 = vcmp.eq.s32.totalorder %v304, %v2268
        %vm2303 = vcmp.eq.s32.totalorder %v305, %v2268
        %vm2304 = vcmp.eq.s32.totalorder %v306, %v2268
        %vm2305 = vcmp.eq.s32.totalorder %v307, %v2268
        %vm2306 = vcmp.eq.s32.totalorder %v308, %v2268
        %vm2307 = vcmp.eq.s32.totalorder %v309, %v2268
        %vm2308 = vcmp.eq.s32.totalorder %v304, %v2271
        %vm2309 = vcmp.eq.s32.totalorder %v305, %v2271
        %vm2310 = vcmp.eq.s32.totalorder %v306, %v2271
        %vm2311 = vcmp.eq.s32.totalorder %v307, %v2271
        %vm2312 = vcmp.eq.s32.totalorder %v308, %v2271
        %vm2313 = vcmp.eq.s32.totalorder %v309, %v2271
        %vm2314 = vcmp.eq.s32.totalorder %v304, %v2274
        %vm2315 = vcmp.eq.s32.totalorder %v305, %v2274
        %vm2316 = vcmp.eq.s32.totalorder %v306, %v2274
        %vm2317 = vcmp.eq.s32.totalorder %v307, %v2274
        %vm2318 = vcmp.eq.s32.totalorder %v308, %v2274
        %vm2319 = vcmp.eq.s32.totalorder %v309, %v2274
        %vm2320 = vcmp.eq.s32.totalorder %v304, %v2277
        %vm2321 = vcmp.eq.s32.totalorder %v305, %v2277
        %vm2322 = vcmp.eq.s32.totalorder %v306, %v2277
        %vm2323 = vcmp.eq.s32.totalorder %v307, %v2277
        %vm2324 = vcmp.eq.s32.totalorder %v308, %v2277
        %vm2325 = vcmp.eq.s32.totalorder %v309, %v2277
        %v2326 = vsel %vm2278, 1, 0
        %v2327 = vsel %vm2279, 1, 0
        %v2328 = vsel %vm2280, 1, 0
        %v2329 = vsel %vm2281, 1, 0
        %v2330 = vsel %vm2282, 1, 0
        %v2331 = vsel %vm2283, 1, 0
        %v2332 = vsel %vm2284, 1, 0
        %v2333 = vsel %vm2285, 1, 0
        %v2334 = vsel %vm2286, 1, 0
        %v2335 = vsel %vm2287, 1, 0
        %v2336 = vsel %vm2288, 1, 0
        %v2337 = vsel %vm2289, 1, 0
        %v2338 = vsel %vm2290, 1, 0
        %v2339 = vsel %vm2291, 1, 0
        %v2340 = vsel %vm2292, 1, 0
        %v2341 = vsel %vm2293, 1, 0
        %v2342 = vsel %vm2294, 1, 0
        %v2343 = vsel %vm2295, 1, 0
        %v2344 = vsel %vm2296, 1, 0
        %v2345 = vsel %vm2297, 1, 0
        %v2346 = vsel %vm2298, 1, 0
        %v2347 = vsel %vm2299, 1, 0
        %v2348 = vsel %vm2300, 1, 0
        %v2349 = vsel %vm2301, 1, 0
        %v2350 = vsel %vm2302, 1, 0
        %v2351 = vsel %vm2303, 1, 0
        %v2352 = vsel %vm2304, 1, 0
        %v2353 = vsel %vm2305, 1, 0
        %v2354 = vsel %vm2306, 1, 0
        %v2355 = vsel %vm2307, 1, 0
        %v2356 = vsel %vm2308, 1, 0
        %v2357 = vsel %vm2309, 1, 0
        %v2358 = vsel %vm2310, 1, 0
        %v2359 = vsel %vm2311, 1, 0
        %v2360 = vsel %vm2312, 1, 0
        %v2361 = vsel %vm2313, 1, 0
        %v2362 = vsel %vm2314, 1, 0
        %v2363 = vsel %vm2315, 1, 0
        %v2364 = vsel %vm2316, 1, 0
        %v2365 = vsel %vm2317, 1, 0
        %v2366 = vsel %vm2318, 1, 0
        %v2367 = vsel %vm2319, 1, 0
        %v2368 = vsel %vm2320, 1, 0
        %v2369 = vsel %vm2321, 1, 0
        %v2370 = vsel %vm2322, 1, 0
        %v2371 = vsel %vm2323, 1, 0
        %v2372 = vsel %vm2324, 1, 0
        %v2373 = vsel %vm2325, 1, 0
        %v2374 = vcvt.s32.f32 %v2326
        %v2375 = vcvt.s32.f32 %v2327
        %v2376 = vcvt.s32.f32 %v2328
        %v2377 = vcvt.s32.f32 %v2329
        %v2378 = vcvt.s32.f32 %v2330
        %v2379 = vcvt.s32.f32 %v2331
        %v2380 = vcvt.s32.f32 %v2332
        %v2381 = vcvt.s32.f32 %v2333
        %v2382 = vcvt.s32.f32 %v2334
        %v2383 = vcvt.s32.f32 %v2335
        %v2384 = vcvt.s32.f32 %v2336
        %v2385 = vcvt.s32.f32 %v2337
        %v2386 = vcvt.s32.f32 %v2338
        %v2387 = vcvt.s32.f32 %v2339
        %v2388 = vcvt.s32.f32 %v2340
        %v2389 = vcvt.s32.f32 %v2341
        %v2390 = vcvt.s32.f32 %v2342
        %v2391 = vcvt.s32.f32 %v2343
        %v2392 = vcvt.s32.f32 %v2344
        %v2393 = vcvt.s32.f32 %v2345
        %v2394 = vcvt.s32.f32 %v2346
        %v2395 = vcvt.s32.f32 %v2347
        %v2396 = vcvt.s32.f32 %v2348
        %v2397 = vcvt.s32.f32 %v2349
        %v2398 = vcvt.s32.f32 %v2350
        %v2399 = vcvt.s32.f32 %v2351
        %v2400 = vcvt.s32.f32 %v2352
        %v2401 = vcvt.s32.f32 %v2353
        %v2402 = vcvt.s32.f32 %v2354
        %v2403 = vcvt.s32.f32 %v2355
        %v2404 = vcvt.s32.f32 %v2356
        %v2405 = vcvt.s32.f32 %v2357
        %v2406 = vcvt.s32.f32 %v2358
        %v2407 = vcvt.s32.f32 %v2359
        %v2408 = vcvt.s32.f32 %v2360
        %v2409 = vcvt.s32.f32 %v2361
        %v2410 = vcvt.s32.f32 %v2362
        %v2411 = vcvt.s32.f32 %v2363
        %v2412 = vcvt.s32.f32 %v2364
        %v2413 = vcvt.s32.f32 %v2365
        %v2414 = vcvt.s32.f32 %v2366
        %v2415 = vcvt.s32.f32 %v2367
        %v2416 = vcvt.s32.f32 %v2368
        %v2417 = vcvt.s32.f32 %v2369
        %v2418 = vcvt.s32.f32 %v2370
        %v2419 = vcvt.s32.f32 %v2371
        %v2420 = vcvt.s32.f32 %v2372
        %v2421 = vcvt.s32.f32 %v2373
        %v2422 = vpack.c.bf16 %v2380, %v2374
        %v2423 = vpack.c.bf16 %v2381, %v2375
        %v2424 = vpack.c.bf16 %v2382, %v2376
        %v2425 = vpack.c.bf16 %v2383, %v2377
        %v2426 = vpack.c.bf16 %v2384, %v2378
        %v2427 = vpack.c.bf16 %v2385, %v2379
        %v2428 = vpack.c.bf16 %v2392, %v2386
        %v2429 = vpack.c.bf16 %v2393, %v2387
        %v2430 = vpack.c.bf16 %v2394, %v2388
        %v2431 = vpack.c.bf16 %v2395, %v2389
        %v2432 = vpack.c.bf16 %v2396, %v2390
        %v2433 = vpack.c.bf16 %v2397, %v2391
        %v2434 = vpack.c.bf16 %v2404, %v2398
        %v2435 = vpack.c.bf16 %v2405, %v2399
        %v2436 = vpack.c.bf16 %v2406, %v2400
        %v2437 = vpack.c.bf16 %v2407, %v2401
        %v2438 = vpack.c.bf16 %v2408, %v2402
        %v2439 = vpack.c.bf16 %v2409, %v2403
        %v2440 = vpack.c.bf16 %v2416, %v2410
        %v2441 = vpack.c.bf16 %v2417, %v2411
        %v2442 = vpack.c.bf16 %v2418, %v2412
        %v2443 = vpack.c.bf16 %v2419, %v2413
        %v2444 = vpack.c.bf16 %v2420, %v2414
        %v2445 = vpack.c.bf16 %v2421, %v2415
        %v2446 = vpack.c.bf16 %v2240, %v2240
        %v2448 = vsel %vm810, %v2446, 0
        %2450 = vmatprep.subr.bf16.mxu0 %v2423
        %2451 = vmatpush1.bf16.msra.mxu0 %v2422
        %2452 = vmatprep.subr.bf16.mxu0 %v2429
        %2453 = vmatpush1.bf16.msra.mxu0 %v2428
        %2454 = vmatprep.subr.bf16.mxu0 %v2435
        %2455 = vmatpush1.bf16.msra.mxu0 %v2434
        %2456 = vmatprep.subr.bf16.mxu0 %v2441
        %2457 = vmatpush1.bf16.msra.mxu0 %v2440
        %2458 = vmatprep.subr.bf16.mxu0 0
        %2459 = vmatpush1.bf16.msra.mxu0 0
        %2460 = vmatprep.subr.bf16.mxu0 0
        %2461 = vmatpush1.bf16.msra.mxu0 0
        %2462 = vmatprep.subr.bf16.mxu0 0
        %2463 = vmatpush1.bf16.msra.mxu0 0
        %2464 = vmatprep.subr.bf16.mxu0 0
        %2465 = vmatpush1.bf16.msra.mxu0 0
        %2466 = vmatprep.subr.bf16.mxu0 0
        %2467 = vmatpush1.bf16.msra.mxu0 0
        %2468 = vmatprep.subr.bf16.mxu0 0
        %2469 = vmatpush1.bf16.msra.mxu0 0
        %2470 = vmatprep.subr.bf16.mxu0 0
        %2471 = vmatpush1.bf16.msra.mxu0 0
        %2472 = vmatprep.subr.bf16.mxu0 0
        %2473 = vmatpush1.bf16.msra.mxu0 0
        %2474 = vmatprep.subr.bf16.mxu0 0
        %2475 = vmatpush1.bf16.msra.mxu0 0
        %2476 = vmatprep.subr.bf16.mxu0 0
        %2477 = vmatpush1.bf16.msra.mxu0 0
        %2478 = vmatprep.subr.bf16.mxu0 0
        %2479 = vmatpush1.bf16.msra.mxu0 0
        %2480 = vmatprep.subr.bf16.mxu0 0
        %2481 = vmatpush1.bf16.msra.mxu0 0
        %2482 = vmatprep.mubr.bf16.mxu0 0
        %2483 = vmatmul.mubr.bf16.gmra.mrb[0].mxu0 %v2448
        %v2484 = vpop.f32.mrb[0].mxu0
        %v2485 = vadd.f32 0.0, %v2484
        %v2486 = vpop.f32.mrb[0].mxu0
        %v2487 = vadd.f32 0.0, %v2486
        %v2488 = vpop.f32.mrb[0].mxu0
        %v2489 = vpop.f32.mrb[0].mxu0
        %2490 = vdwg.mxu0
        %2491 = vmatprep.subr.bf16.mxu0 %v2425
        %2492 = vmatpush1.bf16.msra.mxu0 %v2424
        %2493 = vmatprep.subr.bf16.mxu0 %v2431
        %2494 = vmatpush1.bf16.msra.mxu0 %v2430
        %2495 = vmatprep.subr.bf16.mxu0 %v2437
        %2496 = vmatpush1.bf16.msra.mxu0 %v2436
        %2497 = vmatprep.subr.bf16.mxu0 %v2443
        %2498 = vmatpush1.bf16.msra.mxu0 %v2442
        %2499 = vmatprep.subr.bf16.mxu0 0
        %2500 = vmatpush1.bf16.msra.mxu0 0
        %2501 = vmatprep.subr.bf16.mxu0 0
        %2502 = vmatpush1.bf16.msra.mxu0 0
        %2503 = vmatprep.subr.bf16.mxu0 0
        %2504 = vmatpush1.bf16.msra.mxu0 0
        %2505 = vmatprep.subr.bf16.mxu0 0
        %2506 = vmatpush1.bf16.msra.mxu0 0
        %2507 = vmatprep.subr.bf16.mxu0 0
        %2508 = vmatpush1.bf16.msra.mxu0 0
        %2509 = vmatprep.subr.bf16.mxu0 0
        %2510 = vmatpush1.bf16.msra.mxu0 0
        %2511 = vmatprep.subr.bf16.mxu0 0
        %2512 = vmatpush1.bf16.msra.mxu0 0
        %2513 = vmatprep.subr.bf16.mxu0 0
        %2514 = vmatpush1.bf16.msra.mxu0 0
        %2515 = vmatprep.subr.bf16.mxu0 0
        %2516 = vmatpush1.bf16.msra.mxu0 0
        %2517 = vmatprep.subr.bf16.mxu0 0
        %2518 = vmatpush1.bf16.msra.mxu0 0
        %2519 = vmatprep.subr.bf16.mxu0 0
        %2520 = vmatpush1.bf16.msra.mxu0 0
        %2521 = vmatprep.subr.bf16.mxu0 0
        %2522 = vmatpush1.bf16.msra.mxu0 0
        %2523 = vmatprep.mubr.bf16.mxu0 0
        %2524 = vmatmul.mubr.bf16.gmra.mrb[0].mxu0 %v2448
        %v2525 = vpop.f32.mrb[0].mxu0
        %v2526 = vadd.f32 0.0, %v2525
        %v2527 = vpop.f32.mrb[0].mxu0
        %v2528 = vadd.f32 0.0, %v2527
        %v2529 = vpop.f32.mrb[0].mxu0
        %v2530 = vpop.f32.mrb[0].mxu0
        %2531 = vdwg.mxu0
        %2532 = vmatprep.subr.bf16.mxu0 %v2427
        %2533 = vmatpush1.bf16.msra.mxu0 %v2426
        %2534 = vmatprep.subr.bf16.mxu0 %v2433
        %2535 = vmatpush1.bf16.msra.mxu0 %v2432
        %2536 = vmatprep.subr.bf16.mxu0 %v2439
        %2537 = vmatpush1.bf16.msra.mxu0 %v2438
        %2538 = vmatprep.subr.bf16.mxu0 %v2445
        %2539 = vmatpush1.bf16.msra.mxu0 %v2444
        %2540 = vmatprep.subr.bf16.mxu0 0
        %2541 = vmatpush1.bf16.msra.mxu0 0
        %2542 = vmatprep.subr.bf16.mxu0 0
        %2543 = vmatpush1.bf16.msra.mxu0 0
        %2544 = vmatprep.subr.bf16.mxu0 0
        %2545 = vmatpush1.bf16.msra.mxu0 0
        %2546 = vmatprep.subr.bf16.mxu0 0
        %2547 = vmatpush1.bf16.msra.mxu0 0
        %2548 = vmatprep.subr.bf16.mxu0 0
        %2549 = vmatpush1.bf16.msra.mxu0 0
        %2550 = vmatprep.subr.bf16.mxu0 0
        %2551 = vmatpush1.bf16.msra.mxu0 0
        %2552 = vmatprep.subr.bf16.mxu0 0
        %2553 = vmatpush1.bf16.msra.mxu0 0
        %2554 = vmatprep.subr.bf16.mxu0 0
        %2555 = vmatpush1.bf16.msra.mxu0 0
        %2556 = vmatprep.subr.bf16.mxu0 0
        %2557 = vmatpush1.bf16.msra.mxu0 0
        %2558 = vmatprep.subr.bf16.mxu0 0
        %2559 = vmatpush1.bf16.msra.mxu0 0
        %2560 = vmatprep.subr.bf16.mxu0 0
        %2561 = vmatpush1.bf16.msra.mxu0 0
        %2562 = vmatprep.subr.bf16.mxu0 0
        %2563 = vmatpush1.bf16.msra.mxu0 0
        %2564 = vmatprep.mubr.bf16.mxu0 0
        %2565 = vmatmul.mubr.bf16.gmra.mrb[0].mxu0 %v2448
        %v2566 = vpop.f32.mrb[0].mxu0
        %v2567 = vadd.f32 0.0, %v2566
        %v2568 = vpop.f32.mrb[0].mxu0
        %v2569 = vadd.f32 0.0, %v2568
        %v2570 = vpop.f32.mrb[0].mxu0
        %v2571 = vpop.f32.mrb[0].mxu0
        %2572 = vdwg.mxu0
        %v2573 = vadd.f32 %v2194, %v2485
        %v2574 = vadd.f32 %v2195, %v2487
        %v2575 = vadd.f32 %v2196, %v2526
        %v2576 = vadd.f32 %v2197, %v2528
        %v2577 = vadd.f32 %v2198, %v2567
        %v2578 = vadd.f32 %v2199, %v2569
        %s2579 = scalar_lea.vmem %s1, 12
        %v2580 = vld [vmem:[%s2579] sm:$0x3]
        %v2582 = vsel %vm311, %v2580, 0
        %2584 = vmatprep.subr.bf16.mxu0 0
        %2585 = vmatpush1.bf16.msra.mxu0 %v320
        %2586 = vmatprep.subr.bf16.mxu0 0
        %2587 = vmatpush1.bf16.msra.mxu0 0
        %2588 = vmatprep.subr.bf16.mxu0 0
        %2589 = vmatpush1.bf16.msra.mxu0 0
        %2590 = vmatprep.subr.bf16.mxu0 0
        %2591 = vmatpush1.bf16.msra.mxu0 0
        %2592 = vmatprep.subr.bf16.mxu0 0
        %2593 = vmatpush1.bf16.msra.mxu0 0
        %2594 = vmatprep.subr.bf16.mxu0 0
        %2595 = vmatpush1.bf16.msra.mxu0 0
        %2596 = vmatprep.subr.bf16.mxu0 0
        %2597 = vmatpush1.bf16.msra.mxu0 0
        %2598 = vmatprep.subr.bf16.mxu0 0
        %2599 = vmatpush1.bf16.msra.mxu0 0
        %2600 = vmatprep.subr.bf16.mxu0 0
        %2601 = vmatpush1.bf16.msra.mxu0 0
        %2602 = vmatprep.subr.bf16.mxu0 0
        %2603 = vmatpush1.bf16.msra.mxu0 0
        %2604 = vmatprep.subr.bf16.mxu0 0
        %2605 = vmatpush1.bf16.msra.mxu0 0
        %2606 = vmatprep.subr.bf16.mxu0 0
        %2607 = vmatpush1.bf16.msra.mxu0 0
        %2608 = vmatprep.subr.bf16.mxu0 0
        %2609 = vmatpush1.bf16.msra.mxu0 0
        %2610 = vmatprep.subr.bf16.mxu0 0
        %2611 = vmatpush1.bf16.msra.mxu0 0
        %2612 = vmatprep.subr.bf16.mxu0 0
        %2613 = vmatpush1.bf16.msra.mxu0 0
        %2614 = vmatprep.subr.bf16.mxu0 0
        %2615 = vmatpush1.bf16.msra.mxu0 0
        %2616 = vmatprep.mubr.bf16.mxu0 0
        %2617 = vmatmul.mubr.bf16.gmra.mrb[0].mxu0 %v2582
        %v2618 = vpop.f32.mrb[0].mxu0
        %v2619 = vadd.f32 0.0, %v2618
        %v2620 = vpop.f32.mrb[0].mxu0
        %v2621 = vpop.f32.mrb[0].mxu0
        %v2622 = vpop.f32.mrb[0].mxu0
        %2623 = vdwg.mxu0
        %s2624 = scalar_lea.vmem %s6, 384
        %v2625 = vld [vmem:[%s2624] sm:$0xff]
        %v2626 = vld [vmem:[%s2624 + $0x8] sm:$0xff]
        %v2627 = vld [vmem:[%s2624 + $0x10] sm:$0xff]
        %v2628 = vld [vmem:[%s2624 + $0x18] sm:$0xff]
        %v2629 = vld [vmem:[%s2624 + $0x20] sm:$0xff]
        %v2630 = vld [vmem:[%s2624 + $0x28] sm:$0xff]
        %v2631 = vld [vmem:[%s2624 + $0x30] sm:$0xff]
        %v2632 = vld [vmem:[%s2624 + $0x38] sm:$0xff]
        %2633 = vset.pattern.permute.xlu0 0
        %2634 = vperm.xlu0 %2633, %v2625
        %v2635 = vpop.permute.xlu0 %2634
        %2636 = vset.pattern.permute.xlu0 0
        %2637 = vperm.xlu0 %2636, %v2626
        %v2638 = vpop.permute.xlu0 %2637
        %2639 = vset.pattern.permute.xlu0 0
        %2640 = vperm.xlu0 %2639, %v2627
        %v2641 = vpop.permute.xlu0 %2640
        %2642 = vset.pattern.permute.xlu0 0
        %2643 = vperm.xlu0 %2642, %v2628
        %v2644 = vpop.permute.xlu0 %2643
        %2645 = vset.pattern.permute.xlu0 0
        %2646 = vperm.xlu0 %2645, %v2629
        %v2647 = vpop.permute.xlu0 %2646
        %2648 = vset.pattern.permute.xlu0 0
        %2649 = vperm.xlu0 %2648, %v2630
        %v2650 = vpop.permute.xlu0 %2649
        %2651 = vset.pattern.permute.xlu0 0
        %2652 = vperm.xlu0 %2651, %v2631
        %v2653 = vpop.permute.xlu0 %2652
        %2654 = vset.pattern.permute.xlu0 0
        %2655 = vperm.xlu0 %2654, %v2632
        %v2656 = vpop.permute.xlu0 %2655
        %vm2657 = vcmp.eq.s32.totalorder %v304, %v2635
        %vm2658 = vcmp.eq.s32.totalorder %v305, %v2635
        %vm2659 = vcmp.eq.s32.totalorder %v306, %v2635
        %vm2660 = vcmp.eq.s32.totalorder %v307, %v2635
        %vm2661 = vcmp.eq.s32.totalorder %v308, %v2635
        %vm2662 = vcmp.eq.s32.totalorder %v309, %v2635
        %vm2663 = vcmp.eq.s32.totalorder %v304, %v2638
        %vm2664 = vcmp.eq.s32.totalorder %v305, %v2638
        %vm2665 = vcmp.eq.s32.totalorder %v306, %v2638
        %vm2666 = vcmp.eq.s32.totalorder %v307, %v2638
        %vm2667 = vcmp.eq.s32.totalorder %v308, %v2638
        %vm2668 = vcmp.eq.s32.totalorder %v309, %v2638
        %vm2669 = vcmp.eq.s32.totalorder %v304, %v2641
        %vm2670 = vcmp.eq.s32.totalorder %v305, %v2641
        %vm2671 = vcmp.eq.s32.totalorder %v306, %v2641
        %vm2672 = vcmp.eq.s32.totalorder %v307, %v2641
        %vm2673 = vcmp.eq.s32.totalorder %v308, %v2641
        %vm2674 = vcmp.eq.s32.totalorder %v309, %v2641
        %vm2675 = vcmp.eq.s32.totalorder %v304, %v2644
        %vm2676 = vcmp.eq.s32.totalorder %v305, %v2644
        %vm2677 = vcmp.eq.s32.totalorder %v306, %v2644
        %vm2678 = vcmp.eq.s32.totalorder %v307, %v2644
        %vm2679 = vcmp.eq.s32.totalorder %v308, %v2644
        %vm2680 = vcmp.eq.s32.totalorder %v309, %v2644
        %vm2681 = vcmp.eq.s32.totalorder %v304, %v2647
        %vm2682 = vcmp.eq.s32.totalorder %v305, %v2647
        %vm2683 = vcmp.eq.s32.totalorder %v306, %v2647
        %vm2684 = vcmp.eq.s32.totalorder %v307, %v2647
        %vm2685 = vcmp.eq.s32.totalorder %v308, %v2647
        %vm2686 = vcmp.eq.s32.totalorder %v309, %v2647
        %vm2687 = vcmp.eq.s32.totalorder %v304, %v2650
        %vm2688 = vcmp.eq.s32.totalorder %v305, %v2650
        %vm2689 = vcmp.eq.s32.totalorder %v306, %v2650
        %vm2690 = vcmp.eq.s32.totalorder %v307, %v2650
        %vm2691 = vcmp.eq.s32.totalorder %v308, %v2650
        %vm2692 = vcmp.eq.s32.totalorder %v309, %v2650
        %vm2693 = vcmp.eq.s32.totalorder %v304, %v2653
        %vm2694 = vcmp.eq.s32.totalorder %v305, %v2653
        %vm2695 = vcmp.eq.s32.totalorder %v306, %v2653
        %vm2696 = vcmp.eq.s32.totalorder %v307, %v2653
        %vm2697 = vcmp.eq.s32.totalorder %v308, %v2653
        %vm2698 = vcmp.eq.s32.totalorder %v309, %v2653
        %vm2699 = vcmp.eq.s32.totalorder %v304, %v2656
        %vm2700 = vcmp.eq.s32.totalorder %v305, %v2656
        %vm2701 = vcmp.eq.s32.totalorder %v306, %v2656
        %vm2702 = vcmp.eq.s32.totalorder %v307, %v2656
        %vm2703 = vcmp.eq.s32.totalorder %v308, %v2656
        %vm2704 = vcmp.eq.s32.totalorder %v309, %v2656
        %v2705 = vsel %vm2657, 1, 0
        %v2706 = vsel %vm2658, 1, 0
        %v2707 = vsel %vm2659, 1, 0
        %v2708 = vsel %vm2660, 1, 0
        %v2709 = vsel %vm2661, 1, 0
        %v2710 = vsel %vm2662, 1, 0
        %v2711 = vsel %vm2663, 1, 0
        %v2712 = vsel %vm2664, 1, 0
        %v2713 = vsel %vm2665, 1, 0
        %v2714 = vsel %vm2666, 1, 0
        %v2715 = vsel %vm2667, 1, 0
        %v2716 = vsel %vm2668, 1, 0
        %v2717 = vsel %vm2669, 1, 0
        %v2718 = vsel %vm2670, 1, 0
        %v2719 = vsel %vm2671, 1, 0
        %v2720 = vsel %vm2672, 1, 0
        %v2721 = vsel %vm2673, 1, 0
        %v2722 = vsel %vm2674, 1, 0
        %v2723 = vsel %vm2675, 1, 0
        %v2724 = vsel %vm2676, 1, 0
        %v2725 = vsel %vm2677, 1, 0
        %v2726 = vsel %vm2678, 1, 0
        %v2727 = vsel %vm2679, 1, 0
        %v2728 = vsel %vm2680, 1, 0
        %v2729 = vsel %vm2681, 1, 0
        %v2730 = vsel %vm2682, 1, 0
        %v2731 = vsel %vm2683, 1, 0
        %v2732 = vsel %vm2684, 1, 0
        %v2733 = vsel %vm2685, 1, 0
        %v2734 = vsel %vm2686, 1, 0
        %v2735 = vsel %vm2687, 1, 0
        %v2736 = vsel %vm2688, 1, 0
        %v2737 = vsel %vm2689, 1, 0
        %v2738 = vsel %vm2690, 1, 0
        %v2739 = vsel %vm2691, 1, 0
        %v2740 = vsel %vm2692, 1, 0
        %v2741 = vsel %vm2693, 1, 0
        %v2742 = vsel %vm2694, 1, 0
        %v2743 = vsel %vm2695, 1, 0
        %v2744 = vsel %vm2696, 1, 0
        %v2745 = vsel %vm2697, 1, 0
        %v2746 = vsel %vm2698, 1, 0
        %v2747 = vsel %vm2699, 1, 0
        %v2748 = vsel %vm2700, 1, 0
        %v2749 = vsel %vm2701, 1, 0
        %v2750 = vsel %vm2702, 1, 0
        %v2751 = vsel %vm2703, 1, 0
        %v2752 = vsel %vm2704, 1, 0
        %v2753 = vcvt.s32.f32 %v2705
        %v2754 = vcvt.s32.f32 %v2706
        %v2755 = vcvt.s32.f32 %v2707
        %v2756 = vcvt.s32.f32 %v2708
        %v2757 = vcvt.s32.f32 %v2709
        %v2758 = vcvt.s32.f32 %v2710
        %v2759 = vcvt.s32.f32 %v2711
        %v2760 = vcvt.s32.f32 %v2712
        %v2761 = vcvt.s32.f32 %v2713
        %v2762 = vcvt.s32.f32 %v2714
        %v2763 = vcvt.s32.f32 %v2715
        %v2764 = vcvt.s32.f32 %v2716
        %v2765 = vcvt.s32.f32 %v2717
        %v2766 = vcvt.s32.f32 %v2718
        %v2767 = vcvt.s32.f32 %v2719
        %v2768 = vcvt.s32.f32 %v2720
        %v2769 = vcvt.s32.f32 %v2721
        %v2770 = vcvt.s32.f32 %v2722
        %v2771 = vcvt.s32.f32 %v2723
        %v2772 = vcvt.s32.f32 %v2724
        %v2773 = vcvt.s32.f32 %v2725
        %v2774 = vcvt.s32.f32 %v2726
        %v2775 = vcvt.s32.f32 %v2727
        %v2776 = vcvt.s32.f32 %v2728
        %v2777 = vcvt.s32.f32 %v2729
        %v2778 = vcvt.s32.f32 %v2730
        %v2779 = vcvt.s32.f32 %v2731
        %v2780 = vcvt.s32.f32 %v2732
        %v2781 = vcvt.s32.f32 %v2733
        %v2782 = vcvt.s32.f32 %v2734
        %v2783 = vcvt.s32.f32 %v2735
        %v2784 = vcvt.s32.f32 %v2736
        %v2785 = vcvt.s32.f32 %v2737
        %v2786 = vcvt.s32.f32 %v2738
        %v2787 = vcvt.s32.f32 %v2739
        %v2788 = vcvt.s32.f32 %v2740
        %v2789 = vcvt.s32.f32 %v2741
        %v2790 = vcvt.s32.f32 %v2742
        %v2791 = vcvt.s32.f32 %v2743
        %v2792 = vcvt.s32.f32 %v2744
        %v2793 = vcvt.s32.f32 %v2745
        %v2794 = vcvt.s32.f32 %v2746
        %v2795 = vcvt.s32.f32 %v2747
        %v2796 = vcvt.s32.f32 %v2748
        %v2797 = vcvt.s32.f32 %v2749
        %v2798 = vcvt.s32.f32 %v2750
        %v2799 = vcvt.s32.f32 %v2751
        %v2800 = vcvt.s32.f32 %v2752
        %v2801 = vpack.c.bf16 %v2759, %v2753
        %v2802 = vpack.c.bf16 %v2760, %v2754
        %v2803 = vpack.c.bf16 %v2761, %v2755
        %v2804 = vpack.c.bf16 %v2762, %v2756
        %v2805 = vpack.c.bf16 %v2763, %v2757
        %v2806 = vpack.c.bf16 %v2764, %v2758
        %v2807 = vpack.c.bf16 %v2771, %v2765
        %v2808 = vpack.c.bf16 %v2772, %v2766
        %v2809 = vpack.c.bf16 %v2773, %v2767
        %v2810 = vpack.c.bf16 %v2774, %v2768
        %v2811 = vpack.c.bf16 %v2775, %v2769
        %v2812 = vpack.c.bf16 %v2776, %v2770
        %v2813 = vpack.c.bf16 %v2783, %v2777
        %v2814 = vpack.c.bf16 %v2784, %v2778
        %v2815 = vpack.c.bf16 %v2785, %v2779
        %v2816 = vpack.c.bf16 %v2786, %v2780
        %v2817 = vpack.c.bf16 %v2787, %v2781
        %v2818 = vpack.c.bf16 %v2788, %v2782
        %v2819 = vpack.c.bf16 %v2795, %v2789
        %v2820 = vpack.c.bf16 %v2796, %v2790
        %v2821 = vpack.c.bf16 %v2797, %v2791
        %v2822 = vpack.c.bf16 %v2798, %v2792
        %v2823 = vpack.c.bf16 %v2799, %v2793
        %v2824 = vpack.c.bf16 %v2800, %v2794
        %v2825 = vpack.c.bf16 %v2619, %v2619
        %v2827 = vsel %vm810, %v2825, 0
        %2829 = vmatprep.subr.bf16.mxu0 %v2802
        %2830 = vmatpush1.bf16.msra.mxu0 %v2801
        %2831 = vmatprep.subr.bf16.mxu0 %v2808
        %2832 = vmatpush1.bf16.msra.mxu0 %v2807
        %2833 = vmatprep.subr.bf16.mxu0 %v2814
        %2834 = vmatpush1.bf16.msra.mxu0 %v2813
        %2835 = vmatprep.subr.bf16.mxu0 %v2820
        %2836 = vmatpush1.bf16.msra.mxu0 %v2819
        %2837 = vmatprep.subr.bf16.mxu0 0
        %2838 = vmatpush1.bf16.msra.mxu0 0
        %2839 = vmatprep.subr.bf16.mxu0 0
        %2840 = vmatpush1.bf16.msra.mxu0 0
        %2841 = vmatprep.subr.bf16.mxu0 0
        %2842 = vmatpush1.bf16.msra.mxu0 0
        %2843 = vmatprep.subr.bf16.mxu0 0
        %2844 = vmatpush1.bf16.msra.mxu0 0
        %2845 = vmatprep.subr.bf16.mxu0 0
        %2846 = vmatpush1.bf16.msra.mxu0 0
        %2847 = vmatprep.subr.bf16.mxu0 0
        %2848 = vmatpush1.bf16.msra.mxu0 0
        %2849 = vmatprep.subr.bf16.mxu0 0
        %2850 = vmatpush1.bf16.msra.mxu0 0
        %2851 = vmatprep.subr.bf16.mxu0 0
        %2852 = vmatpush1.bf16.msra.mxu0 0
        %2853 = vmatprep.subr.bf16.mxu0 0
        %2854 = vmatpush1.bf16.msra.mxu0 0
        %2855 = vmatprep.subr.bf16.mxu0 0
        %2856 = vmatpush1.bf16.msra.mxu0 0
        %2857 = vmatprep.subr.bf16.mxu0 0
        %2858 = vmatpush1.bf16.msra.mxu0 0
        %2859 = vmatprep.subr.bf16.mxu0 0
        %2860 = vmatpush1.bf16.msra.mxu0 0
        %2861 = vmatprep.mubr.bf16.mxu0 0
        %2862 = vmatmul.mubr.bf16.gmra.mrb[0].mxu0 %v2827
        %v2863 = vpop.f32.mrb[0].mxu0
        %v2864 = vadd.f32 0.0, %v2863
        %v2865 = vpop.f32.mrb[0].mxu0
        %v2866 = vadd.f32 0.0, %v2865
        %v2867 = vpop.f32.mrb[0].mxu0
        %v2868 = vpop.f32.mrb[0].mxu0
        %2869 = vdwg.mxu0
        %2870 = vmatprep.subr.bf16.mxu0 %v2804
        %2871 = vmatpush1.bf16.msra.mxu0 %v2803
        %2872 = vmatprep.subr.bf16.mxu0 %v2810
        %2873 = vmatpush1.bf16.msra.mxu0 %v2809
        %2874 = vmatprep.subr.bf16.mxu0 %v2816
        %2875 = vmatpush1.bf16.msra.mxu0 %v2815
        %2876 = vmatprep.subr.bf16.mxu0 %v2822
        %2877 = vmatpush1.bf16.msra.mxu0 %v2821
        %2878 = vmatprep.subr.bf16.mxu0 0
        %2879 = vmatpush1.bf16.msra.mxu0 0
        %2880 = vmatprep.subr.bf16.mxu0 0
        %2881 = vmatpush1.bf16.msra.mxu0 0
        %2882 = vmatprep.subr.bf16.mxu0 0
        %2883 = vmatpush1.bf16.msra.mxu0 0
        %2884 = vmatprep.subr.bf16.mxu0 0
        %2885 = vmatpush1.bf16.msra.mxu0 0
        %2886 = vmatprep.subr.bf16.mxu0 0
        %2887 = vmatpush1.bf16.msra.mxu0 0
        %2888 = vmatprep.subr.bf16.mxu0 0
        %2889 = vmatpush1.bf16.msra.mxu0 0
        %2890 = vmatprep.subr.bf16.mxu0 0
        %2891 = vmatpush1.bf16.msra.mxu0 0
        %2892 = vmatprep.subr.bf16.mxu0 0
        %2893 = vmatpush1.bf16.msra.mxu0 0
        %2894 = vmatprep.subr.bf16.mxu0 0
        %2895 = vmatpush1.bf16.msra.mxu0 0
        %2896 = vmatprep.subr.bf16.mxu0 0
        %2897 = vmatpush1.bf16.msra.mxu0 0
        %2898 = vmatprep.subr.bf16.mxu0 0
        %2899 = vmatpush1.bf16.msra.mxu0 0
        %2900 = vmatprep.subr.bf16.mxu0 0
        %2901 = vmatpush1.bf16.msra.mxu0 0
        %2902 = vmatprep.mubr.bf16.mxu0 0
        %2903 = vmatmul.mubr.bf16.gmra.mrb[0].mxu0 %v2827
        %v2904 = vpop.f32.mrb[0].mxu0
        %v2905 = vadd.f32 0.0, %v2904
        %v2906 = vpop.f32.mrb[0].mxu0
        %v2907 = vadd.f32 0.0, %v2906
        %v2908 = vpop.f32.mrb[0].mxu0
        %v2909 = vpop.f32.mrb[0].mxu0
        %2910 = vdwg.mxu0
        %2911 = vmatprep.subr.bf16.mxu0 %v2806
        %2912 = vmatpush1.bf16.msra.mxu0 %v2805
        %2913 = vmatprep.subr.bf16.mxu0 %v2812
        %2914 = vmatpush1.bf16.msra.mxu0 %v2811
        %2915 = vmatprep.subr.bf16.mxu0 %v2818
        %2916 = vmatpush1.bf16.msra.mxu0 %v2817
        %2917 = vmatprep.subr.bf16.mxu0 %v2824
        %2918 = vmatpush1.bf16.msra.mxu0 %v2823
        %2919 = vmatprep.subr.bf16.mxu0 0
        %2920 = vmatpush1.bf16.msra.mxu0 0
        %2921 = vmatprep.subr.bf16.mxu0 0
        %2922 = vmatpush1.bf16.msra.mxu0 0
        %2923 = vmatprep.subr.bf16.mxu0 0
        %2924 = vmatpush1.bf16.msra.mxu0 0
        %2925 = vmatprep.subr.bf16.mxu0 0
        %2926 = vmatpush1.bf16.msra.mxu0 0
        %2927 = vmatprep.subr.bf16.mxu0 0
        %2928 = vmatpush1.bf16.msra.mxu0 0
        %2929 = vmatprep.subr.bf16.mxu0 0
        %2930 = vmatpush1.bf16.msra.mxu0 0
        %2931 = vmatprep.subr.bf16.mxu0 0
        %2932 = vmatpush1.bf16.msra.mxu0 0
        %2933 = vmatprep.subr.bf16.mxu0 0
        %2934 = vmatpush1.bf16.msra.mxu0 0
        %2935 = vmatprep.subr.bf16.mxu0 0
        %2936 = vmatpush1.bf16.msra.mxu0 0
        %2937 = vmatprep.subr.bf16.mxu0 0
        %2938 = vmatpush1.bf16.msra.mxu0 0
        %2939 = vmatprep.subr.bf16.mxu0 0
        %2940 = vmatpush1.bf16.msra.mxu0 0
        %2941 = vmatprep.subr.bf16.mxu0 0
        %2942 = vmatpush1.bf16.msra.mxu0 0
        %2943 = vmatprep.mubr.bf16.mxu0 0
        %2944 = vmatmul.mubr.bf16.gmra.mrb[0].mxu0 %v2827
        %v2945 = vpop.f32.mrb[0].mxu0
        %v2946 = vadd.f32 0.0, %v2945
        %v2947 = vpop.f32.mrb[0].mxu0
        %v2948 = vadd.f32 0.0, %v2947
        %v2949 = vpop.f32.mrb[0].mxu0
        %v2950 = vpop.f32.mrb[0].mxu0
        %2951 = vdwg.mxu0
        %v2952 = vadd.f32 %v2573, %v2864
        %v2953 = vadd.f32 %v2574, %v2866
        %v2954 = vadd.f32 %v2575, %v2905
        %v2955 = vadd.f32 %v2576, %v2907
        %v2956 = vadd.f32 %v2577, %v2946
        %v2957 = vadd.f32 %v2578, %v2948
        %s2958 = scalar_lea.vmem %s1, 14
        %v2959 = vld [vmem:[%s2958] sm:$0x3]
        %v2961 = vsel %vm311, %v2959, 0
        %2963 = vmatprep.subr.bf16.mxu0 0
        %2964 = vmatpush1.bf16.msra.mxu0 %v320
        %2965 = vmatprep.subr.bf16.mxu0 0
        %2966 = vmatpush1.bf16.msra.mxu0 0
        %2967 = vmatprep.subr.bf16.mxu0 0
        %2968 = vmatpush1.bf16.msra.mxu0 0
        %2969 = vmatprep.subr.bf16.mxu0 0
        %2970 = vmatpush1.bf16.msra.mxu0 0
        %2971 = vmatprep.subr.bf16.mxu0 0
        %2972 = vmatpush1.bf16.msra.mxu0 0
        %2973 = vmatprep.subr.bf16.mxu0 0
        %2974 = vmatpush1.bf16.msra.mxu0 0
        %2975 = vmatprep.subr.bf16.mxu0 0
        %2976 = vmatpush1.bf16.msra.mxu0 0
        %2977 = vmatprep.subr.bf16.mxu0 0
        %2978 = vmatpush1.bf16.msra.mxu0 0
        %2979 = vmatprep.subr.bf16.mxu0 0
        %2980 = vmatpush1.bf16.msra.mxu0 0
        %2981 = vmatprep.subr.bf16.mxu0 0
        %2982 = vmatpush1.bf16.msra.mxu0 0
        %2983 = vmatprep.subr.bf16.mxu0 0
        %2984 = vmatpush1.bf16.msra.mxu0 0
        %2985 = vmatprep.subr.bf16.mxu0 0
        %2986 = vmatpush1.bf16.msra.mxu0 0
        %2987 = vmatprep.subr.bf16.mxu0 0
        %2988 = vmatpush1.bf16.msra.mxu0 0
        %2989 = vmatprep.subr.bf16.mxu0 0
        %2990 = vmatpush1.bf16.msra.mxu0 0
        %2991 = vmatprep.subr.bf16.mxu0 0
        %2992 = vmatpush1.bf16.msra.mxu0 0
        %2993 = vmatprep.subr.bf16.mxu0 0
        %2994 = vmatpush1.bf16.msra.mxu0 0
        %2995 = vmatprep.mubr.bf16.mxu0 0
        %2996 = vmatmul.mubr.bf16.gmra.mrb[0].mxu0 %v2961
        %v2997 = vpop.f32.mrb[0].mxu0
        %v2998 = vadd.f32 0.0, %v2997
        %v2999 = vpop.f32.mrb[0].mxu0
        %v3000 = vpop.f32.mrb[0].mxu0
        %v3001 = vpop.f32.mrb[0].mxu0
        %3002 = vdwg.mxu0
        %s3003 = scalar_lea.vmem %s6, 448
        %v3004 = vld [vmem:[%s3003] sm:$0xff]
        %v3005 = vld [vmem:[%s3003 + $0x8] sm:$0xff]
        %v3006 = vld [vmem:[%s3003 + $0x10] sm:$0xff]
        %v3007 = vld [vmem:[%s3003 + $0x18] sm:$0xff]
        %v3008 = vld [vmem:[%s3003 + $0x20] sm:$0xff]
        %v3009 = vld [vmem:[%s3003 + $0x28] sm:$0xff]
        %v3010 = vld [vmem:[%s3003 + $0x30] sm:$0xff]
        %v3011 = vld [vmem:[%s3003 + $0x38] sm:$0xff]
        %3012 = vset.pattern.permute.xlu0 0
        %3013 = vperm.xlu0 %3012, %v3004
        %v3014 = vpop.permute.xlu0 %3013
        %3015 = vset.pattern.permute.xlu0 0
        %3016 = vperm.xlu0 %3015, %v3005
        %v3017 = vpop.permute.xlu0 %3016
        %3018 = vset.pattern.permute.xlu0 0
        %3019 = vperm.xlu0 %3018, %v3006
        %v3020 = vpop.permute.xlu0 %3019
        %3021 = vset.pattern.permute.xlu0 0
        %3022 = vperm.xlu0 %3021, %v3007
        %v3023 = vpop.permute.xlu0 %3022
        %3024 = vset.pattern.permute.xlu0 0
        %3025 = vperm.xlu0 %3024, %v3008
        %v3026 = vpop.permute.xlu0 %3025
        %3027 = vset.pattern.permute.xlu0 0
        %3028 = vperm.xlu0 %3027, %v3009
        %v3029 = vpop.permute.xlu0 %3028
        %3030 = vset.pattern.permute.xlu0 0
        %3031 = vperm.xlu0 %3030, %v3010
        %v3032 = vpop.permute.xlu0 %3031
        %3033 = vset.pattern.permute.xlu0 0
        %3034 = vperm.xlu0 %3033, %v3011
        %v3035 = vpop.permute.xlu0 %3034
        %vm3036 = vcmp.eq.s32.totalorder %v304, %v3014
        %vm3037 = vcmp.eq.s32.totalorder %v305, %v3014
        %vm3038 = vcmp.eq.s32.totalorder %v306, %v3014
        %vm3039 = vcmp.eq.s32.totalorder %v307, %v3014
        %vm3040 = vcmp.eq.s32.totalorder %v308, %v3014
        %vm3041 = vcmp.eq.s32.totalorder %v309, %v3014
        %vm3042 = vcmp.eq.s32.totalorder %v304, %v3017
        %vm3043 = vcmp.eq.s32.totalorder %v305, %v3017
        %vm3044 = vcmp.eq.s32.totalorder %v306, %v3017
        %vm3045 = vcmp.eq.s32.totalorder %v307, %v3017
        %vm3046 = vcmp.eq.s32.totalorder %v308, %v3017
        %vm3047 = vcmp.eq.s32.totalorder %v309, %v3017
        %vm3048 = vcmp.eq.s32.totalorder %v304, %v3020
        %vm3049 = vcmp.eq.s32.totalorder %v305, %v3020
        %vm3050 = vcmp.eq.s32.totalorder %v306, %v3020
        %vm3051 = vcmp.eq.s32.totalorder %v307, %v3020
        %vm3052 = vcmp.eq.s32.totalorder %v308, %v3020
        %vm3053 = vcmp.eq.s32.totalorder %v309, %v3020
        %vm3054 = vcmp.eq.s32.totalorder %v304, %v3023
        %vm3055 = vcmp.eq.s32.totalorder %v305, %v3023
        %vm3056 = vcmp.eq.s32.totalorder %v306, %v3023
        %vm3057 = vcmp.eq.s32.totalorder %v307, %v3023
        %vm3058 = vcmp.eq.s32.totalorder %v308, %v3023
        %vm3059 = vcmp.eq.s32.totalorder %v309, %v3023
        %vm3060 = vcmp.eq.s32.totalorder %v304, %v3026
        %vm3061 = vcmp.eq.s32.totalorder %v305, %v3026
        %vm3062 = vcmp.eq.s32.totalorder %v306, %v3026
        %vm3063 = vcmp.eq.s32.totalorder %v307, %v3026
        %vm3064 = vcmp.eq.s32.totalorder %v308, %v3026
        %vm3065 = vcmp.eq.s32.totalorder %v309, %v3026
        %vm3066 = vcmp.eq.s32.totalorder %v304, %v3029
        %vm3067 = vcmp.eq.s32.totalorder %v305, %v3029
        %vm3068 = vcmp.eq.s32.totalorder %v306, %v3029
        %vm3069 = vcmp.eq.s32.totalorder %v307, %v3029
        %vm3070 = vcmp.eq.s32.totalorder %v308, %v3029
        %vm3071 = vcmp.eq.s32.totalorder %v309, %v3029
        %vm3072 = vcmp.eq.s32.totalorder %v304, %v3032
        %vm3073 = vcmp.eq.s32.totalorder %v305, %v3032
        %vm3074 = vcmp.eq.s32.totalorder %v306, %v3032
        %vm3075 = vcmp.eq.s32.totalorder %v307, %v3032
        %vm3076 = vcmp.eq.s32.totalorder %v308, %v3032
        %vm3077 = vcmp.eq.s32.totalorder %v309, %v3032
        %vm3078 = vcmp.eq.s32.totalorder %v304, %v3035
        %vm3079 = vcmp.eq.s32.totalorder %v305, %v3035
        %vm3080 = vcmp.eq.s32.totalorder %v306, %v3035
        %vm3081 = vcmp.eq.s32.totalorder %v307, %v3035
        %vm3082 = vcmp.eq.s32.totalorder %v308, %v3035
        %vm3083 = vcmp.eq.s32.totalorder %v309, %v3035
        %v3084 = vsel %vm3036, 1, 0
        %v3085 = vsel %vm3037, 1, 0
        %v3086 = vsel %vm3038, 1, 0
        %v3087 = vsel %vm3039, 1, 0
        %v3088 = vsel %vm3040, 1, 0
        %v3089 = vsel %vm3041, 1, 0
        %v3090 = vsel %vm3042, 1, 0
        %v3091 = vsel %vm3043, 1, 0
        %v3092 = vsel %vm3044, 1, 0
        %v3093 = vsel %vm3045, 1, 0
        %v3094 = vsel %vm3046, 1, 0
        %v3095 = vsel %vm3047, 1, 0
        %v3096 = vsel %vm3048, 1, 0
        %v3097 = vsel %vm3049, 1, 0
        %v3098 = vsel %vm3050, 1, 0
        %v3099 = vsel %vm3051, 1, 0
        %v3100 = vsel %vm3052, 1, 0
        %v3101 = vsel %vm3053, 1, 0
        %v3102 = vsel %vm3054, 1, 0
        %v3103 = vsel %vm3055, 1, 0
        %v3104 = vsel %vm3056, 1, 0
        %v3105 = vsel %vm3057, 1, 0
        %v3106 = vsel %vm3058, 1, 0
        %v3107 = vsel %vm3059, 1, 0
        %v3108 = vsel %vm3060, 1, 0
        %v3109 = vsel %vm3061, 1, 0
        %v3110 = vsel %vm3062, 1, 0
        %v3111 = vsel %vm3063, 1, 0
        %v3112 = vsel %vm3064, 1, 0
        %v3113 = vsel %vm3065, 1, 0
        %v3114 = vsel %vm3066, 1, 0
        %v3115 = vsel %vm3067, 1, 0
        %v3116 = vsel %vm3068, 1, 0
        %v3117 = vsel %vm3069, 1, 0
        %v3118 = vsel %vm3070, 1, 0
        %v3119 = vsel %vm3071, 1, 0
        %v3120 = vsel %vm3072, 1, 0
        %v3121 = vsel %vm3073, 1, 0
        %v3122 = vsel %vm3074, 1, 0
        %v3123 = vsel %vm3075, 1, 0
        %v3124 = vsel %vm3076, 1, 0
        %v3125 = vsel %vm3077, 1, 0
        %v3126 = vsel %vm3078, 1, 0
        %v3127 = vsel %vm3079, 1, 0
        %v3128 = vsel %vm3080, 1, 0
        %v3129 = vsel %vm3081, 1, 0
        %v3130 = vsel %vm3082, 1, 0
        %v3131 = vsel %vm3083, 1, 0
        %v3132 = vcvt.s32.f32 %v3084
        %v3133 = vcvt.s32.f32 %v3085
        %v3134 = vcvt.s32.f32 %v3086
        %v3135 = vcvt.s32.f32 %v3087
        %v3136 = vcvt.s32.f32 %v3088
        %v3137 = vcvt.s32.f32 %v3089
        %v3138 = vcvt.s32.f32 %v3090
        %v3139 = vcvt.s32.f32 %v3091
        %v3140 = vcvt.s32.f32 %v3092
        %v3141 = vcvt.s32.f32 %v3093
        %v3142 = vcvt.s32.f32 %v3094
        %v3143 = vcvt.s32.f32 %v3095
        %v3144 = vcvt.s32.f32 %v3096
        %v3145 = vcvt.s32.f32 %v3097
        %v3146 = vcvt.s32.f32 %v3098
        %v3147 = vcvt.s32.f32 %v3099
        %v3148 = vcvt.s32.f32 %v3100
        %v3149 = vcvt.s32.f32 %v3101
        %v3150 = vcvt.s32.f32 %v3102
        %v3151 = vcvt.s32.f32 %v3103
        %v3152 = vcvt.s32.f32 %v3104
        %v3153 = vcvt.s32.f32 %v3105
        %v3154 = vcvt.s32.f32 %v3106
        %v3155 = vcvt.s32.f32 %v3107
        %v3156 = vcvt.s32.f32 %v3108
        %v3157 = vcvt.s32.f32 %v3109
        %v3158 = vcvt.s32.f32 %v3110
        %v3159 = vcvt.s32.f32 %v3111
        %v3160 = vcvt.s32.f32 %v3112
        %v3161 = vcvt.s32.f32 %v3113
        %v3162 = vcvt.s32.f32 %v3114
        %v3163 = vcvt.s32.f32 %v3115
        %v3164 = vcvt.s32.f32 %v3116
        %v3165 = vcvt.s32.f32 %v3117
        %v3166 = vcvt.s32.f32 %v3118
        %v3167 = vcvt.s32.f32 %v3119
        %v3168 = vcvt.s32.f32 %v3120
        %v3169 = vcvt.s32.f32 %v3121
        %v3170 = vcvt.s32.f32 %v3122
        %v3171 = vcvt.s32.f32 %v3123
        %v3172 = vcvt.s32.f32 %v3124
        %v3173 = vcvt.s32.f32 %v3125
        %v3174 = vcvt.s32.f32 %v3126
        %v3175 = vcvt.s32.f32 %v3127
        %v3176 = vcvt.s32.f32 %v3128
        %v3177 = vcvt.s32.f32 %v3129
        %v3178 = vcvt.s32.f32 %v3130
        %v3179 = vcvt.s32.f32 %v3131
        %v3180 = vpack.c.bf16 %v3138, %v3132
        %v3181 = vpack.c.bf16 %v3139, %v3133
        %v3182 = vpack.c.bf16 %v3140, %v3134
        %v3183 = vpack.c.bf16 %v3141, %v3135
        %v3184 = vpack.c.bf16 %v3142, %v3136
        %v3185 = vpack.c.bf16 %v3143, %v3137
        %v3186 = vpack.c.bf16 %v3150, %v3144
        %v3187 = vpack.c.bf16 %v3151, %v3145
        %v3188 = vpack.c.bf16 %v3152, %v3146
        %v3189 = vpack.c.bf16 %v3153, %v3147
        %v3190 = vpack.c.bf16 %v3154, %v3148
        %v3191 = vpack.c.bf16 %v3155, %v3149
        %v3192 = vpack.c.bf16 %v3162, %v3156
        %v3193 = vpack.c.bf16 %v3163, %v3157
        %v3194 = vpack.c.bf16 %v3164, %v3158
        %v3195 = vpack.c.bf16 %v3165, %v3159
        %v3196 = vpack.c.bf16 %v3166, %v3160
        %v3197 = vpack.c.bf16 %v3167, %v3161
        %v3198 = vpack.c.bf16 %v3174, %v3168
        %v3199 = vpack.c.bf16 %v3175, %v3169
        %v3200 = vpack.c.bf16 %v3176, %v3170
        %v3201 = vpack.c.bf16 %v3177, %v3171
        %v3202 = vpack.c.bf16 %v3178, %v3172
        %v3203 = vpack.c.bf16 %v3179, %v3173
        %v3204 = vpack.c.bf16 %v2998, %v2998
        %v3206 = vsel %vm810, %v3204, 0
        %3208 = vmatprep.subr.bf16.mxu0 %v3181
        %3209 = vmatpush1.bf16.msra.mxu0 %v3180
        %3210 = vmatprep.subr.bf16.mxu0 %v3187
        %3211 = vmatpush1.bf16.msra.mxu0 %v3186
        %3212 = vmatprep.subr.bf16.mxu0 %v3193
        %3213 = vmatpush1.bf16.msra.mxu0 %v3192
        %3214 = vmatprep.subr.bf16.mxu0 %v3199
        %3215 = vmatpush1.bf16.msra.mxu0 %v3198
        %3216 = vmatprep.subr.bf16.mxu0 0
        %3217 = vmatpush1.bf16.msra.mxu0 0
        %3218 = vmatprep.subr.bf16.mxu0 0
        %3219 = vmatpush1.bf16.msra.mxu0 0
        %3220 = vmatprep.subr.bf16.mxu0 0
        %3221 = vmatpush1.bf16.msra.mxu0 0
        %3222 = vmatprep.subr.bf16.mxu0 0
        %3223 = vmatpush1.bf16.msra.mxu0 0
        %3224 = vmatprep.subr.bf16.mxu0 0
        %3225 = vmatpush1.bf16.msra.mxu0 0
        %3226 = vmatprep.subr.bf16.mxu0 0
        %3227 = vmatpush1.bf16.msra.mxu0 0
        %3228 = vmatprep.subr.bf16.mxu0 0
        %3229 = vmatpush1.bf16.msra.mxu0 0
        %3230 = vmatprep.subr.bf16.mxu0 0
        %3231 = vmatpush1.bf16.msra.mxu0 0
        %3232 = vmatprep.subr.bf16.mxu0 0
        %3233 = vmatpush1.bf16.msra.mxu0 0
        %3234 = vmatprep.subr.bf16.mxu0 0
        %3235 = vmatpush1.bf16.msra.mxu0 0
        %3236 = vmatprep.subr.bf16.mxu0 0
        %3237 = vmatpush1.bf16.msra.mxu0 0
        %3238 = vmatprep.subr.bf16.mxu0 0
        %3239 = vmatpush1.bf16.msra.mxu0 0
        %3240 = vmatprep.mubr.bf16.mxu0 0
        %3241 = vmatmul.mubr.bf16.gmra.mrb[0].mxu0 %v3206
        %v3242 = vpop.f32.mrb[0].mxu0
        %v3243 = vadd.f32 0.0, %v3242
        %v3244 = vpop.f32.mrb[0].mxu0
        %v3245 = vadd.f32 0.0, %v3244
        %v3246 = vpop.f32.mrb[0].mxu0
        %v3247 = vpop.f32.mrb[0].mxu0
        %3248 = vdwg.mxu0
        %3249 = vmatprep.subr.bf16.mxu0 %v3183
        %3250 = vmatpush1.bf16.msra.mxu0 %v3182
        %3251 = vmatprep.subr.bf16.mxu0 %v3189
        %3252 = vmatpush1.bf16.msra.mxu0 %v3188
        %3253 = vmatprep.subr.bf16.mxu0 %v3195
        %3254 = vmatpush1.bf16.msra.mxu0 %v3194
        %3255 = vmatprep.subr.bf16.mxu0 %v3201
        %3256 = vmatpush1.bf16.msra.mxu0 %v3200
        %3257 = vmatprep.subr.bf16.mxu0 0
        %3258 = vmatpush1.bf16.msra.mxu0 0
        %3259 = vmatprep.subr.bf16.mxu0 0
        %3260 = vmatpush1.bf16.msra.mxu0 0
        %3261 = vmatprep.subr.bf16.mxu0 0
        %3262 = vmatpush1.bf16.msra.mxu0 0
        %3263 = vmatprep.subr.bf16.mxu0 0
        %3264 = vmatpush1.bf16.msra.mxu0 0
        %3265 = vmatprep.subr.bf16.mxu0 0
        %3266 = vmatpush1.bf16.msra.mxu0 0
        %3267 = vmatprep.subr.bf16.mxu0 0
        %3268 = vmatpush1.bf16.msra.mxu0 0
        %3269 = vmatprep.subr.bf16.mxu0 0
        %3270 = vmatpush1.bf16.msra.mxu0 0
        %3271 = vmatprep.subr.bf16.mxu0 0
        %3272 = vmatpush1.bf16.msra.mxu0 0
        %3273 = vmatprep.subr.bf16.mxu0 0
        %3274 = vmatpush1.bf16.msra.mxu0 0
        %3275 = vmatprep.subr.bf16.mxu0 0
        %3276 = vmatpush1.bf16.msra.mxu0 0
        %3277 = vmatprep.subr.bf16.mxu0 0
        %3278 = vmatpush1.bf16.msra.mxu0 0
        %3279 = vmatprep.subr.bf16.mxu0 0
        %3280 = vmatpush1.bf16.msra.mxu0 0
        %3281 = vmatprep.mubr.bf16.mxu0 0
        %3282 = vmatmul.mubr.bf16.gmra.mrb[0].mxu0 %v3206
        %v3283 = vpop.f32.mrb[0].mxu0
        %v3284 = vadd.f32 0.0, %v3283
        %v3285 = vpop.f32.mrb[0].mxu0
        %v3286 = vadd.f32 0.0, %v3285
        %v3287 = vpop.f32.mrb[0].mxu0
        %v3288 = vpop.f32.mrb[0].mxu0
        %3289 = vdwg.mxu0
        %3290 = vmatprep.subr.bf16.mxu0 %v3185
        %3291 = vmatpush1.bf16.msra.mxu0 %v3184
        %3292 = vmatprep.subr.bf16.mxu0 %v3191
        %3293 = vmatpush1.bf16.msra.mxu0 %v3190
        %3294 = vmatprep.subr.bf16.mxu0 %v3197
        %3295 = vmatpush1.bf16.msra.mxu0 %v3196
        %3296 = vmatprep.subr.bf16.mxu0 %v3203
        %3297 = vmatpush1.bf16.msra.mxu0 %v3202
        %3298 = vmatprep.subr.bf16.mxu0 0
        %3299 = vmatpush1.bf16.msra.mxu0 0
        %3300 = vmatprep.subr.bf16.mxu0 0
        %3301 = vmatpush1.bf16.msra.mxu0 0
        %3302 = vmatprep.subr.bf16.mxu0 0
        %3303 = vmatpush1.bf16.msra.mxu0 0
        %3304 = vmatprep.subr.bf16.mxu0 0
        %3305 = vmatpush1.bf16.msra.mxu0 0
        %3306 = vmatprep.subr.bf16.mxu0 0
        %3307 = vmatpush1.bf16.msra.mxu0 0
        %3308 = vmatprep.subr.bf16.mxu0 0
        %3309 = vmatpush1.bf16.msra.mxu0 0
        %3310 = vmatprep.subr.bf16.mxu0 0
        %3311 = vmatpush1.bf16.msra.mxu0 0
        %3312 = vmatprep.subr.bf16.mxu0 0
        %3313 = vmatpush1.bf16.msra.mxu0 0
        %3314 = vmatprep.subr.bf16.mxu0 0
        %3315 = vmatpush1.bf16.msra.mxu0 0
        %3316 = vmatprep.subr.bf16.mxu0 0
        %3317 = vmatpush1.bf16.msra.mxu0 0
        %3318 = vmatprep.subr.bf16.mxu0 0
        %3319 = vmatpush1.bf16.msra.mxu0 0
        %3320 = vmatprep.subr.bf16.mxu0 0
        %3321 = vmatpush1.bf16.msra.mxu0 0
        %3322 = vmatprep.mubr.bf16.mxu0 0
        %3323 = vmatmul.mubr.bf16.gmra.mrb[0].mxu0 %v3206
        %v3324 = vpop.f32.mrb[0].mxu0
        %v3325 = vadd.f32 0.0, %v3324
        %v3326 = vpop.f32.mrb[0].mxu0
        %v3327 = vadd.f32 0.0, %v3326
        %v3328 = vpop.f32.mrb[0].mxu0
        %v3329 = vpop.f32.mrb[0].mxu0
        %3330 = vdwg.mxu0
        %v3331 = vadd.f32 %v2952, %v3243
        %v3332 = vadd.f32 %v2953, %v3245
        %v3333 = vadd.f32 %v2954, %v3284
        %v3334 = vadd.f32 %v2955, %v3286
        %v3335 = vadd.f32 %v2956, %v3325
        %v3336 = vadd.f32 %v2957, %v3327
        %s3337 = scalar_lea.vmem %s1, 16
        %v3338 = vld [vmem:[%s3337] sm:$0x3]
        %v3340 = vsel %vm311, %v3338, 0
        %3342 = vmatprep.subr.bf16.mxu0 0
        %3343 = vmatpush1.bf16.msra.mxu0 %v320
        %3344 = vmatprep.subr.bf16.mxu0 0
        %3345 = vmatpush1.bf16.msra.mxu0 0
        %3346 = vmatprep.subr.bf16.mxu0 0
        %3347 = vmatpush1.bf16.msra.mxu0 0
        %3348 = vmatprep.subr.bf16.mxu0 0
        %3349 = vmatpush1.bf16.msra.mxu0 0
        %3350 = vmatprep.subr.bf16.mxu0 0
        %3351 = vmatpush1.bf16.msra.mxu0 0
        %3352 = vmatprep.subr.bf16.mxu0 0
        %3353 = vmatpush1.bf16.msra.mxu0 0
        %3354 = vmatprep.subr.bf16.mxu0 0
        %3355 = vmatpush1.bf16.msra.mxu0 0
        %3356 = vmatprep.subr.bf16.mxu0 0
        %3357 = vmatpush1.bf16.msra.mxu0 0
        %3358 = vmatprep.subr.bf16.mxu0 0
        %3359 = vmatpush1.bf16.msra.mxu0 0
        %3360 = vmatprep.subr.bf16.mxu0 0
        %3361 = vmatpush1.bf16.msra.mxu0 0
        %3362 = vmatprep.subr.bf16.mxu0 0
        %3363 = vmatpush1.bf16.msra.mxu0 0
        %3364 = vmatprep.subr.bf16.mxu0 0
        %3365 = vmatpush1.bf16.msra.mxu0 0
        %3366 = vmatprep.subr.bf16.mxu0 0
        %3367 = vmatpush1.bf16.msra.mxu0 0
        %3368 = vmatprep.subr.bf16.mxu0 0
        %3369 = vmatpush1.bf16.msra.mxu0 0
        %3370 = vmatprep.subr.bf16.mxu0 0
        %3371 = vmatpush1.bf16.msra.mxu0 0
        %3372 = vmatprep.subr.bf16.mxu0 0
        %3373 = vmatpush1.bf16.msra.mxu0 0
        %3374 = vmatprep.mubr.bf16.mxu0 0
        %3375 = vmatmul.mubr.bf16.gmra.mrb[0].mxu0 %v3340
        %v3376 = vpop.f32.mrb[0].mxu0
        %v3377 = vadd.f32 0.0, %v3376
        %v3378 = vpop.f32.mrb[0].mxu0
        %v3379 = vpop.f32.mrb[0].mxu0
        %v3380 = vpop.f32.mrb[0].mxu0
        %3381 = vdwg.mxu0
        %s3382 = scalar_lea.vmem %s6, 512
        %v3383 = vld [vmem:[%s3382] sm:$0xff]
        %v3384 = vld [vmem:[%s3382 + $0x8] sm:$0xff]
        %v3385 = vld [vmem:[%s3382 + $0x10] sm:$0xff]
        %v3386 = vld [vmem:[%s3382 + $0x18] sm:$0xff]
        %v3387 = vld [vmem:[%s3382 + $0x20] sm:$0xff]
        %v3388 = vld [vmem:[%s3382 + $0x28] sm:$0xff]
        %v3389 = vld [vmem:[%s3382 + $0x30] sm:$0xff]
        %v3390 = vld [vmem:[%s3382 + $0x38] sm:$0xff]
        %3391 = vset.pattern.permute.xlu0 0
        %3392 = vperm.xlu0 %3391, %v3383
        %v3393 = vpop.permute.xlu0 %3392
        %3394 = vset.pattern.permute.xlu0 0
        %3395 = vperm.xlu0 %3394, %v3384
        %v3396 = vpop.permute.xlu0 %3395
        %3397 = vset.pattern.permute.xlu0 0
        %3398 = vperm.xlu0 %3397, %v3385
        %v3399 = vpop.permute.xlu0 %3398
        %3400 = vset.pattern.permute.xlu0 0
        %3401 = vperm.xlu0 %3400, %v3386
        %v3402 = vpop.permute.xlu0 %3401
        %3403 = vset.pattern.permute.xlu0 0
        %3404 = vperm.xlu0 %3403, %v3387
        %v3405 = vpop.permute.xlu0 %3404
        %3406 = vset.pattern.permute.xlu0 0
        %3407 = vperm.xlu0 %3406, %v3388
        %v3408 = vpop.permute.xlu0 %3407
        %3409 = vset.pattern.permute.xlu0 0
        %3410 = vperm.xlu0 %3409, %v3389
        %v3411 = vpop.permute.xlu0 %3410
        %3412 = vset.pattern.permute.xlu0 0
        %3413 = vperm.xlu0 %3412, %v3390
        %v3414 = vpop.permute.xlu0 %3413
        %vm3415 = vcmp.eq.s32.totalorder %v304, %v3393
        %vm3416 = vcmp.eq.s32.totalorder %v305, %v3393
        %vm3417 = vcmp.eq.s32.totalorder %v306, %v3393
        %vm3418 = vcmp.eq.s32.totalorder %v307, %v3393
        %vm3419 = vcmp.eq.s32.totalorder %v308, %v3393
        %vm3420 = vcmp.eq.s32.totalorder %v309, %v3393
        %vm3421 = vcmp.eq.s32.totalorder %v304, %v3396
        %vm3422 = vcmp.eq.s32.totalorder %v305, %v3396
        %vm3423 = vcmp.eq.s32.totalorder %v306, %v3396
        %vm3424 = vcmp.eq.s32.totalorder %v307, %v3396
        %vm3425 = vcmp.eq.s32.totalorder %v308, %v3396
        %vm3426 = vcmp.eq.s32.totalorder %v309, %v3396
        %vm3427 = vcmp.eq.s32.totalorder %v304, %v3399
        %vm3428 = vcmp.eq.s32.totalorder %v305, %v3399
        %vm3429 = vcmp.eq.s32.totalorder %v306, %v3399
        %vm3430 = vcmp.eq.s32.totalorder %v307, %v3399
        %vm3431 = vcmp.eq.s32.totalorder %v308, %v3399
        %vm3432 = vcmp.eq.s32.totalorder %v309, %v3399
        %vm3433 = vcmp.eq.s32.totalorder %v304, %v3402
        %vm3434 = vcmp.eq.s32.totalorder %v305, %v3402
        %vm3435 = vcmp.eq.s32.totalorder %v306, %v3402
        %vm3436 = vcmp.eq.s32.totalorder %v307, %v3402
        %vm3437 = vcmp.eq.s32.totalorder %v308, %v3402
        %vm3438 = vcmp.eq.s32.totalorder %v309, %v3402
        %vm3439 = vcmp.eq.s32.totalorder %v304, %v3405
        %vm3440 = vcmp.eq.s32.totalorder %v305, %v3405
        %vm3441 = vcmp.eq.s32.totalorder %v306, %v3405
        %vm3442 = vcmp.eq.s32.totalorder %v307, %v3405
        %vm3443 = vcmp.eq.s32.totalorder %v308, %v3405
        %vm3444 = vcmp.eq.s32.totalorder %v309, %v3405
        %vm3445 = vcmp.eq.s32.totalorder %v304, %v3408
        %vm3446 = vcmp.eq.s32.totalorder %v305, %v3408
        %vm3447 = vcmp.eq.s32.totalorder %v306, %v3408
        %vm3448 = vcmp.eq.s32.totalorder %v307, %v3408
        %vm3449 = vcmp.eq.s32.totalorder %v308, %v3408
        %vm3450 = vcmp.eq.s32.totalorder %v309, %v3408
        %vm3451 = vcmp.eq.s32.totalorder %v304, %v3411
        %vm3452 = vcmp.eq.s32.totalorder %v305, %v3411
        %vm3453 = vcmp.eq.s32.totalorder %v306, %v3411
        %vm3454 = vcmp.eq.s32.totalorder %v307, %v3411
        %vm3455 = vcmp.eq.s32.totalorder %v308, %v3411
        %vm3456 = vcmp.eq.s32.totalorder %v309, %v3411
        %vm3457 = vcmp.eq.s32.totalorder %v304, %v3414
        %vm3458 = vcmp.eq.s32.totalorder %v305, %v3414
        %vm3459 = vcmp.eq.s32.totalorder %v306, %v3414
        %vm3460 = vcmp.eq.s32.totalorder %v307, %v3414
        %vm3461 = vcmp.eq.s32.totalorder %v308, %v3414
        %vm3462 = vcmp.eq.s32.totalorder %v309, %v3414
        %v3463 = vsel %vm3415, 1, 0
        %v3464 = vsel %vm3416, 1, 0
        %v3465 = vsel %vm3417, 1, 0
        %v3466 = vsel %vm3418, 1, 0
        %v3467 = vsel %vm3419, 1, 0
        %v3468 = vsel %vm3420, 1, 0
        %v3469 = vsel %vm3421, 1, 0
        %v3470 = vsel %vm3422, 1, 0
        %v3471 = vsel %vm3423, 1, 0
        %v3472 = vsel %vm3424, 1, 0
        %v3473 = vsel %vm3425, 1, 0
        %v3474 = vsel %vm3426, 1, 0
        %v3475 = vsel %vm3427, 1, 0
        %v3476 = vsel %vm3428, 1, 0
        %v3477 = vsel %vm3429, 1, 0
        %v3478 = vsel %vm3430, 1, 0
        %v3479 = vsel %vm3431, 1, 0
        %v3480 = vsel %vm3432, 1, 0
        %v3481 = vsel %vm3433, 1, 0
        %v3482 = vsel %vm3434, 1, 0
        %v3483 = vsel %vm3435, 1, 0
        %v3484 = vsel %vm3436, 1, 0
        %v3485 = vsel %vm3437, 1, 0
        %v3486 = vsel %vm3438, 1, 0
        %v3487 = vsel %vm3439, 1, 0
        %v3488 = vsel %vm3440, 1, 0
        %v3489 = vsel %vm3441, 1, 0
        %v3490 = vsel %vm3442, 1, 0
        %v3491 = vsel %vm3443, 1, 0
        %v3492 = vsel %vm3444, 1, 0
        %v3493 = vsel %vm3445, 1, 0
        %v3494 = vsel %vm3446, 1, 0
        %v3495 = vsel %vm3447, 1, 0
        %v3496 = vsel %vm3448, 1, 0
        %v3497 = vsel %vm3449, 1, 0
        %v3498 = vsel %vm3450, 1, 0
        %v3499 = vsel %vm3451, 1, 0
        %v3500 = vsel %vm3452, 1, 0
        %v3501 = vsel %vm3453, 1, 0
        %v3502 = vsel %vm3454, 1, 0
        %v3503 = vsel %vm3455, 1, 0
        %v3504 = vsel %vm3456, 1, 0
        %v3505 = vsel %vm3457, 1, 0
        %v3506 = vsel %vm3458, 1, 0
        %v3507 = vsel %vm3459, 1, 0
        %v3508 = vsel %vm3460, 1, 0
        %v3509 = vsel %vm3461, 1, 0
        %v3510 = vsel %vm3462, 1, 0
        %v3511 = vcvt.s32.f32 %v3463
        %v3512 = vcvt.s32.f32 %v3464
        %v3513 = vcvt.s32.f32 %v3465
        %v3514 = vcvt.s32.f32 %v3466
        %v3515 = vcvt.s32.f32 %v3467
        %v3516 = vcvt.s32.f32 %v3468
        %v3517 = vcvt.s32.f32 %v3469
        %v3518 = vcvt.s32.f32 %v3470
        %v3519 = vcvt.s32.f32 %v3471
        %v3520 = vcvt.s32.f32 %v3472
        %v3521 = vcvt.s32.f32 %v3473
        %v3522 = vcvt.s32.f32 %v3474
        %v3523 = vcvt.s32.f32 %v3475
        %v3524 = vcvt.s32.f32 %v3476
        %v3525 = vcvt.s32.f32 %v3477
        %v3526 = vcvt.s32.f32 %v3478
        %v3527 = vcvt.s32.f32 %v3479
        %v3528 = vcvt.s32.f32 %v3480
        %v3529 = vcvt.s32.f32 %v3481
        %v3530 = vcvt.s32.f32 %v3482
        %v3531 = vcvt.s32.f32 %v3483
        %v3532 = vcvt.s32.f32 %v3484
        %v3533 = vcvt.s32.f32 %v3485
        %v3534 = vcvt.s32.f32 %v3486
        %v3535 = vcvt.s32.f32 %v3487
        %v3536 = vcvt.s32.f32 %v3488
        %v3537 = vcvt.s32.f32 %v3489
        %v3538 = vcvt.s32.f32 %v3490
        %v3539 = vcvt.s32.f32 %v3491
        %v3540 = vcvt.s32.f32 %v3492
        %v3541 = vcvt.s32.f32 %v3493
        %v3542 = vcvt.s32.f32 %v3494
        %v3543 = vcvt.s32.f32 %v3495
        %v3544 = vcvt.s32.f32 %v3496
        %v3545 = vcvt.s32.f32 %v3497
        %v3546 = vcvt.s32.f32 %v3498
        %v3547 = vcvt.s32.f32 %v3499
        %v3548 = vcvt.s32.f32 %v3500
        %v3549 = vcvt.s32.f32 %v3501
        %v3550 = vcvt.s32.f32 %v3502
        %v3551 = vcvt.s32.f32 %v3503
        %v3552 = vcvt.s32.f32 %v3504
        %v3553 = vcvt.s32.f32 %v3505
        %v3554 = vcvt.s32.f32 %v3506
        %v3555 = vcvt.s32.f32 %v3507
        %v3556 = vcvt.s32.f32 %v3508
        %v3557 = vcvt.s32.f32 %v3509
        %v3558 = vcvt.s32.f32 %v3510
        %v3559 = vpack.c.bf16 %v3517, %v3511
        %v3560 = vpack.c.bf16 %v3518, %v3512
        %v3561 = vpack.c.bf16 %v3519, %v3513
        %v3562 = vpack.c.bf16 %v3520, %v3514
        %v3563 = vpack.c.bf16 %v3521, %v3515
        %v3564 = vpack.c.bf16 %v3522, %v3516
        %v3565 = vpack.c.bf16 %v3529, %v3523
        %v3566 = vpack.c.bf16 %v3530, %v3524
        %v3567 = vpack.c.bf16 %v3531, %v3525
        %v3568 = vpack.c.bf16 %v3532, %v3526
        %v3569 = vpack.c.bf16 %v3533, %v3527
        %v3570 = vpack.c.bf16 %v3534, %v3528
        %v3571 = vpack.c.bf16 %v3541, %v3535
        %v3572 = vpack.c.bf16 %v3542, %v3536
        %v3573 = vpack.c.bf16 %v3543, %v3537
        %v3574 = vpack.c.bf16 %v3544, %v3538
        %v3575 = vpack.c.bf16 %v3545, %v3539
        %v3576 = vpack.c.bf16 %v3546, %v3540
        %v3577 = vpack.c.bf16 %v3553, %v3547
        %v3578 = vpack.c.bf16 %v3554, %v3548
        %v3579 = vpack.c.bf16 %v3555, %v3549
        %v3580 = vpack.c.bf16 %v3556, %v3550
        %v3581 = vpack.c.bf16 %v3557, %v3551
        %v3582 = vpack.c.bf16 %v3558, %v3552
        %v3583 = vpack.c.bf16 %v3377, %v3377
        %v3585 = vsel %vm810, %v3583, 0
        %3587 = vmatprep.subr.bf16.mxu0 %v3560
        %3588 = vmatpush1.bf16.msra.mxu0 %v3559
        %3589 = vmatprep.subr.bf16.mxu0 %v3566
        %3590 = vmatpush1.bf16.msra.mxu0 %v3565
        %3591 = vmatprep.subr.bf16.mxu0 %v3572
        %3592 = vmatpush1.bf16.msra.mxu0 %v3571
        %3593 = vmatprep.subr.bf16.mxu0 %v3578
        %3594 = vmatpush1.bf16.msra.mxu0 %v3577
        %3595 = vmatprep.subr.bf16.mxu0 0
        %3596 = vmatpush1.bf16.msra.mxu0 0
        %3597 = vmatprep.subr.bf16.mxu0 0
        %3598 = vmatpush1.bf16.msra.mxu0 0
        %3599 = vmatprep.subr.bf16.mxu0 0
        %3600 = vmatpush1.bf16.msra.mxu0 0
        %3601 = vmatprep.subr.bf16.mxu0 0
        %3602 = vmatpush1.bf16.msra.mxu0 0
        %3603 = vmatprep.subr.bf16.mxu0 0
        %3604 = vmatpush1.bf16.msra.mxu0 0
        %3605 = vmatprep.subr.bf16.mxu0 0
        %3606 = vmatpush1.bf16.msra.mxu0 0
        %3607 = vmatprep.subr.bf16.mxu0 0
        %3608 = vmatpush1.bf16.msra.mxu0 0
        %3609 = vmatprep.subr.bf16.mxu0 0
        %3610 = vmatpush1.bf16.msra.mxu0 0
        %3611 = vmatprep.subr.bf16.mxu0 0
        %3612 = vmatpush1.bf16.msra.mxu0 0
        %3613 = vmatprep.subr.bf16.mxu0 0
        %3614 = vmatpush1.bf16.msra.mxu0 0
        %3615 = vmatprep.subr.bf16.mxu0 0
        %3616 = vmatpush1.bf16.msra.mxu0 0
        %3617 = vmatprep.subr.bf16.mxu0 0
        %3618 = vmatpush1.bf16.msra.mxu0 0
        %3619 = vmatprep.mubr.bf16.mxu0 0
        %3620 = vmatmul.mubr.bf16.gmra.mrb[0].mxu0 %v3585
        %v3621 = vpop.f32.mrb[0].mxu0
        %v3622 = vadd.f32 0.0, %v3621
        %v3623 = vpop.f32.mrb[0].mxu0
        %v3624 = vadd.f32 0.0, %v3623
        %v3625 = vpop.f32.mrb[0].mxu0
        %v3626 = vpop.f32.mrb[0].mxu0
        %3627 = vdwg.mxu0
        %3628 = vmatprep.subr.bf16.mxu0 %v3562
        %3629 = vmatpush1.bf16.msra.mxu0 %v3561
        %3630 = vmatprep.subr.bf16.mxu0 %v3568
        %3631 = vmatpush1.bf16.msra.mxu0 %v3567
        %3632 = vmatprep.subr.bf16.mxu0 %v3574
        %3633 = vmatpush1.bf16.msra.mxu0 %v3573
        %3634 = vmatprep.subr.bf16.mxu0 %v3580
        %3635 = vmatpush1.bf16.msra.mxu0 %v3579
        %3636 = vmatprep.subr.bf16.mxu0 0
        %3637 = vmatpush1.bf16.msra.mxu0 0
        %3638 = vmatprep.subr.bf16.mxu0 0
        %3639 = vmatpush1.bf16.msra.mxu0 0
        %3640 = vmatprep.subr.bf16.mxu0 0
        %3641 = vmatpush1.bf16.msra.mxu0 0
        %3642 = vmatprep.subr.bf16.mxu0 0
        %3643 = vmatpush1.bf16.msra.mxu0 0
        %3644 = vmatprep.subr.bf16.mxu0 0
        %3645 = vmatpush1.bf16.msra.mxu0 0
        %3646 = vmatprep.subr.bf16.mxu0 0
        %3647 = vmatpush1.bf16.msra.mxu0 0
        %3648 = vmatprep.subr.bf16.mxu0 0
        %3649 = vmatpush1.bf16.msra.mxu0 0
        %3650 = vmatprep.subr.bf16.mxu0 0
        %3651 = vmatpush1.bf16.msra.mxu0 0
        %3652 = vmatprep.subr.bf16.mxu0 0
        %3653 = vmatpush1.bf16.msra.mxu0 0
        %3654 = vmatprep.subr.bf16.mxu0 0
        %3655 = vmatpush1.bf16.msra.mxu0 0
        %3656 = vmatprep.subr.bf16.mxu0 0
        %3657 = vmatpush1.bf16.msra.mxu0 0
        %3658 = vmatprep.subr.bf16.mxu0 0
        %3659 = vmatpush1.bf16.msra.mxu0 0
        %3660 = vmatprep.mubr.bf16.mxu0 0
        %3661 = vmatmul.mubr.bf16.gmra.mrb[0].mxu0 %v3585
        %v3662 = vpop.f32.mrb[0].mxu0
        %v3663 = vadd.f32 0.0, %v3662
        %v3664 = vpop.f32.mrb[0].mxu0
        %v3665 = vadd.f32 0.0, %v3664
        %v3666 = vpop.f32.mrb[0].mxu0
        %v3667 = vpop.f32.mrb[0].mxu0
        %3668 = vdwg.mxu0
        %3669 = vmatprep.subr.bf16.mxu0 %v3564
        %3670 = vmatpush1.bf16.msra.mxu0 %v3563
        %3671 = vmatprep.subr.bf16.mxu0 %v3570
        %3672 = vmatpush1.bf16.msra.mxu0 %v3569
        %3673 = vmatprep.subr.bf16.mxu0 %v3576
        %3674 = vmatpush1.bf16.msra.mxu0 %v3575
        %3675 = vmatprep.subr.bf16.mxu0 %v3582
        %3676 = vmatpush1.bf16.msra.mxu0 %v3581
        %3677 = vmatprep.subr.bf16.mxu0 0
        %3678 = vmatpush1.bf16.msra.mxu0 0
        %3679 = vmatprep.subr.bf16.mxu0 0
        %3680 = vmatpush1.bf16.msra.mxu0 0
        %3681 = vmatprep.subr.bf16.mxu0 0
        %3682 = vmatpush1.bf16.msra.mxu0 0
        %3683 = vmatprep.subr.bf16.mxu0 0
        %3684 = vmatpush1.bf16.msra.mxu0 0
        %3685 = vmatprep.subr.bf16.mxu0 0
        %3686 = vmatpush1.bf16.msra.mxu0 0
        %3687 = vmatprep.subr.bf16.mxu0 0
        %3688 = vmatpush1.bf16.msra.mxu0 0
        %3689 = vmatprep.subr.bf16.mxu0 0
        %3690 = vmatpush1.bf16.msra.mxu0 0
        %3691 = vmatprep.subr.bf16.mxu0 0
        %3692 = vmatpush1.bf16.msra.mxu0 0
        %3693 = vmatprep.subr.bf16.mxu0 0
        %3694 = vmatpush1.bf16.msra.mxu0 0
        %3695 = vmatprep.subr.bf16.mxu0 0
        %3696 = vmatpush1.bf16.msra.mxu0 0
        %3697 = vmatprep.subr.bf16.mxu0 0
        %3698 = vmatpush1.bf16.msra.mxu0 0
        %3699 = vmatprep.subr.bf16.mxu0 0
        %3700 = vmatpush1.bf16.msra.mxu0 0
        %3701 = vmatprep.mubr.bf16.mxu0 0
        %3702 = vmatmul.mubr.bf16.gmra.mrb[0].mxu0 %v3585
        %v3703 = vpop.f32.mrb[0].mxu0
        %v3704 = vadd.f32 0.0, %v3703
        %v3705 = vpop.f32.mrb[0].mxu0
        %v3706 = vadd.f32 0.0, %v3705
        %v3707 = vpop.f32.mrb[0].mxu0
        %v3708 = vpop.f32.mrb[0].mxu0
        %3709 = vdwg.mxu0
        %v3710 = vadd.f32 %v3331, %v3622
        %v3711 = vadd.f32 %v3332, %v3624
        %v3712 = vadd.f32 %v3333, %v3663
        %v3713 = vadd.f32 %v3334, %v3665
        %v3714 = vadd.f32 %v3335, %v3704
        %v3715 = vadd.f32 %v3336, %v3706
        %v3716 = vpack.c.bf16 %v3710, %v3710
        %v3717 = vpack.c.bf16 %v3711, %v3711
        %v3718 = vpack.c.bf16 %v3712, %v3712
        %v3719 = vpack.c.bf16 %v3713, %v3713
        %v3720 = vpack.c.bf16 %v3714, %v3714
        %v3721 = vpack.c.bf16 %v3715, %v3715
        %v3728 = vcombine.low %v3716, %v3717
        %v3729 = vcombine.low %v3718, %v3719
        %v3731 = vunpack.c.l.s4 1983009808
        %v3732 = vunpack.c.0.s8 %v3731
        %v3733 = vlaneseq
        %v3734 = vshrl.u32 %v3733, 7
        %v3735 = vsub.s32 %v3732, %v3734
        %v3736 = vrot.slane %v3728, %v3735
        %v3738 = vunpack.c.l.s4 1983009808
        %v3739 = vunpack.c.0.s8 %v3738
        %v3740 = vlaneseq
        %v3741 = vshrl.u32 %v3740, 7
        %v3742 = vsub.s32 %v3739, %v3741
        %v3743 = vrot.slane %v3729, %v3742
        %v3744 = vcombine.low %v3736, %v3743
        %v3745 = vcombine.low %v3720, %v3721
        %v3747 = vunpack.c.l.s4 1983009808
        %v3748 = vunpack.c.0.s8 %v3747
        %v3749 = vlaneseq
        %v3750 = vshrl.u32 %v3749, 7
        %v3751 = vsub.s32 %v3748, %v3750
        %v3752 = vrot.slane %v3745, %v3751
        %3755 = vst [vmem:[#allocation2] sm:$0xff] %v3744
        %3756 = vst [vmem:[#allocation2 + $0x8] sm:$0xf] %v3752
        %v3757 = vld [vmem:[%s2] sm:$0xf]
        %v3758 = vld [vmem:[#allocation2] sm:$0xff]
        %v3759 = vld [vmem:[#allocation2 + $0x8] sm:$0x3]
        %s3760 = scalar_lea.vmem %s2, 4
        %v3761 = vld [vmem:[%s3760] sm:$0xf]
        %v3764 = vcombine.high %v3758, %v3758
        %v3766 = vunpack.c.l.s4 1983009808
        %v3767 = vunpack.c.0.s8 %v3766
        %v3768 = vlaneseq
        %v3769 = vshrl.u32 %v3768, 7
        %v3770 = vsub.s32 %v3767, %v3769
        %v3771 = vrot.slane %v3758, %v3770
        %v3773 = vunpack.c.l.s4 1983009808
        %v3774 = vunpack.c.0.s8 %v3773
        %v3775 = vlaneseq
        %v3776 = vshrl.u32 %v3775, 7
        %v3777 = vsub.s32 %v3774, %v3776
        %v3778 = vrot.slane %v3764, %v3777
        %v3779 = vcombine.high %v3771, %v3771
        %v3780 = vcombine.high %v3778, %v3778
        %v3782 = vunpack.c.l.s4 1983009808
        %v3783 = vunpack.c.0.s8 %v3782
        %v3784 = vlaneseq
        %v3785 = vshrl.u32 %v3784, 7
        %v3786 = vsub.s32 %v3783, %v3785
        %v3787 = vrot.slane %v3759, %v3786
        %3788 = vrot.lane.b32.xlu0 %v3771, 127
        %v3789 = vpop.permute.xlu0 %3788
        %3790 = vrot.lane.b32.xlu0 %v3779, 127
        %v3791 = vpop.permute.xlu0 %3790
        %3792 = vrot.lane.b32.xlu0 %v3778, 127
        %v3793 = vpop.permute.xlu0 %3792
        %3794 = vrot.lane.b32.xlu0 %v3780, 127
        %v3795 = vpop.permute.xlu0 %3794
        %3796 = vrot.lane.b32.xlu0 %v3787, 127
        %v3797 = vpop.permute.xlu0 %3796
        %vm3798 = vcmask 1039360
        %v3799 = vsel %vm3798, %v3789, %v3791
        %v3800 = vsel %vm3798, %v3791, %v3793
        %v3801 = vsel %vm3798, %v3793, %v3795
        %v3802 = vsel %vm3798, %v3795, %v3797
        %vm3803 = vcmask 31744
        %v3805 = vsel %vm3803, %v3761, 0
        %v3808 = vsel %vm315, %v3799, 0
        %v3811 = vsel %vm315, %v3800, 0
        %v3814 = vsel %vm315, %v3801, 0
        %v3817 = vsel %vm315, %v3802, 0
        %v3820 = vsel %vm315, %v3797, 0
        %3822 = vmatprep.subr.bf16.mxu0 %v3811
        %3823 = vmatpush1.bf16.msra.mxu0 %v3808
        %3824 = vmatprep.subr.bf16.mxu0 0
        %3825 = vmatpush1.bf16.msra.mxu0 0
        %3826 = vmatprep.subr.bf16.mxu0 0
        %3827 = vmatpush1.bf16.msra.mxu0 0
        %3828 = vmatprep.subr.bf16.mxu0 0
        %3829 = vmatpush1.bf16.msra.mxu0 0
        %3830 = vmatprep.subr.bf16.mxu0 0
        %3831 = vmatpush1.bf16.msra.mxu0 0
        %3832 = vmatprep.subr.bf16.mxu0 0
        %3833 = vmatpush1.bf16.msra.mxu0 0
        %3834 = vmatprep.subr.bf16.mxu0 0
        %3835 = vmatpush1.bf16.msra.mxu0 0
        %3836 = vmatprep.subr.bf16.mxu0 0
        %3837 = vmatpush1.bf16.msra.mxu0 0
        %3838 = vmatprep.subr.bf16.mxu0 0
        %3839 = vmatpush1.bf16.msra.mxu0 0
        %3840 = vmatprep.subr.bf16.mxu0 0
        %3841 = vmatpush1.bf16.msra.mxu0 0
        %3842 = vmatprep.subr.bf16.mxu0 0
        %3843 = vmatpush1.bf16.msra.mxu0 0
        %3844 = vmatprep.subr.bf16.mxu0 0
        %3845 = vmatpush1.bf16.msra.mxu0 0
        %3846 = vmatprep.subr.bf16.mxu0 0
        %3847 = vmatpush1.bf16.msra.mxu0 0
        %3848 = vmatprep.subr.bf16.mxu0 0
        %3849 = vmatpush1.bf16.msra.mxu0 0
        %3850 = vmatprep.subr.bf16.mxu0 0
        %3851 = vmatpush1.bf16.msra.mxu0 0
        %3852 = vmatprep.subr.bf16.mxu0 0
        %3853 = vmatpush1.bf16.msra.mxu0 0
        %3854 = vmatprep.mubr.bf16.mxu0 0
        %3855 = vmatmul.mubr.bf16.gmra.mrb[0].mxu0 %v3805
        %v3856 = vpop.f32.mrb[0].mxu0
        %v3857 = vadd.f32 0.0, %v3856
        %v3858 = vpop.f32.mrb[0].mxu0
        %v3859 = vadd.f32 0.0, %v3858
        %v3860 = vpop.f32.mrb[0].mxu0
        %v3861 = vpop.f32.mrb[0].mxu0
        %3862 = vdwg.mxu0
        %3863 = vmatprep.subr.bf16.mxu0 %v3817
        %3864 = vmatpush1.bf16.msra.mxu0 %v3814
        %3865 = vmatprep.subr.bf16.mxu0 0
        %3866 = vmatpush1.bf16.msra.mxu0 0
        %3867 = vmatprep.subr.bf16.mxu0 0
        %3868 = vmatpush1.bf16.msra.mxu0 0
        %3869 = vmatprep.subr.bf16.mxu0 0
        %3870 = vmatpush1.bf16.msra.mxu0 0
        %3871 = vmatprep.subr.bf16.mxu0 0
        %3872 = vmatpush1.bf16.msra.mxu0 0
        %3873 = vmatprep.subr.bf16.mxu0 0
        %3874 = vmatpush1.bf16.msra.mxu0 0
        %3875 = vmatprep.subr.bf16.mxu0 0
        %3876 = vmatpush1.bf16.msra.mxu0 0
        %3877 = vmatprep.subr.bf16.mxu0 0
        %3878 = vmatpush1.bf16.msra.mxu0 0
        %3879 = vmatprep.subr.bf16.mxu0 0
        %3880 = vmatpush1.bf16.msra.mxu0 0
        %3881 = vmatprep.subr.bf16.mxu0 0
        %3882 = vmatpush1.bf16.msra.mxu0 0
        %3883 = vmatprep.subr.bf16.mxu0 0
        %3884 = vmatpush1.bf16.msra.mxu0 0
        %3885 = vmatprep.subr.bf16.mxu0 0
        %3886 = vmatpush1.bf16.msra.mxu0 0
        %3887 = vmatprep.subr.bf16.mxu0 0
        %3888 = vmatpush1.bf16.msra.mxu0 0
        %3889 = vmatprep.subr.bf16.mxu0 0
        %3890 = vmatpush1.bf16.msra.mxu0 0
        %3891 = vmatprep.subr.bf16.mxu0 0
        %3892 = vmatpush1.bf16.msra.mxu0 0
        %3893 = vmatprep.subr.bf16.mxu0 0
        %3894 = vmatpush1.bf16.msra.mxu0 0
        %3895 = vmatprep.mubr.bf16.mxu0 0
        %3896 = vmatmul.mubr.bf16.gmra.mrb[0].mxu0 %v3805
        %v3897 = vpop.f32.mrb[0].mxu0
        %v3898 = vadd.f32 0.0, %v3897
        %v3899 = vpop.f32.mrb[0].mxu0
        %v3900 = vadd.f32 0.0, %v3899
        %v3901 = vpop.f32.mrb[0].mxu0
        %v3902 = vpop.f32.mrb[0].mxu0
        %3903 = vdwg.mxu0
        %3904 = vmatprep.subr.bf16.mxu0 0
        %3905 = vmatpush1.bf16.msra.mxu0 %v3820
        %3906 = vmatprep.subr.bf16.mxu0 0
        %3907 = vmatpush1.bf16.msra.mxu0 0
        %3908 = vmatprep.subr.bf16.mxu0 0
        %3909 = vmatpush1.bf16.msra.mxu0 0
        %3910 = vmatprep.subr.bf16.mxu0 0
        %3911 = vmatpush1.bf16.msra.mxu0 0
        %3912 = vmatprep.subr.bf16.mxu0 0
        %3913 = vmatpush1.bf16.msra.mxu0 0
        %3914 = vmatprep.subr.bf16.mxu0 0
        %3915 = vmatpush1.bf16.msra.mxu0 0
        %3916 = vmatprep.subr.bf16.mxu0 0
        %3917 = vmatpush1.bf16.msra.mxu0 0
        %3918 = vmatprep.subr.bf16.mxu0 0
        %3919 = vmatpush1.bf16.msra.mxu0 0
        %3920 = vmatprep.subr.bf16.mxu0 0
        %3921 = vmatpush1.bf16.msra.mxu0 0
        %3922 = vmatprep.subr.bf16.mxu0 0
        %3923 = vmatpush1.bf16.msra.mxu0 0
        %3924 = vmatprep.subr.bf16.mxu0 0
        %3925 = vmatpush1.bf16.msra.mxu0 0
        %3926 = vmatprep.subr.bf16.mxu0 0
        %3927 = vmatpush1.bf16.msra.mxu0 0
        %3928 = vmatprep.subr.bf16.mxu0 0
        %3929 = vmatpush1.bf16.msra.mxu0 0
        %3930 = vmatprep.subr.bf16.mxu0 0
        %3931 = vmatpush1.bf16.msra.mxu0 0
        %3932 = vmatprep.subr.bf16.mxu0 0
        %3933 = vmatpush1.bf16.msra.mxu0 0
        %3934 = vmatprep.subr.bf16.mxu0 0
        %3935 = vmatpush1.bf16.msra.mxu0 0
        %3936 = vmatprep.mubr.bf16.mxu0 0
        %3937 = vmatmul.mubr.bf16.gmra.mrb[0].mxu0 %v3805
        %v3938 = vpop.f32.mrb[0].mxu0
        %v3939 = vadd.f32 0.0, %v3938
        %v3940 = vpop.f32.mrb[0].mxu0
        %v3941 = vpop.f32.mrb[0].mxu0
        %v3942 = vpop.f32.mrb[0].mxu0
        %3943 = vdwg.mxu0
        %v3945 = vsel %vm3803, %v3757, 0
        %v3948 = vsel %vm315, %v3771, 0
        %v3951 = vsel %vm315, %v3779, 0
        %v3954 = vsel %vm315, %v3778, 0
        %v3957 = vsel %vm315, %v3780, 0
        %v3960 = vsel %vm315, %v3787, 0
        %3962 = vmatprep.subr.bf16.mxu0 %v3951
        %3963 = vmatpush1.bf16.msra.mxu0 %v3948
        %3964 = vmatprep.subr.bf16.mxu0 0
        %3965 = vmatpush1.bf16.msra.mxu0 0
        %3966 = vmatprep.subr.bf16.mxu0 0
        %3967 = vmatpush1.bf16.msra.mxu0 0
        %3968 = vmatprep.subr.bf16.mxu0 0
        %3969 = vmatpush1.bf16.msra.mxu0 0
        %3970 = vmatprep.subr.bf16.mxu0 0
        %3971 = vmatpush1.bf16.msra.mxu0 0
        %3972 = vmatprep.subr.bf16.mxu0 0
        %3973 = vmatpush1.bf16.msra.mxu0 0
        %3974 = vmatprep.subr.bf16.mxu0 0
        %3975 = vmatpush1.bf16.msra.mxu0 0
        %3976 = vmatprep.subr.bf16.mxu0 0
        %3977 = vmatpush1.bf16.msra.mxu0 0
        %3978 = vmatprep.subr.bf16.mxu0 0
        %3979 = vmatpush1.bf16.msra.mxu0 0
        %3980 = vmatprep.subr.bf16.mxu0 0
        %3981 = vmatpush1.bf16.msra.mxu0 0
        %3982 = vmatprep.subr.bf16.mxu0 0
        %3983 = vmatpush1.bf16.msra.mxu0 0
        %3984 = vmatprep.subr.bf16.mxu0 0
        %3985 = vmatpush1.bf16.msra.mxu0 0
        %3986 = vmatprep.subr.bf16.mxu0 0
        %3987 = vmatpush1.bf16.msra.mxu0 0
        %3988 = vmatprep.subr.bf16.mxu0 0
        %3989 = vmatpush1.bf16.msra.mxu0 0
        %3990 = vmatprep.subr.bf16.mxu0 0
        %3991 = vmatpush1.bf16.msra.mxu0 0
        %3992 = vmatprep.subr.bf16.mxu0 0
        %3993 = vmatpush1.bf16.msra.mxu0 0
        %3994 = vmatprep.mubr.bf16.mxu0 0
        %3995 = vmatmul.mubr.bf16.gmra.mrb[0].mxu0 %v3945
        %v3996 = vpop.f32.mrb[0].mxu0
        %v3997 = vadd.f32 %v3857, %v3996
        %v3998 = vpop.f32.mrb[0].mxu0
        %v3999 = vadd.f32 %v3859, %v3998
        %v4000 = vpop.f32.mrb[0].mxu0
        %v4001 = vpop.f32.mrb[0].mxu0
        %4002 = vdwg.mxu0
        %4003 = vmatprep.subr.bf16.mxu0 %v3957
        %4004 = vmatpush1.bf16.msra.mxu0 %v3954
        %4005 = vmatprep.subr.bf16.mxu0 0
        %4006 = vmatpush1.bf16.msra.mxu0 0
        %4007 = vmatprep.subr.bf16.mxu0 0
        %4008 = vmatpush1.bf16.msra.mxu0 0
        %4009 = vmatprep.subr.bf16.mxu0 0
        %4010 = vmatpush1.bf16.msra.mxu0 0
        %4011 = vmatprep.subr.bf16.mxu0 0
        %4012 = vmatpush1.bf16.msra.mxu0 0
        %4013 = vmatprep.subr.bf16.mxu0 0
        %4014 = vmatpush1.bf16.msra.mxu0 0
        %4015 = vmatprep.subr.bf16.mxu0 0
        %4016 = vmatpush1.bf16.msra.mxu0 0
        %4017 = vmatprep.subr.bf16.mxu0 0
        %4018 = vmatpush1.bf16.msra.mxu0 0
        %4019 = vmatprep.subr.bf16.mxu0 0
        %4020 = vmatpush1.bf16.msra.mxu0 0
        %4021 = vmatprep.subr.bf16.mxu0 0
        %4022 = vmatpush1.bf16.msra.mxu0 0
        %4023 = vmatprep.subr.bf16.mxu0 0
        %4024 = vmatpush1.bf16.msra.mxu0 0
        %4025 = vmatprep.subr.bf16.mxu0 0
        %4026 = vmatpush1.bf16.msra.mxu0 0
        %4027 = vmatprep.subr.bf16.mxu0 0
        %4028 = vmatpush1.bf16.msra.mxu0 0
        %4029 = vmatprep.subr.bf16.mxu0 0
        %4030 = vmatpush1.bf16.msra.mxu0 0
        %4031 = vmatprep.subr.bf16.mxu0 0
        %4032 = vmatpush1.bf16.msra.mxu0 0
        %4033 = vmatprep.subr.bf16.mxu0 0
        %4034 = vmatpush1.bf16.msra.mxu0 0
        %4035 = vmatprep.mubr.bf16.mxu0 0
        %4036 = vmatmul.mubr.bf16.gmra.mrb[0].mxu0 %v3945
        %v4037 = vpop.f32.mrb[0].mxu0
        %v4038 = vadd.f32 %v3898, %v4037
        %v4039 = vpop.f32.mrb[0].mxu0
        %v4040 = vadd.f32 %v3900, %v4039
        %v4041 = vpop.f32.mrb[0].mxu0
        %v4042 = vpop.f32.mrb[0].mxu0
        %4043 = vdwg.mxu0
        %4044 = vmatprep.subr.bf16.mxu0 0
        %4045 = vmatpush1.bf16.msra.mxu0 %v3960
        %4046 = vmatprep.subr.bf16.mxu0 0
        %4047 = vmatpush1.bf16.msra.mxu0 0
        %4048 = vmatprep.subr.bf16.mxu0 0
        %4049 = vmatpush1.bf16.msra.mxu0 0
        %4050 = vmatprep.subr.bf16.mxu0 0
        %4051 = vmatpush1.bf16.msra.mxu0 0
        %4052 = vmatprep.subr.bf16.mxu0 0
        %4053 = vmatpush1.bf16.msra.mxu0 0
        %4054 = vmatprep.subr.bf16.mxu0 0
        %4055 = vmatpush1.bf16.msra.mxu0 0
        %4056 = vmatprep.subr.bf16.mxu0 0
        %4057 = vmatpush1.bf16.msra.mxu0 0
        %4058 = vmatprep.subr.bf16.mxu0 0
        %4059 = vmatpush1.bf16.msra.mxu0 0
        %4060 = vmatprep.subr.bf16.mxu0 0
        %4061 = vmatpush1.bf16.msra.mxu0 0
        %4062 = vmatprep.subr.bf16.mxu0 0
        %4063 = vmatpush1.bf16.msra.mxu0 0
        %4064 = vmatprep.subr.bf16.mxu0 0
        %4065 = vmatpush1.bf16.msra.mxu0 0
        %4066 = vmatprep.subr.bf16.mxu0 0
        %4067 = vmatpush1.bf16.msra.mxu0 0
        %4068 = vmatprep.subr.bf16.mxu0 0
        %4069 = vmatpush1.bf16.msra.mxu0 0
        %4070 = vmatprep.subr.bf16.mxu0 0
        %4071 = vmatpush1.bf16.msra.mxu0 0
        %4072 = vmatprep.subr.bf16.mxu0 0
        %4073 = vmatpush1.bf16.msra.mxu0 0
        %4074 = vmatprep.subr.bf16.mxu0 0
        %4075 = vmatpush1.bf16.msra.mxu0 0
        %4076 = vmatprep.mubr.bf16.mxu0 0
        %4077 = vmatmul.mubr.bf16.gmra.mrb[0].mxu0 %v3945
        %v4078 = vpop.f32.mrb[0].mxu0
        %v4079 = vadd.f32 %v3939, %v4078
        %v4080 = vpop.f32.mrb[0].mxu0
        %v4081 = vpop.f32.mrb[0].mxu0
        %v4082 = vpop.f32.mrb[0].mxu0
        %4083 = vdwg.mxu0
        %s4084 = scalar_lea.vmem %s2, 8
        %v4085 = vld [vmem:[%s4084] sm:$0xf]
        %v4086 = vld [vmem:[#allocation2] sm:$0xff]
        %v4087 = vld [vmem:[#allocation2 + $0x8] sm:$0x3]
        %v4090 = vcombine.high %v4086, %v4086
        %v4092 = vunpack.c.l.s4 1983009808
        %v4093 = vunpack.c.0.s8 %v4092
        %v4094 = vlaneseq
        %v4095 = vshrl.u32 %v4094, 7
        %v4096 = vsub.s32 %v4093, %v4095
        %v4097 = vrot.slane %v4086, %v4096
        %v4099 = vunpack.c.l.s4 1983009808
        %v4100 = vunpack.c.0.s8 %v4099
        %v4101 = vlaneseq
        %v4102 = vshrl.u32 %v4101, 7
        %v4103 = vsub.s32 %v4100, %v4102
        %v4104 = vrot.slane %v4090, %v4103
        %v4105 = vcombine.high %v4097, %v4097
        %v4106 = vcombine.high %v4104, %v4104
        %v4108 = vunpack.c.l.s4 1983009808
        %v4109 = vunpack.c.0.s8 %v4108
        %v4110 = vlaneseq
        %v4111 = vshrl.u32 %v4110, 7
        %v4112 = vsub.s32 %v4109, %v4111
        %v4113 = vrot.slane %v4087, %v4112
        %4114 = vrot.lane.b32.xlu0 %v4097, 126
        %v4115 = vpop.permute.xlu0 %4114
        %4116 = vrot.lane.b32.xlu0 %v4105, 126
        %v4117 = vpop.permute.xlu0 %4116
        %4118 = vrot.lane.b32.xlu0 %v4104, 126
        %v4119 = vpop.permute.xlu0 %4118
        %4120 = vrot.lane.b32.xlu0 %v4106, 126
        %v4121 = vpop.permute.xlu0 %4120
        %4122 = vrot.lane.b32.xlu0 %v4113, 126
        %v4123 = vpop.permute.xlu0 %4122
        %vm4124 = vcmask 1031168
        %v4125 = vsel %vm4124, %v4115, %v4117
        %v4126 = vsel %vm4124, %v4117, %v4119
        %v4127 = vsel %vm4124, %v4119, %v4121
        %v4128 = vsel %vm4124, %v4121, %v4123
        %v4130 = vsel %vm3803, %v4085, 0
        %v4133 = vsel %vm315, %v4125, 0
        %v4136 = vsel %vm315, %v4126, 0
        %v4139 = vsel %vm315, %v4127, 0
        %v4142 = vsel %vm315, %v4128, 0
        %v4145 = vsel %vm315, %v4123, 0
        %4147 = vmatprep.subr.bf16.mxu0 %v4136
        %4148 = vmatpush1.bf16.msra.mxu0 %v4133
        %4149 = vmatprep.subr.bf16.mxu0 0
        %4150 = vmatpush1.bf16.msra.mxu0 0
        %4151 = vmatprep.subr.bf16.mxu0 0
        %4152 = vmatpush1.bf16.msra.mxu0 0
        %4153 = vmatprep.subr.bf16.mxu0 0
        %4154 = vmatpush1.bf16.msra.mxu0 0
        %4155 = vmatprep.subr.bf16.mxu0 0
        %4156 = vmatpush1.bf16.msra.mxu0 0
        %4157 = vmatprep.subr.bf16.mxu0 0
        %4158 = vmatpush1.bf16.msra.mxu0 0
        %4159 = vmatprep.subr.bf16.mxu0 0
        %4160 = vmatpush1.bf16.msra.mxu0 0
        %4161 = vmatprep.subr.bf16.mxu0 0
        %4162 = vmatpush1.bf16.msra.mxu0 0
        %4163 = vmatprep.subr.bf16.mxu0 0
        %4164 = vmatpush1.bf16.msra.mxu0 0
        %4165 = vmatprep.subr.bf16.mxu0 0
        %4166 = vmatpush1.bf16.msra.mxu0 0
        %4167 = vmatprep.subr.bf16.mxu0 0
        %4168 = vmatpush1.bf16.msra.mxu0 0
        %4169 = vmatprep.subr.bf16.mxu0 0
        %4170 = vmatpush1.bf16.msra.mxu0 0
        %4171 = vmatprep.subr.bf16.mxu0 0
        %4172 = vmatpush1.bf16.msra.mxu0 0
        %4173 = vmatprep.subr.bf16.mxu0 0
        %4174 = vmatpush1.bf16.msra.mxu0 0
        %4175 = vmatprep.subr.bf16.mxu0 0
        %4176 = vmatpush1.bf16.msra.mxu0 0
        %4177 = vmatprep.subr.bf16.mxu0 0
        %4178 = vmatpush1.bf16.msra.mxu0 0
        %4179 = vmatprep.mubr.bf16.mxu0 0
        %4180 = vmatmul.mubr.bf16.gmra.mrb[0].mxu0 %v4130
        %v4181 = vpop.f32.mrb[0].mxu0
        %v4182 = vadd.f32 0.0, %v4181
        %v4183 = vpop.f32.mrb[0].mxu0
        %v4184 = vadd.f32 0.0, %v4183
        %v4185 = vpop.f32.mrb[0].mxu0
        %v4186 = vpop.f32.mrb[0].mxu0
        %4187 = vdwg.mxu0
        %4188 = vmatprep.subr.bf16.mxu0 %v4142
        %4189 = vmatpush1.bf16.msra.mxu0 %v4139
        %4190 = vmatprep.subr.bf16.mxu0 0
        %4191 = vmatpush1.bf16.msra.mxu0 0
        %4192 = vmatprep.subr.bf16.mxu0 0
        %4193 = vmatpush1.bf16.msra.mxu0 0
        %4194 = vmatprep.subr.bf16.mxu0 0
        %4195 = vmatpush1.bf16.msra.mxu0 0
        %4196 = vmatprep.subr.bf16.mxu0 0
        %4197 = vmatpush1.bf16.msra.mxu0 0
        %4198 = vmatprep.subr.bf16.mxu0 0
        %4199 = vmatpush1.bf16.msra.mxu0 0
        %4200 = vmatprep.subr.bf16.mxu0 0
        %4201 = vmatpush1.bf16.msra.mxu0 0
        %4202 = vmatprep.subr.bf16.mxu0 0
        %4203 = vmatpush1.bf16.msra.mxu0 0
        %4204 = vmatprep.subr.bf16.mxu0 0
        %4205 = vmatpush1.bf16.msra.mxu0 0
        %4206 = vmatprep.subr.bf16.mxu0 0
        %4207 = vmatpush1.bf16.msra.mxu0 0
        %4208 = vmatprep.subr.bf16.mxu0 0
        %4209 = vmatpush1.bf16.msra.mxu0 0
        %4210 = vmatprep.subr.bf16.mxu0 0
        %4211 = vmatpush1.bf16.msra.mxu0 0
        %4212 = vmatprep.subr.bf16.mxu0 0
        %4213 = vmatpush1.bf16.msra.mxu0 0
        %4214 = vmatprep.subr.bf16.mxu0 0
        %4215 = vmatpush1.bf16.msra.mxu0 0
        %4216 = vmatprep.subr.bf16.mxu0 0
        %4217 = vmatpush1.bf16.msra.mxu0 0
        %4218 = vmatprep.subr.bf16.mxu0 0
        %4219 = vmatpush1.bf16.msra.mxu0 0
        %4220 = vmatprep.mubr.bf16.mxu0 0
        %4221 = vmatmul.mubr.bf16.gmra.mrb[0].mxu0 %v4130
        %v4222 = vpop.f32.mrb[0].mxu0
        %v4223 = vadd.f32 0.0, %v4222
        %v4224 = vpop.f32.mrb[0].mxu0
        %v4225 = vadd.f32 0.0, %v4224
        %v4226 = vpop.f32.mrb[0].mxu0
        %v4227 = vpop.f32.mrb[0].mxu0
        %4228 = vdwg.mxu0
        %4229 = vmatprep.subr.bf16.mxu0 0
        %4230 = vmatpush1.bf16.msra.mxu0 %v4145
        %4231 = vmatprep.subr.bf16.mxu0 0
        %4232 = vmatpush1.bf16.msra.mxu0 0
        %4233 = vmatprep.subr.bf16.mxu0 0
        %4234 = vmatpush1.bf16.msra.mxu0 0
        %4235 = vmatprep.subr.bf16.mxu0 0
        %4236 = vmatpush1.bf16.msra.mxu0 0
        %4237 = vmatprep.subr.bf16.mxu0 0
        %4238 = vmatpush1.bf16.msra.mxu0 0
        %4239 = vmatprep.subr.bf16.mxu0 0
        %4240 = vmatpush1.bf16.msra.mxu0 0
        %4241 = vmatprep.subr.bf16.mxu0 0
        %4242 = vmatpush1.bf16.msra.mxu0 0
        %4243 = vmatprep.subr.bf16.mxu0 0
        %4244 = vmatpush1.bf16.msra.mxu0 0
        %4245 = vmatprep.subr.bf16.mxu0 0
        %4246 = vmatpush1.bf16.msra.mxu0 0
        %4247 = vmatprep.subr.bf16.mxu0 0
        %4248 = vmatpush1.bf16.msra.mxu0 0
        %4249 = vmatprep.subr.bf16.mxu0 0
        %4250 = vmatpush1.bf16.msra.mxu0 0
        %4251 = vmatprep.subr.bf16.mxu0 0
        %4252 = vmatpush1.bf16.msra.mxu0 0
        %4253 = vmatprep.subr.bf16.mxu0 0
        %4254 = vmatpush1.bf16.msra.mxu0 0
        %4255 = vmatprep.subr.bf16.mxu0 0
        %4256 = vmatpush1.bf16.msra.mxu0 0
        %4257 = vmatprep.subr.bf16.mxu0 0
        %4258 = vmatpush1.bf16.msra.mxu0 0
        %4259 = vmatprep.subr.bf16.mxu0 0
        %4260 = vmatpush1.bf16.msra.mxu0 0
        %4261 = vmatprep.mubr.bf16.mxu0 0
        %4262 = vmatmul.mubr.bf16.gmra.mrb[0].mxu0 %v4130
        %v4263 = vpop.f32.mrb[0].mxu0
        %v4264 = vadd.f32 0.0, %v4263
        %v4265 = vpop.f32.mrb[0].mxu0
        %v4266 = vpop.f32.mrb[0].mxu0
        %v4267 = vpop.f32.mrb[0].mxu0
        %4268 = vdwg.mxu0
        %v4269 = vadd.f32 %v3997, %v4182
        %v4270 = vadd.f32 %v3999, %v4184
        %v4271 = vadd.f32 %v4038, %v4223
        %v4272 = vadd.f32 %v4040, %v4225
        %v4273 = vadd.f32 %v4079, %v4264
        %s4274 = scalar_lea.vmem %s2, 12
        %v4275 = vld [vmem:[%s4274] sm:$0xf]
        %v4276 = vld [vmem:[#allocation2] sm:$0xff]
        %v4277 = vld [vmem:[#allocation2 + $0x8] sm:$0xf]
        %v4280 = vcombine.high %v4276, %v4276
        %v4282 = vunpack.c.l.s4 1983009808
        %v4283 = vunpack.c.0.s8 %v4282
        %v4284 = vlaneseq
        %v4285 = vshrl.u32 %v4284, 7
        %v4286 = vsub.s32 %v4283, %v4285
        %v4287 = vrot.slane %v4276, %v4286
        %v4289 = vunpack.c.l.s4 1983009808
        %v4290 = vunpack.c.0.s8 %v4289
        %v4291 = vlaneseq
        %v4292 = vshrl.u32 %v4291, 7
        %v4293 = vsub.s32 %v4290, %v4292
        %v4294 = vrot.slane %v4280, %v4293
        %v4295 = vcombine.high %v4287, %v4287
        %v4296 = vcombine.high %v4294, %v4294
        %v4298 = vunpack.c.l.s4 1983009808
        %v4299 = vunpack.c.0.s8 %v4298
        %v4300 = vlaneseq
        %v4301 = vshrl.u32 %v4300, 7
        %v4302 = vsub.s32 %v4299, %v4301
        %v4303 = vrot.slane %v4277, %v4302
        %v4304 = vcombine.high %v4303, %v4303
        %4305 = vrot.lane.b32.xlu0 %v4287, 102
        %v4306 = vpop.permute.xlu0 %4305
        %4307 = vrot.lane.b32.xlu0 %v4295, 102
        %v4308 = vpop.permute.xlu0 %4307
        %4309 = vrot.lane.b32.xlu0 %v4294, 102
        %v4310 = vpop.permute.xlu0 %4309
        %4311 = vrot.lane.b32.xlu0 %v4296, 102
        %v4312 = vpop.permute.xlu0 %4311
        %4313 = vrot.lane.b32.xlu0 %v4303, 102
        %v4314 = vpop.permute.xlu0 %4313
        %4315 = vrot.lane.b32.xlu0 %v4304, 102
        %v4316 = vpop.permute.xlu0 %4315
        %vm4317 = vcmask 834560
        %v4318 = vsel %vm4317, %v4306, %v4308
        %v4319 = vsel %vm4317, %v4308, %v4310
        %v4320 = vsel %vm4317, %v4310, %v4312
        %v4321 = vsel %vm4317, %v4312, %v4314
        %v4322 = vsel %vm4317, %v4314, %v4316
        %v4324 = vsel %vm3803, %v4275, 0
        %v4327 = vsel %vm315, %v4318, 0
        %v4330 = vsel %vm315, %v4319, 0
        %v4333 = vsel %vm315, %v4320, 0
        %v4336 = vsel %vm315, %v4321, 0
        %v4339 = vsel %vm315, %v4322, 0
        %4341 = vmatprep.subr.bf16.mxu0 %v4330
        %4342 = vmatpush1.bf16.msra.mxu0 %v4327
        %4343 = vmatprep.subr.bf16.mxu0 0
        %4344 = vmatpush1.bf16.msra.mxu0 0
        %4345 = vmatprep.subr.bf16.mxu0 0
        %4346 = vmatpush1.bf16.msra.mxu0 0
        %4347 = vmatprep.subr.bf16.mxu0 0
        %4348 = vmatpush1.bf16.msra.mxu0 0
        %4349 = vmatprep.subr.bf16.mxu0 0
        %4350 = vmatpush1.bf16.msra.mxu0 0
        %4351 = vmatprep.subr.bf16.mxu0 0
        %4352 = vmatpush1.bf16.msra.mxu0 0
        %4353 = vmatprep.subr.bf16.mxu0 0
        %4354 = vmatpush1.bf16.msra.mxu0 0
        %4355 = vmatprep.subr.bf16.mxu0 0
        %4356 = vmatpush1.bf16.msra.mxu0 0
        %4357 = vmatprep.subr.bf16.mxu0 0
        %4358 = vmatpush1.bf16.msra.mxu0 0
        %4359 = vmatprep.subr.bf16.mxu0 0
        %4360 = vmatpush1.bf16.msra.mxu0 0
        %4361 = vmatprep.subr.bf16.mxu0 0
        %4362 = vmatpush1.bf16.msra.mxu0 0
        %4363 = vmatprep.subr.bf16.mxu0 0
        %4364 = vmatpush1.bf16.msra.mxu0 0
        %4365 = vmatprep.subr.bf16.mxu0 0
        %4366 = vmatpush1.bf16.msra.mxu0 0
        %4367 = vmatprep.subr.bf16.mxu0 0
        %4368 = vmatpush1.bf16.msra.mxu0 0
        %4369 = vmatprep.subr.bf16.mxu0 0
        %4370 = vmatpush1.bf16.msra.mxu0 0
        %4371 = vmatprep.subr.bf16.mxu0 0
        %4372 = vmatpush1.bf16.msra.mxu0 0
        %4373 = vmatprep.mubr.bf16.mxu0 0
        %4374 = vmatmul.mubr.bf16.gmra.mrb[0].mxu0 %v4324
        %v4375 = vpop.f32.mrb[0].mxu0
        %v4376 = vadd.f32 0.0, %v4375
        %v4377 = vpop.f32.mrb[0].mxu0
        %v4378 = vadd.f32 0.0, %v4377
        %v4379 = vpop.f32.mrb[0].mxu0
        %v4380 = vpop.f32.mrb[0].mxu0
        %4381 = vdwg.mxu0
        %4382 = vmatprep.subr.bf16.mxu0 %v4336
        %4383 = vmatpush1.bf16.msra.mxu0 %v4333
        %4384 = vmatprep.subr.bf16.mxu0 0
        %4385 = vmatpush1.bf16.msra.mxu0 0
        %4386 = vmatprep.subr.bf16.mxu0 0
        %4387 = vmatpush1.bf16.msra.mxu0 0
        %4388 = vmatprep.subr.bf16.mxu0 0
        %4389 = vmatpush1.bf16.msra.mxu0 0
        %4390 = vmatprep.subr.bf16.mxu0 0
        %4391 = vmatpush1.bf16.msra.mxu0 0
        %4392 = vmatprep.subr.bf16.mxu0 0
        %4393 = vmatpush1.bf16.msra.mxu0 0
        %4394 = vmatprep.subr.bf16.mxu0 0
        %4395 = vmatpush1.bf16.msra.mxu0 0
        %4396 = vmatprep.subr.bf16.mxu0 0
        %4397 = vmatpush1.bf16.msra.mxu0 0
        %4398 = vmatprep.subr.bf16.mxu0 0
        %4399 = vmatpush1.bf16.msra.mxu0 0
        %4400 = vmatprep.subr.bf16.mxu0 0
        %4401 = vmatpush1.bf16.msra.mxu0 0
        %4402 = vmatprep.subr.bf16.mxu0 0
        %4403 = vmatpush1.bf16.msra.mxu0 0
        %4404 = vmatprep.subr.bf16.mxu0 0
        %4405 = vmatpush1.bf16.msra.mxu0 0
        %4406 = vmatprep.subr.bf16.mxu0 0
        %4407 = vmatpush1.bf16.msra.mxu0 0
        %4408 = vmatprep.subr.bf16.mxu0 0
        %4409 = vmatpush1.bf16.msra.mxu0 0
        %4410 = vmatprep.subr.bf16.mxu0 0
        %4411 = vmatpush1.bf16.msra.mxu0 0
        %4412 = vmatprep.subr.bf16.mxu0 0
        %4413 = vmatpush1.bf16.msra.mxu0 0
        %4414 = vmatprep.mubr.bf16.mxu0 0
        %4415 = vmatmul.mubr.bf16.gmra.mrb[0].mxu0 %v4324
        %v4416 = vpop.f32.mrb[0].mxu0
        %v4417 = vadd.f32 0.0, %v4416
        %v4418 = vpop.f32.mrb[0].mxu0
        %v4419 = vadd.f32 0.0, %v4418
        %v4420 = vpop.f32.mrb[0].mxu0
        %v4421 = vpop.f32.mrb[0].mxu0
        %4422 = vdwg.mxu0
        %4423 = vmatprep.subr.bf16.mxu0 0
        %4424 = vmatpush1.bf16.msra.mxu0 %v4339
        %4425 = vmatprep.subr.bf16.mxu0 0
        %4426 = vmatpush1.bf16.msra.mxu0 0
        %4427 = vmatprep.subr.bf16.mxu0 0
        %4428 = vmatpush1.bf16.msra.mxu0 0
        %4429 = vmatprep.subr.bf16.mxu0 0
        %4430 = vmatpush1.bf16.msra.mxu0 0
        %4431 = vmatprep.subr.bf16.mxu0 0
        %4432 = vmatpush1.bf16.msra.mxu0 0
        %4433 = vmatprep.subr.bf16.mxu0 0
        %4434 = vmatpush1.bf16.msra.mxu0 0
        %4435 = vmatprep.subr.bf16.mxu0 0
        %4436 = vmatpush1.bf16.msra.mxu0 0
        %4437 = vmatprep.subr.bf16.mxu0 0
        %4438 = vmatpush1.bf16.msra.mxu0 0
        %4439 = vmatprep.subr.bf16.mxu0 0
        %4440 = vmatpush1.bf16.msra.mxu0 0
        %4441 = vmatprep.subr.bf16.mxu0 0
        %4442 = vmatpush1.bf16.msra.mxu0 0
        %4443 = vmatprep.subr.bf16.mxu0 0
        %4444 = vmatpush1.bf16.msra.mxu0 0
        %4445 = vmatprep.subr.bf16.mxu0 0
        %4446 = vmatpush1.bf16.msra.mxu0 0
        %4447 = vmatprep.subr.bf16.mxu0 0
        %4448 = vmatpush1.bf16.msra.mxu0 0
        %4449 = vmatprep.subr.bf16.mxu0 0
        %4450 = vmatpush1.bf16.msra.mxu0 0
        %4451 = vmatprep.subr.bf16.mxu0 0
        %4452 = vmatpush1.bf16.msra.mxu0 0
        %4453 = vmatprep.subr.bf16.mxu0 0
        %4454 = vmatpush1.bf16.msra.mxu0 0
        %4455 = vmatprep.mubr.bf16.mxu0 0
        %4456 = vmatmul.mubr.bf16.gmra.mrb[0].mxu0 %v4324
        %v4457 = vpop.f32.mrb[0].mxu0
        %v4458 = vadd.f32 0.0, %v4457
        %v4459 = vpop.f32.mrb[0].mxu0
        %v4460 = vpop.f32.mrb[0].mxu0
        %v4461 = vpop.f32.mrb[0].mxu0
        %4462 = vdwg.mxu0
        %v4463 = vadd.f32 %v4269, %v4376
        %v4464 = vadd.f32 %v4270, %v4378
        %v4465 = vadd.f32 %v4271, %v4417
        %v4466 = vadd.f32 %v4272, %v4419
        %v4467 = vadd.f32 %v4273, %v4458
        %s4468 = scalar_lea.vmem %s2, 16
        %v4469 = vld [vmem:[%s4468] sm:$0xf]
        %v4470 = vld [vmem:[#allocation2] sm:$0xff]
        %v4471 = vld [vmem:[#allocation2 + $0x8] sm:$0xf]
        %v4474 = vcombine.high %v4470, %v4470
        %v4476 = vunpack.c.l.s4 1983009808
        %v4477 = vunpack.c.0.s8 %v4476
        %v4478 = vlaneseq
        %v4479 = vshrl.u32 %v4478, 7
        %v4480 = vsub.s32 %v4477, %v4479
        %v4481 = vrot.slane %v4470, %v4480
        %v4483 = vunpack.c.l.s4 1983009808
        %v4484 = vunpack.c.0.s8 %v4483
        %v4485 = vlaneseq
        %v4486 = vshrl.u32 %v4485, 7
        %v4487 = vsub.s32 %v4484, %v4486
        %v4488 = vrot.slane %v4474, %v4487
        %v4489 = vcombine.high %v4481, %v4481
        %v4490 = vcombine.high %v4488, %v4488
        %v4492 = vunpack.c.l.s4 1983009808
        %v4493 = vunpack.c.0.s8 %v4492
        %v4494 = vlaneseq
        %v4495 = vshrl.u32 %v4494, 7
        %v4496 = vsub.s32 %v4493, %v4495
        %v4497 = vrot.slane %v4471, %v4496
        %v4498 = vcombine.high %v4497, %v4497
        %4499 = vrot.lane.b32.xlu0 %v4481, 101
        %v4500 = vpop.permute.xlu0 %4499
        %4501 = vrot.lane.b32.xlu0 %v4489, 101
        %v4502 = vpop.permute.xlu0 %4501
        %4503 = vrot.lane.b32.xlu0 %v4488, 101
        %v4504 = vpop.permute.xlu0 %4503
        %4505 = vrot.lane.b32.xlu0 %v4490, 101
        %v4506 = vpop.permute.xlu0 %4505
        %4507 = vrot.lane.b32.xlu0 %v4497, 101
        %v4508 = vpop.permute.xlu0 %4507
        %4509 = vrot.lane.b32.xlu0 %v4498, 101
        %v4510 = vpop.permute.xlu0 %4509
        %vm4511 = vcmask 826368
        %v4512 = vsel %vm4511, %v4500, %v4502
        %v4513 = vsel %vm4511, %v4502, %v4504
        %v4514 = vsel %vm4511, %v4504, %v4506
        %v4515 = vsel %vm4511, %v4506, %v4508
        %v4516 = vsel %vm4511, %v4508, %v4510
        %v4518 = vsel %vm3803, %v4469, 0
        %v4521 = vsel %vm315, %v4512, 0
        %v4524 = vsel %vm315, %v4513, 0
        %v4527 = vsel %vm315, %v4514, 0
        %v4530 = vsel %vm315, %v4515, 0
        %v4533 = vsel %vm315, %v4516, 0
        %4535 = vmatprep.subr.bf16.mxu0 %v4524
        %4536 = vmatpush1.bf16.msra.mxu0 %v4521
        %4537 = vmatprep.subr.bf16.mxu0 0
        %4538 = vmatpush1.bf16.msra.mxu0 0
        %4539 = vmatprep.subr.bf16.mxu0 0
        %4540 = vmatpush1.bf16.msra.mxu0 0
        %4541 = vmatprep.subr.bf16.mxu0 0
        %4542 = vmatpush1.bf16.msra.mxu0 0
        %4543 = vmatprep.subr.bf16.mxu0 0
        %4544 = vmatpush1.bf16.msra.mxu0 0
        %4545 = vmatprep.subr.bf16.mxu0 0
        %4546 = vmatpush1.bf16.msra.mxu0 0
        %4547 = vmatprep.subr.bf16.mxu0 0
        %4548 = vmatpush1.bf16.msra.mxu0 0
        %4549 = vmatprep.subr.bf16.mxu0 0
        %4550 = vmatpush1.bf16.msra.mxu0 0
        %4551 = vmatprep.subr.bf16.mxu0 0
        %4552 = vmatpush1.bf16.msra.mxu0 0
        %4553 = vmatprep.subr.bf16.mxu0 0
        %4554 = vmatpush1.bf16.msra.mxu0 0
        %4555 = vmatprep.subr.bf16.mxu0 0
        %4556 = vmatpush1.bf16.msra.mxu0 0
        %4557 = vmatprep.subr.bf16.mxu0 0
        %4558 = vmatpush1.bf16.msra.mxu0 0
        %4559 = vmatprep.subr.bf16.mxu0 0
        %4560 = vmatpush1.bf16.msra.mxu0 0
        %4561 = vmatprep.subr.bf16.mxu0 0
        %4562 = vmatpush1.bf16.msra.mxu0 0
        %4563 = vmatprep.subr.bf16.mxu0 0
        %4564 = vmatpush1.bf16.msra.mxu0 0
        %4565 = vmatprep.subr.bf16.mxu0 0
        %4566 = vmatpush1.bf16.msra.mxu0 0
        %4567 = vmatprep.mubr.bf16.mxu0 0
        %4568 = vmatmul.mubr.bf16.gmra.mrb[0].mxu0 %v4518
        %v4569 = vpop.f32.mrb[0].mxu0
        %v4570 = vadd.f32 0.0, %v4569
        %v4571 = vpop.f32.mrb[0].mxu0
        %v4572 = vadd.f32 0.0, %v4571
        %v4573 = vpop.f32.mrb[0].mxu0
        %v4574 = vpop.f32.mrb[0].mxu0
        %4575 = vdwg.mxu0
        %4576 = vmatprep.subr.bf16.mxu0 %v4530
        %4577 = vmatpush1.bf16.msra.mxu0 %v4527
        %4578 = vmatprep.subr.bf16.mxu0 0
        %4579 = vmatpush1.bf16.msra.mxu0 0
        %4580 = vmatprep.subr.bf16.mxu0 0
        %4581 = vmatpush1.bf16.msra.mxu0 0
        %4582 = vmatprep.subr.bf16.mxu0 0
        %4583 = vmatpush1.bf16.msra.mxu0 0
        %4584 = vmatprep.subr.bf16.mxu0 0
        %4585 = vmatpush1.bf16.msra.mxu0 0
        %4586 = vmatprep.subr.bf16.mxu0 0
        %4587 = vmatpush1.bf16.msra.mxu0 0
        %4588 = vmatprep.subr.bf16.mxu0 0
        %4589 = vmatpush1.bf16.msra.mxu0 0
        %4590 = vmatprep.subr.bf16.mxu0 0
        %4591 = vmatpush1.bf16.msra.mxu0 0
        %4592 = vmatprep.subr.bf16.mxu0 0
        %4593 = vmatpush1.bf16.msra.mxu0 0
        %4594 = vmatprep.subr.bf16.mxu0 0
        %4595 = vmatpush1.bf16.msra.mxu0 0
        %4596 = vmatprep.subr.bf16.mxu0 0
        %4597 = vmatpush1.bf16.msra.mxu0 0
        %4598 = vmatprep.subr.bf16.mxu0 0
        %4599 = vmatpush1.bf16.msra.mxu0 0
        %4600 = vmatprep.subr.bf16.mxu0 0
        %4601 = vmatpush1.bf16.msra.mxu0 0
        %4602 = vmatprep.subr.bf16.mxu0 0
        %4603 = vmatpush1.bf16.msra.mxu0 0
        %4604 = vmatprep.subr.bf16.mxu0 0
        %4605 = vmatpush1.bf16.msra.mxu0 0
        %4606 = vmatprep.subr.bf16.mxu0 0
        %4607 = vmatpush1.bf16.msra.mxu0 0
        %4608 = vmatprep.mubr.bf16.mxu0 0
        %4609 = vmatmul.mubr.bf16.gmra.mrb[0].mxu0 %v4518
        %v4610 = vpop.f32.mrb[0].mxu0
        %v4611 = vadd.f32 0.0, %v4610
        %v4612 = vpop.f32.mrb[0].mxu0
        %v4613 = vadd.f32 0.0, %v4612
        %v4614 = vpop.f32.mrb[0].mxu0
        %v4615 = vpop.f32.mrb[0].mxu0
        %4616 = vdwg.mxu0
        %4617 = vmatprep.subr.bf16.mxu0 0
        %4618 = vmatpush1.bf16.msra.mxu0 %v4533
        %4619 = vmatprep.subr.bf16.mxu0 0
        %4620 = vmatpush1.bf16.msra.mxu0 0
        %4621 = vmatprep.subr.bf16.mxu0 0
        %4622 = vmatpush1.bf16.msra.mxu0 0
        %4623 = vmatprep.subr.bf16.mxu0 0
        %4624 = vmatpush1.bf16.msra.mxu0 0
        %4625 = vmatprep.subr.bf16.mxu0 0
        %4626 = vmatpush1.bf16.msra.mxu0 0
        %4627 = vmatprep.subr.bf16.mxu0 0
        %4628 = vmatpush1.bf16.msra.mxu0 0
        %4629 = vmatprep.subr.bf16.mxu0 0
        %4630 = vmatpush1.bf16.msra.mxu0 0
        %4631 = vmatprep.subr.bf16.mxu0 0
        %4632 = vmatpush1.bf16.msra.mxu0 0
        %4633 = vmatprep.subr.bf16.mxu0 0
        %4634 = vmatpush1.bf16.msra.mxu0 0
        %4635 = vmatprep.subr.bf16.mxu0 0
        %4636 = vmatpush1.bf16.msra.mxu0 0
        %4637 = vmatprep.subr.bf16.mxu0 0
        %4638 = vmatpush1.bf16.msra.mxu0 0
        %4639 = vmatprep.subr.bf16.mxu0 0
        %4640 = vmatpush1.bf16.msra.mxu0 0
        %4641 = vmatprep.subr.bf16.mxu0 0
        %4642 = vmatpush1.bf16.msra.mxu0 0
        %4643 = vmatprep.subr.bf16.mxu0 0
        %4644 = vmatpush1.bf16.msra.mxu0 0
        %4645 = vmatprep.subr.bf16.mxu0 0
        %4646 = vmatpush1.bf16.msra.mxu0 0
        %4647 = vmatprep.subr.bf16.mxu0 0
        %4648 = vmatpush1.bf16.msra.mxu0 0
        %4649 = vmatprep.mubr.bf16.mxu0 0
        %4650 = vmatmul.mubr.bf16.gmra.mrb[0].mxu0 %v4518
        %v4651 = vpop.f32.mrb[0].mxu0
        %v4652 = vadd.f32 0.0, %v4651
        %v4653 = vpop.f32.mrb[0].mxu0
        %v4654 = vpop.f32.mrb[0].mxu0
        %v4655 = vpop.f32.mrb[0].mxu0
        %4656 = vdwg.mxu0
        %v4657 = vadd.f32 %v4463, %v4570
        %v4658 = vadd.f32 %v4464, %v4572
        %v4659 = vadd.f32 %v4465, %v4611
        %v4660 = vadd.f32 %v4466, %v4613
        %v4661 = vadd.f32 %v4467, %v4652
        %s4662 = scalar_lea.vmem %s2, 20
        %v4663 = vld [vmem:[%s4662] sm:$0xf]
        %v4664 = vld [vmem:[#allocation2] sm:$0xff]
        %v4665 = vld [vmem:[#allocation2 + $0x8] sm:$0xf]
        %v4668 = vcombine.high %v4664, %v4664
        %v4670 = vunpack.c.l.s4 1983009808
        %v4671 = vunpack.c.0.s8 %v4670
        %v4672 = vlaneseq
        %v4673 = vshrl.u32 %v4672, 7
        %v4674 = vsub.s32 %v4671, %v4673
        %v4675 = vrot.slane %v4664, %v4674
        %v4677 = vunpack.c.l.s4 1983009808
        %v4678 = vunpack.c.0.s8 %v4677
        %v4679 = vlaneseq
        %v4680 = vshrl.u32 %v4679, 7
        %v4681 = vsub.s32 %v4678, %v4680
        %v4682 = vrot.slane %v4668, %v4681
        %v4683 = vcombine.high %v4675, %v4675
        %v4684 = vcombine.high %v4682, %v4682
        %v4686 = vunpack.c.l.s4 1983009808
        %v4687 = vunpack.c.0.s8 %v4686
        %v4688 = vlaneseq
        %v4689 = vshrl.u32 %v4688, 7
        %v4690 = vsub.s32 %v4687, %v4689
        %v4691 = vrot.slane %v4665, %v4690
        %v4692 = vcombine.high %v4691, %v4691
        %4693 = vrot.lane.b32.xlu0 %v4675, 100
        %v4694 = vpop.permute.xlu0 %4693
        %4695 = vrot.lane.b32.xlu0 %v4683, 100
        %v4696 = vpop.permute.xlu0 %4695
        %4697 = vrot.lane.b32.xlu0 %v4682, 100
        %v4698 = vpop.permute.xlu0 %4697
        %4699 = vrot.lane.b32.xlu0 %v4684, 100
        %v4700 = vpop.permute.xlu0 %4699
        %4701 = vrot.lane.b32.xlu0 %v4691, 100
        %v4702 = vpop.permute.xlu0 %4701
        %4703 = vrot.lane.b32.xlu0 %v4692, 100
        %v4704 = vpop.permute.xlu0 %4703
        %vm4705 = vcmask 818176
        %v4706 = vsel %vm4705, %v4694, %v4696
        %v4707 = vsel %vm4705, %v4696, %v4698
        %v4708 = vsel %vm4705, %v4698, %v4700
        %v4709 = vsel %vm4705, %v4700, %v4702
        %v4710 = vsel %vm4705, %v4702, %v4704
        %v4712 = vsel %vm3803, %v4663, 0
        %v4715 = vsel %vm315, %v4706, 0
        %v4718 = vsel %vm315, %v4707, 0
        %v4721 = vsel %vm315, %v4708, 0
        %v4724 = vsel %vm315, %v4709, 0
        %v4727 = vsel %vm315, %v4710, 0
        %4729 = vmatprep.subr.bf16.mxu0 %v4718
        %4730 = vmatpush1.bf16.msra.mxu0 %v4715
        %4731 = vmatprep.subr.bf16.mxu0 0
        %4732 = vmatpush1.bf16.msra.mxu0 0
        %4733 = vmatprep.subr.bf16.mxu0 0
        %4734 = vmatpush1.bf16.msra.mxu0 0
        %4735 = vmatprep.subr.bf16.mxu0 0
        %4736 = vmatpush1.bf16.msra.mxu0 0
        %4737 = vmatprep.subr.bf16.mxu0 0
        %4738 = vmatpush1.bf16.msra.mxu0 0
        %4739 = vmatprep.subr.bf16.mxu0 0
        %4740 = vmatpush1.bf16.msra.mxu0 0
        %4741 = vmatprep.subr.bf16.mxu0 0
        %4742 = vmatpush1.bf16.msra.mxu0 0
        %4743 = vmatprep.subr.bf16.mxu0 0
        %4744 = vmatpush1.bf16.msra.mxu0 0
        %4745 = vmatprep.subr.bf16.mxu0 0
        %4746 = vmatpush1.bf16.msra.mxu0 0
        %4747 = vmatprep.subr.bf16.mxu0 0
        %4748 = vmatpush1.bf16.msra.mxu0 0
        %4749 = vmatprep.subr.bf16.mxu0 0
        %4750 = vmatpush1.bf16.msra.mxu0 0
        %4751 = vmatprep.subr.bf16.mxu0 0
        %4752 = vmatpush1.bf16.msra.mxu0 0
        %4753 = vmatprep.subr.bf16.mxu0 0
        %4754 = vmatpush1.bf16.msra.mxu0 0
        %4755 = vmatprep.subr.bf16.mxu0 0
        %4756 = vmatpush1.bf16.msra.mxu0 0
        %4757 = vmatprep.subr.bf16.mxu0 0
        %4758 = vmatpush1.bf16.msra.mxu0 0
        %4759 = vmatprep.subr.bf16.mxu0 0
        %4760 = vmatpush1.bf16.msra.mxu0 0
        %4761 = vmatprep.mubr.bf16.mxu0 0
        %4762 = vmatmul.mubr.bf16.gmra.mrb[0].mxu0 %v4712
        %v4763 = vpop.f32.mrb[0].mxu0
        %v4764 = vadd.f32 0.0, %v4763
        %v4765 = vpop.f32.mrb[0].mxu0
        %v4766 = vadd.f32 0.0, %v4765
        %v4767 = vpop.f32.mrb[0].mxu0
        %v4768 = vpop.f32.mrb[0].mxu0
        %4769 = vdwg.mxu0
        %4770 = vmatprep.subr.bf16.mxu0 %v4724
        %4771 = vmatpush1.bf16.msra.mxu0 %v4721
        %4772 = vmatprep.subr.bf16.mxu0 0
        %4773 = vmatpush1.bf16.msra.mxu0 0
        %4774 = vmatprep.subr.bf16.mxu0 0
        %4775 = vmatpush1.bf16.msra.mxu0 0
        %4776 = vmatprep.subr.bf16.mxu0 0
        %4777 = vmatpush1.bf16.msra.mxu0 0
        %4778 = vmatprep.subr.bf16.mxu0 0
        %4779 = vmatpush1.bf16.msra.mxu0 0
        %4780 = vmatprep.subr.bf16.mxu0 0
        %4781 = vmatpush1.bf16.msra.mxu0 0
        %4782 = vmatprep.subr.bf16.mxu0 0
        %4783 = vmatpush1.bf16.msra.mxu0 0
        %4784 = vmatprep.subr.bf16.mxu0 0
        %4785 = vmatpush1.bf16.msra.mxu0 0
        %4786 = vmatprep.subr.bf16.mxu0 0
        %4787 = vmatpush1.bf16.msra.mxu0 0
        %4788 = vmatprep.subr.bf16.mxu0 0
        %4789 = vmatpush1.bf16.msra.mxu0 0
        %4790 = vmatprep.subr.bf16.mxu0 0
        %4791 = vmatpush1.bf16.msra.mxu0 0
        %4792 = vmatprep.subr.bf16.mxu0 0
        %4793 = vmatpush1.bf16.msra.mxu0 0
        %4794 = vmatprep.subr.bf16.mxu0 0
        %4795 = vmatpush1.bf16.msra.mxu0 0
        %4796 = vmatprep.subr.bf16.mxu0 0
        %4797 = vmatpush1.bf16.msra.mxu0 0
        %4798 = vmatprep.subr.bf16.mxu0 0
        %4799 = vmatpush1.bf16.msra.mxu0 0
        %4800 = vmatprep.subr.bf16.mxu0 0
        %4801 = vmatpush1.bf16.msra.mxu0 0
        %4802 = vmatprep.mubr.bf16.mxu0 0
        %4803 = vmatmul.mubr.bf16.gmra.mrb[0].mxu0 %v4712
        %v4804 = vpop.f32.mrb[0].mxu0
        %v4805 = vadd.f32 0.0, %v4804
        %v4806 = vpop.f32.mrb[0].mxu0
        %v4807 = vadd.f32 0.0, %v4806
        %v4808 = vpop.f32.mrb[0].mxu0
        %v4809 = vpop.f32.mrb[0].mxu0
        %4810 = vdwg.mxu0
        %4811 = vmatprep.subr.bf16.mxu0 0
        %4812 = vmatpush1.bf16.msra.mxu0 %v4727
        %4813 = vmatprep.subr.bf16.mxu0 0
        %4814 = vmatpush1.bf16.msra.mxu0 0
        %4815 = vmatprep.subr.bf16.mxu0 0
        %4816 = vmatpush1.bf16.msra.mxu0 0
        %4817 = vmatprep.subr.bf16.mxu0 0
        %4818 = vmatpush1.bf16.msra.mxu0 0
        %4819 = vmatprep.subr.bf16.mxu0 0
        %4820 = vmatpush1.bf16.msra.mxu0 0
        %4821 = vmatprep.subr.bf16.mxu0 0
        %4822 = vmatpush1.bf16.msra.mxu0 0
        %4823 = vmatprep.subr.bf16.mxu0 0
        %4824 = vmatpush1.bf16.msra.mxu0 0
        %4825 = vmatprep.subr.bf16.mxu0 0
        %4826 = vmatpush1.bf16.msra.mxu0 0
        %4827 = vmatprep.subr.bf16.mxu0 0
        %4828 = vmatpush1.bf16.msra.mxu0 0
        %4829 = vmatprep.subr.bf16.mxu0 0
        %4830 = vmatpush1.bf16.msra.mxu0 0
        %4831 = vmatprep.subr.bf16.mxu0 0
        %4832 = vmatpush1.bf16.msra.mxu0 0
        %4833 = vmatprep.subr.bf16.mxu0 0
        %4834 = vmatpush1.bf16.msra.mxu0 0
        %4835 = vmatprep.subr.bf16.mxu0 0
        %4836 = vmatpush1.bf16.msra.mxu0 0
        %4837 = vmatprep.subr.bf16.mxu0 0
        %4838 = vmatpush1.bf16.msra.mxu0 0
        %4839 = vmatprep.subr.bf16.mxu0 0
        %4840 = vmatpush1.bf16.msra.mxu0 0
        %4841 = vmatprep.subr.bf16.mxu0 0
        %4842 = vmatpush1.bf16.msra.mxu0 0
        %4843 = vmatprep.mubr.bf16.mxu0 0
        %4844 = vmatmul.mubr.bf16.gmra.mrb[0].mxu0 %v4712
        %v4845 = vpop.f32.mrb[0].mxu0
        %v4846 = vadd.f32 0.0, %v4845
        %v4847 = vpop.f32.mrb[0].mxu0
        %v4848 = vpop.f32.mrb[0].mxu0
        %v4849 = vpop.f32.mrb[0].mxu0
        %4850 = vdwg.mxu0
        %v4851 = vadd.f32 %v4657, %v4764
        %v4852 = vadd.f32 %v4658, %v4766
        %v4853 = vadd.f32 %v4659, %v4805
        %v4854 = vadd.f32 %v4660, %v4807
        %v4855 = vadd.f32 %v4661, %v4846
        %s4856 = scalar_lea.vmem %s2, 24
        %v4857 = vld [vmem:[%s4856] sm:$0xf]
        %v4858 = vld [vmem:[#allocation2] sm:$0xff]
        %v4859 = vld [vmem:[#allocation2 + $0x8] sm:$0xf]
        %v4862 = vcombine.high %v4858, %v4858
        %v4864 = vunpack.c.l.s4 1983009808
        %v4865 = vunpack.c.0.s8 %v4864
        %v4866 = vlaneseq
        %v4867 = vshrl.u32 %v4866, 7
        %v4868 = vsub.s32 %v4865, %v4867
        %v4869 = vrot.slane %v4858, %v4868
        %v4871 = vunpack.c.l.s4 1983009808
        %v4872 = vunpack.c.0.s8 %v4871
        %v4873 = vlaneseq
        %v4874 = vshrl.u32 %v4873, 7
        %v4875 = vsub.s32 %v4872, %v4874
        %v4876 = vrot.slane %v4862, %v4875
        %v4877 = vcombine.high %v4869, %v4869
        %v4878 = vcombine.high %v4876, %v4876
        %v4880 = vunpack.c.l.s4 1983009808
        %v4881 = vunpack.c.0.s8 %v4880
        %v4882 = vlaneseq
        %v4883 = vshrl.u32 %v4882, 7
        %v4884 = vsub.s32 %v4881, %v4883
        %v4885 = vrot.slane %v4859, %v4884
        %v4886 = vcombine.high %v4885, %v4885
        %4887 = vrot.lane.b32.xlu0 %v4869, 76
        %v4888 = vpop.permute.xlu0 %4887
        %4889 = vrot.lane.b32.xlu0 %v4877, 76
        %v4890 = vpop.permute.xlu0 %4889
        %4891 = vrot.lane.b32.xlu0 %v4876, 76
        %v4892 = vpop.permute.xlu0 %4891
        %4893 = vrot.lane.b32.xlu0 %v4878, 76
        %v4894 = vpop.permute.xlu0 %4893
        %4895 = vrot.lane.b32.xlu0 %v4885, 76
        %v4896 = vpop.permute.xlu0 %4895
        %4897 = vrot.lane.b32.xlu0 %v4886, 76
        %v4898 = vpop.permute.xlu0 %4897
        %vm4899 = vcmask 621568
        %v4900 = vsel %vm4899, %v4888, %v4890
        %v4901 = vsel %vm4899, %v4890, %v4892
        %v4902 = vsel %vm4899, %v4892, %v4894
        %v4903 = vsel %vm4899, %v4894, %v4896
        %v4904 = vsel %vm4899, %v4896, %v4898
        %v4906 = vsel %vm3803, %v4857, 0
        %v4909 = vsel %vm315, %v4900, 0
        %v4912 = vsel %vm315, %v4901, 0
        %v4915 = vsel %vm315, %v4902, 0
        %v4918 = vsel %vm315, %v4903, 0
        %v4921 = vsel %vm315, %v4904, 0
        %4923 = vmatprep.subr.bf16.mxu0 %v4912
        %4924 = vmatpush1.bf16.msra.mxu0 %v4909
        %4925 = vmatprep.subr.bf16.mxu0 0
        %4926 = vmatpush1.bf16.msra.mxu0 0
        %4927 = vmatprep.subr.bf16.mxu0 0
        %4928 = vmatpush1.bf16.msra.mxu0 0
        %4929 = vmatprep.subr.bf16.mxu0 0
        %4930 = vmatpush1.bf16.msra.mxu0 0
        %4931 = vmatprep.subr.bf16.mxu0 0
        %4932 = vmatpush1.bf16.msra.mxu0 0
        %4933 = vmatprep.subr.bf16.mxu0 0
        %4934 = vmatpush1.bf16.msra.mxu0 0
        %4935 = vmatprep.subr.bf16.mxu0 0
        %4936 = vmatpush1.bf16.msra.mxu0 0
        %4937 = vmatprep.subr.bf16.mxu0 0
        %4938 = vmatpush1.bf16.msra.mxu0 0
        %4939 = vmatprep.subr.bf16.mxu0 0
        %4940 = vmatpush1.bf16.msra.mxu0 0
        %4941 = vmatprep.subr.bf16.mxu0 0
        %4942 = vmatpush1.bf16.msra.mxu0 0
        %4943 = vmatprep.subr.bf16.mxu0 0
        %4944 = vmatpush1.bf16.msra.mxu0 0
        %4945 = vmatprep.subr.bf16.mxu0 0
        %4946 = vmatpush1.bf16.msra.mxu0 0
        %4947 = vmatprep.subr.bf16.mxu0 0
        %4948 = vmatpush1.bf16.msra.mxu0 0
        %4949 = vmatprep.subr.bf16.mxu0 0
        %4950 = vmatpush1.bf16.msra.mxu0 0
        %4951 = vmatprep.subr.bf16.mxu0 0
        %4952 = vmatpush1.bf16.msra.mxu0 0
        %4953 = vmatprep.subr.bf16.mxu0 0
        %4954 = vmatpush1.bf16.msra.mxu0 0
        %4955 = vmatprep.mubr.bf16.mxu0 0
        %4956 = vmatmul.mubr.bf16.gmra.mrb[0].mxu0 %v4906
        %v4957 = vpop.f32.mrb[0].mxu0
        %v4958 = vadd.f32 0.0, %v4957
        %v4959 = vpop.f32.mrb[0].mxu0
        %v4960 = vadd.f32 0.0, %v4959
        %v4961 = vpop.f32.mrb[0].mxu0
        %v4962 = vpop.f32.mrb[0].mxu0
        %4963 = vdwg.mxu0
        %4964 = vmatprep.subr.bf16.mxu0 %v4918
        %4965 = vmatpush1.bf16.msra.mxu0 %v4915
        %4966 = vmatprep.subr.bf16.mxu0 0
        %4967 = vmatpush1.bf16.msra.mxu0 0
        %4968 = vmatprep.subr.bf16.mxu0 0
        %4969 = vmatpush1.bf16.msra.mxu0 0
        %4970 = vmatprep.subr.bf16.mxu0 0
        %4971 = vmatpush1.bf16.msra.mxu0 0
        %4972 = vmatprep.subr.bf16.mxu0 0
        %4973 = vmatpush1.bf16.msra.mxu0 0
        %4974 = vmatprep.subr.bf16.mxu0 0
        %4975 = vmatpush1.bf16.msra.mxu0 0
        %4976 = vmatprep.subr.bf16.mxu0 0
        %4977 = vmatpush1.bf16.msra.mxu0 0
        %4978 = vmatprep.subr.bf16.mxu0 0
        %4979 = vmatpush1.bf16.msra.mxu0 0
        %4980 = vmatprep.subr.bf16.mxu0 0
        %4981 = vmatpush1.bf16.msra.mxu0 0
        %4982 = vmatprep.subr.bf16.mxu0 0
        %4983 = vmatpush1.bf16.msra.mxu0 0
        %4984 = vmatprep.subr.bf16.mxu0 0
        %4985 = vmatpush1.bf16.msra.mxu0 0
        %4986 = vmatprep.subr.bf16.mxu0 0
        %4987 = vmatpush1.bf16.msra.mxu0 0
        %4988 = vmatprep.subr.bf16.mxu0 0
        %4989 = vmatpush1.bf16.msra.mxu0 0
        %4990 = vmatprep.subr.bf16.mxu0 0
        %4991 = vmatpush1.bf16.msra.mxu0 0
        %4992 = vmatprep.subr.bf16.mxu0 0
        %4993 = vmatpush1.bf16.msra.mxu0 0
        %4994 = vmatprep.subr.bf16.mxu0 0
        %4995 = vmatpush1.bf16.msra.mxu0 0
        %4996 = vmatprep.mubr.bf16.mxu0 0
        %4997 = vmatmul.mubr.bf16.gmra.mrb[0].mxu0 %v4906
        %v4998 = vpop.f32.mrb[0].mxu0
        %v4999 = vadd.f32 0.0, %v4998
        %v5000 = vpop.f32.mrb[0].mxu0
        %v5001 = vadd.f32 0.0, %v5000
        %v5002 = vpop.f32.mrb[0].mxu0
        %v5003 = vpop.f32.mrb[0].mxu0
        %5004 = vdwg.mxu0
        %5005 = vmatprep.subr.bf16.mxu0 0
        %5006 = vmatpush1.bf16.msra.mxu0 %v4921
        %5007 = vmatprep.subr.bf16.mxu0 0
        %5008 = vmatpush1.bf16.msra.mxu0 0
        %5009 = vmatprep.subr.bf16.mxu0 0
        %5010 = vmatpush1.bf16.msra.mxu0 0
        %5011 = vmatprep.subr.bf16.mxu0 0
        %5012 = vmatpush1.bf16.msra.mxu0 0
        %5013 = vmatprep.subr.bf16.mxu0 0
        %5014 = vmatpush1.bf16.msra.mxu0 0
        %5015 = vmatprep.subr.bf16.mxu0 0
        %5016 = vmatpush1.bf16.msra.mxu0 0
        %5017 = vmatprep.subr.bf16.mxu0 0
        %5018 = vmatpush1.bf16.msra.mxu0 0
        %5019 = vmatprep.subr.bf16.mxu0 0
        %5020 = vmatpush1.bf16.msra.mxu0 0
        %5021 = vmatprep.subr.bf16.mxu0 0
        %5022 = vmatpush1.bf16.msra.mxu0 0
        %5023 = vmatprep.subr.bf16.mxu0 0
        %5024 = vmatpush1.bf16.msra.mxu0 0
        %5025 = vmatprep.subr.bf16.mxu0 0
        %5026 = vmatpush1.bf16.msra.mxu0 0
        %5027 = vmatprep.subr.bf16.mxu0 0
        %5028 = vmatpush1.bf16.msra.mxu0 0
        %5029 = vmatprep.subr.bf16.mxu0 0
        %5030 = vmatpush1.bf16.msra.mxu0 0
        %5031 = vmatprep.subr.bf16.mxu0 0
        %5032 = vmatpush1.bf16.msra.mxu0 0
        %5033 = vmatprep.subr.bf16.mxu0 0
        %5034 = vmatpush1.bf16.msra.mxu0 0
        %5035 = vmatprep.subr.bf16.mxu0 0
        %5036 = vmatpush1.bf16.msra.mxu0 0
        %5037 = vmatprep.mubr.bf16.mxu0 0
        %5038 = vmatmul.mubr.bf16.gmra.mrb[0].mxu0 %v4906
        %v5039 = vpop.f32.mrb[0].mxu0
        %v5040 = vadd.f32 0.0, %v5039
        %v5041 = vpop.f32.mrb[0].mxu0
        %v5042 = vpop.f32.mrb[0].mxu0
        %v5043 = vpop.f32.mrb[0].mxu0
        %5044 = vdwg.mxu0
        %v5045 = vadd.f32 %v4851, %v4958
        %v5046 = vadd.f32 %v4852, %v4960
        %v5047 = vadd.f32 %v4853, %v4999
        %v5048 = vadd.f32 %v4854, %v5001
        %v5049 = vadd.f32 %v4855, %v5040
        %s5050 = scalar_lea.vmem %s2, 28
        %v5051 = vld [vmem:[%s5050] sm:$0xf]
        %v5052 = vld [vmem:[#allocation2] sm:$0xff]
        %v5053 = vld [vmem:[#allocation2 + $0x8] sm:$0xf]
        %v5056 = vcombine.high %v5052, %v5052
        %v5058 = vunpack.c.l.s4 1983009808
        %v5059 = vunpack.c.0.s8 %v5058
        %v5060 = vlaneseq
        %v5061 = vshrl.u32 %v5060, 7
        %v5062 = vsub.s32 %v5059, %v5061
        %v5063 = vrot.slane %v5052, %v5062
        %v5065 = vunpack.c.l.s4 1983009808
        %v5066 = vunpack.c.0.s8 %v5065
        %v5067 = vlaneseq
        %v5068 = vshrl.u32 %v5067, 7
        %v5069 = vsub.s32 %v5066, %v5068
        %v5070 = vrot.slane %v5056, %v5069
        %v5071 = vcombine.high %v5063, %v5063
        %v5072 = vcombine.high %v5070, %v5070
        %v5074 = vunpack.c.l.s4 1983009808
        %v5075 = vunpack.c.0.s8 %v5074
        %v5076 = vlaneseq
        %v5077 = vshrl.u32 %v5076, 7
        %v5078 = vsub.s32 %v5075, %v5077
        %v5079 = vrot.slane %v5053, %v5078
        %v5080 = vcombine.high %v5079, %v5079
        %5081 = vrot.lane.b32.xlu0 %v5063, 75
        %v5082 = vpop.permute.xlu0 %5081
        %5083 = vrot.lane.b32.xlu0 %v5071, 75
        %v5084 = vpop.permute.xlu0 %5083
        %5085 = vrot.lane.b32.xlu0 %v5070, 75
        %v5086 = vpop.permute.xlu0 %5085
        %5087 = vrot.lane.b32.xlu0 %v5072, 75
        %v5088 = vpop.permute.xlu0 %5087
        %5089 = vrot.lane.b32.xlu0 %v5079, 75
        %v5090 = vpop.permute.xlu0 %5089
        %5091 = vrot.lane.b32.xlu0 %v5080, 75
        %v5092 = vpop.permute.xlu0 %5091
        %vm5093 = vcmask 613376
        %v5094 = vsel %vm5093, %v5082, %v5084
        %v5095 = vsel %vm5093, %v5084, %v5086
        %v5096 = vsel %vm5093, %v5086, %v5088
        %v5097 = vsel %vm5093, %v5088, %v5090
        %v5098 = vsel %vm5093, %v5090, %v5092
        %v5100 = vsel %vm3803, %v5051, 0
        %v5103 = vsel %vm315, %v5094, 0
        %v5106 = vsel %vm315, %v5095, 0
        %v5109 = vsel %vm315, %v5096, 0
        %v5112 = vsel %vm315, %v5097, 0
        %v5115 = vsel %vm315, %v5098, 0
        %5117 = vmatprep.subr.bf16.mxu0 %v5106
        %5118 = vmatpush1.bf16.msra.mxu0 %v5103
        %5119 = vmatprep.subr.bf16.mxu0 0
        %5120 = vmatpush1.bf16.msra.mxu0 0
        %5121 = vmatprep.subr.bf16.mxu0 0
        %5122 = vmatpush1.bf16.msra.mxu0 0
        %5123 = vmatprep.subr.bf16.mxu0 0
        %5124 = vmatpush1.bf16.msra.mxu0 0
        %5125 = vmatprep.subr.bf16.mxu0 0
        %5126 = vmatpush1.bf16.msra.mxu0 0
        %5127 = vmatprep.subr.bf16.mxu0 0
        %5128 = vmatpush1.bf16.msra.mxu0 0
        %5129 = vmatprep.subr.bf16.mxu0 0
        %5130 = vmatpush1.bf16.msra.mxu0 0
        %5131 = vmatprep.subr.bf16.mxu0 0
        %5132 = vmatpush1.bf16.msra.mxu0 0
        %5133 = vmatprep.subr.bf16.mxu0 0
        %5134 = vmatpush1.bf16.msra.mxu0 0
        %5135 = vmatprep.subr.bf16.mxu0 0
        %5136 = vmatpush1.bf16.msra.mxu0 0
        %5137 = vmatprep.subr.bf16.mxu0 0
        %5138 = vmatpush1.bf16.msra.mxu0 0
        %5139 = vmatprep.subr.bf16.mxu0 0
        %5140 = vmatpush1.bf16.msra.mxu0 0
        %5141 = vmatprep.subr.bf16.mxu0 0
        %5142 = vmatpush1.bf16.msra.mxu0 0
        %5143 = vmatprep.subr.bf16.mxu0 0
        %5144 = vmatpush1.bf16.msra.mxu0 0
        %5145 = vmatprep.subr.bf16.mxu0 0
        %5146 = vmatpush1.bf16.msra.mxu0 0
        %5147 = vmatprep.subr.bf16.mxu0 0
        %5148 = vmatpush1.bf16.msra.mxu0 0
        %5149 = vmatprep.mubr.bf16.mxu0 0
        %5150 = vmatmul.mubr.bf16.gmra.mrb[0].mxu0 %v5100
        %v5151 = vpop.f32.mrb[0].mxu0
        %v5152 = vadd.f32 0.0, %v5151
        %v5153 = vpop.f32.mrb[0].mxu0
        %v5154 = vadd.f32 0.0, %v5153
        %v5155 = vpop.f32.mrb[0].mxu0
        %v5156 = vpop.f32.mrb[0].mxu0
        %5157 = vdwg.mxu0
        %5158 = vmatprep.subr.bf16.mxu0 %v5112
        %5159 = vmatpush1.bf16.msra.mxu0 %v5109
        %5160 = vmatprep.subr.bf16.mxu0 0
        %5161 = vmatpush1.bf16.msra.mxu0 0
        %5162 = vmatprep.subr.bf16.mxu0 0
        %5163 = vmatpush1.bf16.msra.mxu0 0
        %5164 = vmatprep.subr.bf16.mxu0 0
        %5165 = vmatpush1.bf16.msra.mxu0 0
        %5166 = vmatprep.subr.bf16.mxu0 0
        %5167 = vmatpush1.bf16.msra.mxu0 0
        %5168 = vmatprep.subr.bf16.mxu0 0
        %5169 = vmatpush1.bf16.msra.mxu0 0
        %5170 = vmatprep.subr.bf16.mxu0 0
        %5171 = vmatpush1.bf16.msra.mxu0 0
        %5172 = vmatprep.subr.bf16.mxu0 0
        %5173 = vmatpush1.bf16.msra.mxu0 0
        %5174 = vmatprep.subr.bf16.mxu0 0
        %5175 = vmatpush1.bf16.msra.mxu0 0
        %5176 = vmatprep.subr.bf16.mxu0 0
        %5177 = vmatpush1.bf16.msra.mxu0 0
        %5178 = vmatprep.subr.bf16.mxu0 0
        %5179 = vmatpush1.bf16.msra.mxu0 0
        %5180 = vmatprep.subr.bf16.mxu0 0
        %5181 = vmatpush1.bf16.msra.mxu0 0
        %5182 = vmatprep.subr.bf16.mxu0 0
        %5183 = vmatpush1.bf16.msra.mxu0 0
        %5184 = vmatprep.subr.bf16.mxu0 0
        %5185 = vmatpush1.bf16.msra.mxu0 0
        %5186 = vmatprep.subr.bf16.mxu0 0
        %5187 = vmatpush1.bf16.msra.mxu0 0
        %5188 = vmatprep.subr.bf16.mxu0 0
        %5189 = vmatpush1.bf16.msra.mxu0 0
        %5190 = vmatprep.mubr.bf16.mxu0 0
        %5191 = vmatmul.mubr.bf16.gmra.mrb[0].mxu0 %v5100
        %v5192 = vpop.f32.mrb[0].mxu0
        %v5193 = vadd.f32 0.0, %v5192
        %v5194 = vpop.f32.mrb[0].mxu0
        %v5195 = vadd.f32 0.0, %v5194
        %v5196 = vpop.f32.mrb[0].mxu0
        %v5197 = vpop.f32.mrb[0].mxu0
        %5198 = vdwg.mxu0
        %5199 = vmatprep.subr.bf16.mxu0 0
        %5200 = vmatpush1.bf16.msra.mxu0 %v5115
        %5201 = vmatprep.subr.bf16.mxu0 0
        %5202 = vmatpush1.bf16.msra.mxu0 0
        %5203 = vmatprep.subr.bf16.mxu0 0
        %5204 = vmatpush1.bf16.msra.mxu0 0
        %5205 = vmatprep.subr.bf16.mxu0 0
        %5206 = vmatpush1.bf16.msra.mxu0 0
        %5207 = vmatprep.subr.bf16.mxu0 0
        %5208 = vmatpush1.bf16.msra.mxu0 0
        %5209 = vmatprep.subr.bf16.mxu0 0
        %5210 = vmatpush1.bf16.msra.mxu0 0
        %5211 = vmatprep.subr.bf16.mxu0 0
        %5212 = vmatpush1.bf16.msra.mxu0 0
        %5213 = vmatprep.subr.bf16.mxu0 0
        %5214 = vmatpush1.bf16.msra.mxu0 0
        %5215 = vmatprep.subr.bf16.mxu0 0
        %5216 = vmatpush1.bf16.msra.mxu0 0
        %5217 = vmatprep.subr.bf16.mxu0 0
        %5218 = vmatpush1.bf16.msra.mxu0 0
        %5219 = vmatprep.subr.bf16.mxu0 0
        %5220 = vmatpush1.bf16.msra.mxu0 0
        %5221 = vmatprep.subr.bf16.mxu0 0
        %5222 = vmatpush1.bf16.msra.mxu0 0
        %5223 = vmatprep.subr.bf16.mxu0 0
        %5224 = vmatpush1.bf16.msra.mxu0 0
        %5225 = vmatprep.subr.bf16.mxu0 0
        %5226 = vmatpush1.bf16.msra.mxu0 0
        %5227 = vmatprep.subr.bf16.mxu0 0
        %5228 = vmatpush1.bf16.msra.mxu0 0
        %5229 = vmatprep.subr.bf16.mxu0 0
        %5230 = vmatpush1.bf16.msra.mxu0 0
        %5231 = vmatprep.mubr.bf16.mxu0 0
        %5232 = vmatmul.mubr.bf16.gmra.mrb[0].mxu0 %v5100
        %v5233 = vpop.f32.mrb[0].mxu0
        %v5234 = vadd.f32 0.0, %v5233
        %v5235 = vpop.f32.mrb[0].mxu0
        %v5236 = vpop.f32.mrb[0].mxu0
        %v5237 = vpop.f32.mrb[0].mxu0
        %5238 = vdwg.mxu0
        %v5239 = vadd.f32 %v5045, %v5152
        %v5240 = vadd.f32 %v5046, %v5154
        %v5241 = vadd.f32 %v5047, %v5193
        %v5242 = vadd.f32 %v5048, %v5195
        %v5243 = vadd.f32 %v5049, %v5234
        %s5244 = scalar_lea.vmem %s2, 32
        %v5245 = vld [vmem:[%s5244] sm:$0xf]
        %v5246 = vld [vmem:[#allocation2] sm:$0xff]
        %v5247 = vld [vmem:[#allocation2 + $0x8] sm:$0xf]
        %v5250 = vcombine.high %v5246, %v5246
        %v5252 = vunpack.c.l.s4 1983009808
        %v5253 = vunpack.c.0.s8 %v5252
        %v5254 = vlaneseq
        %v5255 = vshrl.u32 %v5254, 7
        %v5256 = vsub.s32 %v5253, %v5255
        %v5257 = vrot.slane %v5246, %v5256
        %v5259 = vunpack.c.l.s4 1983009808
        %v5260 = vunpack.c.0.s8 %v5259
        %v5261 = vlaneseq
        %v5262 = vshrl.u32 %v5261, 7
        %v5263 = vsub.s32 %v5260, %v5262
        %v5264 = vrot.slane %v5250, %v5263
        %v5265 = vcombine.high %v5257, %v5257
        %v5266 = vcombine.high %v5264, %v5264
        %v5268 = vunpack.c.l.s4 1983009808
        %v5269 = vunpack.c.0.s8 %v5268
        %v5270 = vlaneseq
        %v5271 = vshrl.u32 %v5270, 7
        %v5272 = vsub.s32 %v5269, %v5271
        %v5273 = vrot.slane %v5247, %v5272
        %v5274 = vcombine.high %v5273, %v5273
        %5275 = vrot.lane.b32.xlu0 %v5257, 74
        %v5276 = vpop.permute.xlu0 %5275
        %5277 = vrot.lane.b32.xlu0 %v5265, 74
        %v5278 = vpop.permute.xlu0 %5277
        %5279 = vrot.lane.b32.xlu0 %v5264, 74
        %v5280 = vpop.permute.xlu0 %5279
        %5281 = vrot.lane.b32.xlu0 %v5266, 74
        %v5282 = vpop.permute.xlu0 %5281
        %5283 = vrot.lane.b32.xlu0 %v5273, 74
        %v5284 = vpop.permute.xlu0 %5283
        %5285 = vrot.lane.b32.xlu0 %v5274, 74
        %v5286 = vpop.permute.xlu0 %5285
        %vm5287 = vcmask 605184
        %v5288 = vsel %vm5287, %v5276, %v5278
        %v5289 = vsel %vm5287, %v5278, %v5280
        %v5290 = vsel %vm5287, %v5280, %v5282
        %v5291 = vsel %vm5287, %v5282, %v5284
        %v5292 = vsel %vm5287, %v5284, %v5286
        %v5294 = vsel %vm3803, %v5245, 0
        %v5297 = vsel %vm315, %v5288, 0
        %v5300 = vsel %vm315, %v5289, 0
        %v5303 = vsel %vm315, %v5290, 0
        %v5306 = vsel %vm315, %v5291, 0
        %v5309 = vsel %vm315, %v5292, 0
        %5311 = vmatprep.subr.bf16.mxu0 %v5300
        %5312 = vmatpush1.bf16.msra.mxu0 %v5297
        %5313 = vmatprep.subr.bf16.mxu0 0
        %5314 = vmatpush1.bf16.msra.mxu0 0
        %5315 = vmatprep.subr.bf16.mxu0 0
        %5316 = vmatpush1.bf16.msra.mxu0 0
        %5317 = vmatprep.subr.bf16.mxu0 0
        %5318 = vmatpush1.bf16.msra.mxu0 0
        %5319 = vmatprep.subr.bf16.mxu0 0
        %5320 = vmatpush1.bf16.msra.mxu0 0
        %5321 = vmatprep.subr.bf16.mxu0 0
        %5322 = vmatpush1.bf16.msra.mxu0 0
        %5323 = vmatprep.subr.bf16.mxu0 0
        %5324 = vmatpush1.bf16.msra.mxu0 0
        %5325 = vmatprep.subr.bf16.mxu0 0
        %5326 = vmatpush1.bf16.msra.mxu0 0
        %5327 = vmatprep.subr.bf16.mxu0 0
        %5328 = vmatpush1.bf16.msra.mxu0 0
        %5329 = vmatprep.subr.bf16.mxu0 0
        %5330 = vmatpush1.bf16.msra.mxu0 0
        %5331 = vmatprep.subr.bf16.mxu0 0
        %5332 = vmatpush1.bf16.msra.mxu0 0
        %5333 = vmatprep.subr.bf16.mxu0 0
        %5334 = vmatpush1.bf16.msra.mxu0 0
        %5335 = vmatprep.subr.bf16.mxu0 0
        %5336 = vmatpush1.bf16.msra.mxu0 0
        %5337 = vmatprep.subr.bf16.mxu0 0
        %5338 = vmatpush1.bf16.msra.mxu0 0
        %5339 = vmatprep.subr.bf16.mxu0 0
        %5340 = vmatpush1.bf16.msra.mxu0 0
        %5341 = vmatprep.subr.bf16.mxu0 0
        %5342 = vmatpush1.bf16.msra.mxu0 0
        %5343 = vmatprep.mubr.bf16.mxu0 0
        %5344 = vmatmul.mubr.bf16.gmra.mrb[0].mxu0 %v5294
        %v5345 = vpop.f32.mrb[0].mxu0
        %v5346 = vadd.f32 0.0, %v5345
        %v5347 = vpop.f32.mrb[0].mxu0
        %v5348 = vadd.f32 0.0, %v5347
        %v5349 = vpop.f32.mrb[0].mxu0
        %v5350 = vpop.f32.mrb[0].mxu0
        %5351 = vdwg.mxu0
        %5352 = vmatprep.subr.bf16.mxu0 %v5306
        %5353 = vmatpush1.bf16.msra.mxu0 %v5303
        %5354 = vmatprep.subr.bf16.mxu0 0
        %5355 = vmatpush1.bf16.msra.mxu0 0
        %5356 = vmatprep.subr.bf16.mxu0 0
        %5357 = vmatpush1.bf16.msra.mxu0 0
        %5358 = vmatprep.subr.bf16.mxu0 0
        %5359 = vmatpush1.bf16.msra.mxu0 0
        %5360 = vmatprep.subr.bf16.mxu0 0
        %5361 = vmatpush1.bf16.msra.mxu0 0
        %5362 = vmatprep.subr.bf16.mxu0 0
        %5363 = vmatpush1.bf16.msra.mxu0 0
        %5364 = vmatprep.subr.bf16.mxu0 0
        %5365 = vmatpush1.bf16.msra.mxu0 0
        %5366 = vmatprep.subr.bf16.mxu0 0
        %5367 = vmatpush1.bf16.msra.mxu0 0
        %5368 = vmatprep.subr.bf16.mxu0 0
        %5369 = vmatpush1.bf16.msra.mxu0 0
        %5370 = vmatprep.subr.bf16.mxu0 0
        %5371 = vmatpush1.bf16.msra.mxu0 0
        %5372 = vmatprep.subr.bf16.mxu0 0
        %5373 = vmatpush1.bf16.msra.mxu0 0
        %5374 = vmatprep.subr.bf16.mxu0 0
        %5375 = vmatpush1.bf16.msra.mxu0 0
        %5376 = vmatprep.subr.bf16.mxu0 0
        %5377 = vmatpush1.bf16.msra.mxu0 0
        %5378 = vmatprep.subr.bf16.mxu0 0
        %5379 = vmatpush1.bf16.msra.mxu0 0
        %5380 = vmatprep.subr.bf16.mxu0 0
        %5381 = vmatpush1.bf16.msra.mxu0 0
        %5382 = vmatprep.subr.bf16.mxu0 0
        %5383 = vmatpush1.bf16.msra.mxu0 0
        %5384 = vmatprep.mubr.bf16.mxu0 0
        %5385 = vmatmul.mubr.bf16.gmra.mrb[0].mxu0 %v5294
        %v5386 = vpop.f32.mrb[0].mxu0
        %v5387 = vadd.f32 0.0, %v5386
        %v5388 = vpop.f32.mrb[0].mxu0
        %v5389 = vadd.f32 0.0, %v5388
        %v5390 = vpop.f32.mrb[0].mxu0
        %v5391 = vpop.f32.mrb[0].mxu0
        %5392 = vdwg.mxu0
        %5393 = vmatprep.subr.bf16.mxu0 0
        %5394 = vmatpush1.bf16.msra.mxu0 %v5309
        %5395 = vmatprep.subr.bf16.mxu0 0
        %5396 = vmatpush1.bf16.msra.mxu0 0
        %5397 = vmatprep.subr.bf16.mxu0 0
        %5398 = vmatpush1.bf16.msra.mxu0 0
        %5399 = vmatprep.subr.bf16.mxu0 0
        %5400 = vmatpush1.bf16.msra.mxu0 0
        %5401 = vmatprep.subr.bf16.mxu0 0
        %5402 = vmatpush1.bf16.msra.mxu0 0
        %5403 = vmatprep.subr.bf16.mxu0 0
        %5404 = vmatpush1.bf16.msra.mxu0 0
        %5405 = vmatprep.subr.bf16.mxu0 0
        %5406 = vmatpush1.bf16.msra.mxu0 0
        %5407 = vmatprep.subr.bf16.mxu0 0
        %5408 = vmatpush1.bf16.msra.mxu0 0
        %5409 = vmatprep.subr.bf16.mxu0 0
        %5410 = vmatpush1.bf16.msra.mxu0 0
        %5411 = vmatprep.subr.bf16.mxu0 0
        %5412 = vmatpush1.bf16.msra.mxu0 0
        %5413 = vmatprep.subr.bf16.mxu0 0
        %5414 = vmatpush1.bf16.msra.mxu0 0
        %5415 = vmatprep.subr.bf16.mxu0 0
        %5416 = vmatpush1.bf16.msra.mxu0 0
        %5417 = vmatprep.subr.bf16.mxu0 0
        %5418 = vmatpush1.bf16.msra.mxu0 0
        %5419 = vmatprep.subr.bf16.mxu0 0
        %5420 = vmatpush1.bf16.msra.mxu0 0
        %5421 = vmatprep.subr.bf16.mxu0 0
        %5422 = vmatpush1.bf16.msra.mxu0 0
        %5423 = vmatprep.subr.bf16.mxu0 0
        %5424 = vmatpush1.bf16.msra.mxu0 0
        %5425 = vmatprep.mubr.bf16.mxu0 0
        %5426 = vmatmul.mubr.bf16.gmra.mrb[0].mxu0 %v5294
        %v5427 = vpop.f32.mrb[0].mxu0
        %v5428 = vadd.f32 0.0, %v5427
        %v5429 = vpop.f32.mrb[0].mxu0
        %v5430 = vpop.f32.mrb[0].mxu0
        %v5431 = vpop.f32.mrb[0].mxu0
        %5432 = vdwg.mxu0
        %v5433 = vadd.f32 %v5239, %v5346
        %v5434 = vadd.f32 %v5240, %v5348
        %v5435 = vadd.f32 %v5241, %v5387
        %v5436 = vadd.f32 %v5242, %v5389
        %v5437 = vadd.f32 %v5243, %v5428
        %v5438 = vld [vmem:[%s3] sm:$0xff]
        %5440 = vset.pattern.permute.xlu0 0
        %5441 = vperm.xlu0 %5440, %v5438
        %v5442 = vpop.permute.xlu0 %5441
        %v5444 = vadd.f32 %v5433, %v5442
        %v5445 = vadd.f32 %v5434, %v5442
        %v5446 = vadd.f32 %v5435, %v5442
        %v5447 = vadd.f32 %v5436, %v5442
        %v5448 = vadd.f32 %v5437, %v5442
        %v5449 = vmax.f32 %v5444, 0.0
        %v5450 = vmax.f32 %v5445, 0.0
        %v5451 = vmax.f32 %v5446, 0.0
        %v5452 = vmax.f32 %v5447, 0.0
        %v5453 = vmax.f32 %v5448, 0.0
        %v5454 = vld [vmem:[%s7] sm:$0x1f]
        %v5456 = vlaneseq
        %v5457 = vshrl.u32 %v5456, 7
        %v5458 = vsub.s32 0, %v5457
        %v5459 = vrot.slane %v5454, %v5458
        %v5460 = vlaneseq
        %v5461 = vshrl.u32 %v5460, 7
        %v5462 = vsub.s32 1, %v5461
        %v5463 = vrot.slane %v5454, %v5462
        %v5464 = vlaneseq
        %v5465 = vshrl.u32 %v5464, 7
        %v5466 = vsub.s32 2, %v5465
        %v5467 = vrot.slane %v5454, %v5466
        %v5468 = vlaneseq
        %v5469 = vshrl.u32 %v5468, 7
        %v5470 = vsub.s32 3, %v5469
        %v5471 = vrot.slane %v5454, %v5470
        %v5472 = vlaneseq
        %v5473 = vshrl.u32 %v5472, 7
        %v5474 = vsub.s32 4, %v5473
        %v5475 = vrot.slane %v5454, %v5474
        %v5481 = vmul.f32 %v5449, %v5459
        %v5482 = vmul.f32 %v5450, %v5463
        %v5483 = vmul.f32 %v5451, %v5467
        %v5484 = vmul.f32 %v5452, %v5471
        %v5485 = vmul.f32 %v5453, %v5475
        %5486 = vst [vmem:[#allocation3] sm:$0xff] 0
        %5487 = vst [vmem:[#allocation3 + $0x8] sm:$0xff] 0
        %5488 = vst [vmem:[#allocation3 + $0x10] sm:$0xff] 0
        %5489 = vst [vmem:[#allocation3 + $0x18] sm:$0xf] 0
        %v5490 = vpack.c.bf16 %v5481, %v5481
        %v5491 = vpack.c.bf16 %v5482, %v5482
        %v5492 = vpack.c.bf16 %v5483, %v5483
        %v5493 = vpack.c.bf16 %v5484, %v5484
        %v5494 = vpack.c.bf16 %v5485, %v5485
        %v5500 = vunpack.c.l.b16 %v5490
        %v5501 = vunpack.c.l.b16 %v5491
        %v5502 = vunpack.c.l.b16 %v5492
        %v5503 = vunpack.c.l.b16 %v5493
        %v5504 = vunpack.c.l.b16 %v5494
        %v5505 = vpack.c.b16 %v5501, %v5500
        %v5506 = vpack.c.b16 %v5503, %v5502
        %v5507 = vpack.c.b16 %v5504, %v5504
        %5511 = vst [vmem:[#allocation3 + $0x4] sm:$0xff] %v5505
        %5512 = vst [vmem:[#allocation3 + $0xc] sm:$0xff] %v5506
        %vm5513 = vcmask 912384
        %5514 = vst.msk [vmem:[#allocation3 + $0x14] sm:$0xf] %vm5513, %v5507
        %v5515 = vld [vmem:[%s4] sm:$0xf]
        %v5516 = vld [vmem:[#allocation3] sm:$0xff]
        %v5517 = vld [vmem:[#allocation3 + $0x8] sm:$0xff]
        %v5518 = vld [vmem:[#allocation3 + $0x10] sm:$0xff]
        %s5519 = scalar_lea.vmem %s4, 4
        %v5520 = vld [vmem:[%s5519] sm:$0xf]
        %v5524 = vunpack.c.l.b16 %v5516
        %v5525 = vunpack.c.h.b16 %v5516
        %v5526 = vunpack.c.l.b16 %v5517
        %v5527 = vunpack.c.h.b16 %v5517
        %v5528 = vunpack.c.l.b16 %v5518
        %v5529 = vunpack.c.h.b16 %v5518
        %v5530 = vpack.c.b16 %v5524, %v5524
        %v5531 = vpack.c.b16 %v5525, %v5525
        %v5532 = vpack.c.b16 %v5526, %v5526
        %v5533 = vpack.c.b16 %v5527, %v5527
        %v5534 = vpack.c.b16 %v5528, %v5528
        %v5535 = vpack.c.b16 %v5529, %v5529
        %5536 = vrot.lane.b32.xlu0 %v5530, 26
        %v5537 = vpop.permute.xlu0 %5536
        %5538 = vrot.lane.b32.xlu0 %v5531, 26
        %v5539 = vpop.permute.xlu0 %5538
        %5540 = vrot.lane.b32.xlu0 %v5532, 26
        %v5541 = vpop.permute.xlu0 %5540
        %5542 = vrot.lane.b32.xlu0 %v5533, 26
        %v5543 = vpop.permute.xlu0 %5542
        %5544 = vrot.lane.b32.xlu0 %v5534, 26
        %v5545 = vpop.permute.xlu0 %5544
        %5546 = vrot.lane.b32.xlu0 %v5535, 26
        %v5547 = vpop.permute.xlu0 %5546
        %vm5548 = vcmask 211968
        %v5549 = vsel %vm5548, %v5537, %v5539
        %v5550 = vsel %vm5548, %v5539, %v5541
        %v5551 = vsel %vm5548, %v5541, %v5543
        %v5552 = vsel %vm5548, %v5543, %v5545
        %v5553 = vsel %vm5548, %v5545, %v5547
        %vm5554 = vcmask 64512
        %v5556 = vsel %vm5554, %v5520, 0
        %vm5558 = vcmask 1043456
        %v5560 = vsel %vm5558, %v5549, 0
        %v5563 = vsel %vm5558, %v5550, 0
        %v5566 = vsel %vm5558, %v5551, 0
        %v5569 = vsel %vm5558, %v5552, 0
        %v5572 = vsel %vm5558, %v5553, 0
        %5574 = vmatprep.subr.bf16.mxu0 %v5563
        %5575 = vmatpush1.bf16.msra.mxu0 %v5560
        %5576 = vmatprep.subr.bf16.mxu0 0
        %5577 = vmatpush1.bf16.msra.mxu0 0
        %5578 = vmatprep.subr.bf16.mxu0 0
        %5579 = vmatpush1.bf16.msra.mxu0 0
        %5580 = vmatprep.subr.bf16.mxu0 0
        %5581 = vmatpush1.bf16.msra.mxu0 0
        %5582 = vmatprep.subr.bf16.mxu0 0
        %5583 = vmatpush1.bf16.msra.mxu0 0
        %5584 = vmatprep.subr.bf16.mxu0 0
        %5585 = vmatpush1.bf16.msra.mxu0 0
        %5586 = vmatprep.subr.bf16.mxu0 0
        %5587 = vmatpush1.bf16.msra.mxu0 0
        %5588 = vmatprep.subr.bf16.mxu0 0
        %5589 = vmatpush1.bf16.msra.mxu0 0
        %5590 = vmatprep.subr.bf16.mxu0 0
        %5591 = vmatpush1.bf16.msra.mxu0 0
        %5592 = vmatprep.subr.bf16.mxu0 0
        %5593 = vmatpush1.bf16.msra.mxu0 0
        %5594 = vmatprep.subr.bf16.mxu0 0
        %5595 = vmatpush1.bf16.msra.mxu0 0
        %5596 = vmatprep.subr.bf16.mxu0 0
        %5597 = vmatpush1.bf16.msra.mxu0 0
        %5598 = vmatprep.subr.bf16.mxu0 0
        %5599 = vmatpush1.bf16.msra.mxu0 0
        %5600 = vmatprep.subr.bf16.mxu0 0
        %5601 = vmatpush1.bf16.msra.mxu0 0
        %5602 = vmatprep.subr.bf16.mxu0 0
        %5603 = vmatpush1.bf16.msra.mxu0 0
        %5604 = vmatprep.subr.bf16.mxu0 0
        %5605 = vmatpush1.bf16.msra.mxu0 0
        %5606 = vmatprep.mubr.bf16.mxu0 0
        %5607 = vmatmul.mubr.bf16.gmra.mrb[0].mxu0 %v5556
        %v5608 = vpop.f32.mrb[0].mxu0
        %v5609 = vadd.f32 0.0, %v5608
        %v5610 = vpop.f32.mrb[0].mxu0
        %v5611 = vadd.f32 0.0, %v5610
        %v5612 = vpop.f32.mrb[0].mxu0
        %v5613 = vpop.f32.mrb[0].mxu0
        %5614 = vdwg.mxu0
        %5615 = vmatprep.subr.bf16.mxu0 %v5569
        %5616 = vmatpush1.bf16.msra.mxu0 %v5566
        %5617 = vmatprep.subr.bf16.mxu0 0
        %5618 = vmatpush1.bf16.msra.mxu0 0
        %5619 = vmatprep.subr.bf16.mxu0 0
        %5620 = vmatpush1.bf16.msra.mxu0 0
        %5621 = vmatprep.subr.bf16.mxu0 0
        %5622 = vmatpush1.bf16.msra.mxu0 0
        %5623 = vmatprep.subr.bf16.mxu0 0
        %5624 = vmatpush1.bf16.msra.mxu0 0
        %5625 = vmatprep.subr.bf16.mxu0 0
        %5626 = vmatpush1.bf16.msra.mxu0 0
        %5627 = vmatprep.subr.bf16.mxu0 0
        %5628 = vmatpush1.bf16.msra.mxu0 0
        %5629 = vmatprep.subr.bf16.mxu0 0
        %5630 = vmatpush1.bf16.msra.mxu0 0
        %5631 = vmatprep.subr.bf16.mxu0 0
        %5632 = vmatpush1.bf16.msra.mxu0 0
        %5633 = vmatprep.subr.bf16.mxu0 0
        %5634 = vmatpush1.bf16.msra.mxu0 0
        %5635 = vmatprep.subr.bf16.mxu0 0
        %5636 = vmatpush1.bf16.msra.mxu0 0
        %5637 = vmatprep.subr.bf16.mxu0 0
        %5638 = vmatpush1.bf16.msra.mxu0 0
        %5639 = vmatprep.subr.bf16.mxu0 0
        %5640 = vmatpush1.bf16.msra.mxu0 0
        %5641 = vmatprep.subr.bf16.mxu0 0
        %5642 = vmatpush1.bf16.msra.mxu0 0
        %5643 = vmatprep.subr.bf16.mxu0 0
        %5644 = vmatpush1.bf16.msra.mxu0 0
        %5645 = vmatprep.subr.bf16.mxu0 0
        %5646 = vmatpush1.bf16.msra.mxu0 0
        %5647 = vmatprep.mubr.bf16.mxu0 0
        %5648 = vmatmul.mubr.bf16.gmra.mrb[0].mxu0 %v5556
        %v5649 = vpop.f32.mrb[0].mxu0
        %v5650 = vadd.f32 0.0, %v5649
        %v5651 = vpop.f32.mrb[0].mxu0
        %v5652 = vadd.f32 0.0, %v5651
        %v5653 = vpop.f32.mrb[0].mxu0
        %v5654 = vpop.f32.mrb[0].mxu0
        %5655 = vdwg.mxu0
        %5656 = vmatprep.subr.bf16.mxu0 0
        %5657 = vmatpush1.bf16.msra.mxu0 %v5572
        %5658 = vmatprep.subr.bf16.mxu0 0
        %5659 = vmatpush1.bf16.msra.mxu0 0
        %5660 = vmatprep.subr.bf16.mxu0 0
        %5661 = vmatpush1.bf16.msra.mxu0 0
        %5662 = vmatprep.subr.bf16.mxu0 0
        %5663 = vmatpush1.bf16.msra.mxu0 0
        %5664 = vmatprep.subr.bf16.mxu0 0
        %5665 = vmatpush1.bf16.msra.mxu0 0
        %5666 = vmatprep.subr.bf16.mxu0 0
        %5667 = vmatpush1.bf16.msra.mxu0 0
        %5668 = vmatprep.subr.bf16.mxu0 0
        %5669 = vmatpush1.bf16.msra.mxu0 0
        %5670 = vmatprep.subr.bf16.mxu0 0
        %5671 = vmatpush1.bf16.msra.mxu0 0
        %5672 = vmatprep.subr.bf16.mxu0 0
        %5673 = vmatpush1.bf16.msra.mxu0 0
        %5674 = vmatprep.subr.bf16.mxu0 0
        %5675 = vmatpush1.bf16.msra.mxu0 0
        %5676 = vmatprep.subr.bf16.mxu0 0
        %5677 = vmatpush1.bf16.msra.mxu0 0
        %5678 = vmatprep.subr.bf16.mxu0 0
        %5679 = vmatpush1.bf16.msra.mxu0 0
        %5680 = vmatprep.subr.bf16.mxu0 0
        %5681 = vmatpush1.bf16.msra.mxu0 0
        %5682 = vmatprep.subr.bf16.mxu0 0
        %5683 = vmatpush1.bf16.msra.mxu0 0
        %5684 = vmatprep.subr.bf16.mxu0 0
        %5685 = vmatpush1.bf16.msra.mxu0 0
        %5686 = vmatprep.subr.bf16.mxu0 0
        %5687 = vmatpush1.bf16.msra.mxu0 0
        %5688 = vmatprep.mubr.bf16.mxu0 0
        %5689 = vmatmul.mubr.bf16.gmra.mrb[0].mxu0 %v5556
        %v5690 = vpop.f32.mrb[0].mxu0
        %v5691 = vadd.f32 0.0, %v5690
        %v5692 = vpop.f32.mrb[0].mxu0
        %v5693 = vpop.f32.mrb[0].mxu0
        %v5694 = vpop.f32.mrb[0].mxu0
        %5695 = vdwg.mxu0
        %5696 = vrot.lane.b32.xlu0 %v5530, 27
        %v5697 = vpop.permute.xlu0 %5696
        %5698 = vrot.lane.b32.xlu0 %v5531, 27
        %v5699 = vpop.permute.xlu0 %5698
        %5700 = vrot.lane.b32.xlu0 %v5532, 27
        %v5701 = vpop.permute.xlu0 %5700
        %5702 = vrot.lane.b32.xlu0 %v5533, 27
        %v5703 = vpop.permute.xlu0 %5702
        %5704 = vrot.lane.b32.xlu0 %v5534, 27
        %v5705 = vpop.permute.xlu0 %5704
        %5706 = vrot.lane.b32.xlu0 %v5535, 27
        %v5707 = vpop.permute.xlu0 %5706
        %vm5708 = vcmask 220160
        %v5709 = vsel %vm5708, %v5697, %v5699
        %v5710 = vsel %vm5708, %v5699, %v5701
        %v5711 = vsel %vm5708, %v5701, %v5703
        %v5712 = vsel %vm5708, %v5703, %v5705
        %v5713 = vsel %vm5708, %v5705, %v5707
        %v5715 = vsel %vm5554, %v5515, 0
        %v5718 = vsel %vm5558, %v5709, 0
        %v5721 = vsel %vm5558, %v5710, 0
        %v5724 = vsel %vm5558, %v5711, 0
        %v5727 = vsel %vm5558, %v5712, 0
        %v5730 = vsel %vm5558, %v5713, 0
        %5732 = vmatprep.subr.bf16.mxu0 %v5721
        %5733 = vmatpush1.bf16.msra.mxu0 %v5718
        %5734 = vmatprep.subr.bf16.mxu0 0
        %5735 = vmatpush1.bf16.msra.mxu0 0
        %5736 = vmatprep.subr.bf16.mxu0 0
        %5737 = vmatpush1.bf16.msra.mxu0 0
        %5738 = vmatprep.subr.bf16.mxu0 0
        %5739 = vmatpush1.bf16.msra.mxu0 0
        %5740 = vmatprep.subr.bf16.mxu0 0
        %5741 = vmatpush1.bf16.msra.mxu0 0
        %5742 = vmatprep.subr.bf16.mxu0 0
        %5743 = vmatpush1.bf16.msra.mxu0 0
        %5744 = vmatprep.subr.bf16.mxu0 0
        %5745 = vmatpush1.bf16.msra.mxu0 0
        %5746 = vmatprep.subr.bf16.mxu0 0
        %5747 = vmatpush1.bf16.msra.mxu0 0
        %5748 = vmatprep.subr.bf16.mxu0 0
        %5749 = vmatpush1.bf16.msra.mxu0 0
        %5750 = vmatprep.subr.bf16.mxu0 0
        %5751 = vmatpush1.bf16.msra.mxu0 0
        %5752 = vmatprep.subr.bf16.mxu0 0
        %5753 = vmatpush1.bf16.msra.mxu0 0
        %5754 = vmatprep.subr.bf16.mxu0 0
        %5755 = vmatpush1.bf16.msra.mxu0 0
        %5756 = vmatprep.subr.bf16.mxu0 0
        %5757 = vmatpush1.bf16.msra.mxu0 0
        %5758 = vmatprep.subr.bf16.mxu0 0
        %5759 = vmatpush1.bf16.msra.mxu0 0
        %5760 = vmatprep.subr.bf16.mxu0 0
        %5761 = vmatpush1.bf16.msra.mxu0 0
        %5762 = vmatprep.subr.bf16.mxu0 0
        %5763 = vmatpush1.bf16.msra.mxu0 0
        %5764 = vmatprep.mubr.bf16.mxu0 0
        %5765 = vmatmul.mubr.bf16.gmra.mrb[0].mxu0 %v5715
        %v5766 = vpop.f32.mrb[0].mxu0
        %v5767 = vadd.f32 %v5609, %v5766
        %v5768 = vpop.f32.mrb[0].mxu0
        %v5769 = vadd.f32 %v5611, %v5768
        %v5770 = vpop.f32.mrb[0].mxu0
        %v5771 = vpop.f32.mrb[0].mxu0
        %5772 = vdwg.mxu0
        %5773 = vmatprep.subr.bf16.mxu0 %v5727
        %5774 = vmatpush1.bf16.msra.mxu0 %v5724
        %5775 = vmatprep.subr.bf16.mxu0 0
        %5776 = vmatpush1.bf16.msra.mxu0 0
        %5777 = vmatprep.subr.bf16.mxu0 0
        %5778 = vmatpush1.bf16.msra.mxu0 0
        %5779 = vmatprep.subr.bf16.mxu0 0
        %5780 = vmatpush1.bf16.msra.mxu0 0
        %5781 = vmatprep.subr.bf16.mxu0 0
        %5782 = vmatpush1.bf16.msra.mxu0 0
        %5783 = vmatprep.subr.bf16.mxu0 0
        %5784 = vmatpush1.bf16.msra.mxu0 0
        %5785 = vmatprep.subr.bf16.mxu0 0
        %5786 = vmatpush1.bf16.msra.mxu0 0
        %5787 = vmatprep.subr.bf16.mxu0 0
        %5788 = vmatpush1.bf16.msra.mxu0 0
        %5789 = vmatprep.subr.bf16.mxu0 0
        %5790 = vmatpush1.bf16.msra.mxu0 0
        %5791 = vmatprep.subr.bf16.mxu0 0
        %5792 = vmatpush1.bf16.msra.mxu0 0
        %5793 = vmatprep.subr.bf16.mxu0 0
        %5794 = vmatpush1.bf16.msra.mxu0 0
        %5795 = vmatprep.subr.bf16.mxu0 0
        %5796 = vmatpush1.bf16.msra.mxu0 0
        %5797 = vmatprep.subr.bf16.mxu0 0
        %5798 = vmatpush1.bf16.msra.mxu0 0
        %5799 = vmatprep.subr.bf16.mxu0 0
        %5800 = vmatpush1.bf16.msra.mxu0 0
        %5801 = vmatprep.subr.bf16.mxu0 0
        %5802 = vmatpush1.bf16.msra.mxu0 0
        %5803 = vmatprep.subr.bf16.mxu0 0
        %5804 = vmatpush1.bf16.msra.mxu0 0
        %5805 = vmatprep.mubr.bf16.mxu0 0
        %5806 = vmatmul.mubr.bf16.gmra.mrb[0].mxu0 %v5715
        %v5807 = vpop.f32.mrb[0].mxu0
        %v5808 = vadd.f32 %v5650, %v5807
        %v5809 = vpop.f32.mrb[0].mxu0
        %v5810 = vadd.f32 %v5652, %v5809
        %v5811 = vpop.f32.mrb[0].mxu0
        %v5812 = vpop.f32.mrb[0].mxu0
        %5813 = vdwg.mxu0
        %5814 = vmatprep.subr.bf16.mxu0 0
        %5815 = vmatpush1.bf16.msra.mxu0 %v5730
        %5816 = vmatprep.subr.bf16.mxu0 0
        %5817 = vmatpush1.bf16.msra.mxu0 0
        %5818 = vmatprep.subr.bf16.mxu0 0
        %5819 = vmatpush1.bf16.msra.mxu0 0
        %5820 = vmatprep.subr.bf16.mxu0 0
        %5821 = vmatpush1.bf16.msra.mxu0 0
        %5822 = vmatprep.subr.bf16.mxu0 0
        %5823 = vmatpush1.bf16.msra.mxu0 0
        %5824 = vmatprep.subr.bf16.mxu0 0
        %5825 = vmatpush1.bf16.msra.mxu0 0
        %5826 = vmatprep.subr.bf16.mxu0 0
        %5827 = vmatpush1.bf16.msra.mxu0 0
        %5828 = vmatprep.subr.bf16.mxu0 0
        %5829 = vmatpush1.bf16.msra.mxu0 0
        %5830 = vmatprep.subr.bf16.mxu0 0
        %5831 = vmatpush1.bf16.msra.mxu0 0
        %5832 = vmatprep.subr.bf16.mxu0 0
        %5833 = vmatpush1.bf16.msra.mxu0 0
        %5834 = vmatprep.subr.bf16.mxu0 0
        %5835 = vmatpush1.bf16.msra.mxu0 0
        %5836 = vmatprep.subr.bf16.mxu0 0
        %5837 = vmatpush1.bf16.msra.mxu0 0
        %5838 = vmatprep.subr.bf16.mxu0 0
        %5839 = vmatpush1.bf16.msra.mxu0 0
        %5840 = vmatprep.subr.bf16.mxu0 0
        %5841 = vmatpush1.bf16.msra.mxu0 0
        %5842 = vmatprep.subr.bf16.mxu0 0
        %5843 = vmatpush1.bf16.msra.mxu0 0
        %5844 = vmatprep.subr.bf16.mxu0 0
        %5845 = vmatpush1.bf16.msra.mxu0 0
        %5846 = vmatprep.mubr.bf16.mxu0 0
        %5847 = vmatmul.mubr.bf16.gmra.mrb[0].mxu0 %v5715
        %v5848 = vpop.f32.mrb[0].mxu0
        %v5849 = vadd.f32 %v5691, %v5848
        %v5850 = vpop.f32.mrb[0].mxu0
        %v5851 = vpop.f32.mrb[0].mxu0
        %v5852 = vpop.f32.mrb[0].mxu0
        %5853 = vdwg.mxu0
        %s5854 = scalar_lea.vmem %s4, 8
        %v5855 = vld [vmem:[%s5854] sm:$0xf]
        %5856 = vrot.lane.b32.xlu0 %v5530, 25
        %v5857 = vpop.permute.xlu0 %5856
        %5858 = vrot.lane.b32.xlu0 %v5531, 25
        %v5859 = vpop.permute.xlu0 %5858
        %5860 = vrot.lane.b32.xlu0 %v5532, 25
        %v5861 = vpop.permute.xlu0 %5860
        %5862 = vrot.lane.b32.xlu0 %v5533, 25
        %v5863 = vpop.permute.xlu0 %5862
        %5864 = vrot.lane.b32.xlu0 %v5534, 25
        %v5865 = vpop.permute.xlu0 %5864
        %5866 = vrot.lane.b32.xlu0 %v5535, 25
        %v5867 = vpop.permute.xlu0 %5866
        %vm5868 = vcmask 203776
        %v5869 = vsel %vm5868, %v5857, %v5859
        %v5870 = vsel %vm5868, %v5859, %v5861
        %v5871 = vsel %vm5868, %v5861, %v5863
        %v5872 = vsel %vm5868, %v5863, %v5865
        %v5873 = vsel %vm5868, %v5865, %v5867
        %v5875 = vsel %vm5554, %v5855, 0
        %v5878 = vsel %vm5558, %v5869, 0
        %v5881 = vsel %vm5558, %v5870, 0
        %v5884 = vsel %vm5558, %v5871, 0
        %v5887 = vsel %vm5558, %v5872, 0
        %v5890 = vsel %vm5558, %v5873, 0
        %5892 = vmatprep.subr.bf16.mxu0 %v5881
        %5893 = vmatpush1.bf16.msra.mxu0 %v5878
        %5894 = vmatprep.subr.bf16.mxu0 0
        %5895 = vmatpush1.bf16.msra.mxu0 0
        %5896 = vmatprep.subr.bf16.mxu0 0
        %5897 = vmatpush1.bf16.msra.mxu0 0
        %5898 = vmatprep.subr.bf16.mxu0 0
        %5899 = vmatpush1.bf16.msra.mxu0 0
        %5900 = vmatprep.subr.bf16.mxu0 0
        %5901 = vmatpush1.bf16.msra.mxu0 0
        %5902 = vmatprep.subr.bf16.mxu0 0
        %5903 = vmatpush1.bf16.msra.mxu0 0
        %5904 = vmatprep.subr.bf16.mxu0 0
        %5905 = vmatpush1.bf16.msra.mxu0 0
        %5906 = vmatprep.subr.bf16.mxu0 0
        %5907 = vmatpush1.bf16.msra.mxu0 0
        %5908 = vmatprep.subr.bf16.mxu0 0
        %5909 = vmatpush1.bf16.msra.mxu0 0
        %5910 = vmatprep.subr.bf16.mxu0 0
        %5911 = vmatpush1.bf16.msra.mxu0 0
        %5912 = vmatprep.subr.bf16.mxu0 0
        %5913 = vmatpush1.bf16.msra.mxu0 0
        %5914 = vmatprep.subr.bf16.mxu0 0
        %5915 = vmatpush1.bf16.msra.mxu0 0
        %5916 = vmatprep.subr.bf16.mxu0 0
        %5917 = vmatpush1.bf16.msra.mxu0 0
        %5918 = vmatprep.subr.bf16.mxu0 0
        %5919 = vmatpush1.bf16.msra.mxu0 0
        %5920 = vmatprep.subr.bf16.mxu0 0
        %5921 = vmatpush1.bf16.msra.mxu0 0
        %5922 = vmatprep.subr.bf16.mxu0 0
        %5923 = vmatpush1.bf16.msra.mxu0 0
        %5924 = vmatprep.mubr.bf16.mxu0 0
        %5925 = vmatmul.mubr.bf16.gmra.mrb[0].mxu0 %v5875
        %v5926 = vpop.f32.mrb[0].mxu0
        %v5927 = vadd.f32 0.0, %v5926
        %v5928 = vpop.f32.mrb[0].mxu0
        %v5929 = vadd.f32 0.0, %v5928
        %v5930 = vpop.f32.mrb[0].mxu0
        %v5931 = vpop.f32.mrb[0].mxu0
        %5932 = vdwg.mxu0
        %5933 = vmatprep.subr.bf16.mxu0 %v5887
        %5934 = vmatpush1.bf16.msra.mxu0 %v5884
        %5935 = vmatprep.subr.bf16.mxu0 0
        %5936 = vmatpush1.bf16.msra.mxu0 0
        %5937 = vmatprep.subr.bf16.mxu0 0
        %5938 = vmatpush1.bf16.msra.mxu0 0
        %5939 = vmatprep.subr.bf16.mxu0 0
        %5940 = vmatpush1.bf16.msra.mxu0 0
        %5941 = vmatprep.subr.bf16.mxu0 0
        %5942 = vmatpush1.bf16.msra.mxu0 0
        %5943 = vmatprep.subr.bf16.mxu0 0
        %5944 = vmatpush1.bf16.msra.mxu0 0
        %5945 = vmatprep.subr.bf16.mxu0 0
        %5946 = vmatpush1.bf16.msra.mxu0 0
        %5947 = vmatprep.subr.bf16.mxu0 0
        %5948 = vmatpush1.bf16.msra.mxu0 0
        %5949 = vmatprep.subr.bf16.mxu0 0
        %5950 = vmatpush1.bf16.msra.mxu0 0
        %5951 = vmatprep.subr.bf16.mxu0 0
        %5952 = vmatpush1.bf16.msra.mxu0 0
        %5953 = vmatprep.subr.bf16.mxu0 0
        %5954 = vmatpush1.bf16.msra.mxu0 0
        %5955 = vmatprep.subr.bf16.mxu0 0
        %5956 = vmatpush1.bf16.msra.mxu0 0
        %5957 = vmatprep.subr.bf16.mxu0 0
        %5958 = vmatpush1.bf16.msra.mxu0 0
        %5959 = vmatprep.subr.bf16.mxu0 0
        %5960 = vmatpush1.bf16.msra.mxu0 0
        %5961 = vmatprep.subr.bf16.mxu0 0
        %5962 = vmatpush1.bf16.msra.mxu0 0
        %5963 = vmatprep.subr.bf16.mxu0 0
        %5964 = vmatpush1.bf16.msra.mxu0 0
        %5965 = vmatprep.mubr.bf16.mxu0 0
        %5966 = vmatmul.mubr.bf16.gmra.mrb[0].mxu0 %v5875
        %v5967 = vpop.f32.mrb[0].mxu0
        %v5968 = vadd.f32 0.0, %v5967
        %v5969 = vpop.f32.mrb[0].mxu0
        %v5970 = vadd.f32 0.0, %v5969
        %v5971 = vpop.f32.mrb[0].mxu0
        %v5972 = vpop.f32.mrb[0].mxu0
        %5973 = vdwg.mxu0
        %5974 = vmatprep.subr.bf16.mxu0 0
        %5975 = vmatpush1.bf16.msra.mxu0 %v5890
        %5976 = vmatprep.subr.bf16.mxu0 0
        %5977 = vmatpush1.bf16.msra.mxu0 0
        %5978 = vmatprep.subr.bf16.mxu0 0
        %5979 = vmatpush1.bf16.msra.mxu0 0
        %5980 = vmatprep.subr.bf16.mxu0 0
        %5981 = vmatpush1.bf16.msra.mxu0 0
        %5982 = vmatprep.subr.bf16.mxu0 0
        %5983 = vmatpush1.bf16.msra.mxu0 0
        %5984 = vmatprep.subr.bf16.mxu0 0
        %5985 = vmatpush1.bf16.msra.mxu0 0
        %5986 = vmatprep.subr.bf16.mxu0 0
        %5987 = vmatpush1.bf16.msra.mxu0 0
        %5988 = vmatprep.subr.bf16.mxu0 0
        %5989 = vmatpush1.bf16.msra.mxu0 0
        %5990 = vmatprep.subr.bf16.mxu0 0
        %5991 = vmatpush1.bf16.msra.mxu0 0
        %5992 = vmatprep.subr.bf16.mxu0 0
        %5993 = vmatpush1.bf16.msra.mxu0 0
        %5994 = vmatprep.subr.bf16.mxu0 0
        %5995 = vmatpush1.bf16.msra.mxu0 0
        %5996 = vmatprep.subr.bf16.mxu0 0
        %5997 = vmatpush1.bf16.msra.mxu0 0
        %5998 = vmatprep.subr.bf16.mxu0 0
        %5999 = vmatpush1.bf16.msra.mxu0 0
        %6000 = vmatprep.subr.bf16.mxu0 0
        %6001 = vmatpush1.bf16.msra.mxu0 0
        %6002 = vmatprep.subr.bf16.mxu0 0
        %6003 = vmatpush1.bf16.msra.mxu0 0
        %6004 = vmatprep.subr.bf16.mxu0 0
        %6005 = vmatpush1.bf16.msra.mxu0 0
        %6006 = vmatprep.mubr.bf16.mxu0 0
        %6007 = vmatmul.mubr.bf16.gmra.mrb[0].mxu0 %v5875
        %v6008 = vpop.f32.mrb[0].mxu0
        %v6009 = vadd.f32 0.0, %v6008
        %v6010 = vpop.f32.mrb[0].mxu0
        %v6011 = vpop.f32.mrb[0].mxu0
        %v6012 = vpop.f32.mrb[0].mxu0
        %6013 = vdwg.mxu0
        %v6014 = vadd.f32 %v5767, %v5927
        %v6015 = vadd.f32 %v5769, %v5929
        %v6016 = vadd.f32 %v5808, %v5968
        %v6017 = vadd.f32 %v5810, %v5970
        %v6018 = vadd.f32 %v5849, %v6009
        %s6019 = scalar_lea.vmem %s4, 12
        %v6020 = vld [vmem:[%s6019] sm:$0xf]
        %6021 = vrot.lane.b32.xlu0 %v5530, 1
        %v6022 = vpop.permute.xlu0 %6021
        %6023 = vrot.lane.b32.xlu0 %v5531, 1
        %v6024 = vpop.permute.xlu0 %6023
        %6025 = vrot.lane.b32.xlu0 %v5532, 1
        %v6026 = vpop.permute.xlu0 %6025
        %6027 = vrot.lane.b32.xlu0 %v5533, 1
        %v6028 = vpop.permute.xlu0 %6027
        %6029 = vrot.lane.b32.xlu0 %v5534, 1
        %v6030 = vpop.permute.xlu0 %6029
        %6031 = vrot.lane.b32.xlu0 %v5535, 1
        %v6032 = vpop.permute.xlu0 %6031
        %vm6033 = vcmask 7168
        %v6034 = vsel %vm6033, %v6022, %v6024
        %v6035 = vsel %vm6033, %v6024, %v6026
        %v6036 = vsel %vm6033, %v6026, %v6028
        %v6037 = vsel %vm6033, %v6028, %v6030
        %v6038 = vsel %vm6033, %v6030, %v6032
        %v6040 = vsel %vm5554, %v6020, 0
        %v6043 = vsel %vm5558, %v6034, 0
        %v6046 = vsel %vm5558, %v6035, 0
        %v6049 = vsel %vm5558, %v6036, 0
        %v6052 = vsel %vm5558, %v6037, 0
        %v6055 = vsel %vm5558, %v6038, 0
        %6057 = vmatprep.subr.bf16.mxu0 %v6046
        %6058 = vmatpush1.bf16.msra.mxu0 %v6043
        %6059 = vmatprep.subr.bf16.mxu0 0
        %6060 = vmatpush1.bf16.msra.mxu0 0
        %6061 = vmatprep.subr.bf16.mxu0 0
        %6062 = vmatpush1.bf16.msra.mxu0 0
        %6063 = vmatprep.subr.bf16.mxu0 0
        %6064 = vmatpush1.bf16.msra.mxu0 0
        %6065 = vmatprep.subr.bf16.mxu0 0
        %6066 = vmatpush1.bf16.msra.mxu0 0
        %6067 = vmatprep.subr.bf16.mxu0 0
        %6068 = vmatpush1.bf16.msra.mxu0 0
        %6069 = vmatprep.subr.bf16.mxu0 0
        %6070 = vmatpush1.bf16.msra.mxu0 0
        %6071 = vmatprep.subr.bf16.mxu0 0
        %6072 = vmatpush1.bf16.msra.mxu0 0
        %6073 = vmatprep.subr.bf16.mxu0 0
        %6074 = vmatpush1.bf16.msra.mxu0 0
        %6075 = vmatprep.subr.bf16.mxu0 0
        %6076 = vmatpush1.bf16.msra.mxu0 0
        %6077 = vmatprep.subr.bf16.mxu0 0
        %6078 = vmatpush1.bf16.msra.mxu0 0
        %6079 = vmatprep.subr.bf16.mxu0 0
        %6080 = vmatpush1.bf16.msra.mxu0 0
        %6081 = vmatprep.subr.bf16.mxu0 0
        %6082 = vmatpush1.bf16.msra.mxu0 0
        %6083 = vmatprep.subr.bf16.mxu0 0
        %6084 = vmatpush1.bf16.msra.mxu0 0
        %6085 = vmatprep.subr.bf16.mxu0 0
        %6086 = vmatpush1.bf16.msra.mxu0 0
        %6087 = vmatprep.subr.bf16.mxu0 0
        %6088 = vmatpush1.bf16.msra.mxu0 0
        %6089 = vmatprep.mubr.bf16.mxu0 0
        %6090 = vmatmul.mubr.bf16.gmra.mrb[0].mxu0 %v6040
        %v6091 = vpop.f32.mrb[0].mxu0
        %v6092 = vadd.f32 0.0, %v6091
        %v6093 = vpop.f32.mrb[0].mxu0
        %v6094 = vadd.f32 0.0, %v6093
        %v6095 = vpop.f32.mrb[0].mxu0
        %v6096 = vpop.f32.mrb[0].mxu0
        %6097 = vdwg.mxu0
        %6098 = vmatprep.subr.bf16.mxu0 %v6052
        %6099 = vmatpush1.bf16.msra.mxu0 %v6049
        %6100 = vmatprep.subr.bf16.mxu0 0
        %6101 = vmatpush1.bf16.msra.mxu0 0
        %6102 = vmatprep.subr.bf16.mxu0 0
        %6103 = vmatpush1.bf16.msra.mxu0 0
        %6104 = vmatprep.subr.bf16.mxu0 0
        %6105 = vmatpush1.bf16.msra.mxu0 0
        %6106 = vmatprep.subr.bf16.mxu0 0
        %6107 = vmatpush1.bf16.msra.mxu0 0
        %6108 = vmatprep.subr.bf16.mxu0 0
        %6109 = vmatpush1.bf16.msra.mxu0 0
        %6110 = vmatprep.subr.bf16.mxu0 0
        %6111 = vmatpush1.bf16.msra.mxu0 0
        %6112 = vmatprep.subr.bf16.mxu0 0
        %6113 = vmatpush1.bf16.msra.mxu0 0
        %6114 = vmatprep.subr.bf16.mxu0 0
        %6115 = vmatpush1.bf16.msra.mxu0 0
        %6116 = vmatprep.subr.bf16.mxu0 0
        %6117 = vmatpush1.bf16.msra.mxu0 0
        %6118 = vmatprep.subr.bf16.mxu0 0
        %6119 = vmatpush1.bf16.msra.mxu0 0
        %6120 = vmatprep.subr.bf16.mxu0 0
        %6121 = vmatpush1.bf16.msra.mxu0 0
        %6122 = vmatprep.subr.bf16.mxu0 0
        %6123 = vmatpush1.bf16.msra.mxu0 0
        %6124 = vmatprep.subr.bf16.mxu0 0
        %6125 = vmatpush1.bf16.msra.mxu0 0
        %6126 = vmatprep.subr.bf16.mxu0 0
        %6127 = vmatpush1.bf16.msra.mxu0 0
        %6128 = vmatprep.subr.bf16.mxu0 0
        %6129 = vmatpush1.bf16.msra.mxu0 0
        %6130 = vmatprep.mubr.bf16.mxu0 0
        %6131 = vmatmul.mubr.bf16.gmra.mrb[0].mxu0 %v6040
        %v6132 = vpop.f32.mrb[0].mxu0
        %v6133 = vadd.f32 0.0, %v6132
        %v6134 = vpop.f32.mrb[0].mxu0
        %v6135 = vadd.f32 0.0, %v6134
        %v6136 = vpop.f32.mrb[0].mxu0
        %v6137 = vpop.f32.mrb[0].mxu0
        %6138 = vdwg.mxu0
        %6139 = vmatprep.subr.bf16.mxu0 0
        %6140 = vmatpush1.bf16.msra.mxu0 %v6055
        %6141 = vmatprep.subr.bf16.mxu0 0
        %6142 = vmatpush1.bf16.msra.mxu0 0
        %6143 = vmatprep.subr.bf16.mxu0 0
        %6144 = vmatpush1.bf16.msra.mxu0 0
        %6145 = vmatprep.subr.bf16.mxu0 0
        %6146 = vmatpush1.bf16.msra.mxu0 0
        %6147 = vmatprep.subr.bf16.mxu0 0
        %6148 = vmatpush1.bf16.msra.mxu0 0
        %6149 = vmatprep.subr.bf16.mxu0 0
        %6150 = vmatpush1.bf16.msra.mxu0 0
        %6151 = vmatprep.subr.bf16.mxu0 0
        %6152 = vmatpush1.bf16.msra.mxu0 0
        %6153 = vmatprep.subr.bf16.mxu0 0
        %6154 = vmatpush1.bf16.msra.mxu0 0
        %6155 = vmatprep.subr.bf16.mxu0 0
        %6156 = vmatpush1.bf16.msra.mxu0 0
        %6157 = vmatprep.subr.bf16.mxu0 0
        %6158 = vmatpush1.bf16.msra.mxu0 0
        %6159 = vmatprep.subr.bf16.mxu0 0
        %6160 = vmatpush1.bf16.msra.mxu0 0
        %6161 = vmatprep.subr.bf16.mxu0 0
        %6162 = vmatpush1.bf16.msra.mxu0 0
        %6163 = vmatprep.subr.bf16.mxu0 0
        %6164 = vmatpush1.bf16.msra.mxu0 0
        %6165 = vmatprep.subr.bf16.mxu0 0
        %6166 = vmatpush1.bf16.msra.mxu0 0
        %6167 = vmatprep.subr.bf16.mxu0 0
        %6168 = vmatpush1.bf16.msra.mxu0 0
        %6169 = vmatprep.subr.bf16.mxu0 0
        %6170 = vmatpush1.bf16.msra.mxu0 0
        %6171 = vmatprep.mubr.bf16.mxu0 0
        %6172 = vmatmul.mubr.bf16.gmra.mrb[0].mxu0 %v6040
        %v6173 = vpop.f32.mrb[0].mxu0
        %v6174 = vadd.f32 0.0, %v6173
        %v6175 = vpop.f32.mrb[0].mxu0
        %v6176 = vpop.f32.mrb[0].mxu0
        %v6177 = vpop.f32.mrb[0].mxu0
        %6178 = vdwg.mxu0
        %v6179 = vadd.f32 %v6014, %v6092
        %v6180 = vadd.f32 %v6015, %v6094
        %v6181 = vadd.f32 %v6016, %v6133
        %v6182 = vadd.f32 %v6017, %v6135
        %v6183 = vadd.f32 %v6018, %v6174
        %s6184 = scalar_lea.vmem %s4, 16
        %v6185 = vld [vmem:[%s6184] sm:$0xf]
        %v6186 = vld [vmem:[#allocation3 + $0x4] sm:$0xff]
        %v6187 = vld [vmem:[#allocation3 + $0xc] sm:$0xff]
        %v6188 = vld [vmem:[#allocation3 + $0x14] sm:$0xf]
        %v6192 = vunpack.c.l.b16 %v6186
        %v6193 = vunpack.c.h.b16 %v6186
        %v6194 = vunpack.c.l.b16 %v6187
        %v6195 = vunpack.c.h.b16 %v6187
        %v6196 = vunpack.c.l.b16 %v6188
        %v6197 = vpack.c.b16 %v6192, %v6192
        %v6198 = vpack.c.b16 %v6193, %v6193
        %v6199 = vpack.c.b16 %v6194, %v6194
        %v6200 = vpack.c.b16 %v6195, %v6195
        %v6201 = vpack.c.b16 %v6196, %v6196
        %v6203 = vsel %vm5554, %v6185, 0
        %v6206 = vsel %vm5558, %v6197, 0
        %v6209 = vsel %vm5558, %v6198, 0
        %v6212 = vsel %vm5558, %v6199, 0
        %v6215 = vsel %vm5558, %v6200, 0
        %v6218 = vsel %vm5558, %v6201, 0
        %6220 = vmatprep.subr.bf16.mxu0 %v6209
        %6221 = vmatpush1.bf16.msra.mxu0 %v6206
        %6222 = vmatprep.subr.bf16.mxu0 0
        %6223 = vmatpush1.bf16.msra.mxu0 0
        %6224 = vmatprep.subr.bf16.mxu0 0
        %6225 = vmatpush1.bf16.msra.mxu0 0
        %6226 = vmatprep.subr.bf16.mxu0 0
        %6227 = vmatpush1.bf16.msra.mxu0 0
        %6228 = vmatprep.subr.bf16.mxu0 0
        %6229 = vmatpush1.bf16.msra.mxu0 0
        %6230 = vmatprep.subr.bf16.mxu0 0
        %6231 = vmatpush1.bf16.msra.mxu0 0
        %6232 = vmatprep.subr.bf16.mxu0 0
        %6233 = vmatpush1.bf16.msra.mxu0 0
        %6234 = vmatprep.subr.bf16.mxu0 0
        %6235 = vmatpush1.bf16.msra.mxu0 0
        %6236 = vmatprep.subr.bf16.mxu0 0
        %6237 = vmatpush1.bf16.msra.mxu0 0
        %6238 = vmatprep.subr.bf16.mxu0 0
        %6239 = vmatpush1.bf16.msra.mxu0 0
        %6240 = vmatprep.subr.bf16.mxu0 0
        %6241 = vmatpush1.bf16.msra.mxu0 0
        %6242 = vmatprep.subr.bf16.mxu0 0
        %6243 = vmatpush1.bf16.msra.mxu0 0
        %6244 = vmatprep.subr.bf16.mxu0 0
        %6245 = vmatpush1.bf16.msra.mxu0 0
        %6246 = vmatprep.subr.bf16.mxu0 0
        %6247 = vmatpush1.bf16.msra.mxu0 0
        %6248 = vmatprep.subr.bf16.mxu0 0
        %6249 = vmatpush1.bf16.msra.mxu0 0
        %6250 = vmatprep.subr.bf16.mxu0 0
        %6251 = vmatpush1.bf16.msra.mxu0 0
        %6252 = vmatprep.mubr.bf16.mxu0 0
        %6253 = vmatmul.mubr.bf16.gmra.mrb[0].mxu0 %v6203
        %v6254 = vpop.f32.mrb[0].mxu0
        %v6255 = vadd.f32 0.0, %v6254
        %v6256 = vpop.f32.mrb[0].mxu0
        %v6257 = vadd.f32 0.0, %v6256
        %v6258 = vpop.f32.mrb[0].mxu0
        %v6259 = vpop.f32.mrb[0].mxu0
        %6260 = vdwg.mxu0
        %6261 = vmatprep.subr.bf16.mxu0 %v6215
        %6262 = vmatpush1.bf16.msra.mxu0 %v6212
        %6263 = vmatprep.subr.bf16.mxu0 0
        %6264 = vmatpush1.bf16.msra.mxu0 0
        %6265 = vmatprep.subr.bf16.mxu0 0
        %6266 = vmatpush1.bf16.msra.mxu0 0
        %6267 = vmatprep.subr.bf16.mxu0 0
        %6268 = vmatpush1.bf16.msra.mxu0 0
        %6269 = vmatprep.subr.bf16.mxu0 0
        %6270 = vmatpush1.bf16.msra.mxu0 0
        %6271 = vmatprep.subr.bf16.mxu0 0
        %6272 = vmatpush1.bf16.msra.mxu0 0
        %6273 = vmatprep.subr.bf16.mxu0 0
        %6274 = vmatpush1.bf16.msra.mxu0 0
        %6275 = vmatprep.subr.bf16.mxu0 0
        %6276 = vmatpush1.bf16.msra.mxu0 0
        %6277 = vmatprep.subr.bf16.mxu0 0
        %6278 = vmatpush1.bf16.msra.mxu0 0
        %6279 = vmatprep.subr.bf16.mxu0 0
        %6280 = vmatpush1.bf16.msra.mxu0 0
        %6281 = vmatprep.subr.bf16.mxu0 0
        %6282 = vmatpush1.bf16.msra.mxu0 0
        %6283 = vmatprep.subr.bf16.mxu0 0
        %6284 = vmatpush1.bf16.msra.mxu0 0
        %6285 = vmatprep.subr.bf16.mxu0 0
        %6286 = vmatpush1.bf16.msra.mxu0 0
        %6287 = vmatprep.subr.bf16.mxu0 0
        %6288 = vmatpush1.bf16.msra.mxu0 0
        %6289 = vmatprep.subr.bf16.mxu0 0
        %6290 = vmatpush1.bf16.msra.mxu0 0
        %6291 = vmatprep.subr.bf16.mxu0 0
        %6292 = vmatpush1.bf16.msra.mxu0 0
        %6293 = vmatprep.mubr.bf16.mxu0 0
        %6294 = vmatmul.mubr.bf16.gmra.mrb[0].mxu0 %v6203
        %v6295 = vpop.f32.mrb[0].mxu0
        %v6296 = vadd.f32 0.0, %v6295
        %v6297 = vpop.f32.mrb[0].mxu0
        %v6298 = vadd.f32 0.0, %v6297
        %v6299 = vpop.f32.mrb[0].mxu0
        %v6300 = vpop.f32.mrb[0].mxu0
        %6301 = vdwg.mxu0
        %6302 = vmatprep.subr.bf16.mxu0 0
        %6303 = vmatpush1.bf16.msra.mxu0 %v6218
        %6304 = vmatprep.subr.bf16.mxu0 0
        %6305 = vmatpush1.bf16.msra.mxu0 0
        %6306 = vmatprep.subr.bf16.mxu0 0
        %6307 = vmatpush1.bf16.msra.mxu0 0
        %6308 = vmatprep.subr.bf16.mxu0 0
        %6309 = vmatpush1.bf16.msra.mxu0 0
        %6310 = vmatprep.subr.bf16.mxu0 0
        %6311 = vmatpush1.bf16.msra.mxu0 0
        %6312 = vmatprep.subr.bf16.mxu0 0
        %6313 = vmatpush1.bf16.msra.mxu0 0
        %6314 = vmatprep.subr.bf16.mxu0 0
        %6315 = vmatpush1.bf16.msra.mxu0 0
        %6316 = vmatprep.subr.bf16.mxu0 0
        %6317 = vmatpush1.bf16.msra.mxu0 0
        %6318 = vmatprep.subr.bf16.mxu0 0
        %6319 = vmatpush1.bf16.msra.mxu0 0
        %6320 = vmatprep.subr.bf16.mxu0 0
        %6321 = vmatpush1.bf16.msra.mxu0 0
        %6322 = vmatprep.subr.bf16.mxu0 0
        %6323 = vmatpush1.bf16.msra.mxu0 0
        %6324 = vmatprep.subr.bf16.mxu0 0
        %6325 = vmatpush1.bf16.msra.mxu0 0
        %6326 = vmatprep.subr.bf16.mxu0 0
        %6327 = vmatpush1.bf16.msra.mxu0 0
        %6328 = vmatprep.subr.bf16.mxu0 0
        %6329 = vmatpush1.bf16.msra.mxu0 0
        %6330 = vmatprep.subr.bf16.mxu0 0
        %6331 = vmatpush1.bf16.msra.mxu0 0
        %6332 = vmatprep.subr.bf16.mxu0 0
        %6333 = vmatpush1.bf16.msra.mxu0 0
        %6334 = vmatprep.mubr.bf16.mxu0 0
        %6335 = vmatmul.mubr.bf16.gmra.mrb[0].mxu0 %v6203
        %v6336 = vpop.f32.mrb[0].mxu0
        %v6337 = vadd.f32 0.0, %v6336
        %v6338 = vpop.f32.mrb[0].mxu0
        %v6339 = vpop.f32.mrb[0].mxu0
        %v6340 = vpop.f32.mrb[0].mxu0
        %6341 = vdwg.mxu0
        %v6342 = vadd.f32 %v6179, %v6255
        %v6343 = vadd.f32 %v6180, %v6257
        %v6344 = vadd.f32 %v6181, %v6296
        %v6345 = vadd.f32 %v6182, %v6298
        %v6346 = vadd.f32 %v6183, %v6337
        %s6347 = scalar_lea.vmem %s4, 20
        %v6348 = vld [vmem:[%s6347] sm:$0xf]
        %6349 = vrot.lane.b32.xlu0 %v6197, 127
        %v6350 = vpop.permute.xlu0 %6349
        %6351 = vrot.lane.b32.xlu0 %v6198, 127
        %v6352 = vpop.permute.xlu0 %6351
        %6353 = vrot.lane.b32.xlu0 %v6199, 127
        %v6354 = vpop.permute.xlu0 %6353
        %6355 = vrot.lane.b32.xlu0 %v6200, 127
        %v6356 = vpop.permute.xlu0 %6355
        %6357 = vrot.lane.b32.xlu0 %v6201, 127
        %v6358 = vpop.permute.xlu0 %6357
        %v6359 = vsel %vm3798, %v6350, %v6352
        %v6360 = vsel %vm3798, %v6352, %v6354
        %v6361 = vsel %vm3798, %v6354, %v6356
        %v6362 = vsel %vm3798, %v6356, %v6358
        %v6364 = vsel %vm5554, %v6348, 0
        %v6367 = vsel %vm5558, %v6359, 0
        %v6370 = vsel %vm5558, %v6360, 0
        %v6373 = vsel %vm5558, %v6361, 0
        %v6376 = vsel %vm5558, %v6362, 0
        %v6379 = vsel %vm5558, %v6358, 0
        %6381 = vmatprep.subr.bf16.mxu0 %v6370
        %6382 = vmatpush1.bf16.msra.mxu0 %v6367
        %6383 = vmatprep.subr.bf16.mxu0 0
        %6384 = vmatpush1.bf16.msra.mxu0 0
        %6385 = vmatprep.subr.bf16.mxu0 0
        %6386 = vmatpush1.bf16.msra.mxu0 0
        %6387 = vmatprep.subr.bf16.mxu0 0
        %6388 = vmatpush1.bf16.msra.mxu0 0
        %6389 = vmatprep.subr.bf16.mxu0 0
        %6390 = vmatpush1.bf16.msra.mxu0 0
        %6391 = vmatprep.subr.bf16.mxu0 0
        %6392 = vmatpush1.bf16.msra.mxu0 0
        %6393 = vmatprep.subr.bf16.mxu0 0
        %6394 = vmatpush1.bf16.msra.mxu0 0
        %6395 = vmatprep.subr.bf16.mxu0 0
        %6396 = vmatpush1.bf16.msra.mxu0 0
        %6397 = vmatprep.subr.bf16.mxu0 0
        %6398 = vmatpush1.bf16.msra.mxu0 0
        %6399 = vmatprep.subr.bf16.mxu0 0
        %6400 = vmatpush1.bf16.msra.mxu0 0
        %6401 = vmatprep.subr.bf16.mxu0 0
        %6402 = vmatpush1.bf16.msra.mxu0 0
        %6403 = vmatprep.subr.bf16.mxu0 0
        %6404 = vmatpush1.bf16.msra.mxu0 0
        %6405 = vmatprep.subr.bf16.mxu0 0
        %6406 = vmatpush1.bf16.msra.mxu0 0
        %6407 = vmatprep.subr.bf16.mxu0 0
        %6408 = vmatpush1.bf16.msra.mxu0 0
        %6409 = vmatprep.subr.bf16.mxu0 0
        %6410 = vmatpush1.bf16.msra.mxu0 0
        %6411 = vmatprep.subr.bf16.mxu0 0
        %6412 = vmatpush1.bf16.msra.mxu0 0
        %6413 = vmatprep.mubr.bf16.mxu0 0
        %6414 = vmatmul.mubr.bf16.gmra.mrb[0].mxu0 %v6364
        %v6415 = vpop.f32.mrb[0].mxu0
        %v6416 = vadd.f32 0.0, %v6415
        %v6417 = vpop.f32.mrb[0].mxu0
        %v6418 = vadd.f32 0.0, %v6417
        %v6419 = vpop.f32.mrb[0].mxu0
        %v6420 = vpop.f32.mrb[0].mxu0
        %6421 = vdwg.mxu0
        %6422 = vmatprep.subr.bf16.mxu0 %v6376
        %6423 = vmatpush1.bf16.msra.mxu0 %v6373
        %6424 = vmatprep.subr.bf16.mxu0 0
        %6425 = vmatpush1.bf16.msra.mxu0 0
        %6426 = vmatprep.subr.bf16.mxu0 0
        %6427 = vmatpush1.bf16.msra.mxu0 0
        %6428 = vmatprep.subr.bf16.mxu0 0
        %6429 = vmatpush1.bf16.msra.mxu0 0
        %6430 = vmatprep.subr.bf16.mxu0 0
        %6431 = vmatpush1.bf16.msra.mxu0 0
        %6432 = vmatprep.subr.bf16.mxu0 0
        %6433 = vmatpush1.bf16.msra.mxu0 0
        %6434 = vmatprep.subr.bf16.mxu0 0
        %6435 = vmatpush1.bf16.msra.mxu0 0
        %6436 = vmatprep.subr.bf16.mxu0 0
        %6437 = vmatpush1.bf16.msra.mxu0 0
        %6438 = vmatprep.subr.bf16.mxu0 0
        %6439 = vmatpush1.bf16.msra.mxu0 0
        %6440 = vmatprep.subr.bf16.mxu0 0
        %6441 = vmatpush1.bf16.msra.mxu0 0
        %6442 = vmatprep.subr.bf16.mxu0 0
        %6443 = vmatpush1.bf16.msra.mxu0 0
        %6444 = vmatprep.subr.bf16.mxu0 0
        %6445 = vmatpush1.bf16.msra.mxu0 0
        %6446 = vmatprep.subr.bf16.mxu0 0
        %6447 = vmatpush1.bf16.msra.mxu0 0
        %6448 = vmatprep.subr.bf16.mxu0 0
        %6449 = vmatpush1.bf16.msra.mxu0 0
        %6450 = vmatprep.subr.bf16.mxu0 0
        %6451 = vmatpush1.bf16.msra.mxu0 0
        %6452 = vmatprep.subr.bf16.mxu0 0
        %6453 = vmatpush1.bf16.msra.mxu0 0
        %6454 = vmatprep.mubr.bf16.mxu0 0
        %6455 = vmatmul.mubr.bf16.gmra.mrb[0].mxu0 %v6364
        %v6456 = vpop.f32.mrb[0].mxu0
        %v6457 = vadd.f32 0.0, %v6456
        %v6458 = vpop.f32.mrb[0].mxu0
        %v6459 = vadd.f32 0.0, %v6458
        %v6460 = vpop.f32.mrb[0].mxu0
        %v6461 = vpop.f32.mrb[0].mxu0
        %6462 = vdwg.mxu0
        %6463 = vmatprep.subr.bf16.mxu0 0
        %6464 = vmatpush1.bf16.msra.mxu0 %v6379
        %6465 = vmatprep.subr.bf16.mxu0 0
        %6466 = vmatpush1.bf16.msra.mxu0 0
        %6467 = vmatprep.subr.bf16.mxu0 0
        %6468 = vmatpush1.bf16.msra.mxu0 0
        %6469 = vmatprep.subr.bf16.mxu0 0
        %6470 = vmatpush1.bf16.msra.mxu0 0
        %6471 = vmatprep.subr.bf16.mxu0 0
        %6472 = vmatpush1.bf16.msra.mxu0 0
        %6473 = vmatprep.subr.bf16.mxu0 0
        %6474 = vmatpush1.bf16.msra.mxu0 0
        %6475 = vmatprep.subr.bf16.mxu0 0
        %6476 = vmatpush1.bf16.msra.mxu0 0
        %6477 = vmatprep.subr.bf16.mxu0 0
        %6478 = vmatpush1.bf16.msra.mxu0 0
        %6479 = vmatprep.subr.bf16.mxu0 0
        %6480 = vmatpush1.bf16.msra.mxu0 0
        %6481 = vmatprep.subr.bf16.mxu0 0
        %6482 = vmatpush1.bf16.msra.mxu0 0
        %6483 = vmatprep.subr.bf16.mxu0 0
        %6484 = vmatpush1.bf16.msra.mxu0 0
        %6485 = vmatprep.subr.bf16.mxu0 0
        %6486 = vmatpush1.bf16.msra.mxu0 0
        %6487 = vmatprep.subr.bf16.mxu0 0
        %6488 = vmatpush1.bf16.msra.mxu0 0
        %6489 = vmatprep.subr.bf16.mxu0 0
        %6490 = vmatpush1.bf16.msra.mxu0 0
        %6491 = vmatprep.subr.bf16.mxu0 0
        %6492 = vmatpush1.bf16.msra.mxu0 0
        %6493 = vmatprep.subr.bf16.mxu0 0
        %6494 = vmatpush1.bf16.msra.mxu0 0
        %6495 = vmatprep.mubr.bf16.mxu0 0
        %6496 = vmatmul.mubr.bf16.gmra.mrb[0].mxu0 %v6364
        %v6497 = vpop.f32.mrb[0].mxu0
        %v6498 = vadd.f32 0.0, %v6497
        %v6499 = vpop.f32.mrb[0].mxu0
        %v6500 = vpop.f32.mrb[0].mxu0
        %v6501 = vpop.f32.mrb[0].mxu0
        %6502 = vdwg.mxu0
        %v6503 = vadd.f32 %v6342, %v6416
        %v6504 = vadd.f32 %v6343, %v6418
        %v6505 = vadd.f32 %v6344, %v6457
        %v6506 = vadd.f32 %v6345, %v6459
        %v6507 = vadd.f32 %v6346, %v6498
        %s6508 = scalar_lea.vmem %s4, 24
        %v6509 = vld [vmem:[%s6508] sm:$0xf]
        %v6510 = vld [vmem:[#allocation3 + $0x4] sm:$0xff]
        %v6511 = vld [vmem:[#allocation3 + $0xc] sm:$0xff]
        %v6512 = vld [vmem:[#allocation3 + $0x14] sm:$0xff]
        %v6516 = vunpack.c.l.b16 %v6510
        %v6517 = vunpack.c.h.b16 %v6510
        %v6518 = vunpack.c.l.b16 %v6511
        %v6519 = vunpack.c.h.b16 %v6511
        %v6520 = vunpack.c.l.b16 %v6512
        %v6521 = vunpack.c.h.b16 %v6512
        %v6522 = vpack.c.b16 %v6516, %v6516
        %v6523 = vpack.c.b16 %v6517, %v6517
        %v6524 = vpack.c.b16 %v6518, %v6518
        %v6525 = vpack.c.b16 %v6519, %v6519
        %v6526 = vpack.c.b16 %v6520, %v6520
        %v6527 = vpack.c.b16 %v6521, %v6521
        %6528 = vrot.lane.b32.xlu0 %v6522, 103
        %v6529 = vpop.permute.xlu0 %6528
        %6530 = vrot.lane.b32.xlu0 %v6523, 103
        %v6531 = vpop.permute.xlu0 %6530
        %6532 = vrot.lane.b32.xlu0 %v6524, 103
        %v6533 = vpop.permute.xlu0 %6532
        %6534 = vrot.lane.b32.xlu0 %v6525, 103
        %v6535 = vpop.permute.xlu0 %6534
        %6536 = vrot.lane.b32.xlu0 %v6526, 103
        %v6537 = vpop.permute.xlu0 %6536
        %6538 = vrot.lane.b32.xlu0 %v6527, 103
        %v6539 = vpop.permute.xlu0 %6538
        %vm6540 = vcmask 842752
        %v6541 = vsel %vm6540, %v6529, %v6531
        %v6542 = vsel %vm6540, %v6531, %v6533
        %v6543 = vsel %vm6540, %v6533, %v6535
        %v6544 = vsel %vm6540, %v6535, %v6537
        %v6545 = vsel %vm6540, %v6537, %v6539
        %v6547 = vsel %vm5554, %v6509, 0
        %v6550 = vsel %vm5558, %v6541, 0
        %v6553 = vsel %vm5558, %v6542, 0
        %v6556 = vsel %vm5558, %v6543, 0
        %v6559 = vsel %vm5558, %v6544, 0
        %v6562 = vsel %vm5558, %v6545, 0
        %6564 = vmatprep.subr.bf16.mxu0 %v6553
        %6565 = vmatpush1.bf16.msra.mxu0 %v6550
        %6566 = vmatprep.subr.bf16.mxu0 0
        %6567 = vmatpush1.bf16.msra.mxu0 0
        %6568 = vmatprep.subr.bf16.mxu0 0
        %6569 = vmatpush1.bf16.msra.mxu0 0
        %6570 = vmatprep.subr.bf16.mxu0 0
        %6571 = vmatpush1.bf16.msra.mxu0 0
        %6572 = vmatprep.subr.bf16.mxu0 0
        %6573 = vmatpush1.bf16.msra.mxu0 0
        %6574 = vmatprep.subr.bf16.mxu0 0
        %6575 = vmatpush1.bf16.msra.mxu0 0
        %6576 = vmatprep.subr.bf16.mxu0 0
        %6577 = vmatpush1.bf16.msra.mxu0 0
        %6578 = vmatprep.subr.bf16.mxu0 0
        %6579 = vmatpush1.bf16.msra.mxu0 0
        %6580 = vmatprep.subr.bf16.mxu0 0
        %6581 = vmatpush1.bf16.msra.mxu0 0
        %6582 = vmatprep.subr.bf16.mxu0 0
        %6583 = vmatpush1.bf16.msra.mxu0 0
        %6584 = vmatprep.subr.bf16.mxu0 0
        %6585 = vmatpush1.bf16.msra.mxu0 0
        %6586 = vmatprep.subr.bf16.mxu0 0
        %6587 = vmatpush1.bf16.msra.mxu0 0
        %6588 = vmatprep.subr.bf16.mxu0 0
        %6589 = vmatpush1.bf16.msra.mxu0 0
        %6590 = vmatprep.subr.bf16.mxu0 0
        %6591 = vmatpush1.bf16.msra.mxu0 0
        %6592 = vmatprep.subr.bf16.mxu0 0
        %6593 = vmatpush1.bf16.msra.mxu0 0
        %6594 = vmatprep.subr.bf16.mxu0 0
        %6595 = vmatpush1.bf16.msra.mxu0 0
        %6596 = vmatprep.mubr.bf16.mxu0 0
        %6597 = vmatmul.mubr.bf16.gmra.mrb[0].mxu0 %v6547
        %v6598 = vpop.f32.mrb[0].mxu0
        %v6599 = vadd.f32 0.0, %v6598
        %v6600 = vpop.f32.mrb[0].mxu0
        %v6601 = vadd.f32 0.0, %v6600
        %v6602 = vpop.f32.mrb[0].mxu0
        %v6603 = vpop.f32.mrb[0].mxu0
        %6604 = vdwg.mxu0
        %6605 = vmatprep.subr.bf16.mxu0 %v6559
        %6606 = vmatpush1.bf16.msra.mxu0 %v6556
        %6607 = vmatprep.subr.bf16.mxu0 0
        %6608 = vmatpush1.bf16.msra.mxu0 0
        %6609 = vmatprep.subr.bf16.mxu0 0
        %6610 = vmatpush1.bf16.msra.mxu0 0
        %6611 = vmatprep.subr.bf16.mxu0 0
        %6612 = vmatpush1.bf16.msra.mxu0 0
        %6613 = vmatprep.subr.bf16.mxu0 0
        %6614 = vmatpush1.bf16.msra.mxu0 0
        %6615 = vmatprep.subr.bf16.mxu0 0
        %6616 = vmatpush1.bf16.msra.mxu0 0
        %6617 = vmatprep.subr.bf16.mxu0 0
        %6618 = vmatpush1.bf16.msra.mxu0 0
        %6619 = vmatprep.subr.bf16.mxu0 0
        %6620 = vmatpush1.bf16.msra.mxu0 0
        %6621 = vmatprep.subr.bf16.mxu0 0
        %6622 = vmatpush1.bf16.msra.mxu0 0
        %6623 = vmatprep.subr.bf16.mxu0 0
        %6624 = vmatpush1.bf16.msra.mxu0 0
        %6625 = vmatprep.subr.bf16.mxu0 0
        %6626 = vmatpush1.bf16.msra.mxu0 0
        %6627 = vmatprep.subr.bf16.mxu0 0
        %6628 = vmatpush1.bf16.msra.mxu0 0
        %6629 = vmatprep.subr.bf16.mxu0 0
        %6630 = vmatpush1.bf16.msra.mxu0 0
        %6631 = vmatprep.subr.bf16.mxu0 0
        %6632 = vmatpush1.bf16.msra.mxu0 0
        %6633 = vmatprep.subr.bf16.mxu0 0
        %6634 = vmatpush1.bf16.msra.mxu0 0
        %6635 = vmatprep.subr.bf16.mxu0 0
        %6636 = vmatpush1.bf16.msra.mxu0 0
        %6637 = vmatprep.mubr.bf16.mxu0 0
        %6638 = vmatmul.mubr.bf16.gmra.mrb[0].mxu0 %v6547
        %v6639 = vpop.f32.mrb[0].mxu0
        %v6640 = vadd.f32 0.0, %v6639
        %v6641 = vpop.f32.mrb[0].mxu0
        %v6642 = vadd.f32 0.0, %v6641
        %v6643 = vpop.f32.mrb[0].mxu0
        %v6644 = vpop.f32.mrb[0].mxu0
        %6645 = vdwg.mxu0
        %6646 = vmatprep.subr.bf16.mxu0 0
        %6647 = vmatpush1.bf16.msra.mxu0 %v6562
        %6648 = vmatprep.subr.bf16.mxu0 0
        %6649 = vmatpush1.bf16.msra.mxu0 0
        %6650 = vmatprep.subr.bf16.mxu0 0
        %6651 = vmatpush1.bf16.msra.mxu0 0
        %6652 = vmatprep.subr.bf16.mxu0 0
        %6653 = vmatpush1.bf16.msra.mxu0 0
        %6654 = vmatprep.subr.bf16.mxu0 0
        %6655 = vmatpush1.bf16.msra.mxu0 0
        %6656 = vmatprep.subr.bf16.mxu0 0
        %6657 = vmatpush1.bf16.msra.mxu0 0
        %6658 = vmatprep.subr.bf16.mxu0 0
        %6659 = vmatpush1.bf16.msra.mxu0 0
        %6660 = vmatprep.subr.bf16.mxu0 0
        %6661 = vmatpush1.bf16.msra.mxu0 0
        %6662 = vmatprep.subr.bf16.mxu0 0
        %6663 = vmatpush1.bf16.msra.mxu0 0
        %6664 = vmatprep.subr.bf16.mxu0 0
        %6665 = vmatpush1.bf16.msra.mxu0 0
        %6666 = vmatprep.subr.bf16.mxu0 0
        %6667 = vmatpush1.bf16.msra.mxu0 0
        %6668 = vmatprep.subr.bf16.mxu0 0
        %6669 = vmatpush1.bf16.msra.mxu0 0
        %6670 = vmatprep.subr.bf16.mxu0 0
        %6671 = vmatpush1.bf16.msra.mxu0 0
        %6672 = vmatprep.subr.bf16.mxu0 0
        %6673 = vmatpush1.bf16.msra.mxu0 0
        %6674 = vmatprep.subr.bf16.mxu0 0
        %6675 = vmatpush1.bf16.msra.mxu0 0
        %6676 = vmatprep.subr.bf16.mxu0 0
        %6677 = vmatpush1.bf16.msra.mxu0 0
        %6678 = vmatprep.mubr.bf16.mxu0 0
        %6679 = vmatmul.mubr.bf16.gmra.mrb[0].mxu0 %v6547
        %v6680 = vpop.f32.mrb[0].mxu0
        %v6681 = vadd.f32 0.0, %v6680
        %v6682 = vpop.f32.mrb[0].mxu0
        %v6683 = vpop.f32.mrb[0].mxu0
        %v6684 = vpop.f32.mrb[0].mxu0
        %6685 = vdwg.mxu0
        %v6686 = vadd.f32 %v6503, %v6599
        %v6687 = vadd.f32 %v6504, %v6601
        %v6688 = vadd.f32 %v6505, %v6640
        %v6689 = vadd.f32 %v6506, %v6642
        %v6690 = vadd.f32 %v6507, %v6681
        %s6691 = scalar_lea.vmem %s4, 28
        %v6692 = vld [vmem:[%s6691] sm:$0xf]
        %6693 = vrot.lane.b32.xlu0 %v6522, 102
        %v6694 = vpop.permute.xlu0 %6693
        %6695 = vrot.lane.b32.xlu0 %v6523, 102
        %v6696 = vpop.permute.xlu0 %6695
        %6697 = vrot.lane.b32.xlu0 %v6524, 102
        %v6698 = vpop.permute.xlu0 %6697
        %6699 = vrot.lane.b32.xlu0 %v6525, 102
        %v6700 = vpop.permute.xlu0 %6699
        %6701 = vrot.lane.b32.xlu0 %v6526, 102
        %v6702 = vpop.permute.xlu0 %6701
        %6703 = vrot.lane.b32.xlu0 %v6527, 102
        %v6704 = vpop.permute.xlu0 %6703
        %v6705 = vsel %vm4317, %v6694, %v6696
        %v6706 = vsel %vm4317, %v6696, %v6698
        %v6707 = vsel %vm4317, %v6698, %v6700
        %v6708 = vsel %vm4317, %v6700, %v6702
        %v6709 = vsel %vm4317, %v6702, %v6704
        %v6711 = vsel %vm5554, %v6692, 0
        %v6714 = vsel %vm5558, %v6705, 0
        %v6717 = vsel %vm5558, %v6706, 0
        %v6720 = vsel %vm5558, %v6707, 0
        %v6723 = vsel %vm5558, %v6708, 0
        %v6726 = vsel %vm5558, %v6709, 0
        %6728 = vmatprep.subr.bf16.mxu0 %v6717
        %6729 = vmatpush1.bf16.msra.mxu0 %v6714
        %6730 = vmatprep.subr.bf16.mxu0 0
        %6731 = vmatpush1.bf16.msra.mxu0 0
        %6732 = vmatprep.subr.bf16.mxu0 0
        %6733 = vmatpush1.bf16.msra.mxu0 0
        %6734 = vmatprep.subr.bf16.mxu0 0
        %6735 = vmatpush1.bf16.msra.mxu0 0
        %6736 = vmatprep.subr.bf16.mxu0 0
        %6737 = vmatpush1.bf16.msra.mxu0 0
        %6738 = vmatprep.subr.bf16.mxu0 0
        %6739 = vmatpush1.bf16.msra.mxu0 0
        %6740 = vmatprep.subr.bf16.mxu0 0
        %6741 = vmatpush1.bf16.msra.mxu0 0
        %6742 = vmatprep.subr.bf16.mxu0 0
        %6743 = vmatpush1.bf16.msra.mxu0 0
        %6744 = vmatprep.subr.bf16.mxu0 0
        %6745 = vmatpush1.bf16.msra.mxu0 0
        %6746 = vmatprep.subr.bf16.mxu0 0
        %6747 = vmatpush1.bf16.msra.mxu0 0
        %6748 = vmatprep.subr.bf16.mxu0 0
        %6749 = vmatpush1.bf16.msra.mxu0 0
        %6750 = vmatprep.subr.bf16.mxu0 0
        %6751 = vmatpush1.bf16.msra.mxu0 0
        %6752 = vmatprep.subr.bf16.mxu0 0
        %6753 = vmatpush1.bf16.msra.mxu0 0
        %6754 = vmatprep.subr.bf16.mxu0 0
        %6755 = vmatpush1.bf16.msra.mxu0 0
        %6756 = vmatprep.subr.bf16.mxu0 0
        %6757 = vmatpush1.bf16.msra.mxu0 0
        %6758 = vmatprep.subr.bf16.mxu0 0
        %6759 = vmatpush1.bf16.msra.mxu0 0
        %6760 = vmatprep.mubr.bf16.mxu0 0
        %6761 = vmatmul.mubr.bf16.gmra.mrb[0].mxu0 %v6711
        %v6762 = vpop.f32.mrb[0].mxu0
        %v6763 = vadd.f32 0.0, %v6762
        %v6764 = vpop.f32.mrb[0].mxu0
        %v6765 = vadd.f32 0.0, %v6764
        %v6766 = vpop.f32.mrb[0].mxu0
        %v6767 = vpop.f32.mrb[0].mxu0
        %6768 = vdwg.mxu0
        %6769 = vmatprep.subr.bf16.mxu0 %v6723
        %6770 = vmatpush1.bf16.msra.mxu0 %v6720
        %6771 = vmatprep.subr.bf16.mxu0 0
        %6772 = vmatpush1.bf16.msra.mxu0 0
        %6773 = vmatprep.subr.bf16.mxu0 0
        %6774 = vmatpush1.bf16.msra.mxu0 0
        %6775 = vmatprep.subr.bf16.mxu0 0
        %6776 = vmatpush1.bf16.msra.mxu0 0
        %6777 = vmatprep.subr.bf16.mxu0 0
        %6778 = vmatpush1.bf16.msra.mxu0 0
        %6779 = vmatprep.subr.bf16.mxu0 0
        %6780 = vmatpush1.bf16.msra.mxu0 0
        %6781 = vmatprep.subr.bf16.mxu0 0
        %6782 = vmatpush1.bf16.msra.mxu0 0
        %6783 = vmatprep.subr.bf16.mxu0 0
        %6784 = vmatpush1.bf16.msra.mxu0 0
        %6785 = vmatprep.subr.bf16.mxu0 0
        %6786 = vmatpush1.bf16.msra.mxu0 0
        %6787 = vmatprep.subr.bf16.mxu0 0
        %6788 = vmatpush1.bf16.msra.mxu0 0
        %6789 = vmatprep.subr.bf16.mxu0 0
        %6790 = vmatpush1.bf16.msra.mxu0 0
        %6791 = vmatprep.subr.bf16.mxu0 0
        %6792 = vmatpush1.bf16.msra.mxu0 0
        %6793 = vmatprep.subr.bf16.mxu0 0
        %6794 = vmatpush1.bf16.msra.mxu0 0
        %6795 = vmatprep.subr.bf16.mxu0 0
        %6796 = vmatpush1.bf16.msra.mxu0 0
        %6797 = vmatprep.subr.bf16.mxu0 0
        %6798 = vmatpush1.bf16.msra.mxu0 0
        %6799 = vmatprep.subr.bf16.mxu0 0
        %6800 = vmatpush1.bf16.msra.mxu0 0
        %6801 = vmatprep.mubr.bf16.mxu0 0
        %6802 = vmatmul.mubr.bf16.gmra.mrb[0].mxu0 %v6711
        %v6803 = vpop.f32.mrb[0].mxu0
        %v6804 = vadd.f32 0.0, %v6803
        %v6805 = vpop.f32.mrb[0].mxu0
        %v6806 = vadd.f32 0.0, %v6805
        %v6807 = vpop.f32.mrb[0].mxu0
        %v6808 = vpop.f32.mrb[0].mxu0
        %6809 = vdwg.mxu0
        %6810 = vmatprep.subr.bf16.mxu0 0
        %6811 = vmatpush1.bf16.msra.mxu0 %v6726
        %6812 = vmatprep.subr.bf16.mxu0 0
        %6813 = vmatpush1.bf16.msra.mxu0 0
        %6814 = vmatprep.subr.bf16.mxu0 0
        %6815 = vmatpush1.bf16.msra.mxu0 0
        %6816 = vmatprep.subr.bf16.mxu0 0
        %6817 = vmatpush1.bf16.msra.mxu0 0
        %6818 = vmatprep.subr.bf16.mxu0 0
        %6819 = vmatpush1.bf16.msra.mxu0 0
        %6820 = vmatprep.subr.bf16.mxu0 0
        %6821 = vmatpush1.bf16.msra.mxu0 0
        %6822 = vmatprep.subr.bf16.mxu0 0
        %6823 = vmatpush1.bf16.msra.mxu0 0
        %6824 = vmatprep.subr.bf16.mxu0 0
        %6825 = vmatpush1.bf16.msra.mxu0 0
        %6826 = vmatprep.subr.bf16.mxu0 0
        %6827 = vmatpush1.bf16.msra.mxu0 0
        %6828 = vmatprep.subr.bf16.mxu0 0
        %6829 = vmatpush1.bf16.msra.mxu0 0
        %6830 = vmatprep.subr.bf16.mxu0 0
        %6831 = vmatpush1.bf16.msra.mxu0 0
        %6832 = vmatprep.subr.bf16.mxu0 0
        %6833 = vmatpush1.bf16.msra.mxu0 0
        %6834 = vmatprep.subr.bf16.mxu0 0
        %6835 = vmatpush1.bf16.msra.mxu0 0
        %6836 = vmatprep.subr.bf16.mxu0 0
        %6837 = vmatpush1.bf16.msra.mxu0 0
        %6838 = vmatprep.subr.bf16.mxu0 0
        %6839 = vmatpush1.bf16.msra.mxu0 0
        %6840 = vmatprep.subr.bf16.mxu0 0
        %6841 = vmatpush1.bf16.msra.mxu0 0
        %6842 = vmatprep.mubr.bf16.mxu0 0
        %6843 = vmatmul.mubr.bf16.gmra.mrb[0].mxu0 %v6711
        %v6844 = vpop.f32.mrb[0].mxu0
        %v6845 = vadd.f32 0.0, %v6844
        %v6846 = vpop.f32.mrb[0].mxu0
        %v6847 = vpop.f32.mrb[0].mxu0
        %v6848 = vpop.f32.mrb[0].mxu0
        %6849 = vdwg.mxu0
        %v6850 = vadd.f32 %v6686, %v6763
        %v6851 = vadd.f32 %v6687, %v6765
        %v6852 = vadd.f32 %v6688, %v6804
        %v6853 = vadd.f32 %v6689, %v6806
        %v6854 = vadd.f32 %v6690, %v6845
        %s6855 = scalar_lea.vmem %s4, 32
        %v6856 = vld [vmem:[%s6855] sm:$0xf]
        %6857 = vrot.lane.b32.xlu0 %v6522, 101
        %v6858 = vpop.permute.xlu0 %6857
        %6859 = vrot.lane.b32.xlu0 %v6523, 101
        %v6860 = vpop.permute.xlu0 %6859
        %6861 = vrot.lane.b32.xlu0 %v6524, 101
        %v6862 = vpop.permute.xlu0 %6861
        %6863 = vrot.lane.b32.xlu0 %v6525, 101
        %v6864 = vpop.permute.xlu0 %6863
        %6865 = vrot.lane.b32.xlu0 %v6526, 101
        %v6866 = vpop.permute.xlu0 %6865
        %6867 = vrot.lane.b32.xlu0 %v6527, 101
        %v6868 = vpop.permute.xlu0 %6867
        %v6869 = vsel %vm4511, %v6858, %v6860
        %v6870 = vsel %vm4511, %v6860, %v6862
        %v6871 = vsel %vm4511, %v6862, %v6864
        %v6872 = vsel %vm4511, %v6864, %v6866
        %v6873 = vsel %vm4511, %v6866, %v6868
        %v6875 = vsel %vm5554, %v6856, 0
        %v6878 = vsel %vm5558, %v6869, 0
        %v6881 = vsel %vm5558, %v6870, 0
        %v6884 = vsel %vm5558, %v6871, 0
        %v6887 = vsel %vm5558, %v6872, 0
        %v6890 = vsel %vm5558, %v6873, 0
        %6892 = vmatprep.subr.bf16.mxu0 %v6881
        %6893 = vmatpush1.bf16.msra.mxu0 %v6878
        %6894 = vmatprep.subr.bf16.mxu0 0
        %6895 = vmatpush1.bf16.msra.mxu0 0
        %6896 = vmatprep.subr.bf16.mxu0 0
        %6897 = vmatpush1.bf16.msra.mxu0 0
        %6898 = vmatprep.subr.bf16.mxu0 0
        %6899 = vmatpush1.bf16.msra.mxu0 0
        %6900 = vmatprep.subr.bf16.mxu0 0
        %6901 = vmatpush1.bf16.msra.mxu0 0
        %6902 = vmatprep.subr.bf16.mxu0 0
        %6903 = vmatpush1.bf16.msra.mxu0 0
        %6904 = vmatprep.subr.bf16.mxu0 0
        %6905 = vmatpush1.bf16.msra.mxu0 0
        %6906 = vmatprep.subr.bf16.mxu0 0
        %6907 = vmatpush1.bf16.msra.mxu0 0
        %6908 = vmatprep.subr.bf16.mxu0 0
        %6909 = vmatpush1.bf16.msra.mxu0 0
        %6910 = vmatprep.subr.bf16.mxu0 0
        %6911 = vmatpush1.bf16.msra.mxu0 0
        %6912 = vmatprep.subr.bf16.mxu0 0
        %6913 = vmatpush1.bf16.msra.mxu0 0
        %6914 = vmatprep.subr.bf16.mxu0 0
        %6915 = vmatpush1.bf16.msra.mxu0 0
        %6916 = vmatprep.subr.bf16.mxu0 0
        %6917 = vmatpush1.bf16.msra.mxu0 0
        %6918 = vmatprep.subr.bf16.mxu0 0
        %6919 = vmatpush1.bf16.msra.mxu0 0
        %6920 = vmatprep.subr.bf16.mxu0 0
        %6921 = vmatpush1.bf16.msra.mxu0 0
        %6922 = vmatprep.subr.bf16.mxu0 0
        %6923 = vmatpush1.bf16.msra.mxu0 0
        %6924 = vmatprep.mubr.bf16.mxu0 0
        %6925 = vmatmul.mubr.bf16.gmra.mrb[0].mxu0 %v6875
        %v6926 = vpop.f32.mrb[0].mxu0
        %v6927 = vadd.f32 0.0, %v6926
        %v6928 = vpop.f32.mrb[0].mxu0
        %v6929 = vadd.f32 0.0, %v6928
        %v6930 = vpop.f32.mrb[0].mxu0
        %v6931 = vpop.f32.mrb[0].mxu0
        %6932 = vdwg.mxu0
        %6933 = vmatprep.subr.bf16.mxu0 %v6887
        %6934 = vmatpush1.bf16.msra.mxu0 %v6884
        %6935 = vmatprep.subr.bf16.mxu0 0
        %6936 = vmatpush1.bf16.msra.mxu0 0
        %6937 = vmatprep.subr.bf16.mxu0 0
        %6938 = vmatpush1.bf16.msra.mxu0 0
        %6939 = vmatprep.subr.bf16.mxu0 0
        %6940 = vmatpush1.bf16.msra.mxu0 0
        %6941 = vmatprep.subr.bf16.mxu0 0
        %6942 = vmatpush1.bf16.msra.mxu0 0
        %6943 = vmatprep.subr.bf16.mxu0 0
        %6944 = vmatpush1.bf16.msra.mxu0 0
        %6945 = vmatprep.subr.bf16.mxu0 0
        %6946 = vmatpush1.bf16.msra.mxu0 0
        %6947 = vmatprep.subr.bf16.mxu0 0
        %6948 = vmatpush1.bf16.msra.mxu0 0
        %6949 = vmatprep.subr.bf16.mxu0 0
        %6950 = vmatpush1.bf16.msra.mxu0 0
        %6951 = vmatprep.subr.bf16.mxu0 0
        %6952 = vmatpush1.bf16.msra.mxu0 0
        %6953 = vmatprep.subr.bf16.mxu0 0
        %6954 = vmatpush1.bf16.msra.mxu0 0
        %6955 = vmatprep.subr.bf16.mxu0 0
        %6956 = vmatpush1.bf16.msra.mxu0 0
        %6957 = vmatprep.subr.bf16.mxu0 0
        %6958 = vmatpush1.bf16.msra.mxu0 0
        %6959 = vmatprep.subr.bf16.mxu0 0
        %6960 = vmatpush1.bf16.msra.mxu0 0
        %6961 = vmatprep.subr.bf16.mxu0 0
        %6962 = vmatpush1.bf16.msra.mxu0 0
        %6963 = vmatprep.subr.bf16.mxu0 0
        %6964 = vmatpush1.bf16.msra.mxu0 0
        %6965 = vmatprep.mubr.bf16.mxu0 0
        %6966 = vmatmul.mubr.bf16.gmra.mrb[0].mxu0 %v6875
        %v6967 = vpop.f32.mrb[0].mxu0
        %v6968 = vadd.f32 0.0, %v6967
        %v6969 = vpop.f32.mrb[0].mxu0
        %v6970 = vadd.f32 0.0, %v6969
        %v6971 = vpop.f32.mrb[0].mxu0
        %v6972 = vpop.f32.mrb[0].mxu0
        %6973 = vdwg.mxu0
        %6974 = vmatprep.subr.bf16.mxu0 0
        %6975 = vmatpush1.bf16.msra.mxu0 %v6890
        %6976 = vmatprep.subr.bf16.mxu0 0
        %6977 = vmatpush1.bf16.msra.mxu0 0
        %6978 = vmatprep.subr.bf16.mxu0 0
        %6979 = vmatpush1.bf16.msra.mxu0 0
        %6980 = vmatprep.subr.bf16.mxu0 0
        %6981 = vmatpush1.bf16.msra.mxu0 0
        %6982 = vmatprep.subr.bf16.mxu0 0
        %6983 = vmatpush1.bf16.msra.mxu0 0
        %6984 = vmatprep.subr.bf16.mxu0 0
        %6985 = vmatpush1.bf16.msra.mxu0 0
        %6986 = vmatprep.subr.bf16.mxu0 0
        %6987 = vmatpush1.bf16.msra.mxu0 0
        %6988 = vmatprep.subr.bf16.mxu0 0
        %6989 = vmatpush1.bf16.msra.mxu0 0
        %6990 = vmatprep.subr.bf16.mxu0 0
        %6991 = vmatpush1.bf16.msra.mxu0 0
        %6992 = vmatprep.subr.bf16.mxu0 0
        %6993 = vmatpush1.bf16.msra.mxu0 0
        %6994 = vmatprep.subr.bf16.mxu0 0
        %6995 = vmatpush1.bf16.msra.mxu0 0
        %6996 = vmatprep.subr.bf16.mxu0 0
        %6997 = vmatpush1.bf16.msra.mxu0 0
        %6998 = vmatprep.subr.bf16.mxu0 0
        %6999 = vmatpush1.bf16.msra.mxu0 0
        %7000 = vmatprep.subr.bf16.mxu0 0
        %7001 = vmatpush1.bf16.msra.mxu0 0
        %7002 = vmatprep.subr.bf16.mxu0 0
        %7003 = vmatpush1.bf16.msra.mxu0 0
        %7004 = vmatprep.subr.bf16.mxu0 0
        %7005 = vmatpush1.bf16.msra.mxu0 0
        %7006 = vmatprep.mubr.bf16.mxu0 0
        %7007 = vmatmul.mubr.bf16.gmra.mrb[0].mxu0 %v6875
        %v7008 = vpop.f32.mrb[0].mxu0
        %v7009 = vadd.f32 0.0, %v7008
        %v7010 = vpop.f32.mrb[0].mxu0
        %v7011 = vpop.f32.mrb[0].mxu0
        %v7012 = vpop.f32.mrb[0].mxu0
        %7013 = vdwg.mxu0
        %v7014 = vadd.f32 %v6850, %v6927
        %v7015 = vadd.f32 %v6851, %v6929
        %v7016 = vadd.f32 %v6852, %v6968
        %v7017 = vadd.f32 %v6853, %v6970
        %v7018 = vadd.f32 %v6854, %v7009
        %v7019 = vld [vmem:[%s5] sm:$0xff]
        %7021 = vset.pattern.permute.xlu0 0
        %7022 = vperm.xlu0 %7021, %v7019
        %v7023 = vpop.permute.xlu0 %7022
        %v7025 = vadd.f32 %v7014, %v7023
        %v7026 = vadd.f32 %v7015, %v7023
        %v7027 = vadd.f32 %v7016, %v7023
        %v7028 = vadd.f32 %v7017, %v7023
        %v7029 = vadd.f32 %v7018, %v7023
        %v7030 = vmax.f32 %v7025, 0.0
        %v7031 = vmax.f32 %v7026, 0.0
        %v7032 = vmax.f32 %v7027, 0.0
        %v7033 = vmax.f32 %v7028, 0.0
        %v7034 = vmax.f32 %v7029, 0.0
        %v7036 = vcombine.high %v7030, %v7030
        %v7038 = vunpack.c.l.s4 1966171168
        %v7039 = vunpack.c.0.s8 %v7038
        %v7040 = vlaneseq
        %v7041 = vshrl.u32 %v7040, 7
        %v7042 = vsub.s32 %v7039, %v7041
        %v7043 = vrot.slane %v7030, %v7042
        %v7045 = vunpack.c.l.s4 1966171168
        %v7046 = vunpack.c.0.s8 %v7045
        %v7047 = vlaneseq
        %v7048 = vshrl.u32 %v7047, 7
        %v7049 = vsub.s32 %v7046, %v7048
        %v7050 = vrot.slane %v7036, %v7049
        %v7051 = vcombine.high %v7043, %v7043
        %v7052 = vcombine.high %v7050, %v7050
        %v7054 = vunpack.c.l.s4 1966171168
        %v7055 = vunpack.c.0.s8 %v7054
        %v7056 = vlaneseq
        %v7057 = vshrl.u32 %v7056, 7
        %v7058 = vsub.s32 %v7055, %v7057
        %v7059 = vrot.slane %v7043, %v7058
        %v7061 = vunpack.c.l.s4 1966171168
        %v7062 = vunpack.c.0.s8 %v7061
        %v7063 = vlaneseq
        %v7064 = vshrl.u32 %v7063, 7
        %v7065 = vsub.s32 %v7062, %v7064
        %v7066 = vrot.slane %v7050, %v7065
        %v7068 = vunpack.c.l.s4 1966171168
        %v7069 = vunpack.c.0.s8 %v7068
        %v7070 = vlaneseq
        %v7071 = vshrl.u32 %v7070, 7
        %v7072 = vsub.s32 %v7069, %v7071
        %v7073 = vrot.slane %v7051, %v7072
        %v7075 = vunpack.c.l.s4 1966171168
        %v7076 = vunpack.c.0.s8 %v7075
        %v7077 = vlaneseq
        %v7078 = vshrl.u32 %v7077, 7
        %v7079 = vsub.s32 %v7076, %v7078
        %v7080 = vrot.slane %v7052, %v7079
        %v7081 = vcombine.high %v7059, %v7059
        %v7082 = vcombine.high %v7066, %v7066
        %v7083 = vcombine.high %v7073, %v7073
        %v7084 = vcombine.high %v7080, %v7080
        %vm7093 = vcmask 188416
        %7094 = vst.msk [vmem:[%s296] sm:$0x1] %vm7093, %v7059
        %7095 = vst.msk [vmem:[%s296 + $0x18] sm:$0x1] %vm7093, %v7073
        %7096 = vst.msk [vmem:[%s296 + $0x30] sm:$0x1] %vm7093, %v7081
        %7097 = vst.msk [vmem:[%s296 + $0x48] sm:$0x1] %vm7093, %v7083
        %7098 = vst.msk [vmem:[%s296 + $0x60] sm:$0x1] %vm7093, %v7066
        %7099 = vst.msk [vmem:[%s296 + $0x78] sm:$0x1] %vm7093, %v7080
        %7100 = vst.msk [vmem:[%s296 + $0x90] sm:$0x1] %vm7093, %v7082
        %7101 = vst.msk [vmem:[%s296 + $0xa8] sm:$0x1] %vm7093, %v7084
        %v7102 = vlaneseq
        %v7103 = vshrl.u32 %v7102, 7
        %v7104 = vsub.s32 0, %v7103
        %v7105 = vrot.slane %v7059, %v7104
        %v7106 = vlaneseq
        %v7107 = vshrl.u32 %v7106, 7
        %v7108 = vsub.s32 0, %v7107
        %v7109 = vrot.slane %v7073, %v7108
        %v7110 = vlaneseq
        %v7111 = vshrl.u32 %v7110, 7
        %v7112 = vsub.s32 0, %v7111
        %v7113 = vrot.slane %v7081, %v7112
        %v7114 = vlaneseq
        %v7115 = vshrl.u32 %v7114, 7
        %v7116 = vsub.s32 0, %v7115
        %v7117 = vrot.slane %v7083, %v7116
        %v7118 = vlaneseq
        %v7119 = vshrl.u32 %v7118, 7
        %v7120 = vsub.s32 0, %v7119
        %v7121 = vrot.slane %v7066, %v7120
        %v7122 = vlaneseq
        %v7123 = vshrl.u32 %v7122, 7
        %v7124 = vsub.s32 0, %v7123
        %v7125 = vrot.slane %v7080, %v7124
        %v7126 = vlaneseq
        %v7127 = vshrl.u32 %v7126, 7
        %v7128 = vsub.s32 0, %v7127
        %v7129 = vrot.slane %v7082, %v7128
        %v7130 = vlaneseq
        %v7131 = vshrl.u32 %v7130, 7
        %v7132 = vsub.s32 0, %v7131
        %v7133 = vrot.slane %v7084, %v7132
        %7134 = vrot.lane.b32.xlu0 %v7105, 102
        %v7135 = vpop.permute.xlu0 %7134
        %7136 = vrot.lane.b32.xlu0 %v7109, 102
        %v7137 = vpop.permute.xlu0 %7136
        %7138 = vrot.lane.b32.xlu0 %v7113, 102
        %v7139 = vpop.permute.xlu0 %7138
        %7140 = vrot.lane.b32.xlu0 %v7117, 102
        %v7141 = vpop.permute.xlu0 %7140
        %7142 = vrot.lane.b32.xlu0 %v7121, 102
        %v7143 = vpop.permute.xlu0 %7142
        %7144 = vrot.lane.b32.xlu0 %v7125, 102
        %v7145 = vpop.permute.xlu0 %7144
        %7146 = vrot.lane.b32.xlu0 %v7129, 102
        %v7147 = vpop.permute.xlu0 %7146
        %7148 = vrot.lane.b32.xlu0 %v7133, 102
        %v7149 = vpop.permute.xlu0 %7148
        %7158 = vst.msk [vmem:[%s296 + $0x1] sm:$0x1] %vm7093, %v7135
        %7159 = vst.msk [vmem:[%s296 + $0x19] sm:$0x1] %vm7093, %v7137
        %7160 = vst.msk [vmem:[%s296 + $0x31] sm:$0x1] %vm7093, %v7139
        %7161 = vst.msk [vmem:[%s296 + $0x49] sm:$0x1] %vm7093, %v7141
        %7162 = vst.msk [vmem:[%s296 + $0x61] sm:$0x1] %vm7093, %v7143
        %7163 = vst.msk [vmem:[%s296 + $0x79] sm:$0x1] %vm7093, %v7145
        %7164 = vst.msk [vmem:[%s296 + $0x91] sm:$0x1] %vm7093, %v7147
        %7165 = vst.msk [vmem:[%s296 + $0xa9] sm:$0x1] %vm7093, %v7149
        %7166 = vrot.lane.b32.xlu0 %v7105, 76
        %v7167 = vpop.permute.xlu0 %7166
        %7168 = vrot.lane.b32.xlu0 %v7109, 76
        %v7169 = vpop.permute.xlu0 %7168
        %7170 = vrot.lane.b32.xlu0 %v7113, 76
        %v7171 = vpop.permute.xlu0 %7170
        %7172 = vrot.lane.b32.xlu0 %v7117, 76
        %v7173 = vpop.permute.xlu0 %7172
        %7174 = vrot.lane.b32.xlu0 %v7121, 76
        %v7175 = vpop.permute.xlu0 %7174
        %7176 = vrot.lane.b32.xlu0 %v7125, 76
        %v7177 = vpop.permute.xlu0 %7176
        %7178 = vrot.lane.b32.xlu0 %v7129, 76
        %v7179 = vpop.permute.xlu0 %7178
        %7180 = vrot.lane.b32.xlu0 %v7133, 76
        %v7181 = vpop.permute.xlu0 %7180
        %7190 = vst.msk [vmem:[%s296 + $0x2] sm:$0x1] %vm7093, %v7167
        %7191 = vst.msk [vmem:[%s296 + $0x1a] sm:$0x1] %vm7093, %v7169
        %7192 = vst.msk [vmem:[%s296 + $0x32] sm:$0x1] %vm7093, %v7171
        %7193 = vst.msk [vmem:[%s296 + $0x4a] sm:$0x1] %vm7093, %v7173
        %7194 = vst.msk [vmem:[%s296 + $0x62] sm:$0x1] %vm7093, %v7175
        %7195 = vst.msk [vmem:[%s296 + $0x7a] sm:$0x1] %vm7093, %v7177
        %7196 = vst.msk [vmem:[%s296 + $0x92] sm:$0x1] %vm7093, %v7179
        %7197 = vst.msk [vmem:[%s296 + $0xaa] sm:$0x1] %vm7093, %v7181
        %7198 = vrot.lane.b32.xlu0 %v7105, 50
        %v7199 = vpop.permute.xlu0 %7198
        %7200 = vrot.lane.b32.xlu0 %v7109, 50
        %v7201 = vpop.permute.xlu0 %7200
        %7202 = vrot.lane.b32.xlu0 %v7113, 50
        %v7203 = vpop.permute.xlu0 %7202
        %7204 = vrot.lane.b32.xlu0 %v7117, 50
        %v7205 = vpop.permute.xlu0 %7204
        %7206 = vrot.lane.b32.xlu0 %v7121, 50
        %v7207 = vpop.permute.xlu0 %7206
        %7208 = vrot.lane.b32.xlu0 %v7125, 50
        %v7209 = vpop.permute.xlu0 %7208
        %7210 = vrot.lane.b32.xlu0 %v7129, 50
        %v7211 = vpop.permute.xlu0 %7210
        %7212 = vrot.lane.b32.xlu0 %v7133, 50
        %v7213 = vpop.permute.xlu0 %7212
        %7222 = vst.msk [vmem:[%s296 + $0x3] sm:$0x1] %vm7093, %v7199
        %7223 = vst.msk [vmem:[%s296 + $0x1b] sm:$0x1] %vm7093, %v7201
        %7224 = vst.msk [vmem:[%s296 + $0x33] sm:$0x1] %vm7093, %v7203
        %7225 = vst.msk [vmem:[%s296 + $0x4b] sm:$0x1] %vm7093, %v7205
        %7226 = vst.msk [vmem:[%s296 + $0x63] sm:$0x1] %vm7093, %v7207
        %7227 = vst.msk [vmem:[%s296 + $0x7b] sm:$0x1] %vm7093, %v7209
        %7228 = vst.msk [vmem:[%s296 + $0x93] sm:$0x1] %vm7093, %v7211
        %7229 = vst.msk [vmem:[%s296 + $0xab] sm:$0x1] %vm7093, %v7213
        %7230 = vrot.lane.b32.xlu0 %v7105, 24
        %v7231 = vpop.permute.xlu0 %7230
        %7232 = vrot.lane.b32.xlu0 %v7109, 24
        %v7233 = vpop.permute.xlu0 %7232
        %7234 = vrot.lane.b32.xlu0 %v7113, 24
        %v7235 = vpop.permute.xlu0 %7234
        %7236 = vrot.lane.b32.xlu0 %v7117, 24
        %v7237 = vpop.permute.xlu0 %7236
        %7238 = vrot.lane.b32.xlu0 %v7121, 24
        %v7239 = vpop.permute.xlu0 %7238
        %7240 = vrot.lane.b32.xlu0 %v7125, 24
        %v7241 = vpop.permute.xlu0 %7240
        %7242 = vrot.lane.b32.xlu0 %v7129, 24
        %v7243 = vpop.permute.xlu0 %7242
        %7244 = vrot.lane.b32.xlu0 %v7133, 24
        %v7245 = vpop.permute.xlu0 %7244
        %7254 = vst.msk [vmem:[%s296 + $0x4] sm:$0x1] %vm7093, %v7231
        %7255 = vst.msk [vmem:[%s296 + $0x1c] sm:$0x1] %vm7093, %v7233
        %7256 = vst.msk [vmem:[%s296 + $0x34] sm:$0x1] %vm7093, %v7235
        %7257 = vst.msk [vmem:[%s296 + $0x4c] sm:$0x1] %vm7093, %v7237
        %7258 = vst.msk [vmem:[%s296 + $0x64] sm:$0x1] %vm7093, %v7239
        %7259 = vst.msk [vmem:[%s296 + $0x7c] sm:$0x1] %vm7093, %v7241
        %7260 = vst.msk [vmem:[%s296 + $0x94] sm:$0x1] %vm7093, %v7243
        %7261 = vst.msk [vmem:[%s296 + $0xac] sm:$0x1] %vm7093, %v7245
        %v7263 = vcombine.high %v7031, %v7031
        %v7265 = vunpack.c.l.s4 1966171168
        %v7266 = vunpack.c.0.s8 %v7265
        %v7267 = vlaneseq
        %v7268 = vshrl.u32 %v7267, 7
        %v7269 = vsub.s32 %v7266, %v7268
        %v7270 = vrot.slane %v7031, %v7269
        %v7272 = vunpack.c.l.s4 1966171168
        %v7273 = vunpack.c.0.s8 %v7272
        %v7274 = vlaneseq
        %v7275 = vshrl.u32 %v7274, 7
        %v7276 = vsub.s32 %v7273, %v7275
        %v7277 = vrot.slane %v7263, %v7276
        %v7278 = vcombine.high %v7270, %v7270
        %v7279 = vcombine.high %v7277, %v7277
        %v7281 = vunpack.c.l.s4 1966171168
        %v7282 = vunpack.c.0.s8 %v7281
        %v7283 = vlaneseq
        %v7284 = vshrl.u32 %v7283, 7
        %v7285 = vsub.s32 %v7282, %v7284
        %v7286 = vrot.slane %v7270, %v7285
        %v7288 = vunpack.c.l.s4 1966171168
        %v7289 = vunpack.c.0.s8 %v7288
        %v7290 = vlaneseq
        %v7291 = vshrl.u32 %v7290, 7
        %v7292 = vsub.s32 %v7289, %v7291
        %v7293 = vrot.slane %v7277, %v7292
        %v7295 = vunpack.c.l.s4 1966171168
        %v7296 = vunpack.c.0.s8 %v7295
        %v7297 = vlaneseq
        %v7298 = vshrl.u32 %v7297, 7
        %v7299 = vsub.s32 %v7296, %v7298
        %v7300 = vrot.slane %v7278, %v7299
        %v7302 = vunpack.c.l.s4 1966171168
        %v7303 = vunpack.c.0.s8 %v7302
        %v7304 = vlaneseq
        %v7305 = vshrl.u32 %v7304, 7
        %v7306 = vsub.s32 %v7303, %v7305
        %v7307 = vrot.slane %v7279, %v7306
        %v7308 = vcombine.high %v7286, %v7286
        %v7309 = vcombine.high %v7293, %v7293
        %v7310 = vcombine.high %v7300, %v7300
        %v7311 = vcombine.high %v7307, %v7307
        %v7312 = vlaneseq
        %v7313 = vshrl.u32 %v7312, 7
        %v7314 = vsub.s32 0, %v7313
        %v7315 = vrot.slane %v7286, %v7314
        %v7316 = vlaneseq
        %v7317 = vshrl.u32 %v7316, 7
        %v7318 = vsub.s32 0, %v7317
        %v7319 = vrot.slane %v7300, %v7318
        %v7320 = vlaneseq
        %v7321 = vshrl.u32 %v7320, 7
        %v7322 = vsub.s32 0, %v7321
        %v7323 = vrot.slane %v7308, %v7322
        %v7324 = vlaneseq
        %v7325 = vshrl.u32 %v7324, 7
        %v7326 = vsub.s32 0, %v7325
        %v7327 = vrot.slane %v7310, %v7326
        %v7328 = vlaneseq
        %v7329 = vshrl.u32 %v7328, 7
        %v7330 = vsub.s32 0, %v7329
        %v7331 = vrot.slane %v7293, %v7330
        %v7332 = vlaneseq
        %v7333 = vshrl.u32 %v7332, 7
        %v7334 = vsub.s32 0, %v7333
        %v7335 = vrot.slane %v7307, %v7334
        %v7336 = vlaneseq
        %v7337 = vshrl.u32 %v7336, 7
        %v7338 = vsub.s32 0, %v7337
        %v7339 = vrot.slane %v7309, %v7338
        %v7340 = vlaneseq
        %v7341 = vshrl.u32 %v7340, 7
        %v7342 = vsub.s32 0, %v7341
        %v7343 = vrot.slane %v7311, %v7342
        %7344 = vrot.lane.b32.xlu0 %v7315, 126
        %v7345 = vpop.permute.xlu0 %7344
        %7346 = vrot.lane.b32.xlu0 %v7319, 126
        %v7347 = vpop.permute.xlu0 %7346
        %7348 = vrot.lane.b32.xlu0 %v7323, 126
        %v7349 = vpop.permute.xlu0 %7348
        %7350 = vrot.lane.b32.xlu0 %v7327, 126
        %v7351 = vpop.permute.xlu0 %7350
        %7352 = vrot.lane.b32.xlu0 %v7331, 126
        %v7353 = vpop.permute.xlu0 %7352
        %7354 = vrot.lane.b32.xlu0 %v7335, 126
        %v7355 = vpop.permute.xlu0 %7354
        %7356 = vrot.lane.b32.xlu0 %v7339, 126
        %v7357 = vpop.permute.xlu0 %7356
        %7358 = vrot.lane.b32.xlu0 %v7343, 126
        %v7359 = vpop.permute.xlu0 %7358
        %7368 = vst.msk [vmem:[%s296 + $0x5] sm:$0x1] %vm7093, %v7345
        %7369 = vst.msk [vmem:[%s296 + $0x1d] sm:$0x1] %vm7093, %v7347
        %7370 = vst.msk [vmem:[%s296 + $0x35] sm:$0x1] %vm7093, %v7349
        %7371 = vst.msk [vmem:[%s296 + $0x4d] sm:$0x1] %vm7093, %v7351
        %7372 = vst.msk [vmem:[%s296 + $0x65] sm:$0x1] %vm7093, %v7353
        %7373 = vst.msk [vmem:[%s296 + $0x7d] sm:$0x1] %vm7093, %v7355
        %7374 = vst.msk [vmem:[%s296 + $0x95] sm:$0x1] %vm7093, %v7357
        %7375 = vst.msk [vmem:[%s296 + $0xad] sm:$0x1] %vm7093, %v7359
        %7376 = vrot.lane.b32.xlu0 %v7315, 100
        %v7377 = vpop.permute.xlu0 %7376
        %7378 = vrot.lane.b32.xlu0 %v7319, 100
        %v7379 = vpop.permute.xlu0 %7378
        %7380 = vrot.lane.b32.xlu0 %v7323, 100
        %v7381 = vpop.permute.xlu0 %7380
        %7382 = vrot.lane.b32.xlu0 %v7327, 100
        %v7383 = vpop.permute.xlu0 %7382
        %7384 = vrot.lane.b32.xlu0 %v7331, 100
        %v7385 = vpop.permute.xlu0 %7384
        %7386 = vrot.lane.b32.xlu0 %v7335, 100
        %v7387 = vpop.permute.xlu0 %7386
        %7388 = vrot.lane.b32.xlu0 %v7339, 100
        %v7389 = vpop.permute.xlu0 %7388
        %7390 = vrot.lane.b32.xlu0 %v7343, 100
        %v7391 = vpop.permute.xlu0 %7390
        %7400 = vst.msk [vmem:[%s296 + $0x6] sm:$0x1] %vm7093, %v7377
        %7401 = vst.msk [vmem:[%s296 + $0x1e] sm:$0x1] %vm7093, %v7379
        %7402 = vst.msk [vmem:[%s296 + $0x36] sm:$0x1] %vm7093, %v7381
        %7403 = vst.msk [vmem:[%s296 + $0x4e] sm:$0x1] %vm7093, %v7383
        %7404 = vst.msk [vmem:[%s296 + $0x66] sm:$0x1] %vm7093, %v7385
        %7405 = vst.msk [vmem:[%s296 + $0x7e] sm:$0x1] %vm7093, %v7387
        %7406 = vst.msk [vmem:[%s296 + $0x96] sm:$0x1] %vm7093, %v7389
        %7407 = vst.msk [vmem:[%s296 + $0xae] sm:$0x1] %vm7093, %v7391
        %7408 = vrot.lane.b32.xlu0 %v7315, 74
        %v7409 = vpop.permute.xlu0 %7408
        %7410 = vrot.lane.b32.xlu0 %v7319, 74
        %v7411 = vpop.permute.xlu0 %7410
        %7412 = vrot.lane.b32.xlu0 %v7323, 74
        %v7413 = vpop.permute.xlu0 %7412
        %7414 = vrot.lane.b32.xlu0 %v7327, 74
        %v7415 = vpop.permute.xlu0 %7414
        %7416 = vrot.lane.b32.xlu0 %v7331, 74
        %v7417 = vpop.permute.xlu0 %7416
        %7418 = vrot.lane.b32.xlu0 %v7335, 74
        %v7419 = vpop.permute.xlu0 %7418
        %7420 = vrot.lane.b32.xlu0 %v7339, 74
        %v7421 = vpop.permute.xlu0 %7420
        %7422 = vrot.lane.b32.xlu0 %v7343, 74
        %v7423 = vpop.permute.xlu0 %7422
        %7432 = vst.msk [vmem:[%s296 + $0x7] sm:$0x1] %vm7093, %v7409
        %7433 = vst.msk [vmem:[%s296 + $0x1f] sm:$0x1] %vm7093, %v7411
        %7434 = vst.msk [vmem:[%s296 + $0x37] sm:$0x1] %vm7093, %v7413
        %7435 = vst.msk [vmem:[%s296 + $0x4f] sm:$0x1] %vm7093, %v7415
        %7436 = vst.msk [vmem:[%s296 + $0x67] sm:$0x1] %vm7093, %v7417
        %7437 = vst.msk [vmem:[%s296 + $0x7f] sm:$0x1] %vm7093, %v7419
        %7438 = vst.msk [vmem:[%s296 + $0x97] sm:$0x1] %vm7093, %v7421
        %7439 = vst.msk [vmem:[%s296 + $0xaf] sm:$0x1] %vm7093, %v7423
        %7440 = vrot.lane.b32.xlu0 %v7315, 48
        %v7441 = vpop.permute.xlu0 %7440
        %7442 = vrot.lane.b32.xlu0 %v7319, 48
        %v7443 = vpop.permute.xlu0 %7442
        %7444 = vrot.lane.b32.xlu0 %v7323, 48
        %v7445 = vpop.permute.xlu0 %7444
        %7446 = vrot.lane.b32.xlu0 %v7327, 48
        %v7447 = vpop.permute.xlu0 %7446
        %7448 = vrot.lane.b32.xlu0 %v7331, 48
        %v7449 = vpop.permute.xlu0 %7448
        %7450 = vrot.lane.b32.xlu0 %v7335, 48
        %v7451 = vpop.permute.xlu0 %7450
        %7452 = vrot.lane.b32.xlu0 %v7339, 48
        %v7453 = vpop.permute.xlu0 %7452
        %7454 = vrot.lane.b32.xlu0 %v7343, 48
        %v7455 = vpop.permute.xlu0 %7454
        %7464 = vst.msk [vmem:[%s296 + $0x8] sm:$0x1] %vm7093, %v7441
        %7465 = vst.msk [vmem:[%s296 + $0x20] sm:$0x1] %vm7093, %v7443
        %7466 = vst.msk [vmem:[%s296 + $0x38] sm:$0x1] %vm7093, %v7445
        %7467 = vst.msk [vmem:[%s296 + $0x50] sm:$0x1] %vm7093, %v7447
        %7468 = vst.msk [vmem:[%s296 + $0x68] sm:$0x1] %vm7093, %v7449
        %7469 = vst.msk [vmem:[%s296 + $0x80] sm:$0x1] %vm7093, %v7451
        %7470 = vst.msk [vmem:[%s296 + $0x98] sm:$0x1] %vm7093, %v7453
        %7471 = vst.msk [vmem:[%s296 + $0xb0] sm:$0x1] %vm7093, %v7455
        %v7473 = vcombine.low %v7031, %v7032
        %v7474 = vcombine.high %v7031, %v7032
        %v7476 = vunpack.c.l.s4 1966171168
        %v7477 = vunpack.c.0.s8 %v7476
        %v7478 = vlaneseq
        %v7479 = vshrl.u32 %v7478, 7
        %v7480 = vsub.s32 %v7477, %v7479
        %v7481 = vrot.slane %v7473, %v7480
        %v7483 = vunpack.c.l.s4 1966171168
        %v7484 = vunpack.c.0.s8 %v7483
        %v7485 = vlaneseq
        %v7486 = vshrl.u32 %v7485, 7
        %v7487 = vsub.s32 %v7484, %v7486
        %v7488 = vrot.slane %v7474, %v7487
        %v7489 = vcombine.high %v7481, %v7481
        %v7490 = vcombine.high %v7488, %v7488
        %v7492 = vunpack.c.l.s4 1966171168
        %v7493 = vunpack.c.0.s8 %v7492
        %v7494 = vlaneseq
        %v7495 = vshrl.u32 %v7494, 7
        %v7496 = vsub.s32 %v7493, %v7495
        %v7497 = vrot.slane %v7481, %v7496
        %v7499 = vunpack.c.l.s4 1966171168
        %v7500 = vunpack.c.0.s8 %v7499
        %v7501 = vlaneseq
        %v7502 = vshrl.u32 %v7501, 7
        %v7503 = vsub.s32 %v7500, %v7502
        %v7504 = vrot.slane %v7488, %v7503
        %v7506 = vunpack.c.l.s4 1966171168
        %v7507 = vunpack.c.0.s8 %v7506
        %v7508 = vlaneseq
        %v7509 = vshrl.u32 %v7508, 7
        %v7510 = vsub.s32 %v7507, %v7509
        %v7511 = vrot.slane %v7489, %v7510
        %v7513 = vunpack.c.l.s4 1966171168
        %v7514 = vunpack.c.0.s8 %v7513
        %v7515 = vlaneseq
        %v7516 = vshrl.u32 %v7515, 7
        %v7517 = vsub.s32 %v7514, %v7516
        %v7518 = vrot.slane %v7490, %v7517
        %v7519 = vcombine.high %v7497, %v7497
        %v7520 = vcombine.high %v7504, %v7504
        %v7521 = vcombine.high %v7511, %v7511
        %v7522 = vcombine.high %v7518, %v7518
        %v7523 = vlaneseq
        %v7524 = vshrl.u32 %v7523, 7
        %v7525 = vsub.s32 0, %v7524
        %v7526 = vrot.slane %v7497, %v7525
        %v7527 = vlaneseq
        %v7528 = vshrl.u32 %v7527, 7
        %v7529 = vsub.s32 1, %v7528
        %v7530 = vrot.slane %v7497, %v7529
        %v7531 = vlaneseq
        %v7532 = vshrl.u32 %v7531, 7
        %v7533 = vsub.s32 0, %v7532
        %v7534 = vrot.slane %v7511, %v7533
        %v7535 = vlaneseq
        %v7536 = vshrl.u32 %v7535, 7
        %v7537 = vsub.s32 1, %v7536
        %v7538 = vrot.slane %v7511, %v7537
        %v7539 = vlaneseq
        %v7540 = vshrl.u32 %v7539, 7
        %v7541 = vsub.s32 0, %v7540
        %v7542 = vrot.slane %v7519, %v7541
        %v7543 = vlaneseq
        %v7544 = vshrl.u32 %v7543, 7
        %v7545 = vsub.s32 1, %v7544
        %v7546 = vrot.slane %v7519, %v7545
        %v7547 = vlaneseq
        %v7548 = vshrl.u32 %v7547, 7
        %v7549 = vsub.s32 0, %v7548
        %v7550 = vrot.slane %v7521, %v7549
        %v7551 = vlaneseq
        %v7552 = vshrl.u32 %v7551, 7
        %v7553 = vsub.s32 1, %v7552
        %v7554 = vrot.slane %v7521, %v7553
        %v7555 = vlaneseq
        %v7556 = vshrl.u32 %v7555, 7
        %v7557 = vsub.s32 0, %v7556
        %v7558 = vrot.slane %v7504, %v7557
        %v7559 = vlaneseq
        %v7560 = vshrl.u32 %v7559, 7
        %v7561 = vsub.s32 1, %v7560
        %v7562 = vrot.slane %v7504, %v7561
        %v7563 = vlaneseq
        %v7564 = vshrl.u32 %v7563, 7
        %v7565 = vsub.s32 0, %v7564
        %v7566 = vrot.slane %v7518, %v7565
        %v7567 = vlaneseq
        %v7568 = vshrl.u32 %v7567, 7
        %v7569 = vsub.s32 1, %v7568
        %v7570 = vrot.slane %v7518, %v7569
        %v7571 = vlaneseq
        %v7572 = vshrl.u32 %v7571, 7
        %v7573 = vsub.s32 0, %v7572
        %v7574 = vrot.slane %v7520, %v7573
        %v7575 = vlaneseq
        %v7576 = vshrl.u32 %v7575, 7
        %v7577 = vsub.s32 1, %v7576
        %v7578 = vrot.slane %v7520, %v7577
        %v7579 = vlaneseq
        %v7580 = vshrl.u32 %v7579, 7
        %v7581 = vsub.s32 0, %v7580
        %v7582 = vrot.slane %v7522, %v7581
        %v7583 = vlaneseq
        %v7584 = vshrl.u32 %v7583, 7
        %v7585 = vsub.s32 1, %v7584
        %v7586 = vrot.slane %v7522, %v7585
        %7587 = vrot.lane.b32.xlu0 %v7526, 22
        %v7588 = vpop.permute.xlu0 %7587
        %7589 = vrot.lane.b32.xlu0 %v7530, 22
        %v7590 = vpop.permute.xlu0 %7589
        %7591 = vrot.lane.b32.xlu0 %v7534, 22
        %v7592 = vpop.permute.xlu0 %7591
        %7593 = vrot.lane.b32.xlu0 %v7538, 22
        %v7594 = vpop.permute.xlu0 %7593
        %7595 = vrot.lane.b32.xlu0 %v7542, 22
        %v7596 = vpop.permute.xlu0 %7595
        %7597 = vrot.lane.b32.xlu0 %v7546, 22
        %v7598 = vpop.permute.xlu0 %7597
        %7599 = vrot.lane.b32.xlu0 %v7550, 22
        %v7600 = vpop.permute.xlu0 %7599
        %7601 = vrot.lane.b32.xlu0 %v7554, 22
        %v7602 = vpop.permute.xlu0 %7601
        %7603 = vrot.lane.b32.xlu0 %v7558, 22
        %v7604 = vpop.permute.xlu0 %7603
        %7605 = vrot.lane.b32.xlu0 %v7562, 22
        %v7606 = vpop.permute.xlu0 %7605
        %7607 = vrot.lane.b32.xlu0 %v7566, 22
        %v7608 = vpop.permute.xlu0 %7607
        %7609 = vrot.lane.b32.xlu0 %v7570, 22
        %v7610 = vpop.permute.xlu0 %7609
        %7611 = vrot.lane.b32.xlu0 %v7574, 22
        %v7612 = vpop.permute.xlu0 %7611
        %7613 = vrot.lane.b32.xlu0 %v7578, 22
        %v7614 = vpop.permute.xlu0 %7613
        %7615 = vrot.lane.b32.xlu0 %v7582, 22
        %v7616 = vpop.permute.xlu0 %7615
        %7617 = vrot.lane.b32.xlu0 %v7586, 22
        %v7618 = vpop.permute.xlu0 %7617
        %vm7619 = vcmask 179200
        %v7620 = vsel %vm7619, %v7588, %v7590
        %v7621 = vsel %vm7619, %v7592, %v7594
        %v7622 = vsel %vm7619, %v7596, %v7598
        %v7623 = vsel %vm7619, %v7600, %v7602
        %v7624 = vsel %vm7619, %v7604, %v7606
        %v7625 = vsel %vm7619, %v7608, %v7610
        %v7626 = vsel %vm7619, %v7612, %v7614
        %v7627 = vsel %vm7619, %v7616, %v7618
        %7636 = vst.msk [vmem:[%s296 + $0x9] sm:$0x1] %vm7093, %v7620
        %7637 = vst.msk [vmem:[%s296 + $0x21] sm:$0x1] %vm7093, %v7621
        %7638 = vst.msk [vmem:[%s296 + $0x39] sm:$0x1] %vm7093, %v7622
        %7639 = vst.msk [vmem:[%s296 + $0x51] sm:$0x1] %vm7093, %v7623
        %7640 = vst.msk [vmem:[%s296 + $0x69] sm:$0x1] %vm7093, %v7624
        %7641 = vst.msk [vmem:[%s296 + $0x81] sm:$0x1] %vm7093, %v7625
        %7642 = vst.msk [vmem:[%s296 + $0x99] sm:$0x1] %vm7093, %v7626
        %7643 = vst.msk [vmem:[%s296 + $0xb1] sm:$0x1] %vm7093, %v7627
        %v7644 = vcombine.high %v7032, %v7032
        %v7646 = vunpack.c.l.s4 1966171168
        %v7647 = vunpack.c.0.s8 %v7646
        %v7648 = vlaneseq
        %v7649 = vshrl.u32 %v7648, 7
        %v7650 = vsub.s32 %v7647, %v7649
        %v7651 = vrot.slane %v7032, %v7650
        %v7653 = vunpack.c.l.s4 1966171168
        %v7654 = vunpack.c.0.s8 %v7653
        %v7655 = vlaneseq
        %v7656 = vshrl.u32 %v7655, 7
        %v7657 = vsub.s32 %v7654, %v7656
        %v7658 = vrot.slane %v7644, %v7657
        %v7659 = vcombine.high %v7651, %v7651
        %v7660 = vcombine.high %v7658, %v7658
        %v7662 = vunpack.c.l.s4 1966171168
        %v7663 = vunpack.c.0.s8 %v7662
        %v7664 = vlaneseq
        %v7665 = vshrl.u32 %v7664, 7
        %v7666 = vsub.s32 %v7663, %v7665
        %v7667 = vrot.slane %v7651, %v7666
        %v7669 = vunpack.c.l.s4 1966171168
        %v7670 = vunpack.c.0.s8 %v7669
        %v7671 = vlaneseq
        %v7672 = vshrl.u32 %v7671, 7
        %v7673 = vsub.s32 %v7670, %v7672
        %v7674 = vrot.slane %v7658, %v7673
        %v7676 = vunpack.c.l.s4 1966171168
        %v7677 = vunpack.c.0.s8 %v7676
        %v7678 = vlaneseq
        %v7679 = vshrl.u32 %v7678, 7
        %v7680 = vsub.s32 %v7677, %v7679
        %v7681 = vrot.slane %v7659, %v7680
        %v7683 = vunpack.c.l.s4 1966171168
        %v7684 = vunpack.c.0.s8 %v7683
        %v7685 = vlaneseq
        %v7686 = vshrl.u32 %v7685, 7
        %v7687 = vsub.s32 %v7684, %v7686
        %v7688 = vrot.slane %v7660, %v7687
        %v7689 = vcombine.high %v7667, %v7667
        %v7690 = vcombine.high %v7674, %v7674
        %v7691 = vcombine.high %v7681, %v7681
        %v7692 = vcombine.high %v7688, %v7688
        %v7693 = vlaneseq
        %v7694 = vshrl.u32 %v7693, 7
        %v7695 = vsub.s32 0, %v7694
        %v7696 = vrot.slane %v7667, %v7695
        %v7697 = vlaneseq
        %v7698 = vshrl.u32 %v7697, 7
        %v7699 = vsub.s32 0, %v7698
        %v7700 = vrot.slane %v7681, %v7699
        %v7701 = vlaneseq
        %v7702 = vshrl.u32 %v7701, 7
        %v7703 = vsub.s32 0, %v7702
        %v7704 = vrot.slane %v7689, %v7703
        %v7705 = vlaneseq
        %v7706 = vshrl.u32 %v7705, 7
        %v7707 = vsub.s32 0, %v7706
        %v7708 = vrot.slane %v7691, %v7707
        %v7709 = vlaneseq
        %v7710 = vshrl.u32 %v7709, 7
        %v7711 = vsub.s32 0, %v7710
        %v7712 = vrot.slane %v7674, %v7711
        %v7713 = vlaneseq
        %v7714 = vshrl.u32 %v7713, 7
        %v7715 = vsub.s32 0, %v7714
        %v7716 = vrot.slane %v7688, %v7715
        %v7717 = vlaneseq
        %v7718 = vshrl.u32 %v7717, 7
        %v7719 = vsub.s32 0, %v7718
        %v7720 = vrot.slane %v7690, %v7719
        %v7721 = vlaneseq
        %v7722 = vshrl.u32 %v7721, 7
        %v7723 = vsub.s32 0, %v7722
        %v7724 = vrot.slane %v7692, %v7723
        %7725 = vrot.lane.b32.xlu0 %v7696, 124
        %v7726 = vpop.permute.xlu0 %7725
        %7727 = vrot.lane.b32.xlu0 %v7700, 124
        %v7728 = vpop.permute.xlu0 %7727
        %7729 = vrot.lane.b32.xlu0 %v7704, 124
        %v7730 = vpop.permute.xlu0 %7729
        %7731 = vrot.lane.b32.xlu0 %v7708, 124
        %v7732 = vpop.permute.xlu0 %7731
        %7733 = vrot.lane.b32.xlu0 %v7712, 124
        %v7734 = vpop.permute.xlu0 %7733
        %7735 = vrot.lane.b32.xlu0 %v7716, 124
        %v7736 = vpop.permute.xlu0 %7735
        %7737 = vrot.lane.b32.xlu0 %v7720, 124
        %v7738 = vpop.permute.xlu0 %7737
        %7739 = vrot.lane.b32.xlu0 %v7724, 124
        %v7740 = vpop.permute.xlu0 %7739
        %7749 = vst.msk [vmem:[%s296 + $0xa] sm:$0x1] %vm7093, %v7726
        %7750 = vst.msk [vmem:[%s296 + $0x22] sm:$0x1] %vm7093, %v7728
        %7751 = vst.msk [vmem:[%s296 + $0x3a] sm:$0x1] %vm7093, %v7730
        %7752 = vst.msk [vmem:[%s296 + $0x52] sm:$0x1] %vm7093, %v7732
        %7753 = vst.msk [vmem:[%s296 + $0x6a] sm:$0x1] %vm7093, %v7734
        %7754 = vst.msk [vmem:[%s296 + $0x82] sm:$0x1] %vm7093, %v7736
        %7755 = vst.msk [vmem:[%s296 + $0x9a] sm:$0x1] %vm7093, %v7738
        %7756 = vst.msk [vmem:[%s296 + $0xb2] sm:$0x1] %vm7093, %v7740
        %7757 = vrot.lane.b32.xlu0 %v7696, 98
        %v7758 = vpop.permute.xlu0 %7757
        %7759 = vrot.lane.b32.xlu0 %v7700, 98
        %v7760 = vpop.permute.xlu0 %7759
        %7761 = vrot.lane.b32.xlu0 %v7704, 98
        %v7762 = vpop.permute.xlu0 %7761
        %7763 = vrot.lane.b32.xlu0 %v7708, 98
        %v7764 = vpop.permute.xlu0 %7763
        %7765 = vrot.lane.b32.xlu0 %v7712, 98
        %v7766 = vpop.permute.xlu0 %7765
        %7767 = vrot.lane.b32.xlu0 %v7716, 98
        %v7768 = vpop.permute.xlu0 %7767
        %7769 = vrot.lane.b32.xlu0 %v7720, 98
        %v7770 = vpop.permute.xlu0 %7769
        %7771 = vrot.lane.b32.xlu0 %v7724, 98
        %v7772 = vpop.permute.xlu0 %7771
        %7781 = vst.msk [vmem:[%s296 + $0xb] sm:$0x1] %vm7093, %v7758
        %7782 = vst.msk [vmem:[%s296 + $0x23] sm:$0x1] %vm7093, %v7760
        %7783 = vst.msk [vmem:[%s296 + $0x3b] sm:$0x1] %vm7093, %v7762
        %7784 = vst.msk [vmem:[%s296 + $0x53] sm:$0x1] %vm7093, %v7764
        %7785 = vst.msk [vmem:[%s296 + $0x6b] sm:$0x1] %vm7093, %v7766
        %7786 = vst.msk [vmem:[%s296 + $0x83] sm:$0x1] %vm7093, %v7768
        %7787 = vst.msk [vmem:[%s296 + $0x9b] sm:$0x1] %vm7093, %v7770
        %7788 = vst.msk [vmem:[%s296 + $0xb3] sm:$0x1] %vm7093, %v7772
        %7789 = vrot.lane.b32.xlu0 %v7696, 72
        %v7790 = vpop.permute.xlu0 %7789
        %7791 = vrot.lane.b32.xlu0 %v7700, 72
        %v7792 = vpop.permute.xlu0 %7791
        %7793 = vrot.lane.b32.xlu0 %v7704, 72
        %v7794 = vpop.permute.xlu0 %7793
        %7795 = vrot.lane.b32.xlu0 %v7708, 72
        %v7796 = vpop.permute.xlu0 %7795
        %7797 = vrot.lane.b32.xlu0 %v7712, 72
        %v7798 = vpop.permute.xlu0 %7797
        %7799 = vrot.lane.b32.xlu0 %v7716, 72
        %v7800 = vpop.permute.xlu0 %7799
        %7801 = vrot.lane.b32.xlu0 %v7720, 72
        %v7802 = vpop.permute.xlu0 %7801
        %7803 = vrot.lane.b32.xlu0 %v7724, 72
        %v7804 = vpop.permute.xlu0 %7803
        %7813 = vst.msk [vmem:[%s296 + $0xc] sm:$0x1] %vm7093, %v7790
        %7814 = vst.msk [vmem:[%s296 + $0x24] sm:$0x1] %vm7093, %v7792
        %7815 = vst.msk [vmem:[%s296 + $0x3c] sm:$0x1] %vm7093, %v7794
        %7816 = vst.msk [vmem:[%s296 + $0x54] sm:$0x1] %vm7093, %v7796
        %7817 = vst.msk [vmem:[%s296 + $0x6c] sm:$0x1] %vm7093, %v7798
        %7818 = vst.msk [vmem:[%s296 + $0x84] sm:$0x1] %vm7093, %v7800
        %7819 = vst.msk [vmem:[%s296 + $0x9c] sm:$0x1] %vm7093, %v7802
        %7820 = vst.msk [vmem:[%s296 + $0xb4] sm:$0x1] %vm7093, %v7804
        %7821 = vrot.lane.b32.xlu0 %v7696, 46
        %v7822 = vpop.permute.xlu0 %7821
        %7823 = vrot.lane.b32.xlu0 %v7700, 46
        %v7824 = vpop.permute.xlu0 %7823
        %7825 = vrot.lane.b32.xlu0 %v7704, 46
        %v7826 = vpop.permute.xlu0 %7825
        %7827 = vrot.lane.b32.xlu0 %v7708, 46
        %v7828 = vpop.permute.xlu0 %7827
        %7829 = vrot.lane.b32.xlu0 %v7712, 46
        %v7830 = vpop.permute.xlu0 %7829
        %7831 = vrot.lane.b32.xlu0 %v7716, 46
        %v7832 = vpop.permute.xlu0 %7831
        %7833 = vrot.lane.b32.xlu0 %v7720, 46
        %v7834 = vpop.permute.xlu0 %7833
        %7835 = vrot.lane.b32.xlu0 %v7724, 46
        %v7836 = vpop.permute.xlu0 %7835
        %7845 = vst.msk [vmem:[%s296 + $0xd] sm:$0x1] %vm7093, %v7822
        %7846 = vst.msk [vmem:[%s296 + $0x25] sm:$0x1] %vm7093, %v7824
        %7847 = vst.msk [vmem:[%s296 + $0x3d] sm:$0x1] %vm7093, %v7826
        %7848 = vst.msk [vmem:[%s296 + $0x55] sm:$0x1] %vm7093, %v7828
        %7849 = vst.msk [vmem:[%s296 + $0x6d] sm:$0x1] %vm7093, %v7830
        %7850 = vst.msk [vmem:[%s296 + $0x85] sm:$0x1] %vm7093, %v7832
        %7851 = vst.msk [vmem:[%s296 + $0x9d] sm:$0x1] %vm7093, %v7834
        %7852 = vst.msk [vmem:[%s296 + $0xb5] sm:$0x1] %vm7093, %v7836
        %v7854 = vcombine.low %v7032, %v7033
        %v7855 = vcombine.high %v7032, %v7033
        %v7857 = vunpack.c.l.s4 1966171168
        %v7858 = vunpack.c.0.s8 %v7857
        %v7859 = vlaneseq
        %v7860 = vshrl.u32 %v7859, 7
        %v7861 = vsub.s32 %v7858, %v7860
        %v7862 = vrot.slane %v7854, %v7861
        %v7864 = vunpack.c.l.s4 1966171168
        %v7865 = vunpack.c.0.s8 %v7864
        %v7866 = vlaneseq
        %v7867 = vshrl.u32 %v7866, 7
        %v7868 = vsub.s32 %v7865, %v7867
        %v7869 = vrot.slane %v7855, %v7868
        %v7870 = vcombine.high %v7862, %v7862
        %v7871 = vcombine.high %v7869, %v7869
        %v7873 = vunpack.c.l.s4 1966171168
        %v7874 = vunpack.c.0.s8 %v7873
        %v7875 = vlaneseq
        %v7876 = vshrl.u32 %v7875, 7
        %v7877 = vsub.s32 %v7874, %v7876
        %v7878 = vrot.slane %v7862, %v7877
        %v7880 = vunpack.c.l.s4 1966171168
        %v7881 = vunpack.c.0.s8 %v7880
        %v7882 = vlaneseq
        %v7883 = vshrl.u32 %v7882, 7
        %v7884 = vsub.s32 %v7881, %v7883
        %v7885 = vrot.slane %v7869, %v7884
        %v7887 = vunpack.c.l.s4 1966171168
        %v7888 = vunpack.c.0.s8 %v7887
        %v7889 = vlaneseq
        %v7890 = vshrl.u32 %v7889, 7
        %v7891 = vsub.s32 %v7888, %v7890
        %v7892 = vrot.slane %v7870, %v7891
        %v7894 = vunpack.c.l.s4 1966171168
        %v7895 = vunpack.c.0.s8 %v7894
        %v7896 = vlaneseq
        %v7897 = vshrl.u32 %v7896, 7
        %v7898 = vsub.s32 %v7895, %v7897
        %v7899 = vrot.slane %v7871, %v7898
        %v7900 = vcombine.high %v7878, %v7878
        %v7901 = vcombine.high %v7885, %v7885
        %v7902 = vcombine.high %v7892, %v7892
        %v7903 = vcombine.high %v7899, %v7899
        %v7904 = vlaneseq
        %v7905 = vshrl.u32 %v7904, 7
        %v7906 = vsub.s32 0, %v7905
        %v7907 = vrot.slane %v7878, %v7906
        %v7908 = vlaneseq
        %v7909 = vshrl.u32 %v7908, 7
        %v7910 = vsub.s32 1, %v7909
        %v7911 = vrot.slane %v7878, %v7910
        %v7912 = vlaneseq
        %v7913 = vshrl.u32 %v7912, 7
        %v7914 = vsub.s32 0, %v7913
        %v7915 = vrot.slane %v7892, %v7914
        %v7916 = vlaneseq
        %v7917 = vshrl.u32 %v7916, 7
        %v7918 = vsub.s32 1, %v7917
        %v7919 = vrot.slane %v7892, %v7918
        %v7920 = vlaneseq
        %v7921 = vshrl.u32 %v7920, 7
        %v7922 = vsub.s32 0, %v7921
        %v7923 = vrot.slane %v7900, %v7922
        %v7924 = vlaneseq
        %v7925 = vshrl.u32 %v7924, 7
        %v7926 = vsub.s32 1, %v7925
        %v7927 = vrot.slane %v7900, %v7926
        %v7928 = vlaneseq
        %v7929 = vshrl.u32 %v7928, 7
        %v7930 = vsub.s32 0, %v7929
        %v7931 = vrot.slane %v7902, %v7930
        %v7932 = vlaneseq
        %v7933 = vshrl.u32 %v7932, 7
        %v7934 = vsub.s32 1, %v7933
        %v7935 = vrot.slane %v7902, %v7934
        %v7936 = vlaneseq
        %v7937 = vshrl.u32 %v7936, 7
        %v7938 = vsub.s32 0, %v7937
        %v7939 = vrot.slane %v7885, %v7938
        %v7940 = vlaneseq
        %v7941 = vshrl.u32 %v7940, 7
        %v7942 = vsub.s32 1, %v7941
        %v7943 = vrot.slane %v7885, %v7942
        %v7944 = vlaneseq
        %v7945 = vshrl.u32 %v7944, 7
        %v7946 = vsub.s32 0, %v7945
        %v7947 = vrot.slane %v7899, %v7946
        %v7948 = vlaneseq
        %v7949 = vshrl.u32 %v7948, 7
        %v7950 = vsub.s32 1, %v7949
        %v7951 = vrot.slane %v7899, %v7950
        %v7952 = vlaneseq
        %v7953 = vshrl.u32 %v7952, 7
        %v7954 = vsub.s32 0, %v7953
        %v7955 = vrot.slane %v7901, %v7954
        %v7956 = vlaneseq
        %v7957 = vshrl.u32 %v7956, 7
        %v7958 = vsub.s32 1, %v7957
        %v7959 = vrot.slane %v7901, %v7958
        %v7960 = vlaneseq
        %v7961 = vshrl.u32 %v7960, 7
        %v7962 = vsub.s32 0, %v7961
        %v7963 = vrot.slane %v7903, %v7962
        %v7964 = vlaneseq
        %v7965 = vshrl.u32 %v7964, 7
        %v7966 = vsub.s32 1, %v7965
        %v7967 = vrot.slane %v7903, %v7966
        %7968 = vrot.lane.b32.xlu0 %v7907, 20
        %v7969 = vpop.permute.xlu0 %7968
        %7970 = vrot.lane.b32.xlu0 %v7911, 20
        %v7971 = vpop.permute.xlu0 %7970
        %7972 = vrot.lane.b32.xlu0 %v7915, 20
        %v7973 = vpop.permute.xlu0 %7972
        %7974 = vrot.lane.b32.xlu0 %v7919, 20
        %v7975 = vpop.permute.xlu0 %7974
        %7976 = vrot.lane.b32.xlu0 %v7923, 20
        %v7977 = vpop.permute.xlu0 %7976
        %7978 = vrot.lane.b32.xlu0 %v7927, 20
        %v7979 = vpop.permute.xlu0 %7978
        %7980 = vrot.lane.b32.xlu0 %v7931, 20
        %v7981 = vpop.permute.xlu0 %7980
        %7982 = vrot.lane.b32.xlu0 %v7935, 20
        %v7983 = vpop.permute.xlu0 %7982
        %7984 = vrot.lane.b32.xlu0 %v7939, 20
        %v7985 = vpop.permute.xlu0 %7984
        %7986 = vrot.lane.b32.xlu0 %v7943, 20
        %v7987 = vpop.permute.xlu0 %7986
        %7988 = vrot.lane.b32.xlu0 %v7947, 20
        %v7989 = vpop.permute.xlu0 %7988
        %7990 = vrot.lane.b32.xlu0 %v7951, 20
        %v7991 = vpop.permute.xlu0 %7990
        %7992 = vrot.lane.b32.xlu0 %v7955, 20
        %v7993 = vpop.permute.xlu0 %7992
        %7994 = vrot.lane.b32.xlu0 %v7959, 20
        %v7995 = vpop.permute.xlu0 %7994
        %7996 = vrot.lane.b32.xlu0 %v7963, 20
        %v7997 = vpop.permute.xlu0 %7996
        %7998 = vrot.lane.b32.xlu0 %v7967, 20
        %v7999 = vpop.permute.xlu0 %7998
        %vm8000 = vcmask 162816
        %v8001 = vsel %vm8000, %v7969, %v7971
        %v8002 = vsel %vm8000, %v7973, %v7975
        %v8003 = vsel %vm8000, %v7977, %v7979
        %v8004 = vsel %vm8000, %v7981, %v7983
        %v8005 = vsel %vm8000, %v7985, %v7987
        %v8006 = vsel %vm8000, %v7989, %v7991
        %v8007 = vsel %vm8000, %v7993, %v7995
        %v8008 = vsel %vm8000, %v7997, %v7999
        %8017 = vst.msk [vmem:[%s296 + $0xe] sm:$0x1] %vm7093, %v8001
        %8018 = vst.msk [vmem:[%s296 + $0x26] sm:$0x1] %vm7093, %v8002
        %8019 = vst.msk [vmem:[%s296 + $0x3e] sm:$0x1] %vm7093, %v8003
        %8020 = vst.msk [vmem:[%s296 + $0x56] sm:$0x1] %vm7093, %v8004
        %8021 = vst.msk [vmem:[%s296 + $0x6e] sm:$0x1] %vm7093, %v8005
        %8022 = vst.msk [vmem:[%s296 + $0x86] sm:$0x1] %vm7093, %v8006
        %8023 = vst.msk [vmem:[%s296 + $0x9e] sm:$0x1] %vm7093, %v8007
        %8024 = vst.msk [vmem:[%s296 + $0xb6] sm:$0x1] %vm7093, %v8008
        %v8025 = vcombine.high %v7033, %v7033
        %v8027 = vunpack.c.l.s4 1966171168
        %v8028 = vunpack.c.0.s8 %v8027
        %v8029 = vlaneseq
        %v8030 = vshrl.u32 %v8029, 7
        %v8031 = vsub.s32 %v8028, %v8030
        %v8032 = vrot.slane %v7033, %v8031
        %v8034 = vunpack.c.l.s4 1966171168
        %v8035 = vunpack.c.0.s8 %v8034
        %v8036 = vlaneseq
        %v8037 = vshrl.u32 %v8036, 7
        %v8038 = vsub.s32 %v8035, %v8037
        %v8039 = vrot.slane %v8025, %v8038
        %v8040 = vcombine.high %v8032, %v8032
        %v8041 = vcombine.high %v8039, %v8039
        %v8043 = vunpack.c.l.s4 1966171168
        %v8044 = vunpack.c.0.s8 %v8043
        %v8045 = vlaneseq
        %v8046 = vshrl.u32 %v8045, 7
        %v8047 = vsub.s32 %v8044, %v8046
        %v8048 = vrot.slane %v8032, %v8047
        %v8050 = vunpack.c.l.s4 1966171168
        %v8051 = vunpack.c.0.s8 %v8050
        %v8052 = vlaneseq
        %v8053 = vshrl.u32 %v8052, 7
        %v8054 = vsub.s32 %v8051, %v8053
        %v8055 = vrot.slane %v8039, %v8054
        %v8057 = vunpack.c.l.s4 1966171168
        %v8058 = vunpack.c.0.s8 %v8057
        %v8059 = vlaneseq
        %v8060 = vshrl.u32 %v8059, 7
        %v8061 = vsub.s32 %v8058, %v8060
        %v8062 = vrot.slane %v8040, %v8061
        %v8064 = vunpack.c.l.s4 1966171168
        %v8065 = vunpack.c.0.s8 %v8064
        %v8066 = vlaneseq
        %v8067 = vshrl.u32 %v8066, 7
        %v8068 = vsub.s32 %v8065, %v8067
        %v8069 = vrot.slane %v8041, %v8068
        %v8070 = vcombine.high %v8048, %v8048
        %v8071 = vcombine.high %v8055, %v8055
        %v8072 = vcombine.high %v8062, %v8062
        %v8073 = vcombine.high %v8069, %v8069
        %v8074 = vlaneseq
        %v8075 = vshrl.u32 %v8074, 7
        %v8076 = vsub.s32 0, %v8075
        %v8077 = vrot.slane %v8048, %v8076
        %v8078 = vlaneseq
        %v8079 = vshrl.u32 %v8078, 7
        %v8080 = vsub.s32 0, %v8079
        %v8081 = vrot.slane %v8062, %v8080
        %v8082 = vlaneseq
        %v8083 = vshrl.u32 %v8082, 7
        %v8084 = vsub.s32 0, %v8083
        %v8085 = vrot.slane %v8070, %v8084
        %v8086 = vlaneseq
        %v8087 = vshrl.u32 %v8086, 7
        %v8088 = vsub.s32 0, %v8087
        %v8089 = vrot.slane %v8072, %v8088
        %v8090 = vlaneseq
        %v8091 = vshrl.u32 %v8090, 7
        %v8092 = vsub.s32 0, %v8091
        %v8093 = vrot.slane %v8055, %v8092
        %v8094 = vlaneseq
        %v8095 = vshrl.u32 %v8094, 7
        %v8096 = vsub.s32 0, %v8095
        %v8097 = vrot.slane %v8069, %v8096
        %v8098 = vlaneseq
        %v8099 = vshrl.u32 %v8098, 7
        %v8100 = vsub.s32 0, %v8099
        %v8101 = vrot.slane %v8071, %v8100
        %v8102 = vlaneseq
        %v8103 = vshrl.u32 %v8102, 7
        %v8104 = vsub.s32 0, %v8103
        %v8105 = vrot.slane %v8073, %v8104
        %8106 = vrot.lane.b32.xlu0 %v8077, 122
        %v8107 = vpop.permute.xlu0 %8106
        %8108 = vrot.lane.b32.xlu0 %v8081, 122
        %v8109 = vpop.permute.xlu0 %8108
        %8110 = vrot.lane.b32.xlu0 %v8085, 122
        %v8111 = vpop.permute.xlu0 %8110
        %8112 = vrot.lane.b32.xlu0 %v8089, 122
        %v8113 = vpop.permute.xlu0 %8112
        %8114 = vrot.lane.b32.xlu0 %v8093, 122
        %v8115 = vpop.permute.xlu0 %8114
        %8116 = vrot.lane.b32.xlu0 %v8097, 122
        %v8117 = vpop.permute.xlu0 %8116
        %8118 = vrot.lane.b32.xlu0 %v8101, 122
        %v8119 = vpop.permute.xlu0 %8118
        %8120 = vrot.lane.b32.xlu0 %v8105, 122
        %v8121 = vpop.permute.xlu0 %8120
        %8130 = vst.msk [vmem:[%s296 + $0xf] sm:$0x1] %vm7093, %v8107
        %8131 = vst.msk [vmem:[%s296 + $0x27] sm:$0x1] %vm7093, %v8109
        %8132 = vst.msk [vmem:[%s296 + $0x3f] sm:$0x1] %vm7093, %v8111
        %8133 = vst.msk [vmem:[%s296 + $0x57] sm:$0x1] %vm7093, %v8113
        %8134 = vst.msk [vmem:[%s296 + $0x6f] sm:$0x1] %vm7093, %v8115
        %8135 = vst.msk [vmem:[%s296 + $0x87] sm:$0x1] %vm7093, %v8117
        %8136 = vst.msk [vmem:[%s296 + $0x9f] sm:$0x1] %vm7093, %v8119
        %8137 = vst.msk [vmem:[%s296 + $0xb7] sm:$0x1] %vm7093, %v8121
        %8138 = vrot.lane.b32.xlu0 %v8077, 96
        %v8139 = vpop.permute.xlu0 %8138
        %8140 = vrot.lane.b32.xlu0 %v8081, 96
        %v8141 = vpop.permute.xlu0 %8140
        %8142 = vrot.lane.b32.xlu0 %v8085, 96
        %v8143 = vpop.permute.xlu0 %8142
        %8144 = vrot.lane.b32.xlu0 %v8089, 96
        %v8145 = vpop.permute.xlu0 %8144
        %8146 = vrot.lane.b32.xlu0 %v8093, 96
        %v8147 = vpop.permute.xlu0 %8146
        %8148 = vrot.lane.b32.xlu0 %v8097, 96
        %v8149 = vpop.permute.xlu0 %8148
        %8150 = vrot.lane.b32.xlu0 %v8101, 96
        %v8151 = vpop.permute.xlu0 %8150
        %8152 = vrot.lane.b32.xlu0 %v8105, 96
        %v8153 = vpop.permute.xlu0 %8152
        %8162 = vst.msk [vmem:[%s296 + $0x10] sm:$0x1] %vm7093, %v8139
        %8163 = vst.msk [vmem:[%s296 + $0x28] sm:$0x1] %vm7093, %v8141
        %8164 = vst.msk [vmem:[%s296 + $0x40] sm:$0x1] %vm7093, %v8143
        %8165 = vst.msk [vmem:[%s296 + $0x58] sm:$0x1] %vm7093, %v8145
        %8166 = vst.msk [vmem:[%s296 + $0x70] sm:$0x1] %vm7093, %v8147
        %8167 = vst.msk [vmem:[%s296 + $0x88] sm:$0x1] %vm7093, %v8149
        %8168 = vst.msk [vmem:[%s296 + $0xa0] sm:$0x1] %vm7093, %v8151
        %8169 = vst.msk [vmem:[%s296 + $0xb8] sm:$0x1] %vm7093, %v8153
        %8170 = vrot.lane.b32.xlu0 %v8077, 70
        %v8171 = vpop.permute.xlu0 %8170
        %8172 = vrot.lane.b32.xlu0 %v8081, 70
        %v8173 = vpop.permute.xlu0 %8172
        %8174 = vrot.lane.b32.xlu0 %v8085, 70
        %v8175 = vpop.permute.xlu0 %8174
        %8176 = vrot.lane.b32.xlu0 %v8089, 70
        %v8177 = vpop.permute.xlu0 %8176
        %8178 = vrot.lane.b32.xlu0 %v8093, 70
        %v8179 = vpop.permute.xlu0 %8178
        %8180 = vrot.lane.b32.xlu0 %v8097, 70
        %v8181 = vpop.permute.xlu0 %8180
        %8182 = vrot.lane.b32.xlu0 %v8101, 70
        %v8183 = vpop.permute.xlu0 %8182
        %8184 = vrot.lane.b32.xlu0 %v8105, 70
        %v8185 = vpop.permute.xlu0 %8184
        %8194 = vst.msk [vmem:[%s296 + $0x11] sm:$0x1] %vm7093, %v8171
        %8195 = vst.msk [vmem:[%s296 + $0x29] sm:$0x1] %vm7093, %v8173
        %8196 = vst.msk [vmem:[%s296 + $0x41] sm:$0x1] %vm7093, %v8175
        %8197 = vst.msk [vmem:[%s296 + $0x59] sm:$0x1] %vm7093, %v8177
        %8198 = vst.msk [vmem:[%s296 + $0x71] sm:$0x1] %vm7093, %v8179
        %8199 = vst.msk [vmem:[%s296 + $0x89] sm:$0x1] %vm7093, %v8181
        %8200 = vst.msk [vmem:[%s296 + $0xa1] sm:$0x1] %vm7093, %v8183
        %8201 = vst.msk [vmem:[%s296 + $0xb9] sm:$0x1] %vm7093, %v8185
        %8202 = vrot.lane.b32.xlu0 %v8077, 44
        %v8203 = vpop.permute.xlu0 %8202
        %8204 = vrot.lane.b32.xlu0 %v8081, 44
        %v8205 = vpop.permute.xlu0 %8204
        %8206 = vrot.lane.b32.xlu0 %v8085, 44
        %v8207 = vpop.permute.xlu0 %8206
        %8208 = vrot.lane.b32.xlu0 %v8089, 44
        %v8209 = vpop.permute.xlu0 %8208
        %8210 = vrot.lane.b32.xlu0 %v8093, 44
        %v8211 = vpop.permute.xlu0 %8210
        %8212 = vrot.lane.b32.xlu0 %v8097, 44
        %v8213 = vpop.permute.xlu0 %8212
        %8214 = vrot.lane.b32.xlu0 %v8101, 44
        %v8215 = vpop.permute.xlu0 %8214
        %8216 = vrot.lane.b32.xlu0 %v8105, 44
        %v8217 = vpop.permute.xlu0 %8216
        %8226 = vst.msk [vmem:[%s296 + $0x12] sm:$0x1] %vm7093, %v8203
        %8227 = vst.msk [vmem:[%s296 + $0x2a] sm:$0x1] %vm7093, %v8205
        %8228 = vst.msk [vmem:[%s296 + $0x42] sm:$0x1] %vm7093, %v8207
        %8229 = vst.msk [vmem:[%s296 + $0x5a] sm:$0x1] %vm7093, %v8209
        %8230 = vst.msk [vmem:[%s296 + $0x72] sm:$0x1] %vm7093, %v8211
        %8231 = vst.msk [vmem:[%s296 + $0x8a] sm:$0x1] %vm7093, %v8213
        %8232 = vst.msk [vmem:[%s296 + $0xa2] sm:$0x1] %vm7093, %v8215
        %8233 = vst.msk [vmem:[%s296 + $0xba] sm:$0x1] %vm7093, %v8217
        %v8235 = vcombine.low %v7033, %v7034
        %v8236 = vcombine.high %v7033, %v7034
        %v8238 = vunpack.c.l.s4 1966171168
        %v8239 = vunpack.c.0.s8 %v8238
        %v8240 = vlaneseq
        %v8241 = vshrl.u32 %v8240, 7
        %v8242 = vsub.s32 %v8239, %v8241
        %v8243 = vrot.slane %v8235, %v8242
        %v8245 = vunpack.c.l.s4 1966171168
        %v8246 = vunpack.c.0.s8 %v8245
        %v8247 = vlaneseq
        %v8248 = vshrl.u32 %v8247, 7
        %v8249 = vsub.s32 %v8246, %v8248
        %v8250 = vrot.slane %v8236, %v8249
        %v8251 = vcombine.high %v8243, %v8243
        %v8252 = vcombine.high %v8250, %v8250
        %v8254 = vunpack.c.l.s4 1966171168
        %v8255 = vunpack.c.0.s8 %v8254
        %v8256 = vlaneseq
        %v8257 = vshrl.u32 %v8256, 7
        %v8258 = vsub.s32 %v8255, %v8257
        %v8259 = vrot.slane %v8243, %v8258
        %v8261 = vunpack.c.l.s4 1966171168
        %v8262 = vunpack.c.0.s8 %v8261
        %v8263 = vlaneseq
        %v8264 = vshrl.u32 %v8263, 7
        %v8265 = vsub.s32 %v8262, %v8264
        %v8266 = vrot.slane %v8250, %v8265
        %v8268 = vunpack.c.l.s4 1966171168
        %v8269 = vunpack.c.0.s8 %v8268
        %v8270 = vlaneseq
        %v8271 = vshrl.u32 %v8270, 7
        %v8272 = vsub.s32 %v8269, %v8271
        %v8273 = vrot.slane %v8251, %v8272
        %v8275 = vunpack.c.l.s4 1966171168
        %v8276 = vunpack.c.0.s8 %v8275
        %v8277 = vlaneseq
        %v8278 = vshrl.u32 %v8277, 7
        %v8279 = vsub.s32 %v8276, %v8278
        %v8280 = vrot.slane %v8252, %v8279
        %v8281 = vcombine.high %v8259, %v8259
        %v8282 = vcombine.high %v8266, %v8266
        %v8283 = vcombine.high %v8273, %v8273
        %v8284 = vcombine.high %v8280, %v8280
        %v8285 = vlaneseq
        %v8286 = vshrl.u32 %v8285, 7
        %v8287 = vsub.s32 0, %v8286
        %v8288 = vrot.slane %v8259, %v8287
        %v8289 = vlaneseq
        %v8290 = vshrl.u32 %v8289, 7
        %v8291 = vsub.s32 1, %v8290
        %v8292 = vrot.slane %v8259, %v8291
        %v8293 = vlaneseq
        %v8294 = vshrl.u32 %v8293, 7
        %v8295 = vsub.s32 0, %v8294
        %v8296 = vrot.slane %v8273, %v8295
        %v8297 = vlaneseq
        %v8298 = vshrl.u32 %v8297, 7
        %v8299 = vsub.s32 1, %v8298
        %v8300 = vrot.slane %v8273, %v8299
        %v8301 = vlaneseq
        %v8302 = vshrl.u32 %v8301, 7
        %v8303 = vsub.s32 0, %v8302
        %v8304 = vrot.slane %v8281, %v8303
        %v8305 = vlaneseq
        %v8306 = vshrl.u32 %v8305, 7
        %v8307 = vsub.s32 1, %v8306
        %v8308 = vrot.slane %v8281, %v8307
        %v8309 = vlaneseq
        %v8310 = vshrl.u32 %v8309, 7
        %v8311 = vsub.s32 0, %v8310
        %v8312 = vrot.slane %v8283, %v8311
        %v8313 = vlaneseq
        %v8314 = vshrl.u32 %v8313, 7
        %v8315 = vsub.s32 1, %v8314
        %v8316 = vrot.slane %v8283, %v8315
        %v8317 = vlaneseq
        %v8318 = vshrl.u32 %v8317, 7
        %v8319 = vsub.s32 0, %v8318
        %v8320 = vrot.slane %v8266, %v8319
        %v8321 = vlaneseq
        %v8322 = vshrl.u32 %v8321, 7
        %v8323 = vsub.s32 1, %v8322
        %v8324 = vrot.slane %v8266, %v8323
        %v8325 = vlaneseq
        %v8326 = vshrl.u32 %v8325, 7
        %v8327 = vsub.s32 0, %v8326
        %v8328 = vrot.slane %v8280, %v8327
        %v8329 = vlaneseq
        %v8330 = vshrl.u32 %v8329, 7
        %v8331 = vsub.s32 1, %v8330
        %v8332 = vrot.slane %v8280, %v8331
        %v8333 = vlaneseq
        %v8334 = vshrl.u32 %v8333, 7
        %v8335 = vsub.s32 0, %v8334
        %v8336 = vrot.slane %v8282, %v8335
        %v8337 = vlaneseq
        %v8338 = vshrl.u32 %v8337, 7
        %v8339 = vsub.s32 1, %v8338
        %v8340 = vrot.slane %v8282, %v8339
        %v8341 = vlaneseq
        %v8342 = vshrl.u32 %v8341, 7
        %v8343 = vsub.s32 0, %v8342
        %v8344 = vrot.slane %v8284, %v8343
        %v8345 = vlaneseq
        %v8346 = vshrl.u32 %v8345, 7
        %v8347 = vsub.s32 1, %v8346
        %v8348 = vrot.slane %v8284, %v8347
        %8349 = vrot.lane.b32.xlu0 %v8288, 18
        %v8350 = vpop.permute.xlu0 %8349
        %8351 = vrot.lane.b32.xlu0 %v8292, 18
        %v8352 = vpop.permute.xlu0 %8351
        %8353 = vrot.lane.b32.xlu0 %v8296, 18
        %v8354 = vpop.permute.xlu0 %8353
        %8355 = vrot.lane.b32.xlu0 %v8300, 18
        %v8356 = vpop.permute.xlu0 %8355
        %8357 = vrot.lane.b32.xlu0 %v8304, 18
        %v8358 = vpop.permute.xlu0 %8357
        %8359 = vrot.lane.b32.xlu0 %v8308, 18
        %v8360 = vpop.permute.xlu0 %8359
        %8361 = vrot.lane.b32.xlu0 %v8312, 18
        %v8362 = vpop.permute.xlu0 %8361
        %8363 = vrot.lane.b32.xlu0 %v8316, 18
        %v8364 = vpop.permute.xlu0 %8363
        %8365 = vrot.lane.b32.xlu0 %v8320, 18
        %v8366 = vpop.permute.xlu0 %8365
        %8367 = vrot.lane.b32.xlu0 %v8324, 18
        %v8368 = vpop.permute.xlu0 %8367
        %8369 = vrot.lane.b32.xlu0 %v8328, 18
        %v8370 = vpop.permute.xlu0 %8369
        %8371 = vrot.lane.b32.xlu0 %v8332, 18
        %v8372 = vpop.permute.xlu0 %8371
        %8373 = vrot.lane.b32.xlu0 %v8336, 18
        %v8374 = vpop.permute.xlu0 %8373
        %8375 = vrot.lane.b32.xlu0 %v8340, 18
        %v8376 = vpop.permute.xlu0 %8375
        %8377 = vrot.lane.b32.xlu0 %v8344, 18
        %v8378 = vpop.permute.xlu0 %8377
        %8379 = vrot.lane.b32.xlu0 %v8348, 18
        %v8380 = vpop.permute.xlu0 %8379
        %vm8381 = vcmask 146432
        %v8382 = vsel %vm8381, %v8350, %v8352
        %v8383 = vsel %vm8381, %v8354, %v8356
        %v8384 = vsel %vm8381, %v8358, %v8360
        %v8385 = vsel %vm8381, %v8362, %v8364
        %v8386 = vsel %vm8381, %v8366, %v8368
        %v8387 = vsel %vm8381, %v8370, %v8372
        %v8388 = vsel %vm8381, %v8374, %v8376
        %v8389 = vsel %vm8381, %v8378, %v8380
        %8398 = vst.msk [vmem:[%s296 + $0x13] sm:$0x1] %vm7093, %v8382
        %8399 = vst.msk [vmem:[%s296 + $0x2b] sm:$0x1] %vm7093, %v8383
        %8400 = vst.msk [vmem:[%s296 + $0x43] sm:$0x1] %vm7093, %v8384
        %8401 = vst.msk [vmem:[%s296 + $0x5b] sm:$0x1] %vm7093, %v8385
        %8402 = vst.msk [vmem:[%s296 + $0x73] sm:$0x1] %vm7093, %v8386
        %8403 = vst.msk [vmem:[%s296 + $0x8b] sm:$0x1] %vm7093, %v8387
        %8404 = vst.msk [vmem:[%s296 + $0xa3] sm:$0x1] %vm7093, %v8388
        %8405 = vst.msk [vmem:[%s296 + $0xbb] sm:$0x1] %vm7093, %v8389
        %v8406 = vcombine.high %v7034, %v7034
        %v8408 = vunpack.c.l.s4 1966171168
        %v8409 = vunpack.c.0.s8 %v8408
        %v8410 = vlaneseq
        %v8411 = vshrl.u32 %v8410, 7
        %v8412 = vsub.s32 %v8409, %v8411
        %v8413 = vrot.slane %v7034, %v8412
        %v8415 = vunpack.c.l.s4 1966171168
        %v8416 = vunpack.c.0.s8 %v8415
        %v8417 = vlaneseq
        %v8418 = vshrl.u32 %v8417, 7
        %v8419 = vsub.s32 %v8416, %v8418
        %v8420 = vrot.slane %v8406, %v8419
        %v8421 = vcombine.high %v8413, %v8413
        %v8422 = vcombine.high %v8420, %v8420
        %v8424 = vunpack.c.l.s4 1966171168
        %v8425 = vunpack.c.0.s8 %v8424
        %v8426 = vlaneseq
        %v8427 = vshrl.u32 %v8426, 7
        %v8428 = vsub.s32 %v8425, %v8427
        %v8429 = vrot.slane %v8413, %v8428
        %v8431 = vunpack.c.l.s4 1966171168
        %v8432 = vunpack.c.0.s8 %v8431
        %v8433 = vlaneseq
        %v8434 = vshrl.u32 %v8433, 7
        %v8435 = vsub.s32 %v8432, %v8434
        %v8436 = vrot.slane %v8420, %v8435
        %v8438 = vunpack.c.l.s4 1966171168
        %v8439 = vunpack.c.0.s8 %v8438
        %v8440 = vlaneseq
        %v8441 = vshrl.u32 %v8440, 7
        %v8442 = vsub.s32 %v8439, %v8441
        %v8443 = vrot.slane %v8421, %v8442
        %v8445 = vunpack.c.l.s4 1966171168
        %v8446 = vunpack.c.0.s8 %v8445
        %v8447 = vlaneseq
        %v8448 = vshrl.u32 %v8447, 7
        %v8449 = vsub.s32 %v8446, %v8448
        %v8450 = vrot.slane %v8422, %v8449
        %v8451 = vcombine.high %v8429, %v8429
        %v8452 = vcombine.high %v8436, %v8436
        %v8453 = vcombine.high %v8443, %v8443
        %v8454 = vcombine.high %v8450, %v8450
        %v8455 = vlaneseq
        %v8456 = vshrl.u32 %v8455, 7
        %v8457 = vsub.s32 0, %v8456
        %v8458 = vrot.slane %v8429, %v8457
        %v8459 = vlaneseq
        %v8460 = vshrl.u32 %v8459, 7
        %v8461 = vsub.s32 0, %v8460
        %v8462 = vrot.slane %v8443, %v8461
        %v8463 = vlaneseq
        %v8464 = vshrl.u32 %v8463, 7
        %v8465 = vsub.s32 0, %v8464
        %v8466 = vrot.slane %v8451, %v8465
        %v8467 = vlaneseq
        %v8468 = vshrl.u32 %v8467, 7
        %v8469 = vsub.s32 0, %v8468
        %v8470 = vrot.slane %v8453, %v8469
        %v8471 = vlaneseq
        %v8472 = vshrl.u32 %v8471, 7
        %v8473 = vsub.s32 0, %v8472
        %v8474 = vrot.slane %v8436, %v8473
        %v8475 = vlaneseq
        %v8476 = vshrl.u32 %v8475, 7
        %v8477 = vsub.s32 0, %v8476
        %v8478 = vrot.slane %v8450, %v8477
        %v8479 = vlaneseq
        %v8480 = vshrl.u32 %v8479, 7
        %v8481 = vsub.s32 0, %v8480
        %v8482 = vrot.slane %v8452, %v8481
        %v8483 = vlaneseq
        %v8484 = vshrl.u32 %v8483, 7
        %v8485 = vsub.s32 0, %v8484
        %v8486 = vrot.slane %v8454, %v8485
        %8487 = vrot.lane.b32.xlu0 %v8458, 120
        %v8488 = vpop.permute.xlu0 %8487
        %8489 = vrot.lane.b32.xlu0 %v8462, 120
        %v8490 = vpop.permute.xlu0 %8489
        %8491 = vrot.lane.b32.xlu0 %v8466, 120
        %v8492 = vpop.permute.xlu0 %8491
        %8493 = vrot.lane.b32.xlu0 %v8470, 120
        %v8494 = vpop.permute.xlu0 %8493
        %8495 = vrot.lane.b32.xlu0 %v8474, 120
        %v8496 = vpop.permute.xlu0 %8495
        %8497 = vrot.lane.b32.xlu0 %v8478, 120
        %v8498 = vpop.permute.xlu0 %8497
        %8499 = vrot.lane.b32.xlu0 %v8482, 120
        %v8500 = vpop.permute.xlu0 %8499
        %8501 = vrot.lane.b32.xlu0 %v8486, 120
        %v8502 = vpop.permute.xlu0 %8501
        %8511 = vst.msk [vmem:[%s296 + $0x14] sm:$0x1] %vm7093, %v8488
        %8512 = vst.msk [vmem:[%s296 + $0x2c] sm:$0x1] %vm7093, %v8490
        %8513 = vst.msk [vmem:[%s296 + $0x44] sm:$0x1] %vm7093, %v8492
        %8514 = vst.msk [vmem:[%s296 + $0x5c] sm:$0x1] %vm7093, %v8494
        %8515 = vst.msk [vmem:[%s296 + $0x74] sm:$0x1] %vm7093, %v8496
        %8516 = vst.msk [vmem:[%s296 + $0x8c] sm:$0x1] %vm7093, %v8498
        %8517 = vst.msk [vmem:[%s296 + $0xa4] sm:$0x1] %vm7093, %v8500
        %8518 = vst.msk [vmem:[%s296 + $0xbc] sm:$0x1] %vm7093, %v8502
        %8519 = vrot.lane.b32.xlu0 %v8458, 94
        %v8520 = vpop.permute.xlu0 %8519
        %8521 = vrot.lane.b32.xlu0 %v8462, 94
        %v8522 = vpop.permute.xlu0 %8521
        %8523 = vrot.lane.b32.xlu0 %v8466, 94
        %v8524 = vpop.permute.xlu0 %8523
        %8525 = vrot.lane.b32.xlu0 %v8470, 94
        %v8526 = vpop.permute.xlu0 %8525
        %8527 = vrot.lane.b32.xlu0 %v8474, 94
        %v8528 = vpop.permute.xlu0 %8527
        %8529 = vrot.lane.b32.xlu0 %v8478, 94
        %v8530 = vpop.permute.xlu0 %8529
        %8531 = vrot.lane.b32.xlu0 %v8482, 94
        %v8532 = vpop.permute.xlu0 %8531
        %8533 = vrot.lane.b32.xlu0 %v8486, 94
        %v8534 = vpop.permute.xlu0 %8533
        %8543 = vst.msk [vmem:[%s296 + $0x15] sm:$0x1] %vm7093, %v8520
        %8544 = vst.msk [vmem:[%s296 + $0x2d] sm:$0x1] %vm7093, %v8522
        %8545 = vst.msk [vmem:[%s296 + $0x45] sm:$0x1] %vm7093, %v8524
        %8546 = vst.msk [vmem:[%s296 + $0x5d] sm:$0x1] %vm7093, %v8526
        %8547 = vst.msk [vmem:[%s296 + $0x75] sm:$0x1] %vm7093, %v8528
        %8548 = vst.msk [vmem:[%s296 + $0x8d] sm:$0x1] %vm7093, %v8530
        %8549 = vst.msk [vmem:[%s296 + $0xa5] sm:$0x1] %vm7093, %v8532
        %8550 = vst.msk [vmem:[%s296 + $0xbd] sm:$0x1] %vm7093, %v8534
        %8551 = vrot.lane.b32.xlu0 %v8458, 68
        %v8552 = vpop.permute.xlu0 %8551
        %8553 = vrot.lane.b32.xlu0 %v8462, 68
        %v8554 = vpop.permute.xlu0 %8553
        %8555 = vrot.lane.b32.xlu0 %v8466, 68
        %v8556 = vpop.permute.xlu0 %8555
        %8557 = vrot.lane.b32.xlu0 %v8470, 68
        %v8558 = vpop.permute.xlu0 %8557
        %8559 = vrot.lane.b32.xlu0 %v8474, 68
        %v8560 = vpop.permute.xlu0 %8559
        %8561 = vrot.lane.b32.xlu0 %v8478, 68
        %v8562 = vpop.permute.xlu0 %8561
        %8563 = vrot.lane.b32.xlu0 %v8482, 68
        %v8564 = vpop.permute.xlu0 %8563
        %8565 = vrot.lane.b32.xlu0 %v8486, 68
        %v8566 = vpop.permute.xlu0 %8565
        %8575 = vst.msk [vmem:[%s296 + $0x16] sm:$0x1] %vm7093, %v8552
        %8576 = vst.msk [vmem:[%s296 + $0x2e] sm:$0x1] %vm7093, %v8554
        %8577 = vst.msk [vmem:[%s296 + $0x46] sm:$0x1] %vm7093, %v8556
        %8578 = vst.msk [vmem:[%s296 + $0x5e] sm:$0x1] %vm7093, %v8558
        %8579 = vst.msk [vmem:[%s296 + $0x76] sm:$0x1] %vm7093, %v8560
        %8580 = vst.msk [vmem:[%s296 + $0x8e] sm:$0x1] %vm7093, %v8562
        %8581 = vst.msk [vmem:[%s296 + $0xa6] sm:$0x1] %vm7093, %v8564
        %8582 = vst.msk [vmem:[%s296 + $0xbe] sm:$0x1] %vm7093, %v8566
        %8583 = vrot.lane.b32.xlu0 %v8458, 42
        %v8584 = vpop.permute.xlu0 %8583
        %8585 = vrot.lane.b32.xlu0 %v8462, 42
        %v8586 = vpop.permute.xlu0 %8585
        %8587 = vrot.lane.b32.xlu0 %v8466, 42
        %v8588 = vpop.permute.xlu0 %8587
        %8589 = vrot.lane.b32.xlu0 %v8470, 42
        %v8590 = vpop.permute.xlu0 %8589
        %8591 = vrot.lane.b32.xlu0 %v8474, 42
        %v8592 = vpop.permute.xlu0 %8591
        %8593 = vrot.lane.b32.xlu0 %v8478, 42
        %v8594 = vpop.permute.xlu0 %8593
        %8595 = vrot.lane.b32.xlu0 %v8482, 42
        %v8596 = vpop.permute.xlu0 %8595
        %8597 = vrot.lane.b32.xlu0 %v8486, 42
        %v8598 = vpop.permute.xlu0 %8597
        %8607 = vst.msk [vmem:[%s296 + $0x17] sm:$0x1] %vm7093, %v8584
        %8608 = vst.msk [vmem:[%s296 + $0x2f] sm:$0x1] %vm7093, %v8586
        %8609 = vst.msk [vmem:[%s296 + $0x47] sm:$0x1] %vm7093, %v8588
        %8610 = vst.msk [vmem:[%s296 + $0x5f] sm:$0x1] %vm7093, %v8590
        %8611 = vst.msk [vmem:[%s296 + $0x77] sm:$0x1] %vm7093, %v8592
        %8612 = vst.msk [vmem:[%s296 + $0x8f] sm:$0x1] %vm7093, %v8594
        %8613 = vst.msk [vmem:[%s296 + $0xa7] sm:$0x1] %vm7093, %v8596
        %8614 = vst.msk [vmem:[%s296 + $0xbf] sm:$0x1] %vm7093, %v8598
        %s8615 = sand.u32 %s203, 1
        %s8616 = scalar_lea.sflag [#allocation5], %s8615
        %s8617 = sand.u32 %s203, 1
        %s8618 = smul.addr %s8617, 192
        %s8619 = scalar_lea.vmem [#allocation4], %s8618
        // Predicated region
        $region53: #{same_decoder.1} parent=51 // pred_check
          %p8620 = pneg %p213
        $region54: #{same_decoder.1} parent=51 // pred_check_branch
          %8622 = sbr.rel (%p8620) target = $region56
        $region55: #{same_decoder.1} parent=51 // pred_region
          %s8624 = ssub.s32 3072, 3072
          %8625 = vsyncadd %s8616, %s8624
          %s8626 = smul.addr %s22, 24
          %s8627 = smul.addr %s8626, 128
          %s8628 = scalar_lea.hbm %s8, %s8627
          %s8629 = sshll.u32 %s8619, 4
          %s8630 = int_to_ptr.vmem [resolvable:$true] %s8629
          %8635 = dma.vmem_to_hbm [thread:$0]  %s8630, 3072, %s8628, %s8616, 128, 128, 8
        $region56: #{same_decoder.1} parent=51 // pred_fallthru
          _
      $region52: #{same_decoder.1} parent=5 // pred_fallthru
        _
      %p8636 = scmp.le.s32.totalorder 2, %s17
      // Predicated region
      $region57: #{same_decoder.1} parent=5 // pred_check
        %p8637 = pneg %p8636
      $region58: #{same_decoder.1} parent=5 // pred_check_branch
        %8639 = sbr.rel (%p8637) target = $region60
      $region59: #{same_decoder.1} parent=5 // pred_region
        %s8640 = ssub.s32 %s17, 2
        // Predicated region
        $region61: #{same_decoder.1} parent=59 // pred_check
          %p8641 = pneg %p219
        $region62: #{same_decoder.1} parent=59 // pred_check_branch
          %8643 = sbr.rel (%p8641) target = $region64
        $region63: #{same_decoder.1} parent=59 // pred_region
          %s8644 = sand.u32 %s204, 1
          %s8645 = scalar_lea.sflag [#allocation5], %s8644
          %s8646 = sand.u32 %s204, 1
          %s8647 = smul.addr %s8646, 192
          %s8648 = scalar_lea.vmem [#allocation4], %s8647
          %8649 = dma.done %s8645, 3072
        $region64: #{same_decoder.1} parent=59 // pred_fallthru
          _
      $region60: #{same_decoder.1} parent=5 // pred_fallthru
        _
    $region6: #{same_decoder.1} parent=1 // loop_footer
      %s21 = sadd.s32 1, %s17
    $region7: #{same_decoder.1} parent=1 // loop_footer_branch
      %16 = sbr.rel target = $region3
    $region8: #{same_decoder.1} parent=1 // loop_exit
      _
    %8650 = vsyncpa [#allocation5], 1
    %s8651 = scalar_lea.sflag [#allocation5], 1
    %8652 = vsyncpa %s8651, 1

</llo_original>
